<compile_context>
chip_gen: v6e
topology: v6e:2x2x1
jax: 0.10.0
libtpu: 0.0.40
codegen_flags: <defaults>
</compile_context>

<pallas_src>
import functools

import jax
import jax.numpy as jnp
from jax.experimental import pallas as pl
from jax.experimental.pallas import tpu as pltpu


def _mha_kernel(x_ref, w_ref, b_ref, o_ref, *, seq_len, num_heads, key_dim, head_dim):
    """One batch-tile of tokens per grid step; all heads computed batched."""
    rows, C = x_ref.shape                       # rows = batch_tile * seq_len
    N, H, KD, HD = seq_len, num_heads, key_dim, head_dim
    bt = rows // N
    hkd = H * KD

    x = x_ref[...]                                                   # (rows, C)

    # Fused QKV projection: one lane-dense matmul (softmax scale pre-folded
    # into the Q columns / bias on the host).
    qkv = jnp.dot(x, w_ref[...], preferred_element_type=jnp.float32) + b_ref[...]  # (rows, 2*H*KD + H*HD)

    # Lane-tile-aligned column slices (H*KD == 128 for the default config),
    # then a single head-major relayout per tensor (replaces the old 8-way
    # per-head slice + concat).
    q = qkv[:, :hkd].reshape(bt, N, H, KD).transpose(0, 2, 1, 3).reshape(bt * H, N, KD)
    k = qkv[:, hkd:2 * hkd].reshape(bt, N, H, KD).transpose(0, 2, 1, 3).reshape(bt * H, N, KD)
    v = qkv[:, 2 * hkd:].reshape(bt, N, H, HD).transpose(0, 2, 1, 3).reshape(bt * H, N, HD)

    # Head-batched attention: one contraction / softmax / PV matmul for all
    # (batch, head) pairs.  'gnk,gmk->gnm' contracts the shared KD axis
    # directly (no materialized K transpose per head).
    s = jnp.einsum("gnk,gmk->gnm", q, k, preferred_element_type=jnp.float32)   # (bt*H, N, N)
    s = s - jnp.max(s, axis=-1, keepdims=True)
    p = jnp.exp(s)
    p = p / jnp.sum(p, axis=-1, keepdims=True)                                 # exact divide

    o = jnp.einsum("gnm,gmd->gnd", p, v, preferred_element_type=jnp.float32)   # (bt*H, N, HD)

    # Single contiguous store of the whole output slab for this grid step.
    o_ref[...] = o.reshape(bt, H, N, HD).transpose(0, 2, 1, 3).reshape(rows, H * HD)


def _default_batch_tile(batch):
    """v7x has 2 TensorCores/chip -> keep grid=(B,) so both cores get a batch
    element; single-TC chips (v5e/v6e) or unknown backends -> collapse the
    grid to a single step to kill per-step pipeline overhead."""
    try:
        kind = jax.devices()[0].device_kind.lower()
    except Exception:
        kind = ""
    if "v7" in kind and batch > 1:
        return 1
    return batch


def fuse_qkv_params(wq, wk, wv, bq, bk, bv, *, scale):
    """Per-head params -> fused (C, 2*H*KD + H*HD) weight and (1, ...) bias,
    with the softmax scale folded into the Q columns."""
    H, C, KD = wq.shape
    HD = wv.shape[-1]
    wq_f = (wq * scale).transpose(1, 0, 2).reshape(C, H * KD)
    wk_f = wk.transpose(1, 0, 2).reshape(C, H * KD)
    wv_f = wv.transpose(1, 0, 2).reshape(C, H * HD)
    w_fused = jnp.concatenate([wq_f, wk_f, wv_f], axis=1)            # (C, 2*H*KD + H*HD)

    bq_f = (bq * scale).reshape(H * KD)
    bk_f = bk.reshape(H * KD)
    bv_f = bv.reshape(H * HD)
    b_fused = jnp.concatenate([bq_f, bk_f, bv_f])[None, :]           # (1, 2*H*KD + H*HD)
    return w_fused, b_fused


def mha_forward(x, w_fused, b_fused, *, num_heads, key_dim, head_dim, batch_tile=None):
    """x: (B, N, C); w_fused: (C, 2*H*KD + H*HD); b_fused: (1, 2*H*KD + H*HD).
    Returns (B, N, H*HD)."""
    B, N, C = x.shape
    QKV = w_fused.shape[-1]
    OUT = num_heads * head_dim

    if batch_tile is None:
        batch_tile = _default_batch_tile(B)
    assert B % batch_tile == 0
    steps = B // batch_tile
    rows = batch_tile * N

    # Token-major 2-D slab: sublane-dense projection input, single-slab output.
    x2 = x.reshape(B * N, C)

    flops = 2 * B * N * C * QKV + 2 * B * num_heads * N * N * (key_dim + head_dim)
    transcendentals = B * num_heads * N * N
    bytes_accessed = 4 * (x2.size + w_fused.size + b_fused.size + B * N * OUT)

    out2 = pl.pallas_call(
        functools.partial(_mha_kernel, seq_len=N, num_heads=num_heads,
                          key_dim=key_dim, head_dim=head_dim),
        out_shape=jax.ShapeDtypeStruct((B * N, OUT), jnp.float32),
        grid_spec=pltpu.PrefetchScalarGridSpec(
            num_scalar_prefetch=0,
            grid=(steps,),
            in_specs=[
                pl.BlockSpec((rows, C), lambda b: (b, 0)),   # x tile for this step
                pl.BlockSpec((C, QKV), lambda b: (0, 0)),    # fused W: constant index -> resident
                pl.BlockSpec((1, QKV), lambda b: (0, 0)),    # fused bias: resident
            ],
            out_specs=pl.BlockSpec((rows, OUT), lambda b: (b, 0)),
        ),
        compiler_params=pltpu.CompilerParams(
            dimension_semantics=("parallel",)),
        cost_estimate=pl.CostEstimate(flops=flops,
                                      transcendentals=transcendentals,
                                      bytes_accessed=bytes_accessed),
    )(x2, w_fused, b_fused)

    return out2.reshape(B, N, OUT)


def reference_mha(x, wq, wk, wv, bq, bk, bv, *, scale):
    q = jnp.einsum("bnc,hck->bhnk", x, wq) + bq[None, :, :, :]
    k = jnp.einsum("bnc,hck->bhnk", x, wk) + bk[None, :, :, :]
    v = jnp.einsum("bnc,hcd->bhnd", x, wv) + bv[None, :, :, :]
    s = jnp.einsum("bhqk,bhmk->bhqm", q, k) * scale
    p = jax.nn.softmax(s, axis=-1)
    o = jnp.einsum("bhqm,bhmd->bhqd", p, v)
    B, H, N, HD = o.shape
    return o.transpose(0, 2, 1, 3).reshape(B, N, H * HD)


if __name__ == "__main__":
    # Module hyperparameters (small, consistent with __init__).
    in_channels = 32
    num_heads = 8
    key_ratio = 0.5
    patched_shape = (4, 4)

    head_dim = in_channels // num_heads            # 4
    key_dim = int(in_channels * key_ratio)         # 16
    scale = head_dim ** (-0.5)

    B = 2
    N = patched_shape[0] * patched_shape[1]        # 16
    C = in_channels

    key = jax.random.PRNGKey(0)
    kx, kw, kb = jax.random.split(key, 3)

    x = jax.random.normal(kx, (B, N, C), dtype=jnp.float32)

    # Deterministic init of the single qkv Linear: C -> num_heads*(2*key_dim + head_dim),
    # then split per head into q / k / v slices (PyTorch Linear layout: (out, in)).
    qkv_out = num_heads * (2 * key_dim + head_dim)
    w_qkv = jax.random.normal(kw, (qkv_out, C), dtype=jnp.float32) * 0.05
    b_qkv = jax.random.normal(kb, (qkv_out,), dtype=jnp.float32) * 0.05

    w_heads = w_qkv.reshape(num_heads, 2 * key_dim + head_dim, C)
    b_heads = b_qkv.reshape(num_heads, 2 * key_dim + head_dim)

    wq = w_heads[:, :key_dim, :].transpose(0, 2, 1)                      # (H, C, KD)
    wk = w_heads[:, key_dim:2 * key_dim, :].transpose(0, 2, 1)           # (H, C, KD)
    wv = w_heads[:, 2 * key_dim:, :].transpose(0, 2, 1)                  # (H, C, HD)
    bq = b_heads[:, :key_dim][:, None, :]                                # (H, 1, KD)
    bk = b_heads[:, key_dim:2 * key_dim][:, None, :]                     # (H, 1, KD)
    bv = b_heads[:, 2 * key_dim:][:, None, :]                            # (H, 1, HD)

    # Host-side fusion: one lane-dense weight slab, scale folded into Q columns.
    w_fused, b_fused = fuse_qkv_params(wq, wk, wv, bq, bk, bv, scale=scale)

    out = mha_forward(x, w_fused, b_fused,
                      num_heads=num_heads, key_dim=key_dim, head_dim=head_dim)
    out = jax.block_until_ready(out)

    ref = reference_mha(x, wq, wk, wv, bq, bk, bv, scale=scale)
    # The kernel genuinely returns (B, N, H*HD); H*HD == C only for this config.
    assert out.shape == (B, N, num_heads * head_dim), out.shape
    # Tolerance covers TPU default-precision f32 matmul passes (softmax is exact now).
    assert jnp.allclose(out, ref, atol=2e-3, rtol=2e-3), "mismatch vs reference"

    print("KERNEL_OK")
</pallas_src>

<mosaic_0001>
module attributes {stable_mosaic.version = 11 : i64} {
  func.func @_mha_kernel(%arg0: i32, %arg1: memref<32x32xf32, #tpu.memory_space<vmem>>, %arg2: memref<32x288xf32, #tpu.memory_space<vmem>>, %arg3: memref<1x288xf32, #tpu.memory_space<vmem>>, %arg4: memref<32x32xf32, #tpu.memory_space<vmem>>) attributes {dimension_semantics = [#tpu.dimension_semantics<parallel>], iteration_bounds = array<i64: 1>, scalar_prefetch = 0 : i64, scratch_operands = 0 : i64, tpu.core_type = #tpu.core_type<tc>, window_params = [{transform_indices = @transform_0, window_bounds = array<i64: 32, 32>}, {pipeline_mode = #tpu.pipeline_mode<synchronous>, transform_indices = @transform_1, window_bounds = array<i64: 32, 288>}, {pipeline_mode = #tpu.pipeline_mode<synchronous>, transform_indices = @transform_2, window_bounds = array<i64: 1, 288>}, {transform_indices = @transform_3, window_bounds = array<i64: 32, 32>}]} {
    %c0 = arith.constant 0 : index
    %c0_0 = arith.constant 0 : index
    %0 = vector.load %arg1[%c0, %c0_0] : memref<32x32xf32, #tpu.memory_space<vmem>>, vector<32x32xf32>
    %c0_1 = arith.constant 0 : index
    %c0_2 = arith.constant 0 : index
    %1 = vector.load %arg2[%c0_1, %c0_2] : memref<32x288xf32, #tpu.memory_space<vmem>>, vector<32x288xf32>
    %cst = arith.constant dense<0.000000e+00> : vector<32x288xf32>
    %2 = tpu.matmul %0, %1, %cst {dimension_numbers = #tpu.dot_dimension_numbers<[1], [0], [0], [1], [0, 0, 1, 1], [], []>} : vector<32x32xf32>, vector<32x288xf32>, vector<32x288xf32> -> vector<32x288xf32>
    %c0_3 = arith.constant 0 : index
    %c0_4 = arith.constant 0 : index
    %3 = vector.load %arg3[%c0_3, %c0_4] : memref<1x288xf32, #tpu.memory_space<vmem>>, vector<1x288xf32>
    %4 = vector.broadcast %3 : vector<1x288xf32> to vector<32x288xf32>
    %5 = arith.addf %2, %4 : vector<32x288xf32>
    %6 = vector.extract_strided_slice %5 {offsets = [0, 0], sizes = [32, 128], strides = [1, 1]} : vector<32x288xf32> to vector<32x128xf32>
    %7 = vector.shape_cast %6 : vector<32x128xf32> to vector<2x16x8x16xf32>
    %8 = tpu.transpose %7, [0, 2, 1, 3] : vector<2x16x8x16xf32> -> vector<2x8x16x16xf32>
    %9 = vector.shape_cast %8 : vector<2x8x16x16xf32> to vector<16x16x16xf32>
    %10 = vector.extract_strided_slice %5 {offsets = [0, 128], sizes = [32, 128], strides = [1, 1]} : vector<32x288xf32> to vector<32x128xf32>
    %11 = vector.shape_cast %10 : vector<32x128xf32> to vector<2x16x8x16xf32>
    %12 = tpu.transpose %11, [0, 2, 1, 3] : vector<2x16x8x16xf32> -> vector<2x8x16x16xf32>
    %13 = vector.shape_cast %12 : vector<2x8x16x16xf32> to vector<16x16x16xf32>
    %14 = vector.extract_strided_slice %5 {offsets = [0, 256], sizes = [32, 32], strides = [1, 1]} : vector<32x288xf32> to vector<32x32xf32>
    %15 = vector.shape_cast %14 : vector<32x32xf32> to vector<2x16x8x4xf32>
    %16 = tpu.transpose %15, [0, 2, 1, 3] : vector<2x16x8x4xf32> -> vector<2x8x16x4xf32>
    %17 = vector.shape_cast %16 : vector<2x8x16x4xf32> to vector<16x16x4xf32>
    "tpu.trace_start"() <{level = 10 : i32, message = "gnk,gmk->gnm"}> : () -> ()
    %cst_5 = arith.constant dense<0.000000e+00> : vector<16x16x16xf32>
    %18 = tpu.matmul %9, %13, %cst_5 {dimension_numbers = #tpu.dot_dimension_numbers<[2], [2], [1], [1], [0, 0, 0, 1, 1, 1], [0], [0]>} : vector<16x16x16xf32>, vector<16x16x16xf32>, vector<16x16x16xf32> -> vector<16x16x16xf32>
    "tpu.trace_stop"() : () -> ()
    %cst_6 = arith.constant dense<0xFF800000> : vector<16x16xf32>
    %19 = vector.multi_reduction <maximumf>, %18, %cst_6 [2] : vector<16x16x16xf32> to vector<16x16xf32>
    %20 = vector.shape_cast %19 : vector<16x16xf32> to vector<16x16x1xf32>
    %21 = vector.broadcast %20 : vector<16x16x1xf32> to vector<16x16x16xf32>
    %22 = arith.subf %18, %21 : vector<16x16x16xf32>
    %23 = math.exp %22 : vector<16x16x16xf32>
    %cst_7 = arith.constant dense<0.000000e+00> : vector<16x16xf32>
    %24 = vector.multi_reduction <add>, %23, %cst_7 [2] : vector<16x16x16xf32> to vector<16x16xf32>
    %25 = vector.shape_cast %24 : vector<16x16xf32> to vector<16x16x1xf32>
    %26 = vector.broadcast %25 : vector<16x16x1xf32> to vector<16x16x16xf32>
    %27 = arith.divf %23, %26 : vector<16x16x16xf32>
    "tpu.trace_start"() <{level = 10 : i32, message = "gnm,gmd->gnd"}> : () -> ()
    %cst_8 = arith.constant dense<0.000000e+00> : vector<16x16x4xf32>
    %28 = tpu.matmul %27, %17, %cst_8 {dimension_numbers = #tpu.dot_dimension_numbers<[2], [1], [1], [2], [0, 0, 0, 1, 1, 2], [0], [0]>} : vector<16x16x16xf32>, vector<16x16x4xf32>, vector<16x16x4xf32> -> vector<16x16x4xf32>
    "tpu.trace_stop"() : () -> ()
    %29 = vector.shape_cast %28 : vector<16x16x4xf32> to vector<2x8x16x4xf32>
    %30 = tpu.transpose %29, [0, 2, 1, 3] : vector<2x8x16x4xf32> -> vector<2x16x8x4xf32>
    %31 = vector.shape_cast %30 : vector<2x16x8x4xf32> to vector<32x32xf32>
    %c0_9 = arith.constant 0 : index
    %c0_10 = arith.constant 0 : index
    %32 = vector.load %arg4[%c0_9, %c0_10] : memref<32x32xf32, #tpu.memory_space<vmem>>, vector<32x32xf32>
    tpu.vector_store %arg4[%c0_9, %c0_10], %31 {strides = array<i32>} : memref<32x32xf32, #tpu.memory_space<vmem>>, vector<32x32xf32>,
    return
  }
  func.func @transform_0(%arg0: i32) -> (i32, i32) {
    %c0_i32 = arith.constant 0 : i32
    %c0_i32_0 = arith.constant 0 : i32
    return %arg0, %c0_i32 : i32, i32
  }
  func.func @transform_1(%arg0: i32) -> (i32, i32) {
    %c0_i32 = arith.constant 0 : i32
    %c0_i32_0 = arith.constant 0 : i32
    %c0_i32_1 = arith.constant 0 : i32
    return %c0_i32, %c0_i32_0 : i32, i32
  }
  func.func @transform_2(%arg0: i32) -> (i32, i32) {
    %c0_i32 = arith.constant 0 : i32
    %c0_i32_0 = arith.constant 0 : i32
    %c0_i32_1 = arith.constant 0 : i32
    return %c0_i32, %c0_i32_0 : i32, i32
  }
  func.func @transform_3(%arg0: i32) -> (i32, i32) {
    %c0_i32 = arith.constant 0 : i32
    %c0_i32_0 = arith.constant 0 : i32
    return %arg0, %c0_i32 : i32, i32
  }
}

</mosaic_0001>

<llo_original>
// kernel: tpu_custom_call.1
$region0: #{tpu_custom_call.1}
  #allocation0 [shape = 'u32[]', space=smem, size = 0x4, offset = 0x4, fixed_abs, tag = 'smem constant byte address 0x4 - core index']
  #allocation1 [shape = 'u32[144,128]{1,0:T(1,128)}', space=vmem, size = 0x12000, scoped, tag = 'internal scratch']
  %s0 = inlined_call_operand.hbm [shape: f32[32,32], index: 0, kind: input, shape index: {}]
  %s1 = inlined_call_operand.hbm [shape: f32[32,288], index: 1, kind: input, shape index: {}]
  %s2 = inlined_call_operand.vmem [shape: f32[1,288], index: 2, kind: input, shape index: {}]
  %s3 = inlined_call_operand.hbm [shape: f32[32,32], index: 3, kind: output, shape index: {}]
  %s4 = sld [smem:[#allocation0]]
  $region30: #{tpu_custom_call.1} parent=0
    _
  %s6 = ssub.s32 1, %s4
  %s7 = scalar_select 0, %s6, %s4
  $region1: #{tpu_custom_call.1} parent=0
    #allocation2 [shape = 'u8[16384]{0}', space=vmem, size = 0x4000, scoped, tag = 'input window, operand 0, single buffered']
    #allocation3 [shape = 's32[1]{0}', space=sflag, size = 0x4, scoped, tag = 'scoped memory for tpu_custom_call.1']
    #allocation4 [shape = 's32[1]{0}', space=sflag, size = 0x4, scoped, tag = 'scoped memory for tpu_custom_call.1']
    #allocation5 [shape = 'u8[49152]{0}', space=vmem, size = 0xc000, scoped, tag = 'input window, operand 1, single buffered']
    #allocation6 [shape = 's32[1]{0}', space=sflag, size = 0x4, scoped, tag = 'scoped memory for tpu_custom_call.1']
    #allocation7 [shape = 'u8[16384]{0}', space=vmem, size = 0x4000, scoped, tag = 'output window, operand 0, single buffered']
    %8 = vsyncpa [#allocation3], 0
    %9 = vsyncpa [#allocation6], 0
    %10 = vsyncpa [#allocation4], 0
    // Predicated region
    $region2: #{tpu_custom_call.1} parent=1 // pred_check
      _
    $region3: #{tpu_custom_call.1} parent=1 // pred_check_branch
      %12 = sbr.rel (0) target = $region5
    $region4: #{tpu_custom_call.1} parent=1 // pred_region
      %s14 = ssub.s32 512, 512
      %15 = vsyncadd [#allocation3], %s14
      %s16 = sshll.u32 [#allocation2], 4
      %s17 = int_to_ptr.vmem [resolvable:$true] %s16
      %22 = dma.hbm_to_vmem [thread:$0]  %s0, 512, %s17, [#allocation3], 128, 128, 8
    $region5: #{tpu_custom_call.1} parent=1 // pred_fallthru
      _
    // Predicated region
    $region6: #{tpu_custom_call.1} parent=1 // pred_check
      _
    $region7: #{tpu_custom_call.1} parent=1 // pred_check_branch
      %24 = sbr.rel (0) target = $region9
    $region8: #{tpu_custom_call.1} parent=1 // pred_region
      %s26 = ssub.s32 1536, 1536
      %27 = vsyncadd [#allocation6], %s26
      %s28 = sshll.u32 [#allocation5], 4
      %s29 = int_to_ptr.vmem [resolvable:$true] %s28
      %34 = dma.hbm_to_vmem [thread:$0]  %s1, 1536, %s29, [#allocation6], 384, 384, 24
    $region9: #{tpu_custom_call.1} parent=1 // pred_fallthru
      _
    // Predicated region
    $region10: #{tpu_custom_call.1} parent=1 // pred_check
      _
    $region11: #{tpu_custom_call.1} parent=1 // pred_check_branch
      %36 = sbr.rel (0) target = $region13
    $region12: #{tpu_custom_call.1} parent=1 // pred_region
      _
    $region13: #{tpu_custom_call.1} parent=1 // pred_fallthru
      _
    // Predicated region
    $region14: #{tpu_custom_call.1} parent=1 // pred_check
      _
    $region15: #{tpu_custom_call.1} parent=1 // pred_check_branch
      %38 = sbr.rel (0) target = $region17
    $region16: #{tpu_custom_call.1} parent=1 // pred_region
      %39 = dma.done [#allocation3], 512
    $region17: #{tpu_custom_call.1} parent=1 // pred_fallthru
      _
    // Predicated region
    $region18: #{tpu_custom_call.1} parent=1 // pred_check
      _
    $region19: #{tpu_custom_call.1} parent=1 // pred_check_branch
      %41 = sbr.rel (0) target = $region21
    $region20: #{tpu_custom_call.1} parent=1 // pred_region
      %42 = dma.done [#allocation6], 1536
    $region21: #{tpu_custom_call.1} parent=1 // pred_fallthru
      _
    %v43 = vld [vmem:[#allocation2] sm:$0xff]
    %v44 = vld [vmem:[#allocation2 + $0x8] sm:$0xff]
    %v45 = vld [vmem:[#allocation2 + $0x10] sm:$0xff]
    %v46 = vld [vmem:[#allocation2 + $0x18] sm:$0xff]
    %v47 = vld [vmem:[#allocation5] sm:$0xff]
    %v48 = vld [vmem:[#allocation5 + $0x8] sm:$0xff]
    %v49 = vld [vmem:[#allocation5 + $0x10] sm:$0xff]
    %v50 = vld [vmem:[#allocation5 + $0x18] sm:$0xff]
    %v51 = vld [vmem:[#allocation5 + $0x20] sm:$0xff]
    %v52 = vld [vmem:[#allocation5 + $0x28] sm:$0xff]
    %v53 = vld [vmem:[#allocation5 + $0x30] sm:$0xff]
    %v54 = vld [vmem:[#allocation5 + $0x38] sm:$0xff]
    %v55 = vld [vmem:[#allocation5 + $0x40] sm:$0xff]
    %v56 = vld [vmem:[#allocation5 + $0x48] sm:$0xff]
    %v57 = vld [vmem:[#allocation5 + $0x50] sm:$0xff]
    %v58 = vld [vmem:[#allocation5 + $0x58] sm:$0xff]
    %v59 = vld [vmem:[%s2] sm:$0x7]
    %v61 = vlaneseq
    %v62 = vshrl.u32 %v61, 7
    %v63 = vsub.s32 0, %v62
    %v64 = vrot.slane %v59, %v63
    %v65 = vlaneseq
    %v66 = vshrl.u32 %v65, 7
    %v67 = vsub.s32 1, %v66
    %v68 = vrot.slane %v59, %v67
    %v69 = vlaneseq
    %v70 = vshrl.u32 %v69, 7
    %v71 = vsub.s32 2, %v70
    %v72 = vrot.slane %v59, %v71
    %vm76 = vcmask 261120
    %v78 = vsel %vm76, %v43, 0
    %v81 = vsel %vm76, %v44, 0
    %v84 = vsel %vm76, %v45, 0
    %v87 = vsel %vm76, %v46, 0
    %89 = vmatprep.subr.mxu0 0.0
    %90 = vmatpush1.msra.mxu0 0.0
    %91 = vmatprep.subr.mxu0 0.0
    %92 = vmatpush1.msra.mxu0 0.0
    %93 = vmatprep.subr.mxu0 0.0
    %94 = vmatpush1.msra.mxu0 0.0
    %95 = vmatprep.subr.mxu0 0.0
    %96 = vmatpush1.msra.mxu0 0.0
    %97 = vmatprep.subr.mxu0 0.0
    %98 = vmatpush1.msra.mxu0 0.0
    %99 = vmatprep.subr.mxu0 0.0
    %100 = vmatpush1.msra.mxu0 0.0
    %101 = vmatprep.subr.mxu0 0.0
    %102 = vmatpush1.msra.mxu0 0.0
    %103 = vmatprep.subr.mxu0 0.0
    %104 = vmatpush1.msra.mxu0 0.0
    %105 = vmatprep.subr.mxu0 0.0
    %106 = vmatpush1.msra.mxu0 0.0
    %107 = vmatprep.subr.mxu0 0.0
    %108 = vmatpush1.msra.mxu0 0.0
    %109 = vmatprep.subr.mxu0 0.0
    %110 = vmatpush1.msra.mxu0 0.0
    %111 = vmatprep.subr.mxu0 0.0
    %112 = vmatpush1.msra.mxu0 0.0
    %113 = vmatprep.subr.mxu0 %v57
    %114 = vmatpush1.msra.mxu0 %v56
    %115 = vmatprep.subr.mxu0 %v54
    %116 = vmatpush1.msra.mxu0 %v53
    %117 = vmatprep.subr.mxu0 %v51
    %118 = vmatpush1.msra.mxu0 %v50
    %119 = vmatprep.subr.mxu0 %v48
    %120 = vmatpush1.msra.mxu0 %v47
    %121 = vmatprep.subr.mxu0 0.0
    %122 = vmatpush2.msra.mxu0 0.0
    %123 = vmatprep.subr.mxu0 0.0
    %124 = vmatpush2.msra.mxu0 0.0
    %125 = vmatprep.subr.mxu0 0.0
    %126 = vmatpush2.msra.mxu0 0.0
    %127 = vmatprep.subr.mxu0 0.0
    %128 = vmatpush2.msra.mxu0 0.0
    %129 = vmatprep.subr.mxu0 0.0
    %130 = vmatpush2.msra.mxu0 0.0
    %131 = vmatprep.subr.mxu0 0.0
    %132 = vmatpush2.msra.mxu0 0.0
    %133 = vmatprep.subr.mxu0 0.0
    %134 = vmatpush2.msra.mxu0 0.0
    %135 = vmatprep.subr.mxu0 0.0
    %136 = vmatpush2.msra.mxu0 0.0
    %137 = vmatprep.subr.mxu0 0.0
    %138 = vmatpush2.msra.mxu0 0.0
    %139 = vmatprep.subr.mxu0 0.0
    %140 = vmatpush2.msra.mxu0 0.0
    %141 = vmatprep.subr.mxu0 0.0
    %142 = vmatpush2.msra.mxu0 0.0
    %143 = vmatprep.subr.mxu0 0.0
    %144 = vmatpush2.msra.mxu0 0.0
    %145 = vmatprep.subr.mxu0 0.0
    %146 = vmatpush2.msra.mxu0 0.0
    %147 = vmatprep.subr.mxu0 0.0
    %148 = vmatpush2.msra.mxu0 0.0
    %149 = vmatprep.subr.mxu0 0.0
    %150 = vmatpush2.msra.mxu0 0.0
    %151 = vmatprep.subr.mxu0 0.0
    %152 = vmatpush2.msra.mxu0 0.0
    %153 = vmatprep.mubr.f32.mxu0 0.0
    %154 = vmatmul.mubr.f32.gmra.mxu0 %v78
    %v155 = vpop.f32.mrf.mxu0
    %v156 = vadd.f32 %v64, %v155
    %v157 = vpop.f32.mrf.mxu0
    %v158 = vadd.f32 %v68, %v157
    %159 = vmatprep.mubr.f32.mxu0 0.0
    %160 = vmatmul.mubr.f32.gmra.mxu0 %v81
    %v161 = vpop.f32.mrf.mxu0
    %v162 = vadd.f32 %v64, %v161
    %v163 = vpop.f32.mrf.mxu0
    %v164 = vadd.f32 %v68, %v163
    %165 = vmatprep.mubr.f32.mxu0 0.0
    %166 = vmatmul.mubr.f32.gmra.mxu0 %v84
    %v167 = vpop.f32.mrf.mxu0
    %v168 = vadd.f32 %v64, %v167
    %v169 = vpop.f32.mrf.mxu0
    %v170 = vadd.f32 %v68, %v169
    %171 = vmatprep.mubr.f32.mxu0 0.0
    %172 = vmatmul.mubr.f32.gmra.mxu0 %v87
    %v173 = vpop.f32.mrf.mxu0
    %v174 = vadd.f32 %v64, %v173
    %v175 = vpop.f32.mrf.mxu0
    %v176 = vadd.f32 %v68, %v175
    %177 = vdwg.mxu0
    %178 = vmatprep.subr.mxu0 0.0
    %179 = vmatpush1.msra.mxu0 0.0
    %180 = vmatprep.subr.mxu0 0.0
    %181 = vmatpush1.msra.mxu0 0.0
    %182 = vmatprep.subr.mxu0 0.0
    %183 = vmatpush1.msra.mxu0 0.0
    %184 = vmatprep.subr.mxu0 0.0
    %185 = vmatpush1.msra.mxu0 0.0
    %186 = vmatprep.subr.mxu0 0.0
    %187 = vmatpush1.msra.mxu0 0.0
    %188 = vmatprep.subr.mxu0 0.0
    %189 = vmatpush1.msra.mxu0 0.0
    %190 = vmatprep.subr.mxu0 0.0
    %191 = vmatpush1.msra.mxu0 0.0
    %192 = vmatprep.subr.mxu0 0.0
    %193 = vmatpush1.msra.mxu0 0.0
    %194 = vmatprep.subr.mxu0 0.0
    %195 = vmatpush1.msra.mxu0 0.0
    %196 = vmatprep.subr.mxu0 0.0
    %197 = vmatpush1.msra.mxu0 0.0
    %198 = vmatprep.subr.mxu0 0.0
    %199 = vmatpush1.msra.mxu0 0.0
    %200 = vmatprep.subr.mxu0 0.0
    %201 = vmatpush1.msra.mxu0 0.0
    %202 = vmatprep.subr.mxu0 0.0
    %203 = vmatpush1.msra.mxu0 %v58
    %204 = vmatprep.subr.mxu0 0.0
    %205 = vmatpush1.msra.mxu0 %v55
    %206 = vmatprep.subr.mxu0 0.0
    %207 = vmatpush1.msra.mxu0 %v52
    %208 = vmatprep.subr.mxu0 0.0
    %209 = vmatpush1.msra.mxu0 %v49
    %210 = vmatprep.subr.mxu0 0.0
    %211 = vmatpush2.msra.mxu0 0.0
    %212 = vmatprep.subr.mxu0 0.0
    %213 = vmatpush2.msra.mxu0 0.0
    %214 = vmatprep.subr.mxu0 0.0
    %215 = vmatpush2.msra.mxu0 0.0
    %216 = vmatprep.subr.mxu0 0.0
    %217 = vmatpush2.msra.mxu0 0.0
    %218 = vmatprep.subr.mxu0 0.0
    %219 = vmatpush2.msra.mxu0 0.0
    %220 = vmatprep.subr.mxu0 0.0
    %221 = vmatpush2.msra.mxu0 0.0
    %222 = vmatprep.subr.mxu0 0.0
    %223 = vmatpush2.msra.mxu0 0.0
    %224 = vmatprep.subr.mxu0 0.0
    %225 = vmatpush2.msra.mxu0 0.0
    %226 = vmatprep.subr.mxu0 0.0
    %227 = vmatpush2.msra.mxu0 0.0
    %228 = vmatprep.subr.mxu0 0.0
    %229 = vmatpush2.msra.mxu0 0.0
    %230 = vmatprep.subr.mxu0 0.0
    %231 = vmatpush2.msra.mxu0 0.0
    %232 = vmatprep.subr.mxu0 0.0
    %233 = vmatpush2.msra.mxu0 0.0
    %234 = vmatprep.subr.mxu0 0.0
    %235 = vmatpush2.msra.mxu0 0.0
    %236 = vmatprep.subr.mxu0 0.0
    %237 = vmatpush2.msra.mxu0 0.0
    %238 = vmatprep.subr.mxu0 0.0
    %239 = vmatpush2.msra.mxu0 0.0
    %240 = vmatprep.subr.mxu0 0.0
    %241 = vmatpush2.msra.mxu0 0.0
    %242 = vmatprep.mubr.f32.mxu0 0.0
    %243 = vmatmul.mubr.f32.gmra.mxu0 %v78
    %v244 = vpop.f32.mrf.mxu0
    %v245 = vadd.f32 %v72, %v244
    %v246 = vpop.f32.mrf.mxu0
    %247 = vmatprep.mubr.f32.mxu0 0.0
    %248 = vmatmul.mubr.f32.gmra.mxu0 %v81
    %v249 = vpop.f32.mrf.mxu0
    %v250 = vadd.f32 %v72, %v249
    %v251 = vpop.f32.mrf.mxu0
    %252 = vmatprep.mubr.f32.mxu0 0.0
    %253 = vmatmul.mubr.f32.gmra.mxu0 %v84
    %v254 = vpop.f32.mrf.mxu0
    %v255 = vadd.f32 %v72, %v254
    %v256 = vpop.f32.mrf.mxu0
    %257 = vmatprep.mubr.f32.mxu0 0.0
    %258 = vmatmul.mubr.f32.gmra.mxu0 %v87
    %v259 = vpop.f32.mrf.mxu0
    %v260 = vadd.f32 %v72, %v259
    %v261 = vpop.f32.mrf.mxu0
    %262 = vdwg.mxu0
    %267 = vrot.lane.b32.xlu0 %v156, 112
    %v268 = vpop.permute.xlu0 %267
    %269 = vrot.lane.b32.xlu0 %v162, 112
    %v270 = vpop.permute.xlu0 %269
    %271 = vrot.lane.b32.xlu0 %v168, 112
    %v272 = vpop.permute.xlu0 %271
    %273 = vrot.lane.b32.xlu0 %v174, 112
    %v274 = vpop.permute.xlu0 %273
    %279 = vrot.lane.b32.xlu0 %v156, 96
    %v280 = vpop.permute.xlu0 %279
    %281 = vrot.lane.b32.xlu0 %v162, 96
    %v282 = vpop.permute.xlu0 %281
    %283 = vrot.lane.b32.xlu0 %v168, 96
    %v284 = vpop.permute.xlu0 %283
    %285 = vrot.lane.b32.xlu0 %v174, 96
    %v286 = vpop.permute.xlu0 %285
    %291 = vrot.lane.b32.xlu0 %v156, 80
    %v292 = vpop.permute.xlu0 %291
    %293 = vrot.lane.b32.xlu0 %v162, 80
    %v294 = vpop.permute.xlu0 %293
    %295 = vrot.lane.b32.xlu0 %v168, 80
    %v296 = vpop.permute.xlu0 %295
    %297 = vrot.lane.b32.xlu0 %v174, 80
    %v298 = vpop.permute.xlu0 %297
    %303 = vrot.lane.b32.xlu0 %v156, 64
    %v304 = vpop.permute.xlu0 %303
    %305 = vrot.lane.b32.xlu0 %v162, 64
    %v306 = vpop.permute.xlu0 %305
    %307 = vrot.lane.b32.xlu0 %v168, 64
    %v308 = vpop.permute.xlu0 %307
    %309 = vrot.lane.b32.xlu0 %v174, 64
    %v310 = vpop.permute.xlu0 %309
    %315 = vrot.lane.b32.xlu0 %v156, 48
    %v316 = vpop.permute.xlu0 %315
    %317 = vrot.lane.b32.xlu0 %v162, 48
    %v318 = vpop.permute.xlu0 %317
    %319 = vrot.lane.b32.xlu0 %v168, 48
    %v320 = vpop.permute.xlu0 %319
    %321 = vrot.lane.b32.xlu0 %v174, 48
    %v322 = vpop.permute.xlu0 %321
    %327 = vrot.lane.b32.xlu0 %v156, 32
    %v328 = vpop.permute.xlu0 %327
    %329 = vrot.lane.b32.xlu0 %v162, 32
    %v330 = vpop.permute.xlu0 %329
    %331 = vrot.lane.b32.xlu0 %v168, 32
    %v332 = vpop.permute.xlu0 %331
    %333 = vrot.lane.b32.xlu0 %v174, 32
    %v334 = vpop.permute.xlu0 %333
    %339 = vrot.lane.b32.xlu0 %v156, 16
    %v340 = vpop.permute.xlu0 %339
    %341 = vrot.lane.b32.xlu0 %v162, 16
    %v342 = vpop.permute.xlu0 %341
    %343 = vrot.lane.b32.xlu0 %v168, 16
    %v344 = vpop.permute.xlu0 %343
    %345 = vrot.lane.b32.xlu0 %v174, 16
    %v346 = vpop.permute.xlu0 %345
    %v351 = vcombine.low %v156, %v280
    %v352 = vcombine.high %v156, %v280
    %v354 = vunpack.c.l.s4 1983009808
    %v355 = vunpack.c.0.s8 %v354
    %v356 = vlaneseq
    %v357 = vshrl.u32 %v356, 7
    %v358 = vsub.s32 %v355, %v357
    %v359 = vrot.slane %v351, %v358
    %v361 = vunpack.c.l.s4 1983009808
    %v362 = vunpack.c.0.s8 %v361
    %v363 = vlaneseq
    %v364 = vshrl.u32 %v363, 7
    %v365 = vsub.s32 %v362, %v364
    %v366 = vrot.slane %v352, %v365
    %v367 = vcombine.low %v268, %v292
    %v368 = vcombine.high %v268, %v292
    %v370 = vunpack.c.l.s4 1983009808
    %v371 = vunpack.c.0.s8 %v370
    %v372 = vlaneseq
    %v373 = vshrl.u32 %v372, 7
    %v374 = vsub.s32 %v371, %v373
    %v375 = vrot.slane %v367, %v374
    %v377 = vunpack.c.l.s4 1983009808
    %v378 = vunpack.c.0.s8 %v377
    %v379 = vlaneseq
    %v380 = vshrl.u32 %v379, 7
    %v381 = vsub.s32 %v378, %v380
    %v382 = vrot.slane %v368, %v381
    %v383 = vcombine.low %v304, %v328
    %v384 = vcombine.high %v304, %v328
    %v386 = vunpack.c.l.s4 1983009808
    %v387 = vunpack.c.0.s8 %v386
    %v388 = vlaneseq
    %v389 = vshrl.u32 %v388, 7
    %v390 = vsub.s32 %v387, %v389
    %v391 = vrot.slane %v383, %v390
    %v393 = vunpack.c.l.s4 1983009808
    %v394 = vunpack.c.0.s8 %v393
    %v395 = vlaneseq
    %v396 = vshrl.u32 %v395, 7
    %v397 = vsub.s32 %v394, %v396
    %v398 = vrot.slane %v384, %v397
    %v399 = vcombine.low %v316, %v340
    %v400 = vcombine.high %v316, %v340
    %v402 = vunpack.c.l.s4 1983009808
    %v403 = vunpack.c.0.s8 %v402
    %v404 = vlaneseq
    %v405 = vshrl.u32 %v404, 7
    %v406 = vsub.s32 %v403, %v405
    %v407 = vrot.slane %v399, %v406
    %v409 = vunpack.c.l.s4 1983009808
    %v410 = vunpack.c.0.s8 %v409
    %v411 = vlaneseq
    %v412 = vshrl.u32 %v411, 7
    %v413 = vsub.s32 %v410, %v412
    %v414 = vrot.slane %v400, %v413
    %v415 = vcombine.low %v359, %v375
    %v416 = vcombine.high %v359, %v375
    %v418 = vunpack.c.l.s4 1934713408
    %v419 = vunpack.c.0.s8 %v418
    %v420 = vlaneseq
    %v421 = vshrl.u32 %v420, 7
    %v422 = vsub.s32 %v419, %v421
    %v423 = vrot.slane %v415, %v422
    %v425 = vunpack.c.l.s4 1934713408
    %v426 = vunpack.c.0.s8 %v425
    %v427 = vlaneseq
    %v428 = vshrl.u32 %v427, 7
    %v429 = vsub.s32 %v426, %v428
    %v430 = vrot.slane %v416, %v429
    %v431 = vcombine.low %v366, %v382
    %v432 = vcombine.high %v366, %v382
    %v434 = vunpack.c.l.s4 1934713408
    %v435 = vunpack.c.0.s8 %v434
    %v436 = vlaneseq
    %v437 = vshrl.u32 %v436, 7
    %v438 = vsub.s32 %v435, %v437
    %v439 = vrot.slane %v431, %v438
    %v441 = vunpack.c.l.s4 1934713408
    %v442 = vunpack.c.0.s8 %v441
    %v443 = vlaneseq
    %v444 = vshrl.u32 %v443, 7
    %v445 = vsub.s32 %v442, %v444
    %v446 = vrot.slane %v432, %v445
    %v447 = vcombine.low %v391, %v407
    %v448 = vcombine.high %v391, %v407
    %v450 = vunpack.c.l.s4 1934713408
    %v451 = vunpack.c.0.s8 %v450
    %v452 = vlaneseq
    %v453 = vshrl.u32 %v452, 7
    %v454 = vsub.s32 %v451, %v453
    %v455 = vrot.slane %v447, %v454
    %v457 = vunpack.c.l.s4 1934713408
    %v458 = vunpack.c.0.s8 %v457
    %v459 = vlaneseq
    %v460 = vshrl.u32 %v459, 7
    %v461 = vsub.s32 %v458, %v460
    %v462 = vrot.slane %v448, %v461
    %v463 = vcombine.low %v398, %v414
    %v464 = vcombine.high %v398, %v414
    %v466 = vunpack.c.l.s4 1934713408
    %v467 = vunpack.c.0.s8 %v466
    %v468 = vlaneseq
    %v469 = vshrl.u32 %v468, 7
    %v470 = vsub.s32 %v467, %v469
    %v471 = vrot.slane %v463, %v470
    %v473 = vunpack.c.l.s4 1934713408
    %v474 = vunpack.c.0.s8 %v473
    %v475 = vlaneseq
    %v476 = vshrl.u32 %v475, 7
    %v477 = vsub.s32 %v474, %v476
    %v478 = vrot.slane %v464, %v477
    %v479 = vcombine.low %v423, %v455
    %v480 = vcombine.high %v423, %v455
    %v481 = vcombine.low %v430, %v462
    %v482 = vcombine.high %v430, %v462
    %v483 = vcombine.low %v439, %v471
    %v484 = vcombine.high %v439, %v471
    %v485 = vcombine.low %v446, %v478
    %v486 = vcombine.high %v446, %v478
    %v487 = vcombine.low %v162, %v282
    %v488 = vcombine.high %v162, %v282
    %v490 = vunpack.c.l.s4 1983009808
    %v491 = vunpack.c.0.s8 %v490
    %v492 = vlaneseq
    %v493 = vshrl.u32 %v492, 7
    %v494 = vsub.s32 %v491, %v493
    %v495 = vrot.slane %v487, %v494
    %v497 = vunpack.c.l.s4 1983009808
    %v498 = vunpack.c.0.s8 %v497
    %v499 = vlaneseq
    %v500 = vshrl.u32 %v499, 7
    %v501 = vsub.s32 %v498, %v500
    %v502 = vrot.slane %v488, %v501
    %v503 = vcombine.low %v270, %v294
    %v504 = vcombine.high %v270, %v294
    %v506 = vunpack.c.l.s4 1983009808
    %v507 = vunpack.c.0.s8 %v506
    %v508 = vlaneseq
    %v509 = vshrl.u32 %v508, 7
    %v510 = vsub.s32 %v507, %v509
    %v511 = vrot.slane %v503, %v510
    %v513 = vunpack.c.l.s4 1983009808
    %v514 = vunpack.c.0.s8 %v513
    %v515 = vlaneseq
    %v516 = vshrl.u32 %v515, 7
    %v517 = vsub.s32 %v514, %v516
    %v518 = vrot.slane %v504, %v517
    %v519 = vcombine.low %v306, %v330
    %v520 = vcombine.high %v306, %v330
    %v522 = vunpack.c.l.s4 1983009808
    %v523 = vunpack.c.0.s8 %v522
    %v524 = vlaneseq
    %v525 = vshrl.u32 %v524, 7
    %v526 = vsub.s32 %v523, %v525
    %v527 = vrot.slane %v519, %v526
    %v529 = vunpack.c.l.s4 1983009808
    %v530 = vunpack.c.0.s8 %v529
    %v531 = vlaneseq
    %v532 = vshrl.u32 %v531, 7
    %v533 = vsub.s32 %v530, %v532
    %v534 = vrot.slane %v520, %v533
    %v535 = vcombine.low %v318, %v342
    %v536 = vcombine.high %v318, %v342
    %v538 = vunpack.c.l.s4 1983009808
    %v539 = vunpack.c.0.s8 %v538
    %v540 = vlaneseq
    %v541 = vshrl.u32 %v540, 7
    %v542 = vsub.s32 %v539, %v541
    %v543 = vrot.slane %v535, %v542
    %v545 = vunpack.c.l.s4 1983009808
    %v546 = vunpack.c.0.s8 %v545
    %v547 = vlaneseq
    %v548 = vshrl.u32 %v547, 7
    %v549 = vsub.s32 %v546, %v548
    %v550 = vrot.slane %v536, %v549
    %v551 = vcombine.low %v495, %v511
    %v552 = vcombine.high %v495, %v511
    %v554 = vunpack.c.l.s4 1934713408
    %v555 = vunpack.c.0.s8 %v554
    %v556 = vlaneseq
    %v557 = vshrl.u32 %v556, 7
    %v558 = vsub.s32 %v555, %v557
    %v559 = vrot.slane %v551, %v558
    %v561 = vunpack.c.l.s4 1934713408
    %v562 = vunpack.c.0.s8 %v561
    %v563 = vlaneseq
    %v564 = vshrl.u32 %v563, 7
    %v565 = vsub.s32 %v562, %v564
    %v566 = vrot.slane %v552, %v565
    %v567 = vcombine.low %v502, %v518
    %v568 = vcombine.high %v502, %v518
    %v570 = vunpack.c.l.s4 1934713408
    %v571 = vunpack.c.0.s8 %v570
    %v572 = vlaneseq
    %v573 = vshrl.u32 %v572, 7
    %v574 = vsub.s32 %v571, %v573
    %v575 = vrot.slane %v567, %v574
    %v577 = vunpack.c.l.s4 1934713408
    %v578 = vunpack.c.0.s8 %v577
    %v579 = vlaneseq
    %v580 = vshrl.u32 %v579, 7
    %v581 = vsub.s32 %v578, %v580
    %v582 = vrot.slane %v568, %v581
    %v583 = vcombine.low %v527, %v543
    %v584 = vcombine.high %v527, %v543
    %v586 = vunpack.c.l.s4 1934713408
    %v587 = vunpack.c.0.s8 %v586
    %v588 = vlaneseq
    %v589 = vshrl.u32 %v588, 7
    %v590 = vsub.s32 %v587, %v589
    %v591 = vrot.slane %v583, %v590
    %v593 = vunpack.c.l.s4 1934713408
    %v594 = vunpack.c.0.s8 %v593
    %v595 = vlaneseq
    %v596 = vshrl.u32 %v595, 7
    %v597 = vsub.s32 %v594, %v596
    %v598 = vrot.slane %v584, %v597
    %v599 = vcombine.low %v534, %v550
    %v600 = vcombine.high %v534, %v550
    %v602 = vunpack.c.l.s4 1934713408
    %v603 = vunpack.c.0.s8 %v602
    %v604 = vlaneseq
    %v605 = vshrl.u32 %v604, 7
    %v606 = vsub.s32 %v603, %v605
    %v607 = vrot.slane %v599, %v606
    %v609 = vunpack.c.l.s4 1934713408
    %v610 = vunpack.c.0.s8 %v609
    %v611 = vlaneseq
    %v612 = vshrl.u32 %v611, 7
    %v613 = vsub.s32 %v610, %v612
    %v614 = vrot.slane %v600, %v613
    %v615 = vcombine.low %v559, %v591
    %v616 = vcombine.high %v559, %v591
    %v617 = vcombine.low %v566, %v598
    %v618 = vcombine.high %v566, %v598
    %v619 = vcombine.low %v575, %v607
    %v620 = vcombine.high %v575, %v607
    %v621 = vcombine.low %v582, %v614
    %v622 = vcombine.high %v582, %v614
    %v623 = vcombine.low %v168, %v284
    %v624 = vcombine.high %v168, %v284
    %v626 = vunpack.c.l.s4 1983009808
    %v627 = vunpack.c.0.s8 %v626
    %v628 = vlaneseq
    %v629 = vshrl.u32 %v628, 7
    %v630 = vsub.s32 %v627, %v629
    %v631 = vrot.slane %v623, %v630
    %v633 = vunpack.c.l.s4 1983009808
    %v634 = vunpack.c.0.s8 %v633
    %v635 = vlaneseq
    %v636 = vshrl.u32 %v635, 7
    %v637 = vsub.s32 %v634, %v636
    %v638 = vrot.slane %v624, %v637
    %v639 = vcombine.low %v272, %v296
    %v640 = vcombine.high %v272, %v296
    %v642 = vunpack.c.l.s4 1983009808
    %v643 = vunpack.c.0.s8 %v642
    %v644 = vlaneseq
    %v645 = vshrl.u32 %v644, 7
    %v646 = vsub.s32 %v643, %v645
    %v647 = vrot.slane %v639, %v646
    %v649 = vunpack.c.l.s4 1983009808
    %v650 = vunpack.c.0.s8 %v649
    %v651 = vlaneseq
    %v652 = vshrl.u32 %v651, 7
    %v653 = vsub.s32 %v650, %v652
    %v654 = vrot.slane %v640, %v653
    %v655 = vcombine.low %v308, %v332
    %v656 = vcombine.high %v308, %v332
    %v658 = vunpack.c.l.s4 1983009808
    %v659 = vunpack.c.0.s8 %v658
    %v660 = vlaneseq
    %v661 = vshrl.u32 %v660, 7
    %v662 = vsub.s32 %v659, %v661
    %v663 = vrot.slane %v655, %v662
    %v665 = vunpack.c.l.s4 1983009808
    %v666 = vunpack.c.0.s8 %v665
    %v667 = vlaneseq
    %v668 = vshrl.u32 %v667, 7
    %v669 = vsub.s32 %v666, %v668
    %v670 = vrot.slane %v656, %v669
    %v671 = vcombine.low %v320, %v344
    %v672 = vcombine.high %v320, %v344
    %v674 = vunpack.c.l.s4 1983009808
    %v675 = vunpack.c.0.s8 %v674
    %v676 = vlaneseq
    %v677 = vshrl.u32 %v676, 7
    %v678 = vsub.s32 %v675, %v677
    %v679 = vrot.slane %v671, %v678
    %v681 = vunpack.c.l.s4 1983009808
    %v682 = vunpack.c.0.s8 %v681
    %v683 = vlaneseq
    %v684 = vshrl.u32 %v683, 7
    %v685 = vsub.s32 %v682, %v684
    %v686 = vrot.slane %v672, %v685
    %v687 = vcombine.low %v631, %v647
    %v688 = vcombine.high %v631, %v647
    %v690 = vunpack.c.l.s4 1934713408
    %v691 = vunpack.c.0.s8 %v690
    %v692 = vlaneseq
    %v693 = vshrl.u32 %v692, 7
    %v694 = vsub.s32 %v691, %v693
    %v695 = vrot.slane %v687, %v694
    %v697 = vunpack.c.l.s4 1934713408
    %v698 = vunpack.c.0.s8 %v697
    %v699 = vlaneseq
    %v700 = vshrl.u32 %v699, 7
    %v701 = vsub.s32 %v698, %v700
    %v702 = vrot.slane %v688, %v701
    %v703 = vcombine.low %v638, %v654
    %v704 = vcombine.high %v638, %v654
    %v706 = vunpack.c.l.s4 1934713408
    %v707 = vunpack.c.0.s8 %v706
    %v708 = vlaneseq
    %v709 = vshrl.u32 %v708, 7
    %v710 = vsub.s32 %v707, %v709
    %v711 = vrot.slane %v703, %v710
    %v713 = vunpack.c.l.s4 1934713408
    %v714 = vunpack.c.0.s8 %v713
    %v715 = vlaneseq
    %v716 = vshrl.u32 %v715, 7
    %v717 = vsub.s32 %v714, %v716
    %v718 = vrot.slane %v704, %v717
    %v719 = vcombine.low %v663, %v679
    %v720 = vcombine.high %v663, %v679
    %v722 = vunpack.c.l.s4 1934713408
    %v723 = vunpack.c.0.s8 %v722
    %v724 = vlaneseq
    %v725 = vshrl.u32 %v724, 7
    %v726 = vsub.s32 %v723, %v725
    %v727 = vrot.slane %v719, %v726
    %v729 = vunpack.c.l.s4 1934713408
    %v730 = vunpack.c.0.s8 %v729
    %v731 = vlaneseq
    %v732 = vshrl.u32 %v731, 7
    %v733 = vsub.s32 %v730, %v732
    %v734 = vrot.slane %v720, %v733
    %v735 = vcombine.low %v670, %v686
    %v736 = vcombine.high %v670, %v686
    %v738 = vunpack.c.l.s4 1934713408
    %v739 = vunpack.c.0.s8 %v738
    %v740 = vlaneseq
    %v741 = vshrl.u32 %v740, 7
    %v742 = vsub.s32 %v739, %v741
    %v743 = vrot.slane %v735, %v742
    %v745 = vunpack.c.l.s4 1934713408
    %v746 = vunpack.c.0.s8 %v745
    %v747 = vlaneseq
    %v748 = vshrl.u32 %v747, 7
    %v749 = vsub.s32 %v746, %v748
    %v750 = vrot.slane %v736, %v749
    %v751 = vcombine.low %v695, %v727
    %v752 = vcombine.high %v695, %v727
    %v753 = vcombine.low %v702, %v734
    %v754 = vcombine.high %v702, %v734
    %v755 = vcombine.low %v711, %v743
    %v756 = vcombine.high %v711, %v743
    %v757 = vcombine.low %v718, %v750
    %v758 = vcombine.high %v718, %v750
    %v759 = vcombine.low %v174, %v286
    %v760 = vcombine.high %v174, %v286
    %v762 = vunpack.c.l.s4 1983009808
    %v763 = vunpack.c.0.s8 %v762
    %v764 = vlaneseq
    %v765 = vshrl.u32 %v764, 7
    %v766 = vsub.s32 %v763, %v765
    %v767 = vrot.slane %v759, %v766
    %v769 = vunpack.c.l.s4 1983009808
    %v770 = vunpack.c.0.s8 %v769
    %v771 = vlaneseq
    %v772 = vshrl.u32 %v771, 7
    %v773 = vsub.s32 %v770, %v772
    %v774 = vrot.slane %v760, %v773
    %v775 = vcombine.low %v274, %v298
    %v776 = vcombine.high %v274, %v298
    %v778 = vunpack.c.l.s4 1983009808
    %v779 = vunpack.c.0.s8 %v778
    %v780 = vlaneseq
    %v781 = vshrl.u32 %v780, 7
    %v782 = vsub.s32 %v779, %v781
    %v783 = vrot.slane %v775, %v782
    %v785 = vunpack.c.l.s4 1983009808
    %v786 = vunpack.c.0.s8 %v785
    %v787 = vlaneseq
    %v788 = vshrl.u32 %v787, 7
    %v789 = vsub.s32 %v786, %v788
    %v790 = vrot.slane %v776, %v789
    %v791 = vcombine.low %v310, %v334
    %v792 = vcombine.high %v310, %v334
    %v794 = vunpack.c.l.s4 1983009808
    %v795 = vunpack.c.0.s8 %v794
    %v796 = vlaneseq
    %v797 = vshrl.u32 %v796, 7
    %v798 = vsub.s32 %v795, %v797
    %v799 = vrot.slane %v791, %v798
    %v801 = vunpack.c.l.s4 1983009808
    %v802 = vunpack.c.0.s8 %v801
    %v803 = vlaneseq
    %v804 = vshrl.u32 %v803, 7
    %v805 = vsub.s32 %v802, %v804
    %v806 = vrot.slane %v792, %v805
    %v807 = vcombine.low %v322, %v346
    %v808 = vcombine.high %v322, %v346
    %v810 = vunpack.c.l.s4 1983009808
    %v811 = vunpack.c.0.s8 %v810
    %v812 = vlaneseq
    %v813 = vshrl.u32 %v812, 7
    %v814 = vsub.s32 %v811, %v813
    %v815 = vrot.slane %v807, %v814
    %v817 = vunpack.c.l.s4 1983009808
    %v818 = vunpack.c.0.s8 %v817
    %v819 = vlaneseq
    %v820 = vshrl.u32 %v819, 7
    %v821 = vsub.s32 %v818, %v820
    %v822 = vrot.slane %v808, %v821
    %v823 = vcombine.low %v767, %v783
    %v824 = vcombine.high %v767, %v783
    %v826 = vunpack.c.l.s4 1934713408
    %v827 = vunpack.c.0.s8 %v826
    %v828 = vlaneseq
    %v829 = vshrl.u32 %v828, 7
    %v830 = vsub.s32 %v827, %v829
    %v831 = vrot.slane %v823, %v830
    %v833 = vunpack.c.l.s4 1934713408
    %v834 = vunpack.c.0.s8 %v833
    %v835 = vlaneseq
    %v836 = vshrl.u32 %v835, 7
    %v837 = vsub.s32 %v834, %v836
    %v838 = vrot.slane %v824, %v837
    %v839 = vcombine.low %v774, %v790
    %v840 = vcombine.high %v774, %v790
    %v842 = vunpack.c.l.s4 1934713408
    %v843 = vunpack.c.0.s8 %v842
    %v844 = vlaneseq
    %v845 = vshrl.u32 %v844, 7
    %v846 = vsub.s32 %v843, %v845
    %v847 = vrot.slane %v839, %v846
    %v849 = vunpack.c.l.s4 1934713408
    %v850 = vunpack.c.0.s8 %v849
    %v851 = vlaneseq
    %v852 = vshrl.u32 %v851, 7
    %v853 = vsub.s32 %v850, %v852
    %v854 = vrot.slane %v840, %v853
    %v855 = vcombine.low %v799, %v815
    %v856 = vcombine.high %v799, %v815
    %v858 = vunpack.c.l.s4 1934713408
    %v859 = vunpack.c.0.s8 %v858
    %v860 = vlaneseq
    %v861 = vshrl.u32 %v860, 7
    %v862 = vsub.s32 %v859, %v861
    %v863 = vrot.slane %v855, %v862
    %v865 = vunpack.c.l.s4 1934713408
    %v866 = vunpack.c.0.s8 %v865
    %v867 = vlaneseq
    %v868 = vshrl.u32 %v867, 7
    %v869 = vsub.s32 %v866, %v868
    %v870 = vrot.slane %v856, %v869
    %v871 = vcombine.low %v806, %v822
    %v872 = vcombine.high %v806, %v822
    %v874 = vunpack.c.l.s4 1934713408
    %v875 = vunpack.c.0.s8 %v874
    %v876 = vlaneseq
    %v877 = vshrl.u32 %v876, 7
    %v878 = vsub.s32 %v875, %v877
    %v879 = vrot.slane %v871, %v878
    %v881 = vunpack.c.l.s4 1934713408
    %v882 = vunpack.c.0.s8 %v881
    %v883 = vlaneseq
    %v884 = vshrl.u32 %v883, 7
    %v885 = vsub.s32 %v882, %v884
    %v886 = vrot.slane %v872, %v885
    %v887 = vcombine.low %v831, %v863
    %v888 = vcombine.high %v831, %v863
    %v889 = vcombine.low %v838, %v870
    %v890 = vcombine.high %v838, %v870
    %v891 = vcombine.low %v847, %v879
    %v892 = vcombine.high %v847, %v879
    %v893 = vcombine.low %v854, %v886
    %v894 = vcombine.high %v854, %v886
    %v895 = vcombine.low %v479, %v481
    %v896 = vcombine.high %v479, %v481
    %v898 = vunpack.c.l.s4 1983009808
    %v899 = vunpack.c.0.s8 %v898
    %v900 = vlaneseq
    %v901 = vshrl.u32 %v900, 7
    %v902 = vsub.s32 %v899, %v901
    %v903 = vrot.slane %v895, %v902
    %v905 = vunpack.c.l.s4 1983009808
    %v906 = vunpack.c.0.s8 %v905
    %v907 = vlaneseq
    %v908 = vshrl.u32 %v907, 7
    %v909 = vsub.s32 %v906, %v908
    %v910 = vrot.slane %v896, %v909
    %v911 = vcombine.low %v480, %v482
    %v912 = vcombine.high %v480, %v482
    %v914 = vunpack.c.l.s4 1983009808
    %v915 = vunpack.c.0.s8 %v914
    %v916 = vlaneseq
    %v917 = vshrl.u32 %v916, 7
    %v918 = vsub.s32 %v915, %v917
    %v919 = vrot.slane %v911, %v918
    %v921 = vunpack.c.l.s4 1983009808
    %v922 = vunpack.c.0.s8 %v921
    %v923 = vlaneseq
    %v924 = vshrl.u32 %v923, 7
    %v925 = vsub.s32 %v922, %v924
    %v926 = vrot.slane %v912, %v925
    %v927 = vcombine.low %v483, %v485
    %v928 = vcombine.high %v483, %v485
    %v930 = vunpack.c.l.s4 1983009808
    %v931 = vunpack.c.0.s8 %v930
    %v932 = vlaneseq
    %v933 = vshrl.u32 %v932, 7
    %v934 = vsub.s32 %v931, %v933
    %v935 = vrot.slane %v927, %v934
    %v937 = vunpack.c.l.s4 1983009808
    %v938 = vunpack.c.0.s8 %v937
    %v939 = vlaneseq
    %v940 = vshrl.u32 %v939, 7
    %v941 = vsub.s32 %v938, %v940
    %v942 = vrot.slane %v928, %v941
    %v943 = vcombine.low %v484, %v486
    %v944 = vcombine.high %v484, %v486
    %v946 = vunpack.c.l.s4 1983009808
    %v947 = vunpack.c.0.s8 %v946
    %v948 = vlaneseq
    %v949 = vshrl.u32 %v948, 7
    %v950 = vsub.s32 %v947, %v949
    %v951 = vrot.slane %v943, %v950
    %v953 = vunpack.c.l.s4 1983009808
    %v954 = vunpack.c.0.s8 %v953
    %v955 = vlaneseq
    %v956 = vshrl.u32 %v955, 7
    %v957 = vsub.s32 %v954, %v956
    %v958 = vrot.slane %v944, %v957
    %v959 = vcombine.low %v903, %v919
    %v960 = vcombine.high %v903, %v919
    %v962 = vunpack.c.l.s4 1934713408
    %v963 = vunpack.c.0.s8 %v962
    %v964 = vlaneseq
    %v965 = vshrl.u32 %v964, 7
    %v966 = vsub.s32 %v963, %v965
    %v967 = vrot.slane %v959, %v966
    %v969 = vunpack.c.l.s4 1934713408
    %v970 = vunpack.c.0.s8 %v969
    %v971 = vlaneseq
    %v972 = vshrl.u32 %v971, 7
    %v973 = vsub.s32 %v970, %v972
    %v974 = vrot.slane %v960, %v973
    %v975 = vcombine.low %v910, %v926
    %v976 = vcombine.high %v910, %v926
    %v978 = vunpack.c.l.s4 1934713408
    %v979 = vunpack.c.0.s8 %v978
    %v980 = vlaneseq
    %v981 = vshrl.u32 %v980, 7
    %v982 = vsub.s32 %v979, %v981
    %v983 = vrot.slane %v975, %v982
    %v985 = vunpack.c.l.s4 1934713408
    %v986 = vunpack.c.0.s8 %v985
    %v987 = vlaneseq
    %v988 = vshrl.u32 %v987, 7
    %v989 = vsub.s32 %v986, %v988
    %v990 = vrot.slane %v976, %v989
    %v991 = vcombine.low %v935, %v951
    %v992 = vcombine.high %v935, %v951
    %v994 = vunpack.c.l.s4 1934713408
    %v995 = vunpack.c.0.s8 %v994
    %v996 = vlaneseq
    %v997 = vshrl.u32 %v996, 7
    %v998 = vsub.s32 %v995, %v997
    %v999 = vrot.slane %v991, %v998
    %v1001 = vunpack.c.l.s4 1934713408
    %v1002 = vunpack.c.0.s8 %v1001
    %v1003 = vlaneseq
    %v1004 = vshrl.u32 %v1003, 7
    %v1005 = vsub.s32 %v1002, %v1004
    %v1006 = vrot.slane %v992, %v1005
    %v1007 = vcombine.low %v942, %v958
    %v1008 = vcombine.high %v942, %v958
    %v1010 = vunpack.c.l.s4 1934713408
    %v1011 = vunpack.c.0.s8 %v1010
    %v1012 = vlaneseq
    %v1013 = vshrl.u32 %v1012, 7
    %v1014 = vsub.s32 %v1011, %v1013
    %v1015 = vrot.slane %v1007, %v1014
    %v1017 = vunpack.c.l.s4 1934713408
    %v1018 = vunpack.c.0.s8 %v1017
    %v1019 = vlaneseq
    %v1020 = vshrl.u32 %v1019, 7
    %v1021 = vsub.s32 %v1018, %v1020
    %v1022 = vrot.slane %v1008, %v1021
    %v1023 = vcombine.low %v967, %v999
    %v1024 = vcombine.high %v967, %v999
    %v1025 = vcombine.low %v974, %v1006
    %v1026 = vcombine.high %v974, %v1006
    %v1027 = vcombine.low %v983, %v1015
    %v1028 = vcombine.high %v983, %v1015
    %v1029 = vcombine.low %v990, %v1022
    %v1030 = vcombine.high %v990, %v1022
    %v1031 = vcombine.low %v615, %v617
    %v1032 = vcombine.high %v615, %v617
    %v1034 = vunpack.c.l.s4 1983009808
    %v1035 = vunpack.c.0.s8 %v1034
    %v1036 = vlaneseq
    %v1037 = vshrl.u32 %v1036, 7
    %v1038 = vsub.s32 %v1035, %v1037
    %v1039 = vrot.slane %v1031, %v1038
    %v1041 = vunpack.c.l.s4 1983009808
    %v1042 = vunpack.c.0.s8 %v1041
    %v1043 = vlaneseq
    %v1044 = vshrl.u32 %v1043, 7
    %v1045 = vsub.s32 %v1042, %v1044
    %v1046 = vrot.slane %v1032, %v1045
    %v1047 = vcombine.low %v616, %v618
    %v1048 = vcombine.high %v616, %v618
    %v1050 = vunpack.c.l.s4 1983009808
    %v1051 = vunpack.c.0.s8 %v1050
    %v1052 = vlaneseq
    %v1053 = vshrl.u32 %v1052, 7
    %v1054 = vsub.s32 %v1051, %v1053
    %v1055 = vrot.slane %v1047, %v1054
    %v1057 = vunpack.c.l.s4 1983009808
    %v1058 = vunpack.c.0.s8 %v1057
    %v1059 = vlaneseq
    %v1060 = vshrl.u32 %v1059, 7
    %v1061 = vsub.s32 %v1058, %v1060
    %v1062 = vrot.slane %v1048, %v1061
    %v1063 = vcombine.low %v619, %v621
    %v1064 = vcombine.high %v619, %v621
    %v1066 = vunpack.c.l.s4 1983009808
    %v1067 = vunpack.c.0.s8 %v1066
    %v1068 = vlaneseq
    %v1069 = vshrl.u32 %v1068, 7
    %v1070 = vsub.s32 %v1067, %v1069
    %v1071 = vrot.slane %v1063, %v1070
    %v1073 = vunpack.c.l.s4 1983009808
    %v1074 = vunpack.c.0.s8 %v1073
    %v1075 = vlaneseq
    %v1076 = vshrl.u32 %v1075, 7
    %v1077 = vsub.s32 %v1074, %v1076
    %v1078 = vrot.slane %v1064, %v1077
    %v1079 = vcombine.low %v620, %v622
    %v1080 = vcombine.high %v620, %v622
    %v1082 = vunpack.c.l.s4 1983009808
    %v1083 = vunpack.c.0.s8 %v1082
    %v1084 = vlaneseq
    %v1085 = vshrl.u32 %v1084, 7
    %v1086 = vsub.s32 %v1083, %v1085
    %v1087 = vrot.slane %v1079, %v1086
    %v1089 = vunpack.c.l.s4 1983009808
    %v1090 = vunpack.c.0.s8 %v1089
    %v1091 = vlaneseq
    %v1092 = vshrl.u32 %v1091, 7
    %v1093 = vsub.s32 %v1090, %v1092
    %v1094 = vrot.slane %v1080, %v1093
    %v1095 = vcombine.low %v1039, %v1055
    %v1096 = vcombine.high %v1039, %v1055
    %v1098 = vunpack.c.l.s4 1934713408
    %v1099 = vunpack.c.0.s8 %v1098
    %v1100 = vlaneseq
    %v1101 = vshrl.u32 %v1100, 7
    %v1102 = vsub.s32 %v1099, %v1101
    %v1103 = vrot.slane %v1095, %v1102
    %v1105 = vunpack.c.l.s4 1934713408
    %v1106 = vunpack.c.0.s8 %v1105
    %v1107 = vlaneseq
    %v1108 = vshrl.u32 %v1107, 7
    %v1109 = vsub.s32 %v1106, %v1108
    %v1110 = vrot.slane %v1096, %v1109
    %v1111 = vcombine.low %v1046, %v1062
    %v1112 = vcombine.high %v1046, %v1062
    %v1114 = vunpack.c.l.s4 1934713408
    %v1115 = vunpack.c.0.s8 %v1114
    %v1116 = vlaneseq
    %v1117 = vshrl.u32 %v1116, 7
    %v1118 = vsub.s32 %v1115, %v1117
    %v1119 = vrot.slane %v1111, %v1118
    %v1121 = vunpack.c.l.s4 1934713408
    %v1122 = vunpack.c.0.s8 %v1121
    %v1123 = vlaneseq
    %v1124 = vshrl.u32 %v1123, 7
    %v1125 = vsub.s32 %v1122, %v1124
    %v1126 = vrot.slane %v1112, %v1125
    %v1127 = vcombine.low %v1071, %v1087
    %v1128 = vcombine.high %v1071, %v1087
    %v1130 = vunpack.c.l.s4 1934713408
    %v1131 = vunpack.c.0.s8 %v1130
    %v1132 = vlaneseq
    %v1133 = vshrl.u32 %v1132, 7
    %v1134 = vsub.s32 %v1131, %v1133
    %v1135 = vrot.slane %v1127, %v1134
    %v1137 = vunpack.c.l.s4 1934713408
    %v1138 = vunpack.c.0.s8 %v1137
    %v1139 = vlaneseq
    %v1140 = vshrl.u32 %v1139, 7
    %v1141 = vsub.s32 %v1138, %v1140
    %v1142 = vrot.slane %v1128, %v1141
    %v1143 = vcombine.low %v1078, %v1094
    %v1144 = vcombine.high %v1078, %v1094
    %v1146 = vunpack.c.l.s4 1934713408
    %v1147 = vunpack.c.0.s8 %v1146
    %v1148 = vlaneseq
    %v1149 = vshrl.u32 %v1148, 7
    %v1150 = vsub.s32 %v1147, %v1149
    %v1151 = vrot.slane %v1143, %v1150
    %v1153 = vunpack.c.l.s4 1934713408
    %v1154 = vunpack.c.0.s8 %v1153
    %v1155 = vlaneseq
    %v1156 = vshrl.u32 %v1155, 7
    %v1157 = vsub.s32 %v1154, %v1156
    %v1158 = vrot.slane %v1144, %v1157
    %v1159 = vcombine.low %v1103, %v1135
    %v1160 = vcombine.high %v1103, %v1135
    %v1161 = vcombine.low %v1110, %v1142
    %v1162 = vcombine.high %v1110, %v1142
    %v1163 = vcombine.low %v1119, %v1151
    %v1164 = vcombine.high %v1119, %v1151
    %v1165 = vcombine.low %v1126, %v1158
    %v1166 = vcombine.high %v1126, %v1158
    %v1167 = vcombine.low %v751, %v753
    %v1168 = vcombine.high %v751, %v753
    %v1170 = vunpack.c.l.s4 1983009808
    %v1171 = vunpack.c.0.s8 %v1170
    %v1172 = vlaneseq
    %v1173 = vshrl.u32 %v1172, 7
    %v1174 = vsub.s32 %v1171, %v1173
    %v1175 = vrot.slane %v1167, %v1174
    %v1177 = vunpack.c.l.s4 1983009808
    %v1178 = vunpack.c.0.s8 %v1177
    %v1179 = vlaneseq
    %v1180 = vshrl.u32 %v1179, 7
    %v1181 = vsub.s32 %v1178, %v1180
    %v1182 = vrot.slane %v1168, %v1181
    %v1183 = vcombine.low %v752, %v754
    %v1184 = vcombine.high %v752, %v754
    %v1186 = vunpack.c.l.s4 1983009808
    %v1187 = vunpack.c.0.s8 %v1186
    %v1188 = vlaneseq
    %v1189 = vshrl.u32 %v1188, 7
    %v1190 = vsub.s32 %v1187, %v1189
    %v1191 = vrot.slane %v1183, %v1190
    %v1193 = vunpack.c.l.s4 1983009808
    %v1194 = vunpack.c.0.s8 %v1193
    %v1195 = vlaneseq
    %v1196 = vshrl.u32 %v1195, 7
    %v1197 = vsub.s32 %v1194, %v1196
    %v1198 = vrot.slane %v1184, %v1197
    %v1199 = vcombine.low %v755, %v757
    %v1200 = vcombine.high %v755, %v757
    %v1202 = vunpack.c.l.s4 1983009808
    %v1203 = vunpack.c.0.s8 %v1202
    %v1204 = vlaneseq
    %v1205 = vshrl.u32 %v1204, 7
    %v1206 = vsub.s32 %v1203, %v1205
    %v1207 = vrot.slane %v1199, %v1206
    %v1209 = vunpack.c.l.s4 1983009808
    %v1210 = vunpack.c.0.s8 %v1209
    %v1211 = vlaneseq
    %v1212 = vshrl.u32 %v1211, 7
    %v1213 = vsub.s32 %v1210, %v1212
    %v1214 = vrot.slane %v1200, %v1213
    %v1215 = vcombine.low %v756, %v758
    %v1216 = vcombine.high %v756, %v758
    %v1218 = vunpack.c.l.s4 1983009808
    %v1219 = vunpack.c.0.s8 %v1218
    %v1220 = vlaneseq
    %v1221 = vshrl.u32 %v1220, 7
    %v1222 = vsub.s32 %v1219, %v1221
    %v1223 = vrot.slane %v1215, %v1222
    %v1225 = vunpack.c.l.s4 1983009808
    %v1226 = vunpack.c.0.s8 %v1225
    %v1227 = vlaneseq
    %v1228 = vshrl.u32 %v1227, 7
    %v1229 = vsub.s32 %v1226, %v1228
    %v1230 = vrot.slane %v1216, %v1229
    %v1231 = vcombine.low %v1175, %v1191
    %v1232 = vcombine.high %v1175, %v1191
    %v1234 = vunpack.c.l.s4 1934713408
    %v1235 = vunpack.c.0.s8 %v1234
    %v1236 = vlaneseq
    %v1237 = vshrl.u32 %v1236, 7
    %v1238 = vsub.s32 %v1235, %v1237
    %v1239 = vrot.slane %v1231, %v1238
    %v1241 = vunpack.c.l.s4 1934713408
    %v1242 = vunpack.c.0.s8 %v1241
    %v1243 = vlaneseq
    %v1244 = vshrl.u32 %v1243, 7
    %v1245 = vsub.s32 %v1242, %v1244
    %v1246 = vrot.slane %v1232, %v1245
    %v1247 = vcombine.low %v1182, %v1198
    %v1248 = vcombine.high %v1182, %v1198
    %v1250 = vunpack.c.l.s4 1934713408
    %v1251 = vunpack.c.0.s8 %v1250
    %v1252 = vlaneseq
    %v1253 = vshrl.u32 %v1252, 7
    %v1254 = vsub.s32 %v1251, %v1253
    %v1255 = vrot.slane %v1247, %v1254
    %v1257 = vunpack.c.l.s4 1934713408
    %v1258 = vunpack.c.0.s8 %v1257
    %v1259 = vlaneseq
    %v1260 = vshrl.u32 %v1259, 7
    %v1261 = vsub.s32 %v1258, %v1260
    %v1262 = vrot.slane %v1248, %v1261
    %v1263 = vcombine.low %v1207, %v1223
    %v1264 = vcombine.high %v1207, %v1223
    %v1266 = vunpack.c.l.s4 1934713408
    %v1267 = vunpack.c.0.s8 %v1266
    %v1268 = vlaneseq
    %v1269 = vshrl.u32 %v1268, 7
    %v1270 = vsub.s32 %v1267, %v1269
    %v1271 = vrot.slane %v1263, %v1270
    %v1273 = vunpack.c.l.s4 1934713408
    %v1274 = vunpack.c.0.s8 %v1273
    %v1275 = vlaneseq
    %v1276 = vshrl.u32 %v1275, 7
    %v1277 = vsub.s32 %v1274, %v1276
    %v1278 = vrot.slane %v1264, %v1277
    %v1279 = vcombine.low %v1214, %v1230
    %v1280 = vcombine.high %v1214, %v1230
    %v1282 = vunpack.c.l.s4 1934713408
    %v1283 = vunpack.c.0.s8 %v1282
    %v1284 = vlaneseq
    %v1285 = vshrl.u32 %v1284, 7
    %v1286 = vsub.s32 %v1283, %v1285
    %v1287 = vrot.slane %v1279, %v1286
    %v1289 = vunpack.c.l.s4 1934713408
    %v1290 = vunpack.c.0.s8 %v1289
    %v1291 = vlaneseq
    %v1292 = vshrl.u32 %v1291, 7
    %v1293 = vsub.s32 %v1290, %v1292
    %v1294 = vrot.slane %v1280, %v1293
    %v1295 = vcombine.low %v1239, %v1271
    %v1296 = vcombine.high %v1239, %v1271
    %v1297 = vcombine.low %v1246, %v1278
    %v1298 = vcombine.high %v1246, %v1278
    %v1299 = vcombine.low %v1255, %v1287
    %v1300 = vcombine.high %v1255, %v1287
    %v1301 = vcombine.low %v1262, %v1294
    %v1302 = vcombine.high %v1262, %v1294
    %v1303 = vcombine.low %v887, %v889
    %v1304 = vcombine.high %v887, %v889
    %v1306 = vunpack.c.l.s4 1983009808
    %v1307 = vunpack.c.0.s8 %v1306
    %v1308 = vlaneseq
    %v1309 = vshrl.u32 %v1308, 7
    %v1310 = vsub.s32 %v1307, %v1309
    %v1311 = vrot.slane %v1303, %v1310
    %v1313 = vunpack.c.l.s4 1983009808
    %v1314 = vunpack.c.0.s8 %v1313
    %v1315 = vlaneseq
    %v1316 = vshrl.u32 %v1315, 7
    %v1317 = vsub.s32 %v1314, %v1316
    %v1318 = vrot.slane %v1304, %v1317
    %v1319 = vcombine.low %v888, %v890
    %v1320 = vcombine.high %v888, %v890
    %v1322 = vunpack.c.l.s4 1983009808
    %v1323 = vunpack.c.0.s8 %v1322
    %v1324 = vlaneseq
    %v1325 = vshrl.u32 %v1324, 7
    %v1326 = vsub.s32 %v1323, %v1325
    %v1327 = vrot.slane %v1319, %v1326
    %v1329 = vunpack.c.l.s4 1983009808
    %v1330 = vunpack.c.0.s8 %v1329
    %v1331 = vlaneseq
    %v1332 = vshrl.u32 %v1331, 7
    %v1333 = vsub.s32 %v1330, %v1332
    %v1334 = vrot.slane %v1320, %v1333
    %v1335 = vcombine.low %v891, %v893
    %v1336 = vcombine.high %v891, %v893
    %v1338 = vunpack.c.l.s4 1983009808
    %v1339 = vunpack.c.0.s8 %v1338
    %v1340 = vlaneseq
    %v1341 = vshrl.u32 %v1340, 7
    %v1342 = vsub.s32 %v1339, %v1341
    %v1343 = vrot.slane %v1335, %v1342
    %v1345 = vunpack.c.l.s4 1983009808
    %v1346 = vunpack.c.0.s8 %v1345
    %v1347 = vlaneseq
    %v1348 = vshrl.u32 %v1347, 7
    %v1349 = vsub.s32 %v1346, %v1348
    %v1350 = vrot.slane %v1336, %v1349
    %v1351 = vcombine.low %v892, %v894
    %v1352 = vcombine.high %v892, %v894
    %v1354 = vunpack.c.l.s4 1983009808
    %v1355 = vunpack.c.0.s8 %v1354
    %v1356 = vlaneseq
    %v1357 = vshrl.u32 %v1356, 7
    %v1358 = vsub.s32 %v1355, %v1357
    %v1359 = vrot.slane %v1351, %v1358
    %v1361 = vunpack.c.l.s4 1983009808
    %v1362 = vunpack.c.0.s8 %v1361
    %v1363 = vlaneseq
    %v1364 = vshrl.u32 %v1363, 7
    %v1365 = vsub.s32 %v1362, %v1364
    %v1366 = vrot.slane %v1352, %v1365
    %v1367 = vcombine.low %v1311, %v1327
    %v1368 = vcombine.high %v1311, %v1327
    %v1370 = vunpack.c.l.s4 1934713408
    %v1371 = vunpack.c.0.s8 %v1370
    %v1372 = vlaneseq
    %v1373 = vshrl.u32 %v1372, 7
    %v1374 = vsub.s32 %v1371, %v1373
    %v1375 = vrot.slane %v1367, %v1374
    %v1377 = vunpack.c.l.s4 1934713408
    %v1378 = vunpack.c.0.s8 %v1377
    %v1379 = vlaneseq
    %v1380 = vshrl.u32 %v1379, 7
    %v1381 = vsub.s32 %v1378, %v1380
    %v1382 = vrot.slane %v1368, %v1381
    %v1383 = vcombine.low %v1318, %v1334
    %v1384 = vcombine.high %v1318, %v1334
    %v1386 = vunpack.c.l.s4 1934713408
    %v1387 = vunpack.c.0.s8 %v1386
    %v1388 = vlaneseq
    %v1389 = vshrl.u32 %v1388, 7
    %v1390 = vsub.s32 %v1387, %v1389
    %v1391 = vrot.slane %v1383, %v1390
    %v1393 = vunpack.c.l.s4 1934713408
    %v1394 = vunpack.c.0.s8 %v1393
    %v1395 = vlaneseq
    %v1396 = vshrl.u32 %v1395, 7
    %v1397 = vsub.s32 %v1394, %v1396
    %v1398 = vrot.slane %v1384, %v1397
    %v1399 = vcombine.low %v1343, %v1359
    %v1400 = vcombine.high %v1343, %v1359
    %v1402 = vunpack.c.l.s4 1934713408
    %v1403 = vunpack.c.0.s8 %v1402
    %v1404 = vlaneseq
    %v1405 = vshrl.u32 %v1404, 7
    %v1406 = vsub.s32 %v1403, %v1405
    %v1407 = vrot.slane %v1399, %v1406
    %v1409 = vunpack.c.l.s4 1934713408
    %v1410 = vunpack.c.0.s8 %v1409
    %v1411 = vlaneseq
    %v1412 = vshrl.u32 %v1411, 7
    %v1413 = vsub.s32 %v1410, %v1412
    %v1414 = vrot.slane %v1400, %v1413
    %v1415 = vcombine.low %v1350, %v1366
    %v1416 = vcombine.high %v1350, %v1366
    %v1418 = vunpack.c.l.s4 1934713408
    %v1419 = vunpack.c.0.s8 %v1418
    %v1420 = vlaneseq
    %v1421 = vshrl.u32 %v1420, 7
    %v1422 = vsub.s32 %v1419, %v1421
    %v1423 = vrot.slane %v1415, %v1422
    %v1425 = vunpack.c.l.s4 1934713408
    %v1426 = vunpack.c.0.s8 %v1425
    %v1427 = vlaneseq
    %v1428 = vshrl.u32 %v1427, 7
    %v1429 = vsub.s32 %v1426, %v1428
    %v1430 = vrot.slane %v1416, %v1429
    %v1431 = vcombine.low %v1375, %v1407
    %v1432 = vcombine.high %v1375, %v1407
    %v1433 = vcombine.low %v1382, %v1414
    %v1434 = vcombine.high %v1382, %v1414
    %v1435 = vcombine.low %v1391, %v1423
    %v1436 = vcombine.high %v1391, %v1423
    %v1437 = vcombine.low %v1398, %v1430
    %v1438 = vcombine.high %v1398, %v1430
    %1443 = vrot.lane.b32.xlu0 %v158, 112
    %v1444 = vpop.permute.xlu0 %1443
    %1445 = vrot.lane.b32.xlu0 %v164, 112
    %v1446 = vpop.permute.xlu0 %1445
    %1447 = vrot.lane.b32.xlu0 %v170, 112
    %v1448 = vpop.permute.xlu0 %1447
    %1449 = vrot.lane.b32.xlu0 %v176, 112
    %v1450 = vpop.permute.xlu0 %1449
    %1455 = vrot.lane.b32.xlu0 %v158, 96
    %v1456 = vpop.permute.xlu0 %1455
    %1457 = vrot.lane.b32.xlu0 %v164, 96
    %v1458 = vpop.permute.xlu0 %1457
    %1459 = vrot.lane.b32.xlu0 %v170, 96
    %v1460 = vpop.permute.xlu0 %1459
    %1461 = vrot.lane.b32.xlu0 %v176, 96
    %v1462 = vpop.permute.xlu0 %1461
    %1467 = vrot.lane.b32.xlu0 %v158, 80
    %v1468 = vpop.permute.xlu0 %1467
    %1469 = vrot.lane.b32.xlu0 %v164, 80
    %v1470 = vpop.permute.xlu0 %1469
    %1471 = vrot.lane.b32.xlu0 %v170, 80
    %v1472 = vpop.permute.xlu0 %1471
    %1473 = vrot.lane.b32.xlu0 %v176, 80
    %v1474 = vpop.permute.xlu0 %1473
    %1479 = vrot.lane.b32.xlu0 %v158, 64
    %v1480 = vpop.permute.xlu0 %1479
    %1481 = vrot.lane.b32.xlu0 %v164, 64
    %v1482 = vpop.permute.xlu0 %1481
    %1483 = vrot.lane.b32.xlu0 %v170, 64
    %v1484 = vpop.permute.xlu0 %1483
    %1485 = vrot.lane.b32.xlu0 %v176, 64
    %v1486 = vpop.permute.xlu0 %1485
    %1491 = vrot.lane.b32.xlu0 %v158, 48
    %v1492 = vpop.permute.xlu0 %1491
    %1493 = vrot.lane.b32.xlu0 %v164, 48
    %v1494 = vpop.permute.xlu0 %1493
    %1495 = vrot.lane.b32.xlu0 %v170, 48
    %v1496 = vpop.permute.xlu0 %1495
    %1497 = vrot.lane.b32.xlu0 %v176, 48
    %v1498 = vpop.permute.xlu0 %1497
    %1503 = vrot.lane.b32.xlu0 %v158, 32
    %v1504 = vpop.permute.xlu0 %1503
    %1505 = vrot.lane.b32.xlu0 %v164, 32
    %v1506 = vpop.permute.xlu0 %1505
    %1507 = vrot.lane.b32.xlu0 %v170, 32
    %v1508 = vpop.permute.xlu0 %1507
    %1509 = vrot.lane.b32.xlu0 %v176, 32
    %v1510 = vpop.permute.xlu0 %1509
    %1515 = vrot.lane.b32.xlu0 %v158, 16
    %v1516 = vpop.permute.xlu0 %1515
    %1517 = vrot.lane.b32.xlu0 %v164, 16
    %v1518 = vpop.permute.xlu0 %1517
    %1519 = vrot.lane.b32.xlu0 %v170, 16
    %v1520 = vpop.permute.xlu0 %1519
    %1521 = vrot.lane.b32.xlu0 %v176, 16
    %v1522 = vpop.permute.xlu0 %1521
    %v1527 = vcombine.low %v158, %v1456
    %v1528 = vcombine.high %v158, %v1456
    %v1530 = vunpack.c.l.s4 1983009808
    %v1531 = vunpack.c.0.s8 %v1530
    %v1532 = vlaneseq
    %v1533 = vshrl.u32 %v1532, 7
    %v1534 = vsub.s32 %v1531, %v1533
    %v1535 = vrot.slane %v1527, %v1534
    %v1537 = vunpack.c.l.s4 1983009808
    %v1538 = vunpack.c.0.s8 %v1537
    %v1539 = vlaneseq
    %v1540 = vshrl.u32 %v1539, 7
    %v1541 = vsub.s32 %v1538, %v1540
    %v1542 = vrot.slane %v1528, %v1541
    %v1543 = vcombine.low %v1444, %v1468
    %v1544 = vcombine.high %v1444, %v1468
    %v1546 = vunpack.c.l.s4 1983009808
    %v1547 = vunpack.c.0.s8 %v1546
    %v1548 = vlaneseq
    %v1549 = vshrl.u32 %v1548, 7
    %v1550 = vsub.s32 %v1547, %v1549
    %v1551 = vrot.slane %v1543, %v1550
    %v1553 = vunpack.c.l.s4 1983009808
    %v1554 = vunpack.c.0.s8 %v1553
    %v1555 = vlaneseq
    %v1556 = vshrl.u32 %v1555, 7
    %v1557 = vsub.s32 %v1554, %v1556
    %v1558 = vrot.slane %v1544, %v1557
    %v1559 = vcombine.low %v1480, %v1504
    %v1560 = vcombine.high %v1480, %v1504
    %v1562 = vunpack.c.l.s4 1983009808
    %v1563 = vunpack.c.0.s8 %v1562
    %v1564 = vlaneseq
    %v1565 = vshrl.u32 %v1564, 7
    %v1566 = vsub.s32 %v1563, %v1565
    %v1567 = vrot.slane %v1559, %v1566
    %v1569 = vunpack.c.l.s4 1983009808
    %v1570 = vunpack.c.0.s8 %v1569
    %v1571 = vlaneseq
    %v1572 = vshrl.u32 %v1571, 7
    %v1573 = vsub.s32 %v1570, %v1572
    %v1574 = vrot.slane %v1560, %v1573
    %v1575 = vcombine.low %v1492, %v1516
    %v1576 = vcombine.high %v1492, %v1516
    %v1578 = vunpack.c.l.s4 1983009808
    %v1579 = vunpack.c.0.s8 %v1578
    %v1580 = vlaneseq
    %v1581 = vshrl.u32 %v1580, 7
    %v1582 = vsub.s32 %v1579, %v1581
    %v1583 = vrot.slane %v1575, %v1582
    %v1585 = vunpack.c.l.s4 1983009808
    %v1586 = vunpack.c.0.s8 %v1585
    %v1587 = vlaneseq
    %v1588 = vshrl.u32 %v1587, 7
    %v1589 = vsub.s32 %v1586, %v1588
    %v1590 = vrot.slane %v1576, %v1589
    %v1591 = vcombine.low %v1535, %v1551
    %v1592 = vcombine.high %v1535, %v1551
    %v1594 = vunpack.c.l.s4 1934713408
    %v1595 = vunpack.c.0.s8 %v1594
    %v1596 = vlaneseq
    %v1597 = vshrl.u32 %v1596, 7
    %v1598 = vsub.s32 %v1595, %v1597
    %v1599 = vrot.slane %v1591, %v1598
    %v1601 = vunpack.c.l.s4 1934713408
    %v1602 = vunpack.c.0.s8 %v1601
    %v1603 = vlaneseq
    %v1604 = vshrl.u32 %v1603, 7
    %v1605 = vsub.s32 %v1602, %v1604
    %v1606 = vrot.slane %v1592, %v1605
    %v1607 = vcombine.low %v1542, %v1558
    %v1608 = vcombine.high %v1542, %v1558
    %v1610 = vunpack.c.l.s4 1934713408
    %v1611 = vunpack.c.0.s8 %v1610
    %v1612 = vlaneseq
    %v1613 = vshrl.u32 %v1612, 7
    %v1614 = vsub.s32 %v1611, %v1613
    %v1615 = vrot.slane %v1607, %v1614
    %v1617 = vunpack.c.l.s4 1934713408
    %v1618 = vunpack.c.0.s8 %v1617
    %v1619 = vlaneseq
    %v1620 = vshrl.u32 %v1619, 7
    %v1621 = vsub.s32 %v1618, %v1620
    %v1622 = vrot.slane %v1608, %v1621
    %v1623 = vcombine.low %v1567, %v1583
    %v1624 = vcombine.high %v1567, %v1583
    %v1626 = vunpack.c.l.s4 1934713408
    %v1627 = vunpack.c.0.s8 %v1626
    %v1628 = vlaneseq
    %v1629 = vshrl.u32 %v1628, 7
    %v1630 = vsub.s32 %v1627, %v1629
    %v1631 = vrot.slane %v1623, %v1630
    %v1633 = vunpack.c.l.s4 1934713408
    %v1634 = vunpack.c.0.s8 %v1633
    %v1635 = vlaneseq
    %v1636 = vshrl.u32 %v1635, 7
    %v1637 = vsub.s32 %v1634, %v1636
    %v1638 = vrot.slane %v1624, %v1637
    %v1639 = vcombine.low %v1574, %v1590
    %v1640 = vcombine.high %v1574, %v1590
    %v1642 = vunpack.c.l.s4 1934713408
    %v1643 = vunpack.c.0.s8 %v1642
    %v1644 = vlaneseq
    %v1645 = vshrl.u32 %v1644, 7
    %v1646 = vsub.s32 %v1643, %v1645
    %v1647 = vrot.slane %v1639, %v1646
    %v1649 = vunpack.c.l.s4 1934713408
    %v1650 = vunpack.c.0.s8 %v1649
    %v1651 = vlaneseq
    %v1652 = vshrl.u32 %v1651, 7
    %v1653 = vsub.s32 %v1650, %v1652
    %v1654 = vrot.slane %v1640, %v1653
    %v1655 = vcombine.low %v1599, %v1631
    %v1656 = vcombine.high %v1599, %v1631
    %v1657 = vcombine.low %v1606, %v1638
    %v1658 = vcombine.high %v1606, %v1638
    %v1659 = vcombine.low %v1615, %v1647
    %v1660 = vcombine.high %v1615, %v1647
    %v1661 = vcombine.low %v1622, %v1654
    %v1662 = vcombine.high %v1622, %v1654
    %v1663 = vcombine.low %v164, %v1458
    %v1664 = vcombine.high %v164, %v1458
    %v1666 = vunpack.c.l.s4 1983009808
    %v1667 = vunpack.c.0.s8 %v1666
    %v1668 = vlaneseq
    %v1669 = vshrl.u32 %v1668, 7
    %v1670 = vsub.s32 %v1667, %v1669
    %v1671 = vrot.slane %v1663, %v1670
    %v1673 = vunpack.c.l.s4 1983009808
    %v1674 = vunpack.c.0.s8 %v1673
    %v1675 = vlaneseq
    %v1676 = vshrl.u32 %v1675, 7
    %v1677 = vsub.s32 %v1674, %v1676
    %v1678 = vrot.slane %v1664, %v1677
    %v1679 = vcombine.low %v1446, %v1470
    %v1680 = vcombine.high %v1446, %v1470
    %v1682 = vunpack.c.l.s4 1983009808
    %v1683 = vunpack.c.0.s8 %v1682
    %v1684 = vlaneseq
    %v1685 = vshrl.u32 %v1684, 7
    %v1686 = vsub.s32 %v1683, %v1685
    %v1687 = vrot.slane %v1679, %v1686
    %v1689 = vunpack.c.l.s4 1983009808
    %v1690 = vunpack.c.0.s8 %v1689
    %v1691 = vlaneseq
    %v1692 = vshrl.u32 %v1691, 7
    %v1693 = vsub.s32 %v1690, %v1692
    %v1694 = vrot.slane %v1680, %v1693
    %v1695 = vcombine.low %v1482, %v1506
    %v1696 = vcombine.high %v1482, %v1506
    %v1698 = vunpack.c.l.s4 1983009808
    %v1699 = vunpack.c.0.s8 %v1698
    %v1700 = vlaneseq
    %v1701 = vshrl.u32 %v1700, 7
    %v1702 = vsub.s32 %v1699, %v1701
    %v1703 = vrot.slane %v1695, %v1702
    %v1705 = vunpack.c.l.s4 1983009808
    %v1706 = vunpack.c.0.s8 %v1705
    %v1707 = vlaneseq
    %v1708 = vshrl.u32 %v1707, 7
    %v1709 = vsub.s32 %v1706, %v1708
    %v1710 = vrot.slane %v1696, %v1709
    %v1711 = vcombine.low %v1494, %v1518
    %v1712 = vcombine.high %v1494, %v1518
    %v1714 = vunpack.c.l.s4 1983009808
    %v1715 = vunpack.c.0.s8 %v1714
    %v1716 = vlaneseq
    %v1717 = vshrl.u32 %v1716, 7
    %v1718 = vsub.s32 %v1715, %v1717
    %v1719 = vrot.slane %v1711, %v1718
    %v1721 = vunpack.c.l.s4 1983009808
    %v1722 = vunpack.c.0.s8 %v1721
    %v1723 = vlaneseq
    %v1724 = vshrl.u32 %v1723, 7
    %v1725 = vsub.s32 %v1722, %v1724
    %v1726 = vrot.slane %v1712, %v1725
    %v1727 = vcombine.low %v1671, %v1687
    %v1728 = vcombine.high %v1671, %v1687
    %v1730 = vunpack.c.l.s4 1934713408
    %v1731 = vunpack.c.0.s8 %v1730
    %v1732 = vlaneseq
    %v1733 = vshrl.u32 %v1732, 7
    %v1734 = vsub.s32 %v1731, %v1733
    %v1735 = vrot.slane %v1727, %v1734
    %v1737 = vunpack.c.l.s4 1934713408
    %v1738 = vunpack.c.0.s8 %v1737
    %v1739 = vlaneseq
    %v1740 = vshrl.u32 %v1739, 7
    %v1741 = vsub.s32 %v1738, %v1740
    %v1742 = vrot.slane %v1728, %v1741
    %v1743 = vcombine.low %v1678, %v1694
    %v1744 = vcombine.high %v1678, %v1694
    %v1746 = vunpack.c.l.s4 1934713408
    %v1747 = vunpack.c.0.s8 %v1746
    %v1748 = vlaneseq
    %v1749 = vshrl.u32 %v1748, 7
    %v1750 = vsub.s32 %v1747, %v1749
    %v1751 = vrot.slane %v1743, %v1750
    %v1753 = vunpack.c.l.s4 1934713408
    %v1754 = vunpack.c.0.s8 %v1753
    %v1755 = vlaneseq
    %v1756 = vshrl.u32 %v1755, 7
    %v1757 = vsub.s32 %v1754, %v1756
    %v1758 = vrot.slane %v1744, %v1757
    %v1759 = vcombine.low %v1703, %v1719
    %v1760 = vcombine.high %v1703, %v1719
    %v1762 = vunpack.c.l.s4 1934713408
    %v1763 = vunpack.c.0.s8 %v1762
    %v1764 = vlaneseq
    %v1765 = vshrl.u32 %v1764, 7
    %v1766 = vsub.s32 %v1763, %v1765
    %v1767 = vrot.slane %v1759, %v1766
    %v1769 = vunpack.c.l.s4 1934713408
    %v1770 = vunpack.c.0.s8 %v1769
    %v1771 = vlaneseq
    %v1772 = vshrl.u32 %v1771, 7
    %v1773 = vsub.s32 %v1770, %v1772
    %v1774 = vrot.slane %v1760, %v1773
    %v1775 = vcombine.low %v1710, %v1726
    %v1776 = vcombine.high %v1710, %v1726
    %v1778 = vunpack.c.l.s4 1934713408
    %v1779 = vunpack.c.0.s8 %v1778
    %v1780 = vlaneseq
    %v1781 = vshrl.u32 %v1780, 7
    %v1782 = vsub.s32 %v1779, %v1781
    %v1783 = vrot.slane %v1775, %v1782
    %v1785 = vunpack.c.l.s4 1934713408
    %v1786 = vunpack.c.0.s8 %v1785
    %v1787 = vlaneseq
    %v1788 = vshrl.u32 %v1787, 7
    %v1789 = vsub.s32 %v1786, %v1788
    %v1790 = vrot.slane %v1776, %v1789
    %v1791 = vcombine.low %v1735, %v1767
    %v1792 = vcombine.high %v1735, %v1767
    %v1793 = vcombine.low %v1742, %v1774
    %v1794 = vcombine.high %v1742, %v1774
    %v1795 = vcombine.low %v1751, %v1783
    %v1796 = vcombine.high %v1751, %v1783
    %v1797 = vcombine.low %v1758, %v1790
    %v1798 = vcombine.high %v1758, %v1790
    %v1799 = vcombine.low %v170, %v1460
    %v1800 = vcombine.high %v170, %v1460
    %v1802 = vunpack.c.l.s4 1983009808
    %v1803 = vunpack.c.0.s8 %v1802
    %v1804 = vlaneseq
    %v1805 = vshrl.u32 %v1804, 7
    %v1806 = vsub.s32 %v1803, %v1805
    %v1807 = vrot.slane %v1799, %v1806
    %v1809 = vunpack.c.l.s4 1983009808
    %v1810 = vunpack.c.0.s8 %v1809
    %v1811 = vlaneseq
    %v1812 = vshrl.u32 %v1811, 7
    %v1813 = vsub.s32 %v1810, %v1812
    %v1814 = vrot.slane %v1800, %v1813
    %v1815 = vcombine.low %v1448, %v1472
    %v1816 = vcombine.high %v1448, %v1472
    %v1818 = vunpack.c.l.s4 1983009808
    %v1819 = vunpack.c.0.s8 %v1818
    %v1820 = vlaneseq
    %v1821 = vshrl.u32 %v1820, 7
    %v1822 = vsub.s32 %v1819, %v1821
    %v1823 = vrot.slane %v1815, %v1822
    %v1825 = vunpack.c.l.s4 1983009808
    %v1826 = vunpack.c.0.s8 %v1825
    %v1827 = vlaneseq
    %v1828 = vshrl.u32 %v1827, 7
    %v1829 = vsub.s32 %v1826, %v1828
    %v1830 = vrot.slane %v1816, %v1829
    %v1831 = vcombine.low %v1484, %v1508
    %v1832 = vcombine.high %v1484, %v1508
    %v1834 = vunpack.c.l.s4 1983009808
    %v1835 = vunpack.c.0.s8 %v1834
    %v1836 = vlaneseq
    %v1837 = vshrl.u32 %v1836, 7
    %v1838 = vsub.s32 %v1835, %v1837
    %v1839 = vrot.slane %v1831, %v1838
    %v1841 = vunpack.c.l.s4 1983009808
    %v1842 = vunpack.c.0.s8 %v1841
    %v1843 = vlaneseq
    %v1844 = vshrl.u32 %v1843, 7
    %v1845 = vsub.s32 %v1842, %v1844
    %v1846 = vrot.slane %v1832, %v1845
    %v1847 = vcombine.low %v1496, %v1520
    %v1848 = vcombine.high %v1496, %v1520
    %v1850 = vunpack.c.l.s4 1983009808
    %v1851 = vunpack.c.0.s8 %v1850
    %v1852 = vlaneseq
    %v1853 = vshrl.u32 %v1852, 7
    %v1854 = vsub.s32 %v1851, %v1853
    %v1855 = vrot.slane %v1847, %v1854
    %v1857 = vunpack.c.l.s4 1983009808
    %v1858 = vunpack.c.0.s8 %v1857
    %v1859 = vlaneseq
    %v1860 = vshrl.u32 %v1859, 7
    %v1861 = vsub.s32 %v1858, %v1860
    %v1862 = vrot.slane %v1848, %v1861
    %v1863 = vcombine.low %v1807, %v1823
    %v1864 = vcombine.high %v1807, %v1823
    %v1866 = vunpack.c.l.s4 1934713408
    %v1867 = vunpack.c.0.s8 %v1866
    %v1868 = vlaneseq
    %v1869 = vshrl.u32 %v1868, 7
    %v1870 = vsub.s32 %v1867, %v1869
    %v1871 = vrot.slane %v1863, %v1870
    %v1873 = vunpack.c.l.s4 1934713408
    %v1874 = vunpack.c.0.s8 %v1873
    %v1875 = vlaneseq
    %v1876 = vshrl.u32 %v1875, 7
    %v1877 = vsub.s32 %v1874, %v1876
    %v1878 = vrot.slane %v1864, %v1877
    %v1879 = vcombine.low %v1814, %v1830
    %v1880 = vcombine.high %v1814, %v1830
    %v1882 = vunpack.c.l.s4 1934713408
    %v1883 = vunpack.c.0.s8 %v1882
    %v1884 = vlaneseq
    %v1885 = vshrl.u32 %v1884, 7
    %v1886 = vsub.s32 %v1883, %v1885
    %v1887 = vrot.slane %v1879, %v1886
    %v1889 = vunpack.c.l.s4 1934713408
    %v1890 = vunpack.c.0.s8 %v1889
    %v1891 = vlaneseq
    %v1892 = vshrl.u32 %v1891, 7
    %v1893 = vsub.s32 %v1890, %v1892
    %v1894 = vrot.slane %v1880, %v1893
    %v1895 = vcombine.low %v1839, %v1855
    %v1896 = vcombine.high %v1839, %v1855
    %v1898 = vunpack.c.l.s4 1934713408
    %v1899 = vunpack.c.0.s8 %v1898
    %v1900 = vlaneseq
    %v1901 = vshrl.u32 %v1900, 7
    %v1902 = vsub.s32 %v1899, %v1901
    %v1903 = vrot.slane %v1895, %v1902
    %v1905 = vunpack.c.l.s4 1934713408
    %v1906 = vunpack.c.0.s8 %v1905
    %v1907 = vlaneseq
    %v1908 = vshrl.u32 %v1907, 7
    %v1909 = vsub.s32 %v1906, %v1908
    %v1910 = vrot.slane %v1896, %v1909
    %v1911 = vcombine.low %v1846, %v1862
    %v1912 = vcombine.high %v1846, %v1862
    %v1914 = vunpack.c.l.s4 1934713408
    %v1915 = vunpack.c.0.s8 %v1914
    %v1916 = vlaneseq
    %v1917 = vshrl.u32 %v1916, 7
    %v1918 = vsub.s32 %v1915, %v1917
    %v1919 = vrot.slane %v1911, %v1918
    %v1921 = vunpack.c.l.s4 1934713408
    %v1922 = vunpack.c.0.s8 %v1921
    %v1923 = vlaneseq
    %v1924 = vshrl.u32 %v1923, 7
    %v1925 = vsub.s32 %v1922, %v1924
    %v1926 = vrot.slane %v1912, %v1925
    %v1927 = vcombine.low %v1871, %v1903
    %v1928 = vcombine.high %v1871, %v1903
    %v1929 = vcombine.low %v1878, %v1910
    %v1930 = vcombine.high %v1878, %v1910
    %v1931 = vcombine.low %v1887, %v1919
    %v1932 = vcombine.high %v1887, %v1919
    %v1933 = vcombine.low %v1894, %v1926
    %v1934 = vcombine.high %v1894, %v1926
    %v1935 = vcombine.low %v176, %v1462
    %v1936 = vcombine.high %v176, %v1462
    %v1938 = vunpack.c.l.s4 1983009808
    %v1939 = vunpack.c.0.s8 %v1938
    %v1940 = vlaneseq
    %v1941 = vshrl.u32 %v1940, 7
    %v1942 = vsub.s32 %v1939, %v1941
    %v1943 = vrot.slane %v1935, %v1942
    %v1945 = vunpack.c.l.s4 1983009808
    %v1946 = vunpack.c.0.s8 %v1945
    %v1947 = vlaneseq
    %v1948 = vshrl.u32 %v1947, 7
    %v1949 = vsub.s32 %v1946, %v1948
    %v1950 = vrot.slane %v1936, %v1949
    %v1951 = vcombine.low %v1450, %v1474
    %v1952 = vcombine.high %v1450, %v1474
    %v1954 = vunpack.c.l.s4 1983009808
    %v1955 = vunpack.c.0.s8 %v1954
    %v1956 = vlaneseq
    %v1957 = vshrl.u32 %v1956, 7
    %v1958 = vsub.s32 %v1955, %v1957
    %v1959 = vrot.slane %v1951, %v1958
    %v1961 = vunpack.c.l.s4 1983009808
    %v1962 = vunpack.c.0.s8 %v1961
    %v1963 = vlaneseq
    %v1964 = vshrl.u32 %v1963, 7
    %v1965 = vsub.s32 %v1962, %v1964
    %v1966 = vrot.slane %v1952, %v1965
    %v1967 = vcombine.low %v1486, %v1510
    %v1968 = vcombine.high %v1486, %v1510
    %v1970 = vunpack.c.l.s4 1983009808
    %v1971 = vunpack.c.0.s8 %v1970
    %v1972 = vlaneseq
    %v1973 = vshrl.u32 %v1972, 7
    %v1974 = vsub.s32 %v1971, %v1973
    %v1975 = vrot.slane %v1967, %v1974
    %v1977 = vunpack.c.l.s4 1983009808
    %v1978 = vunpack.c.0.s8 %v1977
    %v1979 = vlaneseq
    %v1980 = vshrl.u32 %v1979, 7
    %v1981 = vsub.s32 %v1978, %v1980
    %v1982 = vrot.slane %v1968, %v1981
    %v1983 = vcombine.low %v1498, %v1522
    %v1984 = vcombine.high %v1498, %v1522
    %v1986 = vunpack.c.l.s4 1983009808
    %v1987 = vunpack.c.0.s8 %v1986
    %v1988 = vlaneseq
    %v1989 = vshrl.u32 %v1988, 7
    %v1990 = vsub.s32 %v1987, %v1989
    %v1991 = vrot.slane %v1983, %v1990
    %v1993 = vunpack.c.l.s4 1983009808
    %v1994 = vunpack.c.0.s8 %v1993
    %v1995 = vlaneseq
    %v1996 = vshrl.u32 %v1995, 7
    %v1997 = vsub.s32 %v1994, %v1996
    %v1998 = vrot.slane %v1984, %v1997
    %v1999 = vcombine.low %v1943, %v1959
    %v2000 = vcombine.high %v1943, %v1959
    %v2002 = vunpack.c.l.s4 1934713408
    %v2003 = vunpack.c.0.s8 %v2002
    %v2004 = vlaneseq
    %v2005 = vshrl.u32 %v2004, 7
    %v2006 = vsub.s32 %v2003, %v2005
    %v2007 = vrot.slane %v1999, %v2006
    %v2009 = vunpack.c.l.s4 1934713408
    %v2010 = vunpack.c.0.s8 %v2009
    %v2011 = vlaneseq
    %v2012 = vshrl.u32 %v2011, 7
    %v2013 = vsub.s32 %v2010, %v2012
    %v2014 = vrot.slane %v2000, %v2013
    %v2015 = vcombine.low %v1950, %v1966
    %v2016 = vcombine.high %v1950, %v1966
    %v2018 = vunpack.c.l.s4 1934713408
    %v2019 = vunpack.c.0.s8 %v2018
    %v2020 = vlaneseq
    %v2021 = vshrl.u32 %v2020, 7
    %v2022 = vsub.s32 %v2019, %v2021
    %v2023 = vrot.slane %v2015, %v2022
    %v2025 = vunpack.c.l.s4 1934713408
    %v2026 = vunpack.c.0.s8 %v2025
    %v2027 = vlaneseq
    %v2028 = vshrl.u32 %v2027, 7
    %v2029 = vsub.s32 %v2026, %v2028
    %v2030 = vrot.slane %v2016, %v2029
    %v2031 = vcombine.low %v1975, %v1991
    %v2032 = vcombine.high %v1975, %v1991
    %v2034 = vunpack.c.l.s4 1934713408
    %v2035 = vunpack.c.0.s8 %v2034
    %v2036 = vlaneseq
    %v2037 = vshrl.u32 %v2036, 7
    %v2038 = vsub.s32 %v2035, %v2037
    %v2039 = vrot.slane %v2031, %v2038
    %v2041 = vunpack.c.l.s4 1934713408
    %v2042 = vunpack.c.0.s8 %v2041
    %v2043 = vlaneseq
    %v2044 = vshrl.u32 %v2043, 7
    %v2045 = vsub.s32 %v2042, %v2044
    %v2046 = vrot.slane %v2032, %v2045
    %v2047 = vcombine.low %v1982, %v1998
    %v2048 = vcombine.high %v1982, %v1998
    %v2050 = vunpack.c.l.s4 1934713408
    %v2051 = vunpack.c.0.s8 %v2050
    %v2052 = vlaneseq
    %v2053 = vshrl.u32 %v2052, 7
    %v2054 = vsub.s32 %v2051, %v2053
    %v2055 = vrot.slane %v2047, %v2054
    %v2057 = vunpack.c.l.s4 1934713408
    %v2058 = vunpack.c.0.s8 %v2057
    %v2059 = vlaneseq
    %v2060 = vshrl.u32 %v2059, 7
    %v2061 = vsub.s32 %v2058, %v2060
    %v2062 = vrot.slane %v2048, %v2061
    %v2063 = vcombine.low %v2007, %v2039
    %v2064 = vcombine.high %v2007, %v2039
    %v2065 = vcombine.low %v2014, %v2046
    %v2066 = vcombine.high %v2014, %v2046
    %v2067 = vcombine.low %v2023, %v2055
    %v2068 = vcombine.high %v2023, %v2055
    %v2069 = vcombine.low %v2030, %v2062
    %v2070 = vcombine.high %v2030, %v2062
    %v2071 = vcombine.low %v1655, %v1657
    %v2072 = vcombine.high %v1655, %v1657
    %v2074 = vunpack.c.l.s4 1983009808
    %v2075 = vunpack.c.0.s8 %v2074
    %v2076 = vlaneseq
    %v2077 = vshrl.u32 %v2076, 7
    %v2078 = vsub.s32 %v2075, %v2077
    %v2079 = vrot.slane %v2071, %v2078
    %v2081 = vunpack.c.l.s4 1983009808
    %v2082 = vunpack.c.0.s8 %v2081
    %v2083 = vlaneseq
    %v2084 = vshrl.u32 %v2083, 7
    %v2085 = vsub.s32 %v2082, %v2084
    %v2086 = vrot.slane %v2072, %v2085
    %v2087 = vcombine.low %v1656, %v1658
    %v2088 = vcombine.high %v1656, %v1658
    %v2090 = vunpack.c.l.s4 1983009808
    %v2091 = vunpack.c.0.s8 %v2090
    %v2092 = vlaneseq
    %v2093 = vshrl.u32 %v2092, 7
    %v2094 = vsub.s32 %v2091, %v2093
    %v2095 = vrot.slane %v2087, %v2094
    %v2097 = vunpack.c.l.s4 1983009808
    %v2098 = vunpack.c.0.s8 %v2097
    %v2099 = vlaneseq
    %v2100 = vshrl.u32 %v2099, 7
    %v2101 = vsub.s32 %v2098, %v2100
    %v2102 = vrot.slane %v2088, %v2101
    %v2103 = vcombine.low %v1659, %v1661
    %v2104 = vcombine.high %v1659, %v1661
    %v2106 = vunpack.c.l.s4 1983009808
    %v2107 = vunpack.c.0.s8 %v2106
    %v2108 = vlaneseq
    %v2109 = vshrl.u32 %v2108, 7
    %v2110 = vsub.s32 %v2107, %v2109
    %v2111 = vrot.slane %v2103, %v2110
    %v2113 = vunpack.c.l.s4 1983009808
    %v2114 = vunpack.c.0.s8 %v2113
    %v2115 = vlaneseq
    %v2116 = vshrl.u32 %v2115, 7
    %v2117 = vsub.s32 %v2114, %v2116
    %v2118 = vrot.slane %v2104, %v2117
    %v2119 = vcombine.low %v1660, %v1662
    %v2120 = vcombine.high %v1660, %v1662
    %v2122 = vunpack.c.l.s4 1983009808
    %v2123 = vunpack.c.0.s8 %v2122
    %v2124 = vlaneseq
    %v2125 = vshrl.u32 %v2124, 7
    %v2126 = vsub.s32 %v2123, %v2125
    %v2127 = vrot.slane %v2119, %v2126
    %v2129 = vunpack.c.l.s4 1983009808
    %v2130 = vunpack.c.0.s8 %v2129
    %v2131 = vlaneseq
    %v2132 = vshrl.u32 %v2131, 7
    %v2133 = vsub.s32 %v2130, %v2132
    %v2134 = vrot.slane %v2120, %v2133
    %v2135 = vcombine.low %v2079, %v2095
    %v2136 = vcombine.high %v2079, %v2095
    %v2138 = vunpack.c.l.s4 1934713408
    %v2139 = vunpack.c.0.s8 %v2138
    %v2140 = vlaneseq
    %v2141 = vshrl.u32 %v2140, 7
    %v2142 = vsub.s32 %v2139, %v2141
    %v2143 = vrot.slane %v2135, %v2142
    %v2145 = vunpack.c.l.s4 1934713408
    %v2146 = vunpack.c.0.s8 %v2145
    %v2147 = vlaneseq
    %v2148 = vshrl.u32 %v2147, 7
    %v2149 = vsub.s32 %v2146, %v2148
    %v2150 = vrot.slane %v2136, %v2149
    %v2151 = vcombine.low %v2086, %v2102
    %v2152 = vcombine.high %v2086, %v2102
    %v2154 = vunpack.c.l.s4 1934713408
    %v2155 = vunpack.c.0.s8 %v2154
    %v2156 = vlaneseq
    %v2157 = vshrl.u32 %v2156, 7
    %v2158 = vsub.s32 %v2155, %v2157
    %v2159 = vrot.slane %v2151, %v2158
    %v2161 = vunpack.c.l.s4 1934713408
    %v2162 = vunpack.c.0.s8 %v2161
    %v2163 = vlaneseq
    %v2164 = vshrl.u32 %v2163, 7
    %v2165 = vsub.s32 %v2162, %v2164
    %v2166 = vrot.slane %v2152, %v2165
    %v2167 = vcombine.low %v2111, %v2127
    %v2168 = vcombine.high %v2111, %v2127
    %v2170 = vunpack.c.l.s4 1934713408
    %v2171 = vunpack.c.0.s8 %v2170
    %v2172 = vlaneseq
    %v2173 = vshrl.u32 %v2172, 7
    %v2174 = vsub.s32 %v2171, %v2173
    %v2175 = vrot.slane %v2167, %v2174
    %v2177 = vunpack.c.l.s4 1934713408
    %v2178 = vunpack.c.0.s8 %v2177
    %v2179 = vlaneseq
    %v2180 = vshrl.u32 %v2179, 7
    %v2181 = vsub.s32 %v2178, %v2180
    %v2182 = vrot.slane %v2168, %v2181
    %v2183 = vcombine.low %v2118, %v2134
    %v2184 = vcombine.high %v2118, %v2134
    %v2186 = vunpack.c.l.s4 1934713408
    %v2187 = vunpack.c.0.s8 %v2186
    %v2188 = vlaneseq
    %v2189 = vshrl.u32 %v2188, 7
    %v2190 = vsub.s32 %v2187, %v2189
    %v2191 = vrot.slane %v2183, %v2190
    %v2193 = vunpack.c.l.s4 1934713408
    %v2194 = vunpack.c.0.s8 %v2193
    %v2195 = vlaneseq
    %v2196 = vshrl.u32 %v2195, 7
    %v2197 = vsub.s32 %v2194, %v2196
    %v2198 = vrot.slane %v2184, %v2197
    %v2199 = vcombine.low %v2143, %v2175
    %v2200 = vcombine.high %v2143, %v2175
    %v2201 = vcombine.low %v2150, %v2182
    %v2202 = vcombine.high %v2150, %v2182
    %v2203 = vcombine.low %v2159, %v2191
    %v2204 = vcombine.high %v2159, %v2191
    %v2205 = vcombine.low %v2166, %v2198
    %v2206 = vcombine.high %v2166, %v2198
    %v2207 = vcombine.low %v1791, %v1793
    %v2208 = vcombine.high %v1791, %v1793
    %v2210 = vunpack.c.l.s4 1983009808
    %v2211 = vunpack.c.0.s8 %v2210
    %v2212 = vlaneseq
    %v2213 = vshrl.u32 %v2212, 7
    %v2214 = vsub.s32 %v2211, %v2213
    %v2215 = vrot.slane %v2207, %v2214
    %v2217 = vunpack.c.l.s4 1983009808
    %v2218 = vunpack.c.0.s8 %v2217
    %v2219 = vlaneseq
    %v2220 = vshrl.u32 %v2219, 7
    %v2221 = vsub.s32 %v2218, %v2220
    %v2222 = vrot.slane %v2208, %v2221
    %v2223 = vcombine.low %v1792, %v1794
    %v2224 = vcombine.high %v1792, %v1794
    %v2226 = vunpack.c.l.s4 1983009808
    %v2227 = vunpack.c.0.s8 %v2226
    %v2228 = vlaneseq
    %v2229 = vshrl.u32 %v2228, 7
    %v2230 = vsub.s32 %v2227, %v2229
    %v2231 = vrot.slane %v2223, %v2230
    %v2233 = vunpack.c.l.s4 1983009808
    %v2234 = vunpack.c.0.s8 %v2233
    %v2235 = vlaneseq
    %v2236 = vshrl.u32 %v2235, 7
    %v2237 = vsub.s32 %v2234, %v2236
    %v2238 = vrot.slane %v2224, %v2237
    %v2239 = vcombine.low %v1795, %v1797
    %v2240 = vcombine.high %v1795, %v1797
    %v2242 = vunpack.c.l.s4 1983009808
    %v2243 = vunpack.c.0.s8 %v2242
    %v2244 = vlaneseq
    %v2245 = vshrl.u32 %v2244, 7
    %v2246 = vsub.s32 %v2243, %v2245
    %v2247 = vrot.slane %v2239, %v2246
    %v2249 = vunpack.c.l.s4 1983009808
    %v2250 = vunpack.c.0.s8 %v2249
    %v2251 = vlaneseq
    %v2252 = vshrl.u32 %v2251, 7
    %v2253 = vsub.s32 %v2250, %v2252
    %v2254 = vrot.slane %v2240, %v2253
    %v2255 = vcombine.low %v1796, %v1798
    %v2256 = vcombine.high %v1796, %v1798
    %v2258 = vunpack.c.l.s4 1983009808
    %v2259 = vunpack.c.0.s8 %v2258
    %v2260 = vlaneseq
    %v2261 = vshrl.u32 %v2260, 7
    %v2262 = vsub.s32 %v2259, %v2261
    %v2263 = vrot.slane %v2255, %v2262
    %v2265 = vunpack.c.l.s4 1983009808
    %v2266 = vunpack.c.0.s8 %v2265
    %v2267 = vlaneseq
    %v2268 = vshrl.u32 %v2267, 7
    %v2269 = vsub.s32 %v2266, %v2268
    %v2270 = vrot.slane %v2256, %v2269
    %v2271 = vcombine.low %v2215, %v2231
    %v2272 = vcombine.high %v2215, %v2231
    %v2274 = vunpack.c.l.s4 1934713408
    %v2275 = vunpack.c.0.s8 %v2274
    %v2276 = vlaneseq
    %v2277 = vshrl.u32 %v2276, 7
    %v2278 = vsub.s32 %v2275, %v2277
    %v2279 = vrot.slane %v2271, %v2278
    %v2281 = vunpack.c.l.s4 1934713408
    %v2282 = vunpack.c.0.s8 %v2281
    %v2283 = vlaneseq
    %v2284 = vshrl.u32 %v2283, 7
    %v2285 = vsub.s32 %v2282, %v2284
    %v2286 = vrot.slane %v2272, %v2285
    %v2287 = vcombine.low %v2222, %v2238
    %v2288 = vcombine.high %v2222, %v2238
    %v2290 = vunpack.c.l.s4 1934713408
    %v2291 = vunpack.c.0.s8 %v2290
    %v2292 = vlaneseq
    %v2293 = vshrl.u32 %v2292, 7
    %v2294 = vsub.s32 %v2291, %v2293
    %v2295 = vrot.slane %v2287, %v2294
    %v2297 = vunpack.c.l.s4 1934713408
    %v2298 = vunpack.c.0.s8 %v2297
    %v2299 = vlaneseq
    %v2300 = vshrl.u32 %v2299, 7
    %v2301 = vsub.s32 %v2298, %v2300
    %v2302 = vrot.slane %v2288, %v2301
    %v2303 = vcombine.low %v2247, %v2263
    %v2304 = vcombine.high %v2247, %v2263
    %v2306 = vunpack.c.l.s4 1934713408
    %v2307 = vunpack.c.0.s8 %v2306
    %v2308 = vlaneseq
    %v2309 = vshrl.u32 %v2308, 7
    %v2310 = vsub.s32 %v2307, %v2309
    %v2311 = vrot.slane %v2303, %v2310
    %v2313 = vunpack.c.l.s4 1934713408
    %v2314 = vunpack.c.0.s8 %v2313
    %v2315 = vlaneseq
    %v2316 = vshrl.u32 %v2315, 7
    %v2317 = vsub.s32 %v2314, %v2316
    %v2318 = vrot.slane %v2304, %v2317
    %v2319 = vcombine.low %v2254, %v2270
    %v2320 = vcombine.high %v2254, %v2270
    %v2322 = vunpack.c.l.s4 1934713408
    %v2323 = vunpack.c.0.s8 %v2322
    %v2324 = vlaneseq
    %v2325 = vshrl.u32 %v2324, 7
    %v2326 = vsub.s32 %v2323, %v2325
    %v2327 = vrot.slane %v2319, %v2326
    %v2329 = vunpack.c.l.s4 1934713408
    %v2330 = vunpack.c.0.s8 %v2329
    %v2331 = vlaneseq
    %v2332 = vshrl.u32 %v2331, 7
    %v2333 = vsub.s32 %v2330, %v2332
    %v2334 = vrot.slane %v2320, %v2333
    %v2335 = vcombine.low %v2279, %v2311
    %v2336 = vcombine.high %v2279, %v2311
    %v2337 = vcombine.low %v2286, %v2318
    %v2338 = vcombine.high %v2286, %v2318
    %v2339 = vcombine.low %v2295, %v2327
    %v2340 = vcombine.high %v2295, %v2327
    %v2341 = vcombine.low %v2302, %v2334
    %v2342 = vcombine.high %v2302, %v2334
    %v2343 = vcombine.low %v1927, %v1929
    %v2344 = vcombine.high %v1927, %v1929
    %v2346 = vunpack.c.l.s4 1983009808
    %v2347 = vunpack.c.0.s8 %v2346
    %v2348 = vlaneseq
    %v2349 = vshrl.u32 %v2348, 7
    %v2350 = vsub.s32 %v2347, %v2349
    %v2351 = vrot.slane %v2343, %v2350
    %v2353 = vunpack.c.l.s4 1983009808
    %v2354 = vunpack.c.0.s8 %v2353
    %v2355 = vlaneseq
    %v2356 = vshrl.u32 %v2355, 7
    %v2357 = vsub.s32 %v2354, %v2356
    %v2358 = vrot.slane %v2344, %v2357
    %v2359 = vcombine.low %v1928, %v1930
    %v2360 = vcombine.high %v1928, %v1930
    %v2362 = vunpack.c.l.s4 1983009808
    %v2363 = vunpack.c.0.s8 %v2362
    %v2364 = vlaneseq
    %v2365 = vshrl.u32 %v2364, 7
    %v2366 = vsub.s32 %v2363, %v2365
    %v2367 = vrot.slane %v2359, %v2366
    %v2369 = vunpack.c.l.s4 1983009808
    %v2370 = vunpack.c.0.s8 %v2369
    %v2371 = vlaneseq
    %v2372 = vshrl.u32 %v2371, 7
    %v2373 = vsub.s32 %v2370, %v2372
    %v2374 = vrot.slane %v2360, %v2373
    %v2375 = vcombine.low %v1931, %v1933
    %v2376 = vcombine.high %v1931, %v1933
    %v2378 = vunpack.c.l.s4 1983009808
    %v2379 = vunpack.c.0.s8 %v2378
    %v2380 = vlaneseq
    %v2381 = vshrl.u32 %v2380, 7
    %v2382 = vsub.s32 %v2379, %v2381
    %v2383 = vrot.slane %v2375, %v2382
    %v2385 = vunpack.c.l.s4 1983009808
    %v2386 = vunpack.c.0.s8 %v2385
    %v2387 = vlaneseq
    %v2388 = vshrl.u32 %v2387, 7
    %v2389 = vsub.s32 %v2386, %v2388
    %v2390 = vrot.slane %v2376, %v2389
    %v2391 = vcombine.low %v1932, %v1934
    %v2392 = vcombine.high %v1932, %v1934
    %v2394 = vunpack.c.l.s4 1983009808
    %v2395 = vunpack.c.0.s8 %v2394
    %v2396 = vlaneseq
    %v2397 = vshrl.u32 %v2396, 7
    %v2398 = vsub.s32 %v2395, %v2397
    %v2399 = vrot.slane %v2391, %v2398
    %v2401 = vunpack.c.l.s4 1983009808
    %v2402 = vunpack.c.0.s8 %v2401
    %v2403 = vlaneseq
    %v2404 = vshrl.u32 %v2403, 7
    %v2405 = vsub.s32 %v2402, %v2404
    %v2406 = vrot.slane %v2392, %v2405
    %v2407 = vcombine.low %v2351, %v2367
    %v2408 = vcombine.high %v2351, %v2367
    %v2410 = vunpack.c.l.s4 1934713408
    %v2411 = vunpack.c.0.s8 %v2410
    %v2412 = vlaneseq
    %v2413 = vshrl.u32 %v2412, 7
    %v2414 = vsub.s32 %v2411, %v2413
    %v2415 = vrot.slane %v2407, %v2414
    %v2417 = vunpack.c.l.s4 1934713408
    %v2418 = vunpack.c.0.s8 %v2417
    %v2419 = vlaneseq
    %v2420 = vshrl.u32 %v2419, 7
    %v2421 = vsub.s32 %v2418, %v2420
    %v2422 = vrot.slane %v2408, %v2421
    %v2423 = vcombine.low %v2358, %v2374
    %v2424 = vcombine.high %v2358, %v2374
    %v2426 = vunpack.c.l.s4 1934713408
    %v2427 = vunpack.c.0.s8 %v2426
    %v2428 = vlaneseq
    %v2429 = vshrl.u32 %v2428, 7
    %v2430 = vsub.s32 %v2427, %v2429
    %v2431 = vrot.slane %v2423, %v2430
    %v2433 = vunpack.c.l.s4 1934713408
    %v2434 = vunpack.c.0.s8 %v2433
    %v2435 = vlaneseq
    %v2436 = vshrl.u32 %v2435, 7
    %v2437 = vsub.s32 %v2434, %v2436
    %v2438 = vrot.slane %v2424, %v2437
    %v2439 = vcombine.low %v2383, %v2399
    %v2440 = vcombine.high %v2383, %v2399
    %v2442 = vunpack.c.l.s4 1934713408
    %v2443 = vunpack.c.0.s8 %v2442
    %v2444 = vlaneseq
    %v2445 = vshrl.u32 %v2444, 7
    %v2446 = vsub.s32 %v2443, %v2445
    %v2447 = vrot.slane %v2439, %v2446
    %v2449 = vunpack.c.l.s4 1934713408
    %v2450 = vunpack.c.0.s8 %v2449
    %v2451 = vlaneseq
    %v2452 = vshrl.u32 %v2451, 7
    %v2453 = vsub.s32 %v2450, %v2452
    %v2454 = vrot.slane %v2440, %v2453
    %v2455 = vcombine.low %v2390, %v2406
    %v2456 = vcombine.high %v2390, %v2406
    %v2458 = vunpack.c.l.s4 1934713408
    %v2459 = vunpack.c.0.s8 %v2458
    %v2460 = vlaneseq
    %v2461 = vshrl.u32 %v2460, 7
    %v2462 = vsub.s32 %v2459, %v2461
    %v2463 = vrot.slane %v2455, %v2462
    %v2465 = vunpack.c.l.s4 1934713408
    %v2466 = vunpack.c.0.s8 %v2465
    %v2467 = vlaneseq
    %v2468 = vshrl.u32 %v2467, 7
    %v2469 = vsub.s32 %v2466, %v2468
    %v2470 = vrot.slane %v2456, %v2469
    %v2471 = vcombine.low %v2415, %v2447
    %v2472 = vcombine.high %v2415, %v2447
    %v2473 = vcombine.low %v2422, %v2454
    %v2474 = vcombine.high %v2422, %v2454
    %v2475 = vcombine.low %v2431, %v2463
    %v2476 = vcombine.high %v2431, %v2463
    %v2477 = vcombine.low %v2438, %v2470
    %v2478 = vcombine.high %v2438, %v2470
    %v2479 = vcombine.low %v2063, %v2065
    %v2480 = vcombine.high %v2063, %v2065
    %v2482 = vunpack.c.l.s4 1983009808
    %v2483 = vunpack.c.0.s8 %v2482
    %v2484 = vlaneseq
    %v2485 = vshrl.u32 %v2484, 7
    %v2486 = vsub.s32 %v2483, %v2485
    %v2487 = vrot.slane %v2479, %v2486
    %v2489 = vunpack.c.l.s4 1983009808
    %v2490 = vunpack.c.0.s8 %v2489
    %v2491 = vlaneseq
    %v2492 = vshrl.u32 %v2491, 7
    %v2493 = vsub.s32 %v2490, %v2492
    %v2494 = vrot.slane %v2480, %v2493
    %v2495 = vcombine.low %v2064, %v2066
    %v2496 = vcombine.high %v2064, %v2066
    %v2498 = vunpack.c.l.s4 1983009808
    %v2499 = vunpack.c.0.s8 %v2498
    %v2500 = vlaneseq
    %v2501 = vshrl.u32 %v2500, 7
    %v2502 = vsub.s32 %v2499, %v2501
    %v2503 = vrot.slane %v2495, %v2502
    %v2505 = vunpack.c.l.s4 1983009808
    %v2506 = vunpack.c.0.s8 %v2505
    %v2507 = vlaneseq
    %v2508 = vshrl.u32 %v2507, 7
    %v2509 = vsub.s32 %v2506, %v2508
    %v2510 = vrot.slane %v2496, %v2509
    %v2511 = vcombine.low %v2067, %v2069
    %v2512 = vcombine.high %v2067, %v2069
    %v2514 = vunpack.c.l.s4 1983009808
    %v2515 = vunpack.c.0.s8 %v2514
    %v2516 = vlaneseq
    %v2517 = vshrl.u32 %v2516, 7
    %v2518 = vsub.s32 %v2515, %v2517
    %v2519 = vrot.slane %v2511, %v2518
    %v2521 = vunpack.c.l.s4 1983009808
    %v2522 = vunpack.c.0.s8 %v2521
    %v2523 = vlaneseq
    %v2524 = vshrl.u32 %v2523, 7
    %v2525 = vsub.s32 %v2522, %v2524
    %v2526 = vrot.slane %v2512, %v2525
    %v2527 = vcombine.low %v2068, %v2070
    %v2528 = vcombine.high %v2068, %v2070
    %v2530 = vunpack.c.l.s4 1983009808
    %v2531 = vunpack.c.0.s8 %v2530
    %v2532 = vlaneseq
    %v2533 = vshrl.u32 %v2532, 7
    %v2534 = vsub.s32 %v2531, %v2533
    %v2535 = vrot.slane %v2527, %v2534
    %v2537 = vunpack.c.l.s4 1983009808
    %v2538 = vunpack.c.0.s8 %v2537
    %v2539 = vlaneseq
    %v2540 = vshrl.u32 %v2539, 7
    %v2541 = vsub.s32 %v2538, %v2540
    %v2542 = vrot.slane %v2528, %v2541
    %v2543 = vcombine.low %v2487, %v2503
    %v2544 = vcombine.high %v2487, %v2503
    %v2546 = vunpack.c.l.s4 1934713408
    %v2547 = vunpack.c.0.s8 %v2546
    %v2548 = vlaneseq
    %v2549 = vshrl.u32 %v2548, 7
    %v2550 = vsub.s32 %v2547, %v2549
    %v2551 = vrot.slane %v2543, %v2550
    %v2553 = vunpack.c.l.s4 1934713408
    %v2554 = vunpack.c.0.s8 %v2553
    %v2555 = vlaneseq
    %v2556 = vshrl.u32 %v2555, 7
    %v2557 = vsub.s32 %v2554, %v2556
    %v2558 = vrot.slane %v2544, %v2557
    %v2559 = vcombine.low %v2494, %v2510
    %v2560 = vcombine.high %v2494, %v2510
    %v2562 = vunpack.c.l.s4 1934713408
    %v2563 = vunpack.c.0.s8 %v2562
    %v2564 = vlaneseq
    %v2565 = vshrl.u32 %v2564, 7
    %v2566 = vsub.s32 %v2563, %v2565
    %v2567 = vrot.slane %v2559, %v2566
    %v2569 = vunpack.c.l.s4 1934713408
    %v2570 = vunpack.c.0.s8 %v2569
    %v2571 = vlaneseq
    %v2572 = vshrl.u32 %v2571, 7
    %v2573 = vsub.s32 %v2570, %v2572
    %v2574 = vrot.slane %v2560, %v2573
    %v2575 = vcombine.low %v2519, %v2535
    %v2576 = vcombine.high %v2519, %v2535
    %v2578 = vunpack.c.l.s4 1934713408
    %v2579 = vunpack.c.0.s8 %v2578
    %v2580 = vlaneseq
    %v2581 = vshrl.u32 %v2580, 7
    %v2582 = vsub.s32 %v2579, %v2581
    %v2583 = vrot.slane %v2575, %v2582
    %v2585 = vunpack.c.l.s4 1934713408
    %v2586 = vunpack.c.0.s8 %v2585
    %v2587 = vlaneseq
    %v2588 = vshrl.u32 %v2587, 7
    %v2589 = vsub.s32 %v2586, %v2588
    %v2590 = vrot.slane %v2576, %v2589
    %v2591 = vcombine.low %v2526, %v2542
    %v2592 = vcombine.high %v2526, %v2542
    %v2594 = vunpack.c.l.s4 1934713408
    %v2595 = vunpack.c.0.s8 %v2594
    %v2596 = vlaneseq
    %v2597 = vshrl.u32 %v2596, 7
    %v2598 = vsub.s32 %v2595, %v2597
    %v2599 = vrot.slane %v2591, %v2598
    %v2601 = vunpack.c.l.s4 1934713408
    %v2602 = vunpack.c.0.s8 %v2601
    %v2603 = vlaneseq
    %v2604 = vshrl.u32 %v2603, 7
    %v2605 = vsub.s32 %v2602, %v2604
    %v2606 = vrot.slane %v2592, %v2605
    %v2607 = vcombine.low %v2551, %v2583
    %v2608 = vcombine.high %v2551, %v2583
    %v2609 = vcombine.low %v2558, %v2590
    %v2610 = vcombine.high %v2558, %v2590
    %v2611 = vcombine.low %v2567, %v2599
    %v2612 = vcombine.high %v2567, %v2599
    %v2613 = vcombine.low %v2574, %v2606
    %v2614 = vcombine.high %v2574, %v2606
    %2619 = vrot.lane.b32.xlu0 %v245, 124
    %v2620 = vpop.permute.xlu0 %2619
    %2621 = vrot.lane.b32.xlu0 %v250, 124
    %v2622 = vpop.permute.xlu0 %2621
    %2623 = vrot.lane.b32.xlu0 %v255, 124
    %v2624 = vpop.permute.xlu0 %2623
    %2625 = vrot.lane.b32.xlu0 %v260, 124
    %v2626 = vpop.permute.xlu0 %2625
    %2631 = vrot.lane.b32.xlu0 %v245, 120
    %v2632 = vpop.permute.xlu0 %2631
    %2633 = vrot.lane.b32.xlu0 %v250, 120
    %v2634 = vpop.permute.xlu0 %2633
    %2635 = vrot.lane.b32.xlu0 %v255, 120
    %v2636 = vpop.permute.xlu0 %2635
    %2637 = vrot.lane.b32.xlu0 %v260, 120
    %v2638 = vpop.permute.xlu0 %2637
    %2643 = vrot.lane.b32.xlu0 %v245, 116
    %v2644 = vpop.permute.xlu0 %2643
    %2645 = vrot.lane.b32.xlu0 %v250, 116
    %v2646 = vpop.permute.xlu0 %2645
    %2647 = vrot.lane.b32.xlu0 %v255, 116
    %v2648 = vpop.permute.xlu0 %2647
    %2649 = vrot.lane.b32.xlu0 %v260, 116
    %v2650 = vpop.permute.xlu0 %2649
    %2655 = vrot.lane.b32.xlu0 %v245, 112
    %v2656 = vpop.permute.xlu0 %2655
    %2657 = vrot.lane.b32.xlu0 %v250, 112
    %v2658 = vpop.permute.xlu0 %2657
    %2659 = vrot.lane.b32.xlu0 %v255, 112
    %v2660 = vpop.permute.xlu0 %2659
    %2661 = vrot.lane.b32.xlu0 %v260, 112
    %v2662 = vpop.permute.xlu0 %2661
    %2667 = vrot.lane.b32.xlu0 %v245, 108
    %v2668 = vpop.permute.xlu0 %2667
    %2669 = vrot.lane.b32.xlu0 %v250, 108
    %v2670 = vpop.permute.xlu0 %2669
    %2671 = vrot.lane.b32.xlu0 %v255, 108
    %v2672 = vpop.permute.xlu0 %2671
    %2673 = vrot.lane.b32.xlu0 %v260, 108
    %v2674 = vpop.permute.xlu0 %2673
    %2679 = vrot.lane.b32.xlu0 %v245, 104
    %v2680 = vpop.permute.xlu0 %2679
    %2681 = vrot.lane.b32.xlu0 %v250, 104
    %v2682 = vpop.permute.xlu0 %2681
    %2683 = vrot.lane.b32.xlu0 %v255, 104
    %v2684 = vpop.permute.xlu0 %2683
    %2685 = vrot.lane.b32.xlu0 %v260, 104
    %v2686 = vpop.permute.xlu0 %2685
    %2691 = vrot.lane.b32.xlu0 %v245, 100
    %v2692 = vpop.permute.xlu0 %2691
    %2693 = vrot.lane.b32.xlu0 %v250, 100
    %v2694 = vpop.permute.xlu0 %2693
    %2695 = vrot.lane.b32.xlu0 %v255, 100
    %v2696 = vpop.permute.xlu0 %2695
    %2697 = vrot.lane.b32.xlu0 %v260, 100
    %v2698 = vpop.permute.xlu0 %2697
    %v2703 = vcombine.low %v245, %v2632
    %v2704 = vcombine.high %v245, %v2632
    %v2706 = vunpack.c.l.s4 1983009808
    %v2707 = vunpack.c.0.s8 %v2706
    %v2708 = vlaneseq
    %v2709 = vshrl.u32 %v2708, 7
    %v2710 = vsub.s32 %v2707, %v2709
    %v2711 = vrot.slane %v2703, %v2710
    %v2713 = vunpack.c.l.s4 1983009808
    %v2714 = vunpack.c.0.s8 %v2713
    %v2715 = vlaneseq
    %v2716 = vshrl.u32 %v2715, 7
    %v2717 = vsub.s32 %v2714, %v2716
    %v2718 = vrot.slane %v2704, %v2717
    %v2719 = vcombine.low %v2620, %v2644
    %v2720 = vcombine.high %v2620, %v2644
    %v2722 = vunpack.c.l.s4 1983009808
    %v2723 = vunpack.c.0.s8 %v2722
    %v2724 = vlaneseq
    %v2725 = vshrl.u32 %v2724, 7
    %v2726 = vsub.s32 %v2723, %v2725
    %v2727 = vrot.slane %v2719, %v2726
    %v2729 = vunpack.c.l.s4 1983009808
    %v2730 = vunpack.c.0.s8 %v2729
    %v2731 = vlaneseq
    %v2732 = vshrl.u32 %v2731, 7
    %v2733 = vsub.s32 %v2730, %v2732
    %v2734 = vrot.slane %v2720, %v2733
    %v2735 = vcombine.low %v2656, %v2680
    %v2736 = vcombine.high %v2656, %v2680
    %v2738 = vunpack.c.l.s4 1983009808
    %v2739 = vunpack.c.0.s8 %v2738
    %v2740 = vlaneseq
    %v2741 = vshrl.u32 %v2740, 7
    %v2742 = vsub.s32 %v2739, %v2741
    %v2743 = vrot.slane %v2735, %v2742
    %v2745 = vunpack.c.l.s4 1983009808
    %v2746 = vunpack.c.0.s8 %v2745
    %v2747 = vlaneseq
    %v2748 = vshrl.u32 %v2747, 7
    %v2749 = vsub.s32 %v2746, %v2748
    %v2750 = vrot.slane %v2736, %v2749
    %v2751 = vcombine.low %v2668, %v2692
    %v2752 = vcombine.high %v2668, %v2692
    %v2754 = vunpack.c.l.s4 1983009808
    %v2755 = vunpack.c.0.s8 %v2754
    %v2756 = vlaneseq
    %v2757 = vshrl.u32 %v2756, 7
    %v2758 = vsub.s32 %v2755, %v2757
    %v2759 = vrot.slane %v2751, %v2758
    %v2761 = vunpack.c.l.s4 1983009808
    %v2762 = vunpack.c.0.s8 %v2761
    %v2763 = vlaneseq
    %v2764 = vshrl.u32 %v2763, 7
    %v2765 = vsub.s32 %v2762, %v2764
    %v2766 = vrot.slane %v2752, %v2765
    %v2767 = vcombine.low %v2711, %v2727
    %v2768 = vcombine.high %v2711, %v2727
    %v2770 = vunpack.c.l.s4 1934713408
    %v2771 = vunpack.c.0.s8 %v2770
    %v2772 = vlaneseq
    %v2773 = vshrl.u32 %v2772, 7
    %v2774 = vsub.s32 %v2771, %v2773
    %v2775 = vrot.slane %v2767, %v2774
    %v2777 = vunpack.c.l.s4 1934713408
    %v2778 = vunpack.c.0.s8 %v2777
    %v2779 = vlaneseq
    %v2780 = vshrl.u32 %v2779, 7
    %v2781 = vsub.s32 %v2778, %v2780
    %v2782 = vrot.slane %v2768, %v2781
    %v2783 = vcombine.low %v2718, %v2734
    %v2784 = vcombine.high %v2718, %v2734
    %v2786 = vunpack.c.l.s4 1934713408
    %v2787 = vunpack.c.0.s8 %v2786
    %v2788 = vlaneseq
    %v2789 = vshrl.u32 %v2788, 7
    %v2790 = vsub.s32 %v2787, %v2789
    %v2791 = vrot.slane %v2783, %v2790
    %v2793 = vunpack.c.l.s4 1934713408
    %v2794 = vunpack.c.0.s8 %v2793
    %v2795 = vlaneseq
    %v2796 = vshrl.u32 %v2795, 7
    %v2797 = vsub.s32 %v2794, %v2796
    %v2798 = vrot.slane %v2784, %v2797
    %v2799 = vcombine.low %v2743, %v2759
    %v2800 = vcombine.high %v2743, %v2759
    %v2802 = vunpack.c.l.s4 1934713408
    %v2803 = vunpack.c.0.s8 %v2802
    %v2804 = vlaneseq
    %v2805 = vshrl.u32 %v2804, 7
    %v2806 = vsub.s32 %v2803, %v2805
    %v2807 = vrot.slane %v2799, %v2806
    %v2809 = vunpack.c.l.s4 1934713408
    %v2810 = vunpack.c.0.s8 %v2809
    %v2811 = vlaneseq
    %v2812 = vshrl.u32 %v2811, 7
    %v2813 = vsub.s32 %v2810, %v2812
    %v2814 = vrot.slane %v2800, %v2813
    %v2815 = vcombine.low %v2750, %v2766
    %v2816 = vcombine.high %v2750, %v2766
    %v2818 = vunpack.c.l.s4 1934713408
    %v2819 = vunpack.c.0.s8 %v2818
    %v2820 = vlaneseq
    %v2821 = vshrl.u32 %v2820, 7
    %v2822 = vsub.s32 %v2819, %v2821
    %v2823 = vrot.slane %v2815, %v2822
    %v2825 = vunpack.c.l.s4 1934713408
    %v2826 = vunpack.c.0.s8 %v2825
    %v2827 = vlaneseq
    %v2828 = vshrl.u32 %v2827, 7
    %v2829 = vsub.s32 %v2826, %v2828
    %v2830 = vrot.slane %v2816, %v2829
    %v2831 = vcombine.low %v2775, %v2807
    %v2832 = vcombine.high %v2775, %v2807
    %v2833 = vcombine.low %v2782, %v2814
    %v2834 = vcombine.high %v2782, %v2814
    %v2835 = vcombine.low %v2791, %v2823
    %v2836 = vcombine.high %v2791, %v2823
    %v2837 = vcombine.low %v2798, %v2830
    %v2838 = vcombine.high %v2798, %v2830
    %v2839 = vcombine.low %v250, %v2634
    %v2840 = vcombine.high %v250, %v2634
    %v2842 = vunpack.c.l.s4 1983009808
    %v2843 = vunpack.c.0.s8 %v2842
    %v2844 = vlaneseq
    %v2845 = vshrl.u32 %v2844, 7
    %v2846 = vsub.s32 %v2843, %v2845
    %v2847 = vrot.slane %v2839, %v2846
    %v2849 = vunpack.c.l.s4 1983009808
    %v2850 = vunpack.c.0.s8 %v2849
    %v2851 = vlaneseq
    %v2852 = vshrl.u32 %v2851, 7
    %v2853 = vsub.s32 %v2850, %v2852
    %v2854 = vrot.slane %v2840, %v2853
    %v2855 = vcombine.low %v2622, %v2646
    %v2856 = vcombine.high %v2622, %v2646
    %v2858 = vunpack.c.l.s4 1983009808
    %v2859 = vunpack.c.0.s8 %v2858
    %v2860 = vlaneseq
    %v2861 = vshrl.u32 %v2860, 7
    %v2862 = vsub.s32 %v2859, %v2861
    %v2863 = vrot.slane %v2855, %v2862
    %v2865 = vunpack.c.l.s4 1983009808
    %v2866 = vunpack.c.0.s8 %v2865
    %v2867 = vlaneseq
    %v2868 = vshrl.u32 %v2867, 7
    %v2869 = vsub.s32 %v2866, %v2868
    %v2870 = vrot.slane %v2856, %v2869
    %v2871 = vcombine.low %v2658, %v2682
    %v2872 = vcombine.high %v2658, %v2682
    %v2874 = vunpack.c.l.s4 1983009808
    %v2875 = vunpack.c.0.s8 %v2874
    %v2876 = vlaneseq
    %v2877 = vshrl.u32 %v2876, 7
    %v2878 = vsub.s32 %v2875, %v2877
    %v2879 = vrot.slane %v2871, %v2878
    %v2881 = vunpack.c.l.s4 1983009808
    %v2882 = vunpack.c.0.s8 %v2881
    %v2883 = vlaneseq
    %v2884 = vshrl.u32 %v2883, 7
    %v2885 = vsub.s32 %v2882, %v2884
    %v2886 = vrot.slane %v2872, %v2885
    %v2887 = vcombine.low %v2670, %v2694
    %v2888 = vcombine.high %v2670, %v2694
    %v2890 = vunpack.c.l.s4 1983009808
    %v2891 = vunpack.c.0.s8 %v2890
    %v2892 = vlaneseq
    %v2893 = vshrl.u32 %v2892, 7
    %v2894 = vsub.s32 %v2891, %v2893
    %v2895 = vrot.slane %v2887, %v2894
    %v2897 = vunpack.c.l.s4 1983009808
    %v2898 = vunpack.c.0.s8 %v2897
    %v2899 = vlaneseq
    %v2900 = vshrl.u32 %v2899, 7
    %v2901 = vsub.s32 %v2898, %v2900
    %v2902 = vrot.slane %v2888, %v2901
    %v2903 = vcombine.low %v2847, %v2863
    %v2904 = vcombine.high %v2847, %v2863
    %v2906 = vunpack.c.l.s4 1934713408
    %v2907 = vunpack.c.0.s8 %v2906
    %v2908 = vlaneseq
    %v2909 = vshrl.u32 %v2908, 7
    %v2910 = vsub.s32 %v2907, %v2909
    %v2911 = vrot.slane %v2903, %v2910
    %v2913 = vunpack.c.l.s4 1934713408
    %v2914 = vunpack.c.0.s8 %v2913
    %v2915 = vlaneseq
    %v2916 = vshrl.u32 %v2915, 7
    %v2917 = vsub.s32 %v2914, %v2916
    %v2918 = vrot.slane %v2904, %v2917
    %v2919 = vcombine.low %v2854, %v2870
    %v2920 = vcombine.high %v2854, %v2870
    %v2922 = vunpack.c.l.s4 1934713408
    %v2923 = vunpack.c.0.s8 %v2922
    %v2924 = vlaneseq
    %v2925 = vshrl.u32 %v2924, 7
    %v2926 = vsub.s32 %v2923, %v2925
    %v2927 = vrot.slane %v2919, %v2926
    %v2929 = vunpack.c.l.s4 1934713408
    %v2930 = vunpack.c.0.s8 %v2929
    %v2931 = vlaneseq
    %v2932 = vshrl.u32 %v2931, 7
    %v2933 = vsub.s32 %v2930, %v2932
    %v2934 = vrot.slane %v2920, %v2933
    %v2935 = vcombine.low %v2879, %v2895
    %v2936 = vcombine.high %v2879, %v2895
    %v2938 = vunpack.c.l.s4 1934713408
    %v2939 = vunpack.c.0.s8 %v2938
    %v2940 = vlaneseq
    %v2941 = vshrl.u32 %v2940, 7
    %v2942 = vsub.s32 %v2939, %v2941
    %v2943 = vrot.slane %v2935, %v2942
    %v2945 = vunpack.c.l.s4 1934713408
    %v2946 = vunpack.c.0.s8 %v2945
    %v2947 = vlaneseq
    %v2948 = vshrl.u32 %v2947, 7
    %v2949 = vsub.s32 %v2946, %v2948
    %v2950 = vrot.slane %v2936, %v2949
    %v2951 = vcombine.low %v2886, %v2902
    %v2952 = vcombine.high %v2886, %v2902
    %v2954 = vunpack.c.l.s4 1934713408
    %v2955 = vunpack.c.0.s8 %v2954
    %v2956 = vlaneseq
    %v2957 = vshrl.u32 %v2956, 7
    %v2958 = vsub.s32 %v2955, %v2957
    %v2959 = vrot.slane %v2951, %v2958
    %v2961 = vunpack.c.l.s4 1934713408
    %v2962 = vunpack.c.0.s8 %v2961
    %v2963 = vlaneseq
    %v2964 = vshrl.u32 %v2963, 7
    %v2965 = vsub.s32 %v2962, %v2964
    %v2966 = vrot.slane %v2952, %v2965
    %v2967 = vcombine.low %v2911, %v2943
    %v2968 = vcombine.high %v2911, %v2943
    %v2969 = vcombine.low %v2918, %v2950
    %v2970 = vcombine.high %v2918, %v2950
    %v2971 = vcombine.low %v2927, %v2959
    %v2972 = vcombine.high %v2927, %v2959
    %v2973 = vcombine.low %v2934, %v2966
    %v2974 = vcombine.high %v2934, %v2966
    %v2975 = vcombine.low %v255, %v2636
    %v2976 = vcombine.high %v255, %v2636
    %v2978 = vunpack.c.l.s4 1983009808
    %v2979 = vunpack.c.0.s8 %v2978
    %v2980 = vlaneseq
    %v2981 = vshrl.u32 %v2980, 7
    %v2982 = vsub.s32 %v2979, %v2981
    %v2983 = vrot.slane %v2975, %v2982
    %v2985 = vunpack.c.l.s4 1983009808
    %v2986 = vunpack.c.0.s8 %v2985
    %v2987 = vlaneseq
    %v2988 = vshrl.u32 %v2987, 7
    %v2989 = vsub.s32 %v2986, %v2988
    %v2990 = vrot.slane %v2976, %v2989
    %v2991 = vcombine.low %v2624, %v2648
    %v2992 = vcombine.high %v2624, %v2648
    %v2994 = vunpack.c.l.s4 1983009808
    %v2995 = vunpack.c.0.s8 %v2994
    %v2996 = vlaneseq
    %v2997 = vshrl.u32 %v2996, 7
    %v2998 = vsub.s32 %v2995, %v2997
    %v2999 = vrot.slane %v2991, %v2998
    %v3001 = vunpack.c.l.s4 1983009808
    %v3002 = vunpack.c.0.s8 %v3001
    %v3003 = vlaneseq
    %v3004 = vshrl.u32 %v3003, 7
    %v3005 = vsub.s32 %v3002, %v3004
    %v3006 = vrot.slane %v2992, %v3005
    %v3007 = vcombine.low %v2660, %v2684
    %v3008 = vcombine.high %v2660, %v2684
    %v3010 = vunpack.c.l.s4 1983009808
    %v3011 = vunpack.c.0.s8 %v3010
    %v3012 = vlaneseq
    %v3013 = vshrl.u32 %v3012, 7
    %v3014 = vsub.s32 %v3011, %v3013
    %v3015 = vrot.slane %v3007, %v3014
    %v3017 = vunpack.c.l.s4 1983009808
    %v3018 = vunpack.c.0.s8 %v3017
    %v3019 = vlaneseq
    %v3020 = vshrl.u32 %v3019, 7
    %v3021 = vsub.s32 %v3018, %v3020
    %v3022 = vrot.slane %v3008, %v3021
    %v3023 = vcombine.low %v2672, %v2696
    %v3024 = vcombine.high %v2672, %v2696
    %v3026 = vunpack.c.l.s4 1983009808
    %v3027 = vunpack.c.0.s8 %v3026
    %v3028 = vlaneseq
    %v3029 = vshrl.u32 %v3028, 7
    %v3030 = vsub.s32 %v3027, %v3029
    %v3031 = vrot.slane %v3023, %v3030
    %v3033 = vunpack.c.l.s4 1983009808
    %v3034 = vunpack.c.0.s8 %v3033
    %v3035 = vlaneseq
    %v3036 = vshrl.u32 %v3035, 7
    %v3037 = vsub.s32 %v3034, %v3036
    %v3038 = vrot.slane %v3024, %v3037
    %v3039 = vcombine.low %v2983, %v2999
    %v3040 = vcombine.high %v2983, %v2999
    %v3042 = vunpack.c.l.s4 1934713408
    %v3043 = vunpack.c.0.s8 %v3042
    %v3044 = vlaneseq
    %v3045 = vshrl.u32 %v3044, 7
    %v3046 = vsub.s32 %v3043, %v3045
    %v3047 = vrot.slane %v3039, %v3046
    %v3049 = vunpack.c.l.s4 1934713408
    %v3050 = vunpack.c.0.s8 %v3049
    %v3051 = vlaneseq
    %v3052 = vshrl.u32 %v3051, 7
    %v3053 = vsub.s32 %v3050, %v3052
    %v3054 = vrot.slane %v3040, %v3053
    %v3055 = vcombine.low %v2990, %v3006
    %v3056 = vcombine.high %v2990, %v3006
    %v3058 = vunpack.c.l.s4 1934713408
    %v3059 = vunpack.c.0.s8 %v3058
    %v3060 = vlaneseq
    %v3061 = vshrl.u32 %v3060, 7
    %v3062 = vsub.s32 %v3059, %v3061
    %v3063 = vrot.slane %v3055, %v3062
    %v3065 = vunpack.c.l.s4 1934713408
    %v3066 = vunpack.c.0.s8 %v3065
    %v3067 = vlaneseq
    %v3068 = vshrl.u32 %v3067, 7
    %v3069 = vsub.s32 %v3066, %v3068
    %v3070 = vrot.slane %v3056, %v3069
    %v3071 = vcombine.low %v3015, %v3031
    %v3072 = vcombine.high %v3015, %v3031
    %v3074 = vunpack.c.l.s4 1934713408
    %v3075 = vunpack.c.0.s8 %v3074
    %v3076 = vlaneseq
    %v3077 = vshrl.u32 %v3076, 7
    %v3078 = vsub.s32 %v3075, %v3077
    %v3079 = vrot.slane %v3071, %v3078
    %v3081 = vunpack.c.l.s4 1934713408
    %v3082 = vunpack.c.0.s8 %v3081
    %v3083 = vlaneseq
    %v3084 = vshrl.u32 %v3083, 7
    %v3085 = vsub.s32 %v3082, %v3084
    %v3086 = vrot.slane %v3072, %v3085
    %v3087 = vcombine.low %v3022, %v3038
    %v3088 = vcombine.high %v3022, %v3038
    %v3090 = vunpack.c.l.s4 1934713408
    %v3091 = vunpack.c.0.s8 %v3090
    %v3092 = vlaneseq
    %v3093 = vshrl.u32 %v3092, 7
    %v3094 = vsub.s32 %v3091, %v3093
    %v3095 = vrot.slane %v3087, %v3094
    %v3097 = vunpack.c.l.s4 1934713408
    %v3098 = vunpack.c.0.s8 %v3097
    %v3099 = vlaneseq
    %v3100 = vshrl.u32 %v3099, 7
    %v3101 = vsub.s32 %v3098, %v3100
    %v3102 = vrot.slane %v3088, %v3101
    %v3103 = vcombine.low %v3047, %v3079
    %v3104 = vcombine.high %v3047, %v3079
    %v3105 = vcombine.low %v3054, %v3086
    %v3106 = vcombine.high %v3054, %v3086
    %v3107 = vcombine.low %v3063, %v3095
    %v3108 = vcombine.high %v3063, %v3095
    %v3109 = vcombine.low %v3070, %v3102
    %v3110 = vcombine.high %v3070, %v3102
    %v3111 = vcombine.low %v260, %v2638
    %v3112 = vcombine.high %v260, %v2638
    %v3114 = vunpack.c.l.s4 1983009808
    %v3115 = vunpack.c.0.s8 %v3114
    %v3116 = vlaneseq
    %v3117 = vshrl.u32 %v3116, 7
    %v3118 = vsub.s32 %v3115, %v3117
    %v3119 = vrot.slane %v3111, %v3118
    %v3121 = vunpack.c.l.s4 1983009808
    %v3122 = vunpack.c.0.s8 %v3121
    %v3123 = vlaneseq
    %v3124 = vshrl.u32 %v3123, 7
    %v3125 = vsub.s32 %v3122, %v3124
    %v3126 = vrot.slane %v3112, %v3125
    %v3127 = vcombine.low %v2626, %v2650
    %v3128 = vcombine.high %v2626, %v2650
    %v3130 = vunpack.c.l.s4 1983009808
    %v3131 = vunpack.c.0.s8 %v3130
    %v3132 = vlaneseq
    %v3133 = vshrl.u32 %v3132, 7
    %v3134 = vsub.s32 %v3131, %v3133
    %v3135 = vrot.slane %v3127, %v3134
    %v3137 = vunpack.c.l.s4 1983009808
    %v3138 = vunpack.c.0.s8 %v3137
    %v3139 = vlaneseq
    %v3140 = vshrl.u32 %v3139, 7
    %v3141 = vsub.s32 %v3138, %v3140
    %v3142 = vrot.slane %v3128, %v3141
    %v3143 = vcombine.low %v2662, %v2686
    %v3144 = vcombine.high %v2662, %v2686
    %v3146 = vunpack.c.l.s4 1983009808
    %v3147 = vunpack.c.0.s8 %v3146
    %v3148 = vlaneseq
    %v3149 = vshrl.u32 %v3148, 7
    %v3150 = vsub.s32 %v3147, %v3149
    %v3151 = vrot.slane %v3143, %v3150
    %v3153 = vunpack.c.l.s4 1983009808
    %v3154 = vunpack.c.0.s8 %v3153
    %v3155 = vlaneseq
    %v3156 = vshrl.u32 %v3155, 7
    %v3157 = vsub.s32 %v3154, %v3156
    %v3158 = vrot.slane %v3144, %v3157
    %v3159 = vcombine.low %v2674, %v2698
    %v3160 = vcombine.high %v2674, %v2698
    %v3162 = vunpack.c.l.s4 1983009808
    %v3163 = vunpack.c.0.s8 %v3162
    %v3164 = vlaneseq
    %v3165 = vshrl.u32 %v3164, 7
    %v3166 = vsub.s32 %v3163, %v3165
    %v3167 = vrot.slane %v3159, %v3166
    %v3169 = vunpack.c.l.s4 1983009808
    %v3170 = vunpack.c.0.s8 %v3169
    %v3171 = vlaneseq
    %v3172 = vshrl.u32 %v3171, 7
    %v3173 = vsub.s32 %v3170, %v3172
    %v3174 = vrot.slane %v3160, %v3173
    %v3175 = vcombine.low %v3119, %v3135
    %v3176 = vcombine.high %v3119, %v3135
    %v3178 = vunpack.c.l.s4 1934713408
    %v3179 = vunpack.c.0.s8 %v3178
    %v3180 = vlaneseq
    %v3181 = vshrl.u32 %v3180, 7
    %v3182 = vsub.s32 %v3179, %v3181
    %v3183 = vrot.slane %v3175, %v3182
    %v3185 = vunpack.c.l.s4 1934713408
    %v3186 = vunpack.c.0.s8 %v3185
    %v3187 = vlaneseq
    %v3188 = vshrl.u32 %v3187, 7
    %v3189 = vsub.s32 %v3186, %v3188
    %v3190 = vrot.slane %v3176, %v3189
    %v3191 = vcombine.low %v3126, %v3142
    %v3192 = vcombine.high %v3126, %v3142
    %v3194 = vunpack.c.l.s4 1934713408
    %v3195 = vunpack.c.0.s8 %v3194
    %v3196 = vlaneseq
    %v3197 = vshrl.u32 %v3196, 7
    %v3198 = vsub.s32 %v3195, %v3197
    %v3199 = vrot.slane %v3191, %v3198
    %v3201 = vunpack.c.l.s4 1934713408
    %v3202 = vunpack.c.0.s8 %v3201
    %v3203 = vlaneseq
    %v3204 = vshrl.u32 %v3203, 7
    %v3205 = vsub.s32 %v3202, %v3204
    %v3206 = vrot.slane %v3192, %v3205
    %v3207 = vcombine.low %v3151, %v3167
    %v3208 = vcombine.high %v3151, %v3167
    %v3210 = vunpack.c.l.s4 1934713408
    %v3211 = vunpack.c.0.s8 %v3210
    %v3212 = vlaneseq
    %v3213 = vshrl.u32 %v3212, 7
    %v3214 = vsub.s32 %v3211, %v3213
    %v3215 = vrot.slane %v3207, %v3214
    %v3217 = vunpack.c.l.s4 1934713408
    %v3218 = vunpack.c.0.s8 %v3217
    %v3219 = vlaneseq
    %v3220 = vshrl.u32 %v3219, 7
    %v3221 = vsub.s32 %v3218, %v3220
    %v3222 = vrot.slane %v3208, %v3221
    %v3223 = vcombine.low %v3158, %v3174
    %v3224 = vcombine.high %v3158, %v3174
    %v3226 = vunpack.c.l.s4 1934713408
    %v3227 = vunpack.c.0.s8 %v3226
    %v3228 = vlaneseq
    %v3229 = vshrl.u32 %v3228, 7
    %v3230 = vsub.s32 %v3227, %v3229
    %v3231 = vrot.slane %v3223, %v3230
    %v3233 = vunpack.c.l.s4 1934713408
    %v3234 = vunpack.c.0.s8 %v3233
    %v3235 = vlaneseq
    %v3236 = vshrl.u32 %v3235, 7
    %v3237 = vsub.s32 %v3234, %v3236
    %v3238 = vrot.slane %v3224, %v3237
    %v3239 = vcombine.low %v3183, %v3215
    %v3240 = vcombine.high %v3183, %v3215
    %v3241 = vcombine.low %v3190, %v3222
    %v3242 = vcombine.high %v3190, %v3222
    %v3243 = vcombine.low %v3199, %v3231
    %v3244 = vcombine.high %v3199, %v3231
    %v3245 = vcombine.low %v3206, %v3238
    %v3246 = vcombine.high %v3206, %v3238
    %v3247 = vcombine.low %v2831, %v2833
    %v3248 = vcombine.high %v2831, %v2833
    %v3250 = vunpack.c.l.s4 1983009808
    %v3251 = vunpack.c.0.s8 %v3250
    %v3252 = vlaneseq
    %v3253 = vshrl.u32 %v3252, 7
    %v3254 = vsub.s32 %v3251, %v3253
    %v3255 = vrot.slane %v3247, %v3254
    %v3257 = vunpack.c.l.s4 1983009808
    %v3258 = vunpack.c.0.s8 %v3257
    %v3259 = vlaneseq
    %v3260 = vshrl.u32 %v3259, 7
    %v3261 = vsub.s32 %v3258, %v3260
    %v3262 = vrot.slane %v3248, %v3261
    %v3263 = vcombine.low %v2832, %v2834
    %v3264 = vcombine.high %v2832, %v2834
    %v3266 = vunpack.c.l.s4 1983009808
    %v3267 = vunpack.c.0.s8 %v3266
    %v3268 = vlaneseq
    %v3269 = vshrl.u32 %v3268, 7
    %v3270 = vsub.s32 %v3267, %v3269
    %v3271 = vrot.slane %v3263, %v3270
    %v3273 = vunpack.c.l.s4 1983009808
    %v3274 = vunpack.c.0.s8 %v3273
    %v3275 = vlaneseq
    %v3276 = vshrl.u32 %v3275, 7
    %v3277 = vsub.s32 %v3274, %v3276
    %v3278 = vrot.slane %v3264, %v3277
    %v3279 = vcombine.low %v2835, %v2837
    %v3280 = vcombine.high %v2835, %v2837
    %v3282 = vunpack.c.l.s4 1983009808
    %v3283 = vunpack.c.0.s8 %v3282
    %v3284 = vlaneseq
    %v3285 = vshrl.u32 %v3284, 7
    %v3286 = vsub.s32 %v3283, %v3285
    %v3287 = vrot.slane %v3279, %v3286
    %v3289 = vunpack.c.l.s4 1983009808
    %v3290 = vunpack.c.0.s8 %v3289
    %v3291 = vlaneseq
    %v3292 = vshrl.u32 %v3291, 7
    %v3293 = vsub.s32 %v3290, %v3292
    %v3294 = vrot.slane %v3280, %v3293
    %v3295 = vcombine.low %v2836, %v2838
    %v3296 = vcombine.high %v2836, %v2838
    %v3298 = vunpack.c.l.s4 1983009808
    %v3299 = vunpack.c.0.s8 %v3298
    %v3300 = vlaneseq
    %v3301 = vshrl.u32 %v3300, 7
    %v3302 = vsub.s32 %v3299, %v3301
    %v3303 = vrot.slane %v3295, %v3302
    %v3305 = vunpack.c.l.s4 1983009808
    %v3306 = vunpack.c.0.s8 %v3305
    %v3307 = vlaneseq
    %v3308 = vshrl.u32 %v3307, 7
    %v3309 = vsub.s32 %v3306, %v3308
    %v3310 = vrot.slane %v3296, %v3309
    %v3311 = vcombine.low %v3255, %v3271
    %v3312 = vcombine.high %v3255, %v3271
    %v3314 = vunpack.c.l.s4 1934713408
    %v3315 = vunpack.c.0.s8 %v3314
    %v3316 = vlaneseq
    %v3317 = vshrl.u32 %v3316, 7
    %v3318 = vsub.s32 %v3315, %v3317
    %v3319 = vrot.slane %v3311, %v3318
    %v3321 = vunpack.c.l.s4 1934713408
    %v3322 = vunpack.c.0.s8 %v3321
    %v3323 = vlaneseq
    %v3324 = vshrl.u32 %v3323, 7
    %v3325 = vsub.s32 %v3322, %v3324
    %v3326 = vrot.slane %v3312, %v3325
    %v3327 = vcombine.low %v3262, %v3278
    %v3328 = vcombine.high %v3262, %v3278
    %v3330 = vunpack.c.l.s4 1934713408
    %v3331 = vunpack.c.0.s8 %v3330
    %v3332 = vlaneseq
    %v3333 = vshrl.u32 %v3332, 7
    %v3334 = vsub.s32 %v3331, %v3333
    %v3335 = vrot.slane %v3327, %v3334
    %v3337 = vunpack.c.l.s4 1934713408
    %v3338 = vunpack.c.0.s8 %v3337
    %v3339 = vlaneseq
    %v3340 = vshrl.u32 %v3339, 7
    %v3341 = vsub.s32 %v3338, %v3340
    %v3342 = vrot.slane %v3328, %v3341
    %v3343 = vcombine.low %v3287, %v3303
    %v3344 = vcombine.high %v3287, %v3303
    %v3346 = vunpack.c.l.s4 1934713408
    %v3347 = vunpack.c.0.s8 %v3346
    %v3348 = vlaneseq
    %v3349 = vshrl.u32 %v3348, 7
    %v3350 = vsub.s32 %v3347, %v3349
    %v3351 = vrot.slane %v3343, %v3350
    %v3353 = vunpack.c.l.s4 1934713408
    %v3354 = vunpack.c.0.s8 %v3353
    %v3355 = vlaneseq
    %v3356 = vshrl.u32 %v3355, 7
    %v3357 = vsub.s32 %v3354, %v3356
    %v3358 = vrot.slane %v3344, %v3357
    %v3359 = vcombine.low %v3294, %v3310
    %v3360 = vcombine.high %v3294, %v3310
    %v3362 = vunpack.c.l.s4 1934713408
    %v3363 = vunpack.c.0.s8 %v3362
    %v3364 = vlaneseq
    %v3365 = vshrl.u32 %v3364, 7
    %v3366 = vsub.s32 %v3363, %v3365
    %v3367 = vrot.slane %v3359, %v3366
    %v3369 = vunpack.c.l.s4 1934713408
    %v3370 = vunpack.c.0.s8 %v3369
    %v3371 = vlaneseq
    %v3372 = vshrl.u32 %v3371, 7
    %v3373 = vsub.s32 %v3370, %v3372
    %v3374 = vrot.slane %v3360, %v3373
    %v3375 = vcombine.low %v3319, %v3351
    %v3376 = vcombine.high %v3319, %v3351
    %v3377 = vcombine.low %v3326, %v3358
    %v3378 = vcombine.high %v3326, %v3358
    %v3379 = vcombine.low %v3335, %v3367
    %v3380 = vcombine.high %v3335, %v3367
    %v3381 = vcombine.low %v3342, %v3374
    %v3382 = vcombine.high %v3342, %v3374
    %v3383 = vcombine.low %v2967, %v2969
    %v3384 = vcombine.high %v2967, %v2969
    %v3386 = vunpack.c.l.s4 1983009808
    %v3387 = vunpack.c.0.s8 %v3386
    %v3388 = vlaneseq
    %v3389 = vshrl.u32 %v3388, 7
    %v3390 = vsub.s32 %v3387, %v3389
    %v3391 = vrot.slane %v3383, %v3390
    %v3393 = vunpack.c.l.s4 1983009808
    %v3394 = vunpack.c.0.s8 %v3393
    %v3395 = vlaneseq
    %v3396 = vshrl.u32 %v3395, 7
    %v3397 = vsub.s32 %v3394, %v3396
    %v3398 = vrot.slane %v3384, %v3397
    %v3399 = vcombine.low %v2968, %v2970
    %v3400 = vcombine.high %v2968, %v2970
    %v3402 = vunpack.c.l.s4 1983009808
    %v3403 = vunpack.c.0.s8 %v3402
    %v3404 = vlaneseq
    %v3405 = vshrl.u32 %v3404, 7
    %v3406 = vsub.s32 %v3403, %v3405
    %v3407 = vrot.slane %v3399, %v3406
    %v3409 = vunpack.c.l.s4 1983009808
    %v3410 = vunpack.c.0.s8 %v3409
    %v3411 = vlaneseq
    %v3412 = vshrl.u32 %v3411, 7
    %v3413 = vsub.s32 %v3410, %v3412
    %v3414 = vrot.slane %v3400, %v3413
    %v3415 = vcombine.low %v2971, %v2973
    %v3416 = vcombine.high %v2971, %v2973
    %v3418 = vunpack.c.l.s4 1983009808
    %v3419 = vunpack.c.0.s8 %v3418
    %v3420 = vlaneseq
    %v3421 = vshrl.u32 %v3420, 7
    %v3422 = vsub.s32 %v3419, %v3421
    %v3423 = vrot.slane %v3415, %v3422
    %v3425 = vunpack.c.l.s4 1983009808
    %v3426 = vunpack.c.0.s8 %v3425
    %v3427 = vlaneseq
    %v3428 = vshrl.u32 %v3427, 7
    %v3429 = vsub.s32 %v3426, %v3428
    %v3430 = vrot.slane %v3416, %v3429
    %v3431 = vcombine.low %v2972, %v2974
    %v3432 = vcombine.high %v2972, %v2974
    %v3434 = vunpack.c.l.s4 1983009808
    %v3435 = vunpack.c.0.s8 %v3434
    %v3436 = vlaneseq
    %v3437 = vshrl.u32 %v3436, 7
    %v3438 = vsub.s32 %v3435, %v3437
    %v3439 = vrot.slane %v3431, %v3438
    %v3441 = vunpack.c.l.s4 1983009808
    %v3442 = vunpack.c.0.s8 %v3441
    %v3443 = vlaneseq
    %v3444 = vshrl.u32 %v3443, 7
    %v3445 = vsub.s32 %v3442, %v3444
    %v3446 = vrot.slane %v3432, %v3445
    %v3447 = vcombine.low %v3391, %v3407
    %v3448 = vcombine.high %v3391, %v3407
    %v3450 = vunpack.c.l.s4 1934713408
    %v3451 = vunpack.c.0.s8 %v3450
    %v3452 = vlaneseq
    %v3453 = vshrl.u32 %v3452, 7
    %v3454 = vsub.s32 %v3451, %v3453
    %v3455 = vrot.slane %v3447, %v3454
    %v3457 = vunpack.c.l.s4 1934713408
    %v3458 = vunpack.c.0.s8 %v3457
    %v3459 = vlaneseq
    %v3460 = vshrl.u32 %v3459, 7
    %v3461 = vsub.s32 %v3458, %v3460
    %v3462 = vrot.slane %v3448, %v3461
    %v3463 = vcombine.low %v3398, %v3414
    %v3464 = vcombine.high %v3398, %v3414
    %v3466 = vunpack.c.l.s4 1934713408
    %v3467 = vunpack.c.0.s8 %v3466
    %v3468 = vlaneseq
    %v3469 = vshrl.u32 %v3468, 7
    %v3470 = vsub.s32 %v3467, %v3469
    %v3471 = vrot.slane %v3463, %v3470
    %v3473 = vunpack.c.l.s4 1934713408
    %v3474 = vunpack.c.0.s8 %v3473
    %v3475 = vlaneseq
    %v3476 = vshrl.u32 %v3475, 7
    %v3477 = vsub.s32 %v3474, %v3476
    %v3478 = vrot.slane %v3464, %v3477
    %v3479 = vcombine.low %v3423, %v3439
    %v3480 = vcombine.high %v3423, %v3439
    %v3482 = vunpack.c.l.s4 1934713408
    %v3483 = vunpack.c.0.s8 %v3482
    %v3484 = vlaneseq
    %v3485 = vshrl.u32 %v3484, 7
    %v3486 = vsub.s32 %v3483, %v3485
    %v3487 = vrot.slane %v3479, %v3486
    %v3489 = vunpack.c.l.s4 1934713408
    %v3490 = vunpack.c.0.s8 %v3489
    %v3491 = vlaneseq
    %v3492 = vshrl.u32 %v3491, 7
    %v3493 = vsub.s32 %v3490, %v3492
    %v3494 = vrot.slane %v3480, %v3493
    %v3495 = vcombine.low %v3430, %v3446
    %v3496 = vcombine.high %v3430, %v3446
    %v3498 = vunpack.c.l.s4 1934713408
    %v3499 = vunpack.c.0.s8 %v3498
    %v3500 = vlaneseq
    %v3501 = vshrl.u32 %v3500, 7
    %v3502 = vsub.s32 %v3499, %v3501
    %v3503 = vrot.slane %v3495, %v3502
    %v3505 = vunpack.c.l.s4 1934713408
    %v3506 = vunpack.c.0.s8 %v3505
    %v3507 = vlaneseq
    %v3508 = vshrl.u32 %v3507, 7
    %v3509 = vsub.s32 %v3506, %v3508
    %v3510 = vrot.slane %v3496, %v3509
    %v3511 = vcombine.low %v3455, %v3487
    %v3512 = vcombine.high %v3455, %v3487
    %v3513 = vcombine.low %v3462, %v3494
    %v3514 = vcombine.high %v3462, %v3494
    %v3515 = vcombine.low %v3471, %v3503
    %v3516 = vcombine.high %v3471, %v3503
    %v3517 = vcombine.low %v3478, %v3510
    %v3518 = vcombine.high %v3478, %v3510
    %v3519 = vcombine.low %v3103, %v3105
    %v3520 = vcombine.high %v3103, %v3105
    %v3522 = vunpack.c.l.s4 1983009808
    %v3523 = vunpack.c.0.s8 %v3522
    %v3524 = vlaneseq
    %v3525 = vshrl.u32 %v3524, 7
    %v3526 = vsub.s32 %v3523, %v3525
    %v3527 = vrot.slane %v3519, %v3526
    %v3529 = vunpack.c.l.s4 1983009808
    %v3530 = vunpack.c.0.s8 %v3529
    %v3531 = vlaneseq
    %v3532 = vshrl.u32 %v3531, 7
    %v3533 = vsub.s32 %v3530, %v3532
    %v3534 = vrot.slane %v3520, %v3533
    %v3535 = vcombine.low %v3104, %v3106
    %v3536 = vcombine.high %v3104, %v3106
    %v3538 = vunpack.c.l.s4 1983009808
    %v3539 = vunpack.c.0.s8 %v3538
    %v3540 = vlaneseq
    %v3541 = vshrl.u32 %v3540, 7
    %v3542 = vsub.s32 %v3539, %v3541
    %v3543 = vrot.slane %v3535, %v3542
    %v3545 = vunpack.c.l.s4 1983009808
    %v3546 = vunpack.c.0.s8 %v3545
    %v3547 = vlaneseq
    %v3548 = vshrl.u32 %v3547, 7
    %v3549 = vsub.s32 %v3546, %v3548
    %v3550 = vrot.slane %v3536, %v3549
    %v3551 = vcombine.low %v3107, %v3109
    %v3552 = vcombine.high %v3107, %v3109
    %v3554 = vunpack.c.l.s4 1983009808
    %v3555 = vunpack.c.0.s8 %v3554
    %v3556 = vlaneseq
    %v3557 = vshrl.u32 %v3556, 7
    %v3558 = vsub.s32 %v3555, %v3557
    %v3559 = vrot.slane %v3551, %v3558
    %v3561 = vunpack.c.l.s4 1983009808
    %v3562 = vunpack.c.0.s8 %v3561
    %v3563 = vlaneseq
    %v3564 = vshrl.u32 %v3563, 7
    %v3565 = vsub.s32 %v3562, %v3564
    %v3566 = vrot.slane %v3552, %v3565
    %v3567 = vcombine.low %v3108, %v3110
    %v3568 = vcombine.high %v3108, %v3110
    %v3570 = vunpack.c.l.s4 1983009808
    %v3571 = vunpack.c.0.s8 %v3570
    %v3572 = vlaneseq
    %v3573 = vshrl.u32 %v3572, 7
    %v3574 = vsub.s32 %v3571, %v3573
    %v3575 = vrot.slane %v3567, %v3574
    %v3577 = vunpack.c.l.s4 1983009808
    %v3578 = vunpack.c.0.s8 %v3577
    %v3579 = vlaneseq
    %v3580 = vshrl.u32 %v3579, 7
    %v3581 = vsub.s32 %v3578, %v3580
    %v3582 = vrot.slane %v3568, %v3581
    %v3583 = vcombine.low %v3527, %v3543
    %v3584 = vcombine.high %v3527, %v3543
    %v3586 = vunpack.c.l.s4 1934713408
    %v3587 = vunpack.c.0.s8 %v3586
    %v3588 = vlaneseq
    %v3589 = vshrl.u32 %v3588, 7
    %v3590 = vsub.s32 %v3587, %v3589
    %v3591 = vrot.slane %v3583, %v3590
    %v3593 = vunpack.c.l.s4 1934713408
    %v3594 = vunpack.c.0.s8 %v3593
    %v3595 = vlaneseq
    %v3596 = vshrl.u32 %v3595, 7
    %v3597 = vsub.s32 %v3594, %v3596
    %v3598 = vrot.slane %v3584, %v3597
    %v3599 = vcombine.low %v3534, %v3550
    %v3600 = vcombine.high %v3534, %v3550
    %v3602 = vunpack.c.l.s4 1934713408
    %v3603 = vunpack.c.0.s8 %v3602
    %v3604 = vlaneseq
    %v3605 = vshrl.u32 %v3604, 7
    %v3606 = vsub.s32 %v3603, %v3605
    %v3607 = vrot.slane %v3599, %v3606
    %v3609 = vunpack.c.l.s4 1934713408
    %v3610 = vunpack.c.0.s8 %v3609
    %v3611 = vlaneseq
    %v3612 = vshrl.u32 %v3611, 7
    %v3613 = vsub.s32 %v3610, %v3612
    %v3614 = vrot.slane %v3600, %v3613
    %v3615 = vcombine.low %v3559, %v3575
    %v3616 = vcombine.high %v3559, %v3575
    %v3618 = vunpack.c.l.s4 1934713408
    %v3619 = vunpack.c.0.s8 %v3618
    %v3620 = vlaneseq
    %v3621 = vshrl.u32 %v3620, 7
    %v3622 = vsub.s32 %v3619, %v3621
    %v3623 = vrot.slane %v3615, %v3622
    %v3625 = vunpack.c.l.s4 1934713408
    %v3626 = vunpack.c.0.s8 %v3625
    %v3627 = vlaneseq
    %v3628 = vshrl.u32 %v3627, 7
    %v3629 = vsub.s32 %v3626, %v3628
    %v3630 = vrot.slane %v3616, %v3629
    %v3631 = vcombine.low %v3566, %v3582
    %v3632 = vcombine.high %v3566, %v3582
    %v3634 = vunpack.c.l.s4 1934713408
    %v3635 = vunpack.c.0.s8 %v3634
    %v3636 = vlaneseq
    %v3637 = vshrl.u32 %v3636, 7
    %v3638 = vsub.s32 %v3635, %v3637
    %v3639 = vrot.slane %v3631, %v3638
    %v3641 = vunpack.c.l.s4 1934713408
    %v3642 = vunpack.c.0.s8 %v3641
    %v3643 = vlaneseq
    %v3644 = vshrl.u32 %v3643, 7
    %v3645 = vsub.s32 %v3642, %v3644
    %v3646 = vrot.slane %v3632, %v3645
    %v3647 = vcombine.low %v3591, %v3623
    %v3648 = vcombine.high %v3591, %v3623
    %v3649 = vcombine.low %v3598, %v3630
    %v3650 = vcombine.high %v3598, %v3630
    %v3651 = vcombine.low %v3607, %v3639
    %v3652 = vcombine.high %v3607, %v3639
    %v3653 = vcombine.low %v3614, %v3646
    %v3654 = vcombine.high %v3614, %v3646
    %v3655 = vcombine.low %v3239, %v3241
    %v3656 = vcombine.high %v3239, %v3241
    %v3658 = vunpack.c.l.s4 1983009808
    %v3659 = vunpack.c.0.s8 %v3658
    %v3660 = vlaneseq
    %v3661 = vshrl.u32 %v3660, 7
    %v3662 = vsub.s32 %v3659, %v3661
    %v3663 = vrot.slane %v3655, %v3662
    %v3665 = vunpack.c.l.s4 1983009808
    %v3666 = vunpack.c.0.s8 %v3665
    %v3667 = vlaneseq
    %v3668 = vshrl.u32 %v3667, 7
    %v3669 = vsub.s32 %v3666, %v3668
    %v3670 = vrot.slane %v3656, %v3669
    %v3671 = vcombine.low %v3240, %v3242
    %v3672 = vcombine.high %v3240, %v3242
    %v3674 = vunpack.c.l.s4 1983009808
    %v3675 = vunpack.c.0.s8 %v3674
    %v3676 = vlaneseq
    %v3677 = vshrl.u32 %v3676, 7
    %v3678 = vsub.s32 %v3675, %v3677
    %v3679 = vrot.slane %v3671, %v3678
    %v3681 = vunpack.c.l.s4 1983009808
    %v3682 = vunpack.c.0.s8 %v3681
    %v3683 = vlaneseq
    %v3684 = vshrl.u32 %v3683, 7
    %v3685 = vsub.s32 %v3682, %v3684
    %v3686 = vrot.slane %v3672, %v3685
    %v3687 = vcombine.low %v3243, %v3245
    %v3688 = vcombine.high %v3243, %v3245
    %v3690 = vunpack.c.l.s4 1983009808
    %v3691 = vunpack.c.0.s8 %v3690
    %v3692 = vlaneseq
    %v3693 = vshrl.u32 %v3692, 7
    %v3694 = vsub.s32 %v3691, %v3693
    %v3695 = vrot.slane %v3687, %v3694
    %v3697 = vunpack.c.l.s4 1983009808
    %v3698 = vunpack.c.0.s8 %v3697
    %v3699 = vlaneseq
    %v3700 = vshrl.u32 %v3699, 7
    %v3701 = vsub.s32 %v3698, %v3700
    %v3702 = vrot.slane %v3688, %v3701
    %v3703 = vcombine.low %v3244, %v3246
    %v3704 = vcombine.high %v3244, %v3246
    %v3706 = vunpack.c.l.s4 1983009808
    %v3707 = vunpack.c.0.s8 %v3706
    %v3708 = vlaneseq
    %v3709 = vshrl.u32 %v3708, 7
    %v3710 = vsub.s32 %v3707, %v3709
    %v3711 = vrot.slane %v3703, %v3710
    %v3713 = vunpack.c.l.s4 1983009808
    %v3714 = vunpack.c.0.s8 %v3713
    %v3715 = vlaneseq
    %v3716 = vshrl.u32 %v3715, 7
    %v3717 = vsub.s32 %v3714, %v3716
    %v3718 = vrot.slane %v3704, %v3717
    %v3719 = vcombine.low %v3663, %v3679
    %v3720 = vcombine.high %v3663, %v3679
    %v3722 = vunpack.c.l.s4 1934713408
    %v3723 = vunpack.c.0.s8 %v3722
    %v3724 = vlaneseq
    %v3725 = vshrl.u32 %v3724, 7
    %v3726 = vsub.s32 %v3723, %v3725
    %v3727 = vrot.slane %v3719, %v3726
    %v3729 = vunpack.c.l.s4 1934713408
    %v3730 = vunpack.c.0.s8 %v3729
    %v3731 = vlaneseq
    %v3732 = vshrl.u32 %v3731, 7
    %v3733 = vsub.s32 %v3730, %v3732
    %v3734 = vrot.slane %v3720, %v3733
    %v3735 = vcombine.low %v3670, %v3686
    %v3736 = vcombine.high %v3670, %v3686
    %v3738 = vunpack.c.l.s4 1934713408
    %v3739 = vunpack.c.0.s8 %v3738
    %v3740 = vlaneseq
    %v3741 = vshrl.u32 %v3740, 7
    %v3742 = vsub.s32 %v3739, %v3741
    %v3743 = vrot.slane %v3735, %v3742
    %v3745 = vunpack.c.l.s4 1934713408
    %v3746 = vunpack.c.0.s8 %v3745
    %v3747 = vlaneseq
    %v3748 = vshrl.u32 %v3747, 7
    %v3749 = vsub.s32 %v3746, %v3748
    %v3750 = vrot.slane %v3736, %v3749
    %v3751 = vcombine.low %v3695, %v3711
    %v3752 = vcombine.high %v3695, %v3711
    %v3754 = vunpack.c.l.s4 1934713408
    %v3755 = vunpack.c.0.s8 %v3754
    %v3756 = vlaneseq
    %v3757 = vshrl.u32 %v3756, 7
    %v3758 = vsub.s32 %v3755, %v3757
    %v3759 = vrot.slane %v3751, %v3758
    %v3761 = vunpack.c.l.s4 1934713408
    %v3762 = vunpack.c.0.s8 %v3761
    %v3763 = vlaneseq
    %v3764 = vshrl.u32 %v3763, 7
    %v3765 = vsub.s32 %v3762, %v3764
    %v3766 = vrot.slane %v3752, %v3765
    %v3767 = vcombine.low %v3702, %v3718
    %v3768 = vcombine.high %v3702, %v3718
    %v3770 = vunpack.c.l.s4 1934713408
    %v3771 = vunpack.c.0.s8 %v3770
    %v3772 = vlaneseq
    %v3773 = vshrl.u32 %v3772, 7
    %v3774 = vsub.s32 %v3771, %v3773
    %v3775 = vrot.slane %v3767, %v3774
    %v3777 = vunpack.c.l.s4 1934713408
    %v3778 = vunpack.c.0.s8 %v3777
    %v3779 = vlaneseq
    %v3780 = vshrl.u32 %v3779, 7
    %v3781 = vsub.s32 %v3778, %v3780
    %v3782 = vrot.slane %v3768, %v3781
    %v3783 = vcombine.low %v3727, %v3759
    %v3784 = vcombine.high %v3727, %v3759
    %v3785 = vcombine.low %v3734, %v3766
    %v3786 = vcombine.high %v3734, %v3766
    %v3787 = vcombine.low %v3743, %v3775
    %v3788 = vcombine.high %v3743, %v3775
    %v3789 = vcombine.low %v3750, %v3782
    %v3790 = vcombine.high %v3750, %v3782
    %vm3791 = vcmask 130048
    %v3793 = vsel %vm3791, %v1023, 0
    %v3796 = vsel %vm3791, %v1159, 0
    %v3799 = vsel %vm3791, %v2199, 0
    %v3802 = vsel %vm3791, %v2335, 0
    %3804 = vmatprep.subr.mxu0 0.0
    %3805 = vmatpush1.xpose.msra.mxu0 0.0
    %3806 = vmatprep.subr.mxu0 0.0
    %3807 = vmatpush1.xpose.msra.mxu0 0.0
    %3808 = vmatprep.subr.mxu0 0.0
    %3809 = vmatpush1.xpose.msra.mxu0 0.0
    %3810 = vmatprep.subr.mxu0 0.0
    %3811 = vmatpush1.xpose.msra.mxu0 0.0
    %3812 = vmatprep.subr.mxu0 0.0
    %3813 = vmatpush1.xpose.msra.mxu0 0.0
    %3814 = vmatprep.subr.mxu0 0.0
    %3815 = vmatpush1.xpose.msra.mxu0 0.0
    %3816 = vmatprep.subr.mxu0 0.0
    %3817 = vmatpush1.xpose.msra.mxu0 0.0
    %3818 = vmatprep.subr.mxu0 0.0
    %3819 = vmatpush1.xpose.msra.mxu0 0.0
    %3820 = vmatprep.subr.mxu0 0.0
    %3821 = vmatpush1.xpose.msra.mxu0 0.0
    %3822 = vmatprep.subr.mxu0 0.0
    %3823 = vmatpush1.xpose.msra.mxu0 0.0
    %3824 = vmatprep.subr.mxu0 0.0
    %3825 = vmatpush1.xpose.msra.mxu0 0.0
    %3826 = vmatprep.subr.mxu0 0.0
    %3827 = vmatpush1.xpose.msra.mxu0 0.0
    %3828 = vmatprep.subr.mxu0 0.0
    %3829 = vmatpush1.xpose.msra.mxu0 0.0
    %3830 = vmatprep.subr.mxu0 0.0
    %3831 = vmatpush1.xpose.msra.mxu0 0.0
    %3832 = vmatprep.subr.mxu0 0.0
    %3833 = vmatpush1.xpose.msra.mxu0 %v3802
    %3834 = vmatprep.subr.mxu0 0.0
    %3835 = vmatpush1.xpose.msra.mxu0 %v3799
    %3836 = vmatprep.subr.mxu0 0.0
    %3837 = vmatpush2.xpose.msra.mxu0 0.0
    %3838 = vmatprep.subr.mxu0 0.0
    %3839 = vmatpush2.xpose.msra.mxu0 0.0
    %3840 = vmatprep.subr.mxu0 0.0
    %3841 = vmatpush2.xpose.msra.mxu0 0.0
    %3842 = vmatprep.subr.mxu0 0.0
    %3843 = vmatpush2.xpose.msra.mxu0 0.0
    %3844 = vmatprep.subr.mxu0 0.0
    %3845 = vmatpush2.xpose.msra.mxu0 0.0
    %3846 = vmatprep.subr.mxu0 0.0
    %3847 = vmatpush2.xpose.msra.mxu0 0.0
    %3848 = vmatprep.subr.mxu0 0.0
    %3849 = vmatpush2.xpose.msra.mxu0 0.0
    %3850 = vmatprep.subr.mxu0 0.0
    %3851 = vmatpush2.xpose.msra.mxu0 0.0
    %3852 = vmatprep.subr.mxu0 0.0
    %3853 = vmatpush2.xpose.msra.mxu0 0.0
    %3854 = vmatprep.subr.mxu0 0.0
    %3855 = vmatpush2.xpose.msra.mxu0 0.0
    %3856 = vmatprep.subr.mxu0 0.0
    %3857 = vmatpush2.xpose.msra.mxu0 0.0
    %3858 = vmatprep.subr.mxu0 0.0
    %3859 = vmatpush2.xpose.msra.mxu0 0.0
    %3860 = vmatprep.subr.mxu0 0.0
    %3861 = vmatpush2.xpose.msra.mxu0 0.0
    %3862 = vmatprep.subr.mxu0 0.0
    %3863 = vmatpush2.xpose.msra.mxu0 0.0
    %3864 = vmatprep.subr.mxu0 0.0
    %3865 = vmatpush2.xpose.msra.mxu0 0.0
    %3866 = vmatprep.subr.mxu0 0.0
    %3867 = vmatpush2.xpose.msra.mxu0 0.0
    %3868 = vmatprep.mubr.f32.mxu0 0.0
    %3869 = vmatmul.mubr.f32.gmra.mxu0 %v3793
    %v3870 = vpop.f32.mrf.mxu0
    %v3871 = vadd.f32 0.0, %v3870
    %v3872 = vpop.f32.mrf.mxu0
    %3873 = vmatprep.mubr.f32.mxu0 0.0
    %3874 = vmatmul.mubr.f32.gmra.mxu0 %v3796
    %v3875 = vpop.f32.mrf.mxu0
    %v3876 = vadd.f32 0.0, %v3875
    %v3877 = vpop.f32.mrf.mxu0
    %3878 = vdwg.mxu0
    %v3880 = vsel %vm3791, %v1024, 0
    %v3883 = vsel %vm3791, %v1160, 0
    %v3886 = vsel %vm3791, %v2200, 0
    %v3889 = vsel %vm3791, %v2336, 0
    %3891 = vmatprep.subr.mxu0 0.0
    %3892 = vmatpush1.xpose.msra.mxu0 0.0
    %3893 = vmatprep.subr.mxu0 0.0
    %3894 = vmatpush1.xpose.msra.mxu0 0.0
    %3895 = vmatprep.subr.mxu0 0.0
    %3896 = vmatpush1.xpose.msra.mxu0 0.0
    %3897 = vmatprep.subr.mxu0 0.0
    %3898 = vmatpush1.xpose.msra.mxu0 0.0
    %3899 = vmatprep.subr.mxu0 0.0
    %3900 = vmatpush1.xpose.msra.mxu0 0.0
    %3901 = vmatprep.subr.mxu0 0.0
    %3902 = vmatpush1.xpose.msra.mxu0 0.0
    %3903 = vmatprep.subr.mxu0 0.0
    %3904 = vmatpush1.xpose.msra.mxu0 0.0
    %3905 = vmatprep.subr.mxu0 0.0
    %3906 = vmatpush1.xpose.msra.mxu0 0.0
    %3907 = vmatprep.subr.mxu0 0.0
    %3908 = vmatpush1.xpose.msra.mxu0 0.0
    %3909 = vmatprep.subr.mxu0 0.0
    %3910 = vmatpush1.xpose.msra.mxu0 0.0
    %3911 = vmatprep.subr.mxu0 0.0
    %3912 = vmatpush1.xpose.msra.mxu0 0.0
    %3913 = vmatprep.subr.mxu0 0.0
    %3914 = vmatpush1.xpose.msra.mxu0 0.0
    %3915 = vmatprep.subr.mxu0 0.0
    %3916 = vmatpush1.xpose.msra.mxu0 0.0
    %3917 = vmatprep.subr.mxu0 0.0
    %3918 = vmatpush1.xpose.msra.mxu0 0.0
    %3919 = vmatprep.subr.mxu0 0.0
    %3920 = vmatpush1.xpose.msra.mxu0 %v3889
    %3921 = vmatprep.subr.mxu0 0.0
    %3922 = vmatpush1.xpose.msra.mxu0 %v3886
    %3923 = vmatprep.subr.mxu0 0.0
    %3924 = vmatpush2.xpose.msra.mxu0 0.0
    %3925 = vmatprep.subr.mxu0 0.0
    %3926 = vmatpush2.xpose.msra.mxu0 0.0
    %3927 = vmatprep.subr.mxu0 0.0
    %3928 = vmatpush2.xpose.msra.mxu0 0.0
    %3929 = vmatprep.subr.mxu0 0.0
    %3930 = vmatpush2.xpose.msra.mxu0 0.0
    %3931 = vmatprep.subr.mxu0 0.0
    %3932 = vmatpush2.xpose.msra.mxu0 0.0
    %3933 = vmatprep.subr.mxu0 0.0
    %3934 = vmatpush2.xpose.msra.mxu0 0.0
    %3935 = vmatprep.subr.mxu0 0.0
    %3936 = vmatpush2.xpose.msra.mxu0 0.0
    %3937 = vmatprep.subr.mxu0 0.0
    %3938 = vmatpush2.xpose.msra.mxu0 0.0
    %3939 = vmatprep.subr.mxu0 0.0
    %3940 = vmatpush2.xpose.msra.mxu0 0.0
    %3941 = vmatprep.subr.mxu0 0.0
    %3942 = vmatpush2.xpose.msra.mxu0 0.0
    %3943 = vmatprep.subr.mxu0 0.0
    %3944 = vmatpush2.xpose.msra.mxu0 0.0
    %3945 = vmatprep.subr.mxu0 0.0
    %3946 = vmatpush2.xpose.msra.mxu0 0.0
    %3947 = vmatprep.subr.mxu0 0.0
    %3948 = vmatpush2.xpose.msra.mxu0 0.0
    %3949 = vmatprep.subr.mxu0 0.0
    %3950 = vmatpush2.xpose.msra.mxu0 0.0
    %3951 = vmatprep.subr.mxu0 0.0
    %3952 = vmatpush2.xpose.msra.mxu0 0.0
    %3953 = vmatprep.subr.mxu0 0.0
    %3954 = vmatpush2.xpose.msra.mxu0 0.0
    %3955 = vmatprep.mubr.f32.mxu0 0.0
    %3956 = vmatmul.mubr.f32.gmra.mxu0 %v3880
    %v3957 = vpop.f32.mrf.mxu0
    %v3958 = vadd.f32 0.0, %v3957
    %v3959 = vpop.f32.mrf.mxu0
    %3960 = vmatprep.mubr.f32.mxu0 0.0
    %3961 = vmatmul.mubr.f32.gmra.mxu0 %v3883
    %v3962 = vpop.f32.mrf.mxu0
    %v3963 = vadd.f32 0.0, %v3962
    %v3964 = vpop.f32.mrf.mxu0
    %3965 = vdwg.mxu0
    %v3967 = vsel %vm3791, %v1025, 0
    %v3970 = vsel %vm3791, %v1161, 0
    %v3973 = vsel %vm3791, %v2201, 0
    %v3976 = vsel %vm3791, %v2337, 0
    %3978 = vmatprep.subr.mxu0 0.0
    %3979 = vmatpush1.xpose.msra.mxu0 0.0
    %3980 = vmatprep.subr.mxu0 0.0
    %3981 = vmatpush1.xpose.msra.mxu0 0.0
    %3982 = vmatprep.subr.mxu0 0.0
    %3983 = vmatpush1.xpose.msra.mxu0 0.0
    %3984 = vmatprep.subr.mxu0 0.0
    %3985 = vmatpush1.xpose.msra.mxu0 0.0
    %3986 = vmatprep.subr.mxu0 0.0
    %3987 = vmatpush1.xpose.msra.mxu0 0.0
    %3988 = vmatprep.subr.mxu0 0.0
    %3989 = vmatpush1.xpose.msra.mxu0 0.0
    %3990 = vmatprep.subr.mxu0 0.0
    %3991 = vmatpush1.xpose.msra.mxu0 0.0
    %3992 = vmatprep.subr.mxu0 0.0
    %3993 = vmatpush1.xpose.msra.mxu0 0.0
    %3994 = vmatprep.subr.mxu0 0.0
    %3995 = vmatpush1.xpose.msra.mxu0 0.0
    %3996 = vmatprep.subr.mxu0 0.0
    %3997 = vmatpush1.xpose.msra.mxu0 0.0
    %3998 = vmatprep.subr.mxu0 0.0
    %3999 = vmatpush1.xpose.msra.mxu0 0.0
    %4000 = vmatprep.subr.mxu0 0.0
    %4001 = vmatpush1.xpose.msra.mxu0 0.0
    %4002 = vmatprep.subr.mxu0 0.0
    %4003 = vmatpush1.xpose.msra.mxu0 0.0
    %4004 = vmatprep.subr.mxu0 0.0
    %4005 = vmatpush1.xpose.msra.mxu0 0.0
    %4006 = vmatprep.subr.mxu0 0.0
    %4007 = vmatpush1.xpose.msra.mxu0 %v3976
    %4008 = vmatprep.subr.mxu0 0.0
    %4009 = vmatpush1.xpose.msra.mxu0 %v3973
    %4010 = vmatprep.subr.mxu0 0.0
    %4011 = vmatpush2.xpose.msra.mxu0 0.0
    %4012 = vmatprep.subr.mxu0 0.0
    %4013 = vmatpush2.xpose.msra.mxu0 0.0
    %4014 = vmatprep.subr.mxu0 0.0
    %4015 = vmatpush2.xpose.msra.mxu0 0.0
    %4016 = vmatprep.subr.mxu0 0.0
    %4017 = vmatpush2.xpose.msra.mxu0 0.0
    %4018 = vmatprep.subr.mxu0 0.0
    %4019 = vmatpush2.xpose.msra.mxu0 0.0
    %4020 = vmatprep.subr.mxu0 0.0
    %4021 = vmatpush2.xpose.msra.mxu0 0.0
    %4022 = vmatprep.subr.mxu0 0.0
    %4023 = vmatpush2.xpose.msra.mxu0 0.0
    %4024 = vmatprep.subr.mxu0 0.0
    %4025 = vmatpush2.xpose.msra.mxu0 0.0
    %4026 = vmatprep.subr.mxu0 0.0
    %4027 = vmatpush2.xpose.msra.mxu0 0.0
    %4028 = vmatprep.subr.mxu0 0.0
    %4029 = vmatpush2.xpose.msra.mxu0 0.0
    %4030 = vmatprep.subr.mxu0 0.0
    %4031 = vmatpush2.xpose.msra.mxu0 0.0
    %4032 = vmatprep.subr.mxu0 0.0
    %4033 = vmatpush2.xpose.msra.mxu0 0.0
    %4034 = vmatprep.subr.mxu0 0.0
    %4035 = vmatpush2.xpose.msra.mxu0 0.0
    %4036 = vmatprep.subr.mxu0 0.0
    %4037 = vmatpush2.xpose.msra.mxu0 0.0
    %4038 = vmatprep.subr.mxu0 0.0
    %4039 = vmatpush2.xpose.msra.mxu0 0.0
    %4040 = vmatprep.subr.mxu0 0.0
    %4041 = vmatpush2.xpose.msra.mxu0 0.0
    %4042 = vmatprep.mubr.f32.mxu0 0.0
    %4043 = vmatmul.mubr.f32.gmra.mxu0 %v3967
    %v4044 = vpop.f32.mrf.mxu0
    %v4045 = vadd.f32 0.0, %v4044
    %v4046 = vpop.f32.mrf.mxu0
    %4047 = vmatprep.mubr.f32.mxu0 0.0
    %4048 = vmatmul.mubr.f32.gmra.mxu0 %v3970
    %v4049 = vpop.f32.mrf.mxu0
    %v4050 = vadd.f32 0.0, %v4049
    %v4051 = vpop.f32.mrf.mxu0
    %4052 = vdwg.mxu0
    %v4054 = vsel %vm3791, %v1026, 0
    %v4057 = vsel %vm3791, %v1162, 0
    %v4060 = vsel %vm3791, %v2202, 0
    %v4063 = vsel %vm3791, %v2338, 0
    %4065 = vmatprep.subr.mxu0 0.0
    %4066 = vmatpush1.xpose.msra.mxu0 0.0
    %4067 = vmatprep.subr.mxu0 0.0
    %4068 = vmatpush1.xpose.msra.mxu0 0.0
    %4069 = vmatprep.subr.mxu0 0.0
    %4070 = vmatpush1.xpose.msra.mxu0 0.0
    %4071 = vmatprep.subr.mxu0 0.0
    %4072 = vmatpush1.xpose.msra.mxu0 0.0
    %4073 = vmatprep.subr.mxu0 0.0
    %4074 = vmatpush1.xpose.msra.mxu0 0.0
    %4075 = vmatprep.subr.mxu0 0.0
    %4076 = vmatpush1.xpose.msra.mxu0 0.0
    %4077 = vmatprep.subr.mxu0 0.0
    %4078 = vmatpush1.xpose.msra.mxu0 0.0
    %4079 = vmatprep.subr.mxu0 0.0
    %4080 = vmatpush1.xpose.msra.mxu0 0.0
    %4081 = vmatprep.subr.mxu0 0.0
    %4082 = vmatpush1.xpose.msra.mxu0 0.0
    %4083 = vmatprep.subr.mxu0 0.0
    %4084 = vmatpush1.xpose.msra.mxu0 0.0
    %4085 = vmatprep.subr.mxu0 0.0
    %4086 = vmatpush1.xpose.msra.mxu0 0.0
    %4087 = vmatprep.subr.mxu0 0.0
    %4088 = vmatpush1.xpose.msra.mxu0 0.0
    %4089 = vmatprep.subr.mxu0 0.0
    %4090 = vmatpush1.xpose.msra.mxu0 0.0
    %4091 = vmatprep.subr.mxu0 0.0
    %4092 = vmatpush1.xpose.msra.mxu0 0.0
    %4093 = vmatprep.subr.mxu0 0.0
    %4094 = vmatpush1.xpose.msra.mxu0 %v4063
    %4095 = vmatprep.subr.mxu0 0.0
    %4096 = vmatpush1.xpose.msra.mxu0 %v4060
    %4097 = vmatprep.subr.mxu0 0.0
    %4098 = vmatpush2.xpose.msra.mxu0 0.0
    %4099 = vmatprep.subr.mxu0 0.0
    %4100 = vmatpush2.xpose.msra.mxu0 0.0
    %4101 = vmatprep.subr.mxu0 0.0
    %4102 = vmatpush2.xpose.msra.mxu0 0.0
    %4103 = vmatprep.subr.mxu0 0.0
    %4104 = vmatpush2.xpose.msra.mxu0 0.0
    %4105 = vmatprep.subr.mxu0 0.0
    %4106 = vmatpush2.xpose.msra.mxu0 0.0
    %4107 = vmatprep.subr.mxu0 0.0
    %4108 = vmatpush2.xpose.msra.mxu0 0.0
    %4109 = vmatprep.subr.mxu0 0.0
    %4110 = vmatpush2.xpose.msra.mxu0 0.0
    %4111 = vmatprep.subr.mxu0 0.0
    %4112 = vmatpush2.xpose.msra.mxu0 0.0
    %4113 = vmatprep.subr.mxu0 0.0
    %4114 = vmatpush2.xpose.msra.mxu0 0.0
    %4115 = vmatprep.subr.mxu0 0.0
    %4116 = vmatpush2.xpose.msra.mxu0 0.0
    %4117 = vmatprep.subr.mxu0 0.0
    %4118 = vmatpush2.xpose.msra.mxu0 0.0
    %4119 = vmatprep.subr.mxu0 0.0
    %4120 = vmatpush2.xpose.msra.mxu0 0.0
    %4121 = vmatprep.subr.mxu0 0.0
    %4122 = vmatpush2.xpose.msra.mxu0 0.0
    %4123 = vmatprep.subr.mxu0 0.0
    %4124 = vmatpush2.xpose.msra.mxu0 0.0
    %4125 = vmatprep.subr.mxu0 0.0
    %4126 = vmatpush2.xpose.msra.mxu0 0.0
    %4127 = vmatprep.subr.mxu0 0.0
    %4128 = vmatpush2.xpose.msra.mxu0 0.0
    %4129 = vmatprep.mubr.f32.mxu0 0.0
    %4130 = vmatmul.mubr.f32.gmra.mxu0 %v4054
    %v4131 = vpop.f32.mrf.mxu0
    %v4132 = vadd.f32 0.0, %v4131
    %v4133 = vpop.f32.mrf.mxu0
    %4134 = vmatprep.mubr.f32.mxu0 0.0
    %4135 = vmatmul.mubr.f32.gmra.mxu0 %v4057
    %v4136 = vpop.f32.mrf.mxu0
    %v4137 = vadd.f32 0.0, %v4136
    %v4138 = vpop.f32.mrf.mxu0
    %4139 = vdwg.mxu0
    %v4141 = vsel %vm3791, %v1027, 0
    %v4144 = vsel %vm3791, %v1163, 0
    %v4147 = vsel %vm3791, %v2203, 0
    %v4150 = vsel %vm3791, %v2339, 0
    %4152 = vmatprep.subr.mxu0 0.0
    %4153 = vmatpush1.xpose.msra.mxu0 0.0
    %4154 = vmatprep.subr.mxu0 0.0
    %4155 = vmatpush1.xpose.msra.mxu0 0.0
    %4156 = vmatprep.subr.mxu0 0.0
    %4157 = vmatpush1.xpose.msra.mxu0 0.0
    %4158 = vmatprep.subr.mxu0 0.0
    %4159 = vmatpush1.xpose.msra.mxu0 0.0
    %4160 = vmatprep.subr.mxu0 0.0
    %4161 = vmatpush1.xpose.msra.mxu0 0.0
    %4162 = vmatprep.subr.mxu0 0.0
    %4163 = vmatpush1.xpose.msra.mxu0 0.0
    %4164 = vmatprep.subr.mxu0 0.0
    %4165 = vmatpush1.xpose.msra.mxu0 0.0
    %4166 = vmatprep.subr.mxu0 0.0
    %4167 = vmatpush1.xpose.msra.mxu0 0.0
    %4168 = vmatprep.subr.mxu0 0.0
    %4169 = vmatpush1.xpose.msra.mxu0 0.0
    %4170 = vmatprep.subr.mxu0 0.0
    %4171 = vmatpush1.xpose.msra.mxu0 0.0
    %4172 = vmatprep.subr.mxu0 0.0
    %4173 = vmatpush1.xpose.msra.mxu0 0.0
    %4174 = vmatprep.subr.mxu0 0.0
    %4175 = vmatpush1.xpose.msra.mxu0 0.0
    %4176 = vmatprep.subr.mxu0 0.0
    %4177 = vmatpush1.xpose.msra.mxu0 0.0
    %4178 = vmatprep.subr.mxu0 0.0
    %4179 = vmatpush1.xpose.msra.mxu0 0.0
    %4180 = vmatprep.subr.mxu0 0.0
    %4181 = vmatpush1.xpose.msra.mxu0 %v4150
    %4182 = vmatprep.subr.mxu0 0.0
    %4183 = vmatpush1.xpose.msra.mxu0 %v4147
    %4184 = vmatprep.subr.mxu0 0.0
    %4185 = vmatpush2.xpose.msra.mxu0 0.0
    %4186 = vmatprep.subr.mxu0 0.0
    %4187 = vmatpush2.xpose.msra.mxu0 0.0
    %4188 = vmatprep.subr.mxu0 0.0
    %4189 = vmatpush2.xpose.msra.mxu0 0.0
    %4190 = vmatprep.subr.mxu0 0.0
    %4191 = vmatpush2.xpose.msra.mxu0 0.0
    %4192 = vmatprep.subr.mxu0 0.0
    %4193 = vmatpush2.xpose.msra.mxu0 0.0
    %4194 = vmatprep.subr.mxu0 0.0
    %4195 = vmatpush2.xpose.msra.mxu0 0.0
    %4196 = vmatprep.subr.mxu0 0.0
    %4197 = vmatpush2.xpose.msra.mxu0 0.0
    %4198 = vmatprep.subr.mxu0 0.0
    %4199 = vmatpush2.xpose.msra.mxu0 0.0
    %4200 = vmatprep.subr.mxu0 0.0
    %4201 = vmatpush2.xpose.msra.mxu0 0.0
    %4202 = vmatprep.subr.mxu0 0.0
    %4203 = vmatpush2.xpose.msra.mxu0 0.0
    %4204 = vmatprep.subr.mxu0 0.0
    %4205 = vmatpush2.xpose.msra.mxu0 0.0
    %4206 = vmatprep.subr.mxu0 0.0
    %4207 = vmatpush2.xpose.msra.mxu0 0.0
    %4208 = vmatprep.subr.mxu0 0.0
    %4209 = vmatpush2.xpose.msra.mxu0 0.0
    %4210 = vmatprep.subr.mxu0 0.0
    %4211 = vmatpush2.xpose.msra.mxu0 0.0
    %4212 = vmatprep.subr.mxu0 0.0
    %4213 = vmatpush2.xpose.msra.mxu0 0.0
    %4214 = vmatprep.subr.mxu0 0.0
    %4215 = vmatpush2.xpose.msra.mxu0 0.0
    %4216 = vmatprep.mubr.f32.mxu0 0.0
    %4217 = vmatmul.mubr.f32.gmra.mxu0 %v4141
    %v4218 = vpop.f32.mrf.mxu0
    %v4219 = vadd.f32 0.0, %v4218
    %v4220 = vpop.f32.mrf.mxu0
    %4221 = vmatprep.mubr.f32.mxu0 0.0
    %4222 = vmatmul.mubr.f32.gmra.mxu0 %v4144
    %v4223 = vpop.f32.mrf.mxu0
    %v4224 = vadd.f32 0.0, %v4223
    %v4225 = vpop.f32.mrf.mxu0
    %4226 = vdwg.mxu0
    %v4228 = vsel %vm3791, %v1028, 0
    %v4231 = vsel %vm3791, %v1164, 0
    %v4234 = vsel %vm3791, %v2204, 0
    %v4237 = vsel %vm3791, %v2340, 0
    %4239 = vmatprep.subr.mxu0 0.0
    %4240 = vmatpush1.xpose.msra.mxu0 0.0
    %4241 = vmatprep.subr.mxu0 0.0
    %4242 = vmatpush1.xpose.msra.mxu0 0.0
    %4243 = vmatprep.subr.mxu0 0.0
    %4244 = vmatpush1.xpose.msra.mxu0 0.0
    %4245 = vmatprep.subr.mxu0 0.0
    %4246 = vmatpush1.xpose.msra.mxu0 0.0
    %4247 = vmatprep.subr.mxu0 0.0
    %4248 = vmatpush1.xpose.msra.mxu0 0.0
    %4249 = vmatprep.subr.mxu0 0.0
    %4250 = vmatpush1.xpose.msra.mxu0 0.0
    %4251 = vmatprep.subr.mxu0 0.0
    %4252 = vmatpush1.xpose.msra.mxu0 0.0
    %4253 = vmatprep.subr.mxu0 0.0
    %4254 = vmatpush1.xpose.msra.mxu0 0.0
    %4255 = vmatprep.subr.mxu0 0.0
    %4256 = vmatpush1.xpose.msra.mxu0 0.0
    %4257 = vmatprep.subr.mxu0 0.0
    %4258 = vmatpush1.xpose.msra.mxu0 0.0
    %4259 = vmatprep.subr.mxu0 0.0
    %4260 = vmatpush1.xpose.msra.mxu0 0.0
    %4261 = vmatprep.subr.mxu0 0.0
    %4262 = vmatpush1.xpose.msra.mxu0 0.0
    %4263 = vmatprep.subr.mxu0 0.0
    %4264 = vmatpush1.xpose.msra.mxu0 0.0
    %4265 = vmatprep.subr.mxu0 0.0
    %4266 = vmatpush1.xpose.msra.mxu0 0.0
    %4267 = vmatprep.subr.mxu0 0.0
    %4268 = vmatpush1.xpose.msra.mxu0 %v4237
    %4269 = vmatprep.subr.mxu0 0.0
    %4270 = vmatpush1.xpose.msra.mxu0 %v4234
    %4271 = vmatprep.subr.mxu0 0.0
    %4272 = vmatpush2.xpose.msra.mxu0 0.0
    %4273 = vmatprep.subr.mxu0 0.0
    %4274 = vmatpush2.xpose.msra.mxu0 0.0
    %4275 = vmatprep.subr.mxu0 0.0
    %4276 = vmatpush2.xpose.msra.mxu0 0.0
    %4277 = vmatprep.subr.mxu0 0.0
    %4278 = vmatpush2.xpose.msra.mxu0 0.0
    %4279 = vmatprep.subr.mxu0 0.0
    %4280 = vmatpush2.xpose.msra.mxu0 0.0
    %4281 = vmatprep.subr.mxu0 0.0
    %4282 = vmatpush2.xpose.msra.mxu0 0.0
    %4283 = vmatprep.subr.mxu0 0.0
    %4284 = vmatpush2.xpose.msra.mxu0 0.0
    %4285 = vmatprep.subr.mxu0 0.0
    %4286 = vmatpush2.xpose.msra.mxu0 0.0
    %4287 = vmatprep.subr.mxu0 0.0
    %4288 = vmatpush2.xpose.msra.mxu0 0.0
    %4289 = vmatprep.subr.mxu0 0.0
    %4290 = vmatpush2.xpose.msra.mxu0 0.0
    %4291 = vmatprep.subr.mxu0 0.0
    %4292 = vmatpush2.xpose.msra.mxu0 0.0
    %4293 = vmatprep.subr.mxu0 0.0
    %4294 = vmatpush2.xpose.msra.mxu0 0.0
    %4295 = vmatprep.subr.mxu0 0.0
    %4296 = vmatpush2.xpose.msra.mxu0 0.0
    %4297 = vmatprep.subr.mxu0 0.0
    %4298 = vmatpush2.xpose.msra.mxu0 0.0
    %4299 = vmatprep.subr.mxu0 0.0
    %4300 = vmatpush2.xpose.msra.mxu0 0.0
    %4301 = vmatprep.subr.mxu0 0.0
    %4302 = vmatpush2.xpose.msra.mxu0 0.0
    %4303 = vmatprep.mubr.f32.mxu0 0.0
    %4304 = vmatmul.mubr.f32.gmra.mxu0 %v4228
    %v4305 = vpop.f32.mrf.mxu0
    %v4306 = vadd.f32 0.0, %v4305
    %v4307 = vpop.f32.mrf.mxu0
    %4308 = vmatprep.mubr.f32.mxu0 0.0
    %4309 = vmatmul.mubr.f32.gmra.mxu0 %v4231
    %v4310 = vpop.f32.mrf.mxu0
    %v4311 = vadd.f32 0.0, %v4310
    %v4312 = vpop.f32.mrf.mxu0
    %4313 = vdwg.mxu0
    %v4315 = vsel %vm3791, %v1029, 0
    %v4318 = vsel %vm3791, %v1165, 0
    %v4321 = vsel %vm3791, %v2205, 0
    %v4324 = vsel %vm3791, %v2341, 0
    %4326 = vmatprep.subr.mxu0 0.0
    %4327 = vmatpush1.xpose.msra.mxu0 0.0
    %4328 = vmatprep.subr.mxu0 0.0
    %4329 = vmatpush1.xpose.msra.mxu0 0.0
    %4330 = vmatprep.subr.mxu0 0.0
    %4331 = vmatpush1.xpose.msra.mxu0 0.0
    %4332 = vmatprep.subr.mxu0 0.0
    %4333 = vmatpush1.xpose.msra.mxu0 0.0
    %4334 = vmatprep.subr.mxu0 0.0
    %4335 = vmatpush1.xpose.msra.mxu0 0.0
    %4336 = vmatprep.subr.mxu0 0.0
    %4337 = vmatpush1.xpose.msra.mxu0 0.0
    %4338 = vmatprep.subr.mxu0 0.0
    %4339 = vmatpush1.xpose.msra.mxu0 0.0
    %4340 = vmatprep.subr.mxu0 0.0
    %4341 = vmatpush1.xpose.msra.mxu0 0.0
    %4342 = vmatprep.subr.mxu0 0.0
    %4343 = vmatpush1.xpose.msra.mxu0 0.0
    %4344 = vmatprep.subr.mxu0 0.0
    %4345 = vmatpush1.xpose.msra.mxu0 0.0
    %4346 = vmatprep.subr.mxu0 0.0
    %4347 = vmatpush1.xpose.msra.mxu0 0.0
    %4348 = vmatprep.subr.mxu0 0.0
    %4349 = vmatpush1.xpose.msra.mxu0 0.0
    %4350 = vmatprep.subr.mxu0 0.0
    %4351 = vmatpush1.xpose.msra.mxu0 0.0
    %4352 = vmatprep.subr.mxu0 0.0
    %4353 = vmatpush1.xpose.msra.mxu0 0.0
    %4354 = vmatprep.subr.mxu0 0.0
    %4355 = vmatpush1.xpose.msra.mxu0 %v4324
    %4356 = vmatprep.subr.mxu0 0.0
    %4357 = vmatpush1.xpose.msra.mxu0 %v4321
    %4358 = vmatprep.subr.mxu0 0.0
    %4359 = vmatpush2.xpose.msra.mxu0 0.0
    %4360 = vmatprep.subr.mxu0 0.0
    %4361 = vmatpush2.xpose.msra.mxu0 0.0
    %4362 = vmatprep.subr.mxu0 0.0
    %4363 = vmatpush2.xpose.msra.mxu0 0.0
    %4364 = vmatprep.subr.mxu0 0.0
    %4365 = vmatpush2.xpose.msra.mxu0 0.0
    %4366 = vmatprep.subr.mxu0 0.0
    %4367 = vmatpush2.xpose.msra.mxu0 0.0
    %4368 = vmatprep.subr.mxu0 0.0
    %4369 = vmatpush2.xpose.msra.mxu0 0.0
    %4370 = vmatprep.subr.mxu0 0.0
    %4371 = vmatpush2.xpose.msra.mxu0 0.0
    %4372 = vmatprep.subr.mxu0 0.0
    %4373 = vmatpush2.xpose.msra.mxu0 0.0
    %4374 = vmatprep.subr.mxu0 0.0
    %4375 = vmatpush2.xpose.msra.mxu0 0.0
    %4376 = vmatprep.subr.mxu0 0.0
    %4377 = vmatpush2.xpose.msra.mxu0 0.0
    %4378 = vmatprep.subr.mxu0 0.0
    %4379 = vmatpush2.xpose.msra.mxu0 0.0
    %4380 = vmatprep.subr.mxu0 0.0
    %4381 = vmatpush2.xpose.msra.mxu0 0.0
    %4382 = vmatprep.subr.mxu0 0.0
    %4383 = vmatpush2.xpose.msra.mxu0 0.0
    %4384 = vmatprep.subr.mxu0 0.0
    %4385 = vmatpush2.xpose.msra.mxu0 0.0
    %4386 = vmatprep.subr.mxu0 0.0
    %4387 = vmatpush2.xpose.msra.mxu0 0.0
    %4388 = vmatprep.subr.mxu0 0.0
    %4389 = vmatpush2.xpose.msra.mxu0 0.0
    %4390 = vmatprep.mubr.f32.mxu0 0.0
    %4391 = vmatmul.mubr.f32.gmra.mxu0 %v4315
    %v4392 = vpop.f32.mrf.mxu0
    %v4393 = vadd.f32 0.0, %v4392
    %v4394 = vpop.f32.mrf.mxu0
    %4395 = vmatprep.mubr.f32.mxu0 0.0
    %4396 = vmatmul.mubr.f32.gmra.mxu0 %v4318
    %v4397 = vpop.f32.mrf.mxu0
    %v4398 = vadd.f32 0.0, %v4397
    %v4399 = vpop.f32.mrf.mxu0
    %4400 = vdwg.mxu0
    %v4402 = vsel %vm3791, %v1030, 0
    %v4405 = vsel %vm3791, %v1166, 0
    %v4408 = vsel %vm3791, %v2206, 0
    %v4411 = vsel %vm3791, %v2342, 0
    %4413 = vmatprep.subr.mxu0 0.0
    %4414 = vmatpush1.xpose.msra.mxu0 0.0
    %4415 = vmatprep.subr.mxu0 0.0
    %4416 = vmatpush1.xpose.msra.mxu0 0.0
    %4417 = vmatprep.subr.mxu0 0.0
    %4418 = vmatpush1.xpose.msra.mxu0 0.0
    %4419 = vmatprep.subr.mxu0 0.0
    %4420 = vmatpush1.xpose.msra.mxu0 0.0
    %4421 = vmatprep.subr.mxu0 0.0
    %4422 = vmatpush1.xpose.msra.mxu0 0.0
    %4423 = vmatprep.subr.mxu0 0.0
    %4424 = vmatpush1.xpose.msra.mxu0 0.0
    %4425 = vmatprep.subr.mxu0 0.0
    %4426 = vmatpush1.xpose.msra.mxu0 0.0
    %4427 = vmatprep.subr.mxu0 0.0
    %4428 = vmatpush1.xpose.msra.mxu0 0.0
    %4429 = vmatprep.subr.mxu0 0.0
    %4430 = vmatpush1.xpose.msra.mxu0 0.0
    %4431 = vmatprep.subr.mxu0 0.0
    %4432 = vmatpush1.xpose.msra.mxu0 0.0
    %4433 = vmatprep.subr.mxu0 0.0
    %4434 = vmatpush1.xpose.msra.mxu0 0.0
    %4435 = vmatprep.subr.mxu0 0.0
    %4436 = vmatpush1.xpose.msra.mxu0 0.0
    %4437 = vmatprep.subr.mxu0 0.0
    %4438 = vmatpush1.xpose.msra.mxu0 0.0
    %4439 = vmatprep.subr.mxu0 0.0
    %4440 = vmatpush1.xpose.msra.mxu0 0.0
    %4441 = vmatprep.subr.mxu0 0.0
    %4442 = vmatpush1.xpose.msra.mxu0 %v4411
    %4443 = vmatprep.subr.mxu0 0.0
    %4444 = vmatpush1.xpose.msra.mxu0 %v4408
    %4445 = vmatprep.subr.mxu0 0.0
    %4446 = vmatpush2.xpose.msra.mxu0 0.0
    %4447 = vmatprep.subr.mxu0 0.0
    %4448 = vmatpush2.xpose.msra.mxu0 0.0
    %4449 = vmatprep.subr.mxu0 0.0
    %4450 = vmatpush2.xpose.msra.mxu0 0.0
    %4451 = vmatprep.subr.mxu0 0.0
    %4452 = vmatpush2.xpose.msra.mxu0 0.0
    %4453 = vmatprep.subr.mxu0 0.0
    %4454 = vmatpush2.xpose.msra.mxu0 0.0
    %4455 = vmatprep.subr.mxu0 0.0
    %4456 = vmatpush2.xpose.msra.mxu0 0.0
    %4457 = vmatprep.subr.mxu0 0.0
    %4458 = vmatpush2.xpose.msra.mxu0 0.0
    %4459 = vmatprep.subr.mxu0 0.0
    %4460 = vmatpush2.xpose.msra.mxu0 0.0
    %4461 = vmatprep.subr.mxu0 0.0
    %4462 = vmatpush2.xpose.msra.mxu0 0.0
    %4463 = vmatprep.subr.mxu0 0.0
    %4464 = vmatpush2.xpose.msra.mxu0 0.0
    %4465 = vmatprep.subr.mxu0 0.0
    %4466 = vmatpush2.xpose.msra.mxu0 0.0
    %4467 = vmatprep.subr.mxu0 0.0
    %4468 = vmatpush2.xpose.msra.mxu0 0.0
    %4469 = vmatprep.subr.mxu0 0.0
    %4470 = vmatpush2.xpose.msra.mxu0 0.0
    %4471 = vmatprep.subr.mxu0 0.0
    %4472 = vmatpush2.xpose.msra.mxu0 0.0
    %4473 = vmatprep.subr.mxu0 0.0
    %4474 = vmatpush2.xpose.msra.mxu0 0.0
    %4475 = vmatprep.subr.mxu0 0.0
    %4476 = vmatpush2.xpose.msra.mxu0 0.0
    %4477 = vmatprep.mubr.f32.mxu0 0.0
    %4478 = vmatmul.mubr.f32.gmra.mxu0 %v4402
    %v4479 = vpop.f32.mrf.mxu0
    %v4480 = vadd.f32 0.0, %v4479
    %v4481 = vpop.f32.mrf.mxu0
    %4482 = vmatprep.mubr.f32.mxu0 0.0
    %4483 = vmatmul.mubr.f32.gmra.mxu0 %v4405
    %v4484 = vpop.f32.mrf.mxu0
    %v4485 = vadd.f32 0.0, %v4484
    %v4486 = vpop.f32.mrf.mxu0
    %4487 = vdwg.mxu0
    %v4489 = vsel %vm3791, %v1295, 0
    %v4492 = vsel %vm3791, %v1431, 0
    %v4495 = vsel %vm3791, %v2471, 0
    %v4498 = vsel %vm3791, %v2607, 0
    %4500 = vmatprep.subr.mxu0 0.0
    %4501 = vmatpush1.xpose.msra.mxu0 0.0
    %4502 = vmatprep.subr.mxu0 0.0
    %4503 = vmatpush1.xpose.msra.mxu0 0.0
    %4504 = vmatprep.subr.mxu0 0.0
    %4505 = vmatpush1.xpose.msra.mxu0 0.0
    %4506 = vmatprep.subr.mxu0 0.0
    %4507 = vmatpush1.xpose.msra.mxu0 0.0
    %4508 = vmatprep.subr.mxu0 0.0
    %4509 = vmatpush1.xpose.msra.mxu0 0.0
    %4510 = vmatprep.subr.mxu0 0.0
    %4511 = vmatpush1.xpose.msra.mxu0 0.0
    %4512 = vmatprep.subr.mxu0 0.0
    %4513 = vmatpush1.xpose.msra.mxu0 0.0
    %4514 = vmatprep.subr.mxu0 0.0
    %4515 = vmatpush1.xpose.msra.mxu0 0.0
    %4516 = vmatprep.subr.mxu0 0.0
    %4517 = vmatpush1.xpose.msra.mxu0 0.0
    %4518 = vmatprep.subr.mxu0 0.0
    %4519 = vmatpush1.xpose.msra.mxu0 0.0
    %4520 = vmatprep.subr.mxu0 0.0
    %4521 = vmatpush1.xpose.msra.mxu0 0.0
    %4522 = vmatprep.subr.mxu0 0.0
    %4523 = vmatpush1.xpose.msra.mxu0 0.0
    %4524 = vmatprep.subr.mxu0 0.0
    %4525 = vmatpush1.xpose.msra.mxu0 0.0
    %4526 = vmatprep.subr.mxu0 0.0
    %4527 = vmatpush1.xpose.msra.mxu0 0.0
    %4528 = vmatprep.subr.mxu0 0.0
    %4529 = vmatpush1.xpose.msra.mxu0 %v4498
    %4530 = vmatprep.subr.mxu0 0.0
    %4531 = vmatpush1.xpose.msra.mxu0 %v4495
    %4532 = vmatprep.subr.mxu0 0.0
    %4533 = vmatpush2.xpose.msra.mxu0 0.0
    %4534 = vmatprep.subr.mxu0 0.0
    %4535 = vmatpush2.xpose.msra.mxu0 0.0
    %4536 = vmatprep.subr.mxu0 0.0
    %4537 = vmatpush2.xpose.msra.mxu0 0.0
    %4538 = vmatprep.subr.mxu0 0.0
    %4539 = vmatpush2.xpose.msra.mxu0 0.0
    %4540 = vmatprep.subr.mxu0 0.0
    %4541 = vmatpush2.xpose.msra.mxu0 0.0
    %4542 = vmatprep.subr.mxu0 0.0
    %4543 = vmatpush2.xpose.msra.mxu0 0.0
    %4544 = vmatprep.subr.mxu0 0.0
    %4545 = vmatpush2.xpose.msra.mxu0 0.0
    %4546 = vmatprep.subr.mxu0 0.0
    %4547 = vmatpush2.xpose.msra.mxu0 0.0
    %4548 = vmatprep.subr.mxu0 0.0
    %4549 = vmatpush2.xpose.msra.mxu0 0.0
    %4550 = vmatprep.subr.mxu0 0.0
    %4551 = vmatpush2.xpose.msra.mxu0 0.0
    %4552 = vmatprep.subr.mxu0 0.0
    %4553 = vmatpush2.xpose.msra.mxu0 0.0
    %4554 = vmatprep.subr.mxu0 0.0
    %4555 = vmatpush2.xpose.msra.mxu0 0.0
    %4556 = vmatprep.subr.mxu0 0.0
    %4557 = vmatpush2.xpose.msra.mxu0 0.0
    %4558 = vmatprep.subr.mxu0 0.0
    %4559 = vmatpush2.xpose.msra.mxu0 0.0
    %4560 = vmatprep.subr.mxu0 0.0
    %4561 = vmatpush2.xpose.msra.mxu0 0.0
    %4562 = vmatprep.subr.mxu0 0.0
    %4563 = vmatpush2.xpose.msra.mxu0 0.0
    %4564 = vmatprep.mubr.f32.mxu0 0.0
    %4565 = vmatmul.mubr.f32.gmra.mxu0 %v4489
    %v4566 = vpop.f32.mrf.mxu0
    %v4567 = vadd.f32 0.0, %v4566
    %v4568 = vpop.f32.mrf.mxu0
    %4569 = vmatprep.mubr.f32.mxu0 0.0
    %4570 = vmatmul.mubr.f32.gmra.mxu0 %v4492
    %v4571 = vpop.f32.mrf.mxu0
    %v4572 = vadd.f32 0.0, %v4571
    %v4573 = vpop.f32.mrf.mxu0
    %4574 = vdwg.mxu0
    %v4576 = vsel %vm3791, %v1296, 0
    %v4579 = vsel %vm3791, %v1432, 0
    %v4582 = vsel %vm3791, %v2472, 0
    %v4585 = vsel %vm3791, %v2608, 0
    %4587 = vmatprep.subr.mxu0 0.0
    %4588 = vmatpush1.xpose.msra.mxu0 0.0
    %4589 = vmatprep.subr.mxu0 0.0
    %4590 = vmatpush1.xpose.msra.mxu0 0.0
    %4591 = vmatprep.subr.mxu0 0.0
    %4592 = vmatpush1.xpose.msra.mxu0 0.0
    %4593 = vmatprep.subr.mxu0 0.0
    %4594 = vmatpush1.xpose.msra.mxu0 0.0
    %4595 = vmatprep.subr.mxu0 0.0
    %4596 = vmatpush1.xpose.msra.mxu0 0.0
    %4597 = vmatprep.subr.mxu0 0.0
    %4598 = vmatpush1.xpose.msra.mxu0 0.0
    %4599 = vmatprep.subr.mxu0 0.0
    %4600 = vmatpush1.xpose.msra.mxu0 0.0
    %4601 = vmatprep.subr.mxu0 0.0
    %4602 = vmatpush1.xpose.msra.mxu0 0.0
    %4603 = vmatprep.subr.mxu0 0.0
    %4604 = vmatpush1.xpose.msra.mxu0 0.0
    %4605 = vmatprep.subr.mxu0 0.0
    %4606 = vmatpush1.xpose.msra.mxu0 0.0
    %4607 = vmatprep.subr.mxu0 0.0
    %4608 = vmatpush1.xpose.msra.mxu0 0.0
    %4609 = vmatprep.subr.mxu0 0.0
    %4610 = vmatpush1.xpose.msra.mxu0 0.0
    %4611 = vmatprep.subr.mxu0 0.0
    %4612 = vmatpush1.xpose.msra.mxu0 0.0
    %4613 = vmatprep.subr.mxu0 0.0
    %4614 = vmatpush1.xpose.msra.mxu0 0.0
    %4615 = vmatprep.subr.mxu0 0.0
    %4616 = vmatpush1.xpose.msra.mxu0 %v4585
    %4617 = vmatprep.subr.mxu0 0.0
    %4618 = vmatpush1.xpose.msra.mxu0 %v4582
    %4619 = vmatprep.subr.mxu0 0.0
    %4620 = vmatpush2.xpose.msra.mxu0 0.0
    %4621 = vmatprep.subr.mxu0 0.0
    %4622 = vmatpush2.xpose.msra.mxu0 0.0
    %4623 = vmatprep.subr.mxu0 0.0
    %4624 = vmatpush2.xpose.msra.mxu0 0.0
    %4625 = vmatprep.subr.mxu0 0.0
    %4626 = vmatpush2.xpose.msra.mxu0 0.0
    %4627 = vmatprep.subr.mxu0 0.0
    %4628 = vmatpush2.xpose.msra.mxu0 0.0
    %4629 = vmatprep.subr.mxu0 0.0
    %4630 = vmatpush2.xpose.msra.mxu0 0.0
    %4631 = vmatprep.subr.mxu0 0.0
    %4632 = vmatpush2.xpose.msra.mxu0 0.0
    %4633 = vmatprep.subr.mxu0 0.0
    %4634 = vmatpush2.xpose.msra.mxu0 0.0
    %4635 = vmatprep.subr.mxu0 0.0
    %4636 = vmatpush2.xpose.msra.mxu0 0.0
    %4637 = vmatprep.subr.mxu0 0.0
    %4638 = vmatpush2.xpose.msra.mxu0 0.0
    %4639 = vmatprep.subr.mxu0 0.0
    %4640 = vmatpush2.xpose.msra.mxu0 0.0
    %4641 = vmatprep.subr.mxu0 0.0
    %4642 = vmatpush2.xpose.msra.mxu0 0.0
    %4643 = vmatprep.subr.mxu0 0.0
    %4644 = vmatpush2.xpose.msra.mxu0 0.0
    %4645 = vmatprep.subr.mxu0 0.0
    %4646 = vmatpush2.xpose.msra.mxu0 0.0
    %4647 = vmatprep.subr.mxu0 0.0
    %4648 = vmatpush2.xpose.msra.mxu0 0.0
    %4649 = vmatprep.subr.mxu0 0.0
    %4650 = vmatpush2.xpose.msra.mxu0 0.0
    %4651 = vmatprep.mubr.f32.mxu0 0.0
    %4652 = vmatmul.mubr.f32.gmra.mxu0 %v4576
    %v4653 = vpop.f32.mrf.mxu0
    %v4654 = vadd.f32 0.0, %v4653
    %v4655 = vpop.f32.mrf.mxu0
    %4656 = vmatprep.mubr.f32.mxu0 0.0
    %4657 = vmatmul.mubr.f32.gmra.mxu0 %v4579
    %v4658 = vpop.f32.mrf.mxu0
    %v4659 = vadd.f32 0.0, %v4658
    %v4660 = vpop.f32.mrf.mxu0
    %4661 = vdwg.mxu0
    %v4663 = vsel %vm3791, %v1297, 0
    %v4666 = vsel %vm3791, %v1433, 0
    %v4669 = vsel %vm3791, %v2473, 0
    %v4672 = vsel %vm3791, %v2609, 0
    %4674 = vmatprep.subr.mxu0 0.0
    %4675 = vmatpush1.xpose.msra.mxu0 0.0
    %4676 = vmatprep.subr.mxu0 0.0
    %4677 = vmatpush1.xpose.msra.mxu0 0.0
    %4678 = vmatprep.subr.mxu0 0.0
    %4679 = vmatpush1.xpose.msra.mxu0 0.0
    %4680 = vmatprep.subr.mxu0 0.0
    %4681 = vmatpush1.xpose.msra.mxu0 0.0
    %4682 = vmatprep.subr.mxu0 0.0
    %4683 = vmatpush1.xpose.msra.mxu0 0.0
    %4684 = vmatprep.subr.mxu0 0.0
    %4685 = vmatpush1.xpose.msra.mxu0 0.0
    %4686 = vmatprep.subr.mxu0 0.0
    %4687 = vmatpush1.xpose.msra.mxu0 0.0
    %4688 = vmatprep.subr.mxu0 0.0
    %4689 = vmatpush1.xpose.msra.mxu0 0.0
    %4690 = vmatprep.subr.mxu0 0.0
    %4691 = vmatpush1.xpose.msra.mxu0 0.0
    %4692 = vmatprep.subr.mxu0 0.0
    %4693 = vmatpush1.xpose.msra.mxu0 0.0
    %4694 = vmatprep.subr.mxu0 0.0
    %4695 = vmatpush1.xpose.msra.mxu0 0.0
    %4696 = vmatprep.subr.mxu0 0.0
    %4697 = vmatpush1.xpose.msra.mxu0 0.0
    %4698 = vmatprep.subr.mxu0 0.0
    %4699 = vmatpush1.xpose.msra.mxu0 0.0
    %4700 = vmatprep.subr.mxu0 0.0
    %4701 = vmatpush1.xpose.msra.mxu0 0.0
    %4702 = vmatprep.subr.mxu0 0.0
    %4703 = vmatpush1.xpose.msra.mxu0 %v4672
    %4704 = vmatprep.subr.mxu0 0.0
    %4705 = vmatpush1.xpose.msra.mxu0 %v4669
    %4706 = vmatprep.subr.mxu0 0.0
    %4707 = vmatpush2.xpose.msra.mxu0 0.0
    %4708 = vmatprep.subr.mxu0 0.0
    %4709 = vmatpush2.xpose.msra.mxu0 0.0
    %4710 = vmatprep.subr.mxu0 0.0
    %4711 = vmatpush2.xpose.msra.mxu0 0.0
    %4712 = vmatprep.subr.mxu0 0.0
    %4713 = vmatpush2.xpose.msra.mxu0 0.0
    %4714 = vmatprep.subr.mxu0 0.0
    %4715 = vmatpush2.xpose.msra.mxu0 0.0
    %4716 = vmatprep.subr.mxu0 0.0
    %4717 = vmatpush2.xpose.msra.mxu0 0.0
    %4718 = vmatprep.subr.mxu0 0.0
    %4719 = vmatpush2.xpose.msra.mxu0 0.0
    %4720 = vmatprep.subr.mxu0 0.0
    %4721 = vmatpush2.xpose.msra.mxu0 0.0
    %4722 = vmatprep.subr.mxu0 0.0
    %4723 = vmatpush2.xpose.msra.mxu0 0.0
    %4724 = vmatprep.subr.mxu0 0.0
    %4725 = vmatpush2.xpose.msra.mxu0 0.0
    %4726 = vmatprep.subr.mxu0 0.0
    %4727 = vmatpush2.xpose.msra.mxu0 0.0
    %4728 = vmatprep.subr.mxu0 0.0
    %4729 = vmatpush2.xpose.msra.mxu0 0.0
    %4730 = vmatprep.subr.mxu0 0.0
    %4731 = vmatpush2.xpose.msra.mxu0 0.0
    %4732 = vmatprep.subr.mxu0 0.0
    %4733 = vmatpush2.xpose.msra.mxu0 0.0
    %4734 = vmatprep.subr.mxu0 0.0
    %4735 = vmatpush2.xpose.msra.mxu0 0.0
    %4736 = vmatprep.subr.mxu0 0.0
    %4737 = vmatpush2.xpose.msra.mxu0 0.0
    %4738 = vmatprep.mubr.f32.mxu0 0.0
    %4739 = vmatmul.mubr.f32.gmra.mxu0 %v4663
    %v4740 = vpop.f32.mrf.mxu0
    %v4741 = vadd.f32 0.0, %v4740
    %v4742 = vpop.f32.mrf.mxu0
    %4743 = vmatprep.mubr.f32.mxu0 0.0
    %4744 = vmatmul.mubr.f32.gmra.mxu0 %v4666
    %v4745 = vpop.f32.mrf.mxu0
    %v4746 = vadd.f32 0.0, %v4745
    %v4747 = vpop.f32.mrf.mxu0
    %4748 = vdwg.mxu0
    %v4750 = vsel %vm3791, %v1298, 0
    %v4753 = vsel %vm3791, %v1434, 0
    %v4756 = vsel %vm3791, %v2474, 0
    %v4759 = vsel %vm3791, %v2610, 0
    %4761 = vmatprep.subr.mxu0 0.0
    %4762 = vmatpush1.xpose.msra.mxu0 0.0
    %4763 = vmatprep.subr.mxu0 0.0
    %4764 = vmatpush1.xpose.msra.mxu0 0.0
    %4765 = vmatprep.subr.mxu0 0.0
    %4766 = vmatpush1.xpose.msra.mxu0 0.0
    %4767 = vmatprep.subr.mxu0 0.0
    %4768 = vmatpush1.xpose.msra.mxu0 0.0
    %4769 = vmatprep.subr.mxu0 0.0
    %4770 = vmatpush1.xpose.msra.mxu0 0.0
    %4771 = vmatprep.subr.mxu0 0.0
    %4772 = vmatpush1.xpose.msra.mxu0 0.0
    %4773 = vmatprep.subr.mxu0 0.0
    %4774 = vmatpush1.xpose.msra.mxu0 0.0
    %4775 = vmatprep.subr.mxu0 0.0
    %4776 = vmatpush1.xpose.msra.mxu0 0.0
    %4777 = vmatprep.subr.mxu0 0.0
    %4778 = vmatpush1.xpose.msra.mxu0 0.0
    %4779 = vmatprep.subr.mxu0 0.0
    %4780 = vmatpush1.xpose.msra.mxu0 0.0
    %4781 = vmatprep.subr.mxu0 0.0
    %4782 = vmatpush1.xpose.msra.mxu0 0.0
    %4783 = vmatprep.subr.mxu0 0.0
    %4784 = vmatpush1.xpose.msra.mxu0 0.0
    %4785 = vmatprep.subr.mxu0 0.0
    %4786 = vmatpush1.xpose.msra.mxu0 0.0
    %4787 = vmatprep.subr.mxu0 0.0
    %4788 = vmatpush1.xpose.msra.mxu0 0.0
    %4789 = vmatprep.subr.mxu0 0.0
    %4790 = vmatpush1.xpose.msra.mxu0 %v4759
    %4791 = vmatprep.subr.mxu0 0.0
    %4792 = vmatpush1.xpose.msra.mxu0 %v4756
    %4793 = vmatprep.subr.mxu0 0.0
    %4794 = vmatpush2.xpose.msra.mxu0 0.0
    %4795 = vmatprep.subr.mxu0 0.0
    %4796 = vmatpush2.xpose.msra.mxu0 0.0
    %4797 = vmatprep.subr.mxu0 0.0
    %4798 = vmatpush2.xpose.msra.mxu0 0.0
    %4799 = vmatprep.subr.mxu0 0.0
    %4800 = vmatpush2.xpose.msra.mxu0 0.0
    %4801 = vmatprep.subr.mxu0 0.0
    %4802 = vmatpush2.xpose.msra.mxu0 0.0
    %4803 = vmatprep.subr.mxu0 0.0
    %4804 = vmatpush2.xpose.msra.mxu0 0.0
    %4805 = vmatprep.subr.mxu0 0.0
    %4806 = vmatpush2.xpose.msra.mxu0 0.0
    %4807 = vmatprep.subr.mxu0 0.0
    %4808 = vmatpush2.xpose.msra.mxu0 0.0
    %4809 = vmatprep.subr.mxu0 0.0
    %4810 = vmatpush2.xpose.msra.mxu0 0.0
    %4811 = vmatprep.subr.mxu0 0.0
    %4812 = vmatpush2.xpose.msra.mxu0 0.0
    %4813 = vmatprep.subr.mxu0 0.0
    %4814 = vmatpush2.xpose.msra.mxu0 0.0
    %4815 = vmatprep.subr.mxu0 0.0
    %4816 = vmatpush2.xpose.msra.mxu0 0.0
    %4817 = vmatprep.subr.mxu0 0.0
    %4818 = vmatpush2.xpose.msra.mxu0 0.0
    %4819 = vmatprep.subr.mxu0 0.0
    %4820 = vmatpush2.xpose.msra.mxu0 0.0
    %4821 = vmatprep.subr.mxu0 0.0
    %4822 = vmatpush2.xpose.msra.mxu0 0.0
    %4823 = vmatprep.subr.mxu0 0.0
    %4824 = vmatpush2.xpose.msra.mxu0 0.0
    %4825 = vmatprep.mubr.f32.mxu0 0.0
    %4826 = vmatmul.mubr.f32.gmra.mxu0 %v4750
    %v4827 = vpop.f32.mrf.mxu0
    %v4828 = vadd.f32 0.0, %v4827
    %v4829 = vpop.f32.mrf.mxu0
    %4830 = vmatprep.mubr.f32.mxu0 0.0
    %4831 = vmatmul.mubr.f32.gmra.mxu0 %v4753
    %v4832 = vpop.f32.mrf.mxu0
    %v4833 = vadd.f32 0.0, %v4832
    %v4834 = vpop.f32.mrf.mxu0
    %4835 = vdwg.mxu0
    %v4837 = vsel %vm3791, %v1299, 0
    %v4840 = vsel %vm3791, %v1435, 0
    %v4843 = vsel %vm3791, %v2475, 0
    %v4846 = vsel %vm3791, %v2611, 0
    %4848 = vmatprep.subr.mxu0 0.0
    %4849 = vmatpush1.xpose.msra.mxu0 0.0
    %4850 = vmatprep.subr.mxu0 0.0
    %4851 = vmatpush1.xpose.msra.mxu0 0.0
    %4852 = vmatprep.subr.mxu0 0.0
    %4853 = vmatpush1.xpose.msra.mxu0 0.0
    %4854 = vmatprep.subr.mxu0 0.0
    %4855 = vmatpush1.xpose.msra.mxu0 0.0
    %4856 = vmatprep.subr.mxu0 0.0
    %4857 = vmatpush1.xpose.msra.mxu0 0.0
    %4858 = vmatprep.subr.mxu0 0.0
    %4859 = vmatpush1.xpose.msra.mxu0 0.0
    %4860 = vmatprep.subr.mxu0 0.0
    %4861 = vmatpush1.xpose.msra.mxu0 0.0
    %4862 = vmatprep.subr.mxu0 0.0
    %4863 = vmatpush1.xpose.msra.mxu0 0.0
    %4864 = vmatprep.subr.mxu0 0.0
    %4865 = vmatpush1.xpose.msra.mxu0 0.0
    %4866 = vmatprep.subr.mxu0 0.0
    %4867 = vmatpush1.xpose.msra.mxu0 0.0
    %4868 = vmatprep.subr.mxu0 0.0
    %4869 = vmatpush1.xpose.msra.mxu0 0.0
    %4870 = vmatprep.subr.mxu0 0.0
    %4871 = vmatpush1.xpose.msra.mxu0 0.0
    %4872 = vmatprep.subr.mxu0 0.0
    %4873 = vmatpush1.xpose.msra.mxu0 0.0
    %4874 = vmatprep.subr.mxu0 0.0
    %4875 = vmatpush1.xpose.msra.mxu0 0.0
    %4876 = vmatprep.subr.mxu0 0.0
    %4877 = vmatpush1.xpose.msra.mxu0 %v4846
    %4878 = vmatprep.subr.mxu0 0.0
    %4879 = vmatpush1.xpose.msra.mxu0 %v4843
    %4880 = vmatprep.subr.mxu0 0.0
    %4881 = vmatpush2.xpose.msra.mxu0 0.0
    %4882 = vmatprep.subr.mxu0 0.0
    %4883 = vmatpush2.xpose.msra.mxu0 0.0
    %4884 = vmatprep.subr.mxu0 0.0
    %4885 = vmatpush2.xpose.msra.mxu0 0.0
    %4886 = vmatprep.subr.mxu0 0.0
    %4887 = vmatpush2.xpose.msra.mxu0 0.0
    %4888 = vmatprep.subr.mxu0 0.0
    %4889 = vmatpush2.xpose.msra.mxu0 0.0
    %4890 = vmatprep.subr.mxu0 0.0
    %4891 = vmatpush2.xpose.msra.mxu0 0.0
    %4892 = vmatprep.subr.mxu0 0.0
    %4893 = vmatpush2.xpose.msra.mxu0 0.0
    %4894 = vmatprep.subr.mxu0 0.0
    %4895 = vmatpush2.xpose.msra.mxu0 0.0
    %4896 = vmatprep.subr.mxu0 0.0
    %4897 = vmatpush2.xpose.msra.mxu0 0.0
    %4898 = vmatprep.subr.mxu0 0.0
    %4899 = vmatpush2.xpose.msra.mxu0 0.0
    %4900 = vmatprep.subr.mxu0 0.0
    %4901 = vmatpush2.xpose.msra.mxu0 0.0
    %4902 = vmatprep.subr.mxu0 0.0
    %4903 = vmatpush2.xpose.msra.mxu0 0.0
    %4904 = vmatprep.subr.mxu0 0.0
    %4905 = vmatpush2.xpose.msra.mxu0 0.0
    %4906 = vmatprep.subr.mxu0 0.0
    %4907 = vmatpush2.xpose.msra.mxu0 0.0
    %4908 = vmatprep.subr.mxu0 0.0
    %4909 = vmatpush2.xpose.msra.mxu0 0.0
    %4910 = vmatprep.subr.mxu0 0.0
    %4911 = vmatpush2.xpose.msra.mxu0 0.0
    %4912 = vmatprep.mubr.f32.mxu0 0.0
    %4913 = vmatmul.mubr.f32.gmra.mxu0 %v4837
    %v4914 = vpop.f32.mrf.mxu0
    %v4915 = vadd.f32 0.0, %v4914
    %v4916 = vpop.f32.mrf.mxu0
    %4917 = vmatprep.mubr.f32.mxu0 0.0
    %4918 = vmatmul.mubr.f32.gmra.mxu0 %v4840
    %v4919 = vpop.f32.mrf.mxu0
    %v4920 = vadd.f32 0.0, %v4919
    %v4921 = vpop.f32.mrf.mxu0
    %4922 = vdwg.mxu0
    %v4924 = vsel %vm3791, %v1300, 0
    %v4927 = vsel %vm3791, %v1436, 0
    %v4930 = vsel %vm3791, %v2476, 0
    %v4933 = vsel %vm3791, %v2612, 0
    %4935 = vmatprep.subr.mxu0 0.0
    %4936 = vmatpush1.xpose.msra.mxu0 0.0
    %4937 = vmatprep.subr.mxu0 0.0
    %4938 = vmatpush1.xpose.msra.mxu0 0.0
    %4939 = vmatprep.subr.mxu0 0.0
    %4940 = vmatpush1.xpose.msra.mxu0 0.0
    %4941 = vmatprep.subr.mxu0 0.0
    %4942 = vmatpush1.xpose.msra.mxu0 0.0
    %4943 = vmatprep.subr.mxu0 0.0
    %4944 = vmatpush1.xpose.msra.mxu0 0.0
    %4945 = vmatprep.subr.mxu0 0.0
    %4946 = vmatpush1.xpose.msra.mxu0 0.0
    %4947 = vmatprep.subr.mxu0 0.0
    %4948 = vmatpush1.xpose.msra.mxu0 0.0
    %4949 = vmatprep.subr.mxu0 0.0
    %4950 = vmatpush1.xpose.msra.mxu0 0.0
    %4951 = vmatprep.subr.mxu0 0.0
    %4952 = vmatpush1.xpose.msra.mxu0 0.0
    %4953 = vmatprep.subr.mxu0 0.0
    %4954 = vmatpush1.xpose.msra.mxu0 0.0
    %4955 = vmatprep.subr.mxu0 0.0
    %4956 = vmatpush1.xpose.msra.mxu0 0.0
    %4957 = vmatprep.subr.mxu0 0.0
    %4958 = vmatpush1.xpose.msra.mxu0 0.0
    %4959 = vmatprep.subr.mxu0 0.0
    %4960 = vmatpush1.xpose.msra.mxu0 0.0
    %4961 = vmatprep.subr.mxu0 0.0
    %4962 = vmatpush1.xpose.msra.mxu0 0.0
    %4963 = vmatprep.subr.mxu0 0.0
    %4964 = vmatpush1.xpose.msra.mxu0 %v4933
    %4965 = vmatprep.subr.mxu0 0.0
    %4966 = vmatpush1.xpose.msra.mxu0 %v4930
    %4967 = vmatprep.subr.mxu0 0.0
    %4968 = vmatpush2.xpose.msra.mxu0 0.0
    %4969 = vmatprep.subr.mxu0 0.0
    %4970 = vmatpush2.xpose.msra.mxu0 0.0
    %4971 = vmatprep.subr.mxu0 0.0
    %4972 = vmatpush2.xpose.msra.mxu0 0.0
    %4973 = vmatprep.subr.mxu0 0.0
    %4974 = vmatpush2.xpose.msra.mxu0 0.0
    %4975 = vmatprep.subr.mxu0 0.0
    %4976 = vmatpush2.xpose.msra.mxu0 0.0
    %4977 = vmatprep.subr.mxu0 0.0
    %4978 = vmatpush2.xpose.msra.mxu0 0.0
    %4979 = vmatprep.subr.mxu0 0.0
    %4980 = vmatpush2.xpose.msra.mxu0 0.0
    %4981 = vmatprep.subr.mxu0 0.0
    %4982 = vmatpush2.xpose.msra.mxu0 0.0
    %4983 = vmatprep.subr.mxu0 0.0
    %4984 = vmatpush2.xpose.msra.mxu0 0.0
    %4985 = vmatprep.subr.mxu0 0.0
    %4986 = vmatpush2.xpose.msra.mxu0 0.0
    %4987 = vmatprep.subr.mxu0 0.0
    %4988 = vmatpush2.xpose.msra.mxu0 0.0
    %4989 = vmatprep.subr.mxu0 0.0
    %4990 = vmatpush2.xpose.msra.mxu0 0.0
    %4991 = vmatprep.subr.mxu0 0.0
    %4992 = vmatpush2.xpose.msra.mxu0 0.0
    %4993 = vmatprep.subr.mxu0 0.0
    %4994 = vmatpush2.xpose.msra.mxu0 0.0
    %4995 = vmatprep.subr.mxu0 0.0
    %4996 = vmatpush2.xpose.msra.mxu0 0.0
    %4997 = vmatprep.subr.mxu0 0.0
    %4998 = vmatpush2.xpose.msra.mxu0 0.0
    %4999 = vmatprep.mubr.f32.mxu0 0.0
    %5000 = vmatmul.mubr.f32.gmra.mxu0 %v4924
    %v5001 = vpop.f32.mrf.mxu0
    %v5002 = vadd.f32 0.0, %v5001
    %v5003 = vpop.f32.mrf.mxu0
    %5004 = vmatprep.mubr.f32.mxu0 0.0
    %5005 = vmatmul.mubr.f32.gmra.mxu0 %v4927
    %v5006 = vpop.f32.mrf.mxu0
    %v5007 = vadd.f32 0.0, %v5006
    %v5008 = vpop.f32.mrf.mxu0
    %5009 = vdwg.mxu0
    %v5011 = vsel %vm3791, %v1301, 0
    %v5014 = vsel %vm3791, %v1437, 0
    %v5017 = vsel %vm3791, %v2477, 0
    %v5020 = vsel %vm3791, %v2613, 0
    %5022 = vmatprep.subr.mxu0 0.0
    %5023 = vmatpush1.xpose.msra.mxu0 0.0
    %5024 = vmatprep.subr.mxu0 0.0
    %5025 = vmatpush1.xpose.msra.mxu0 0.0
    %5026 = vmatprep.subr.mxu0 0.0
    %5027 = vmatpush1.xpose.msra.mxu0 0.0
    %5028 = vmatprep.subr.mxu0 0.0
    %5029 = vmatpush1.xpose.msra.mxu0 0.0
    %5030 = vmatprep.subr.mxu0 0.0
    %5031 = vmatpush1.xpose.msra.mxu0 0.0
    %5032 = vmatprep.subr.mxu0 0.0
    %5033 = vmatpush1.xpose.msra.mxu0 0.0
    %5034 = vmatprep.subr.mxu0 0.0
    %5035 = vmatpush1.xpose.msra.mxu0 0.0
    %5036 = vmatprep.subr.mxu0 0.0
    %5037 = vmatpush1.xpose.msra.mxu0 0.0
    %5038 = vmatprep.subr.mxu0 0.0
    %5039 = vmatpush1.xpose.msra.mxu0 0.0
    %5040 = vmatprep.subr.mxu0 0.0
    %5041 = vmatpush1.xpose.msra.mxu0 0.0
    %5042 = vmatprep.subr.mxu0 0.0
    %5043 = vmatpush1.xpose.msra.mxu0 0.0
    %5044 = vmatprep.subr.mxu0 0.0
    %5045 = vmatpush1.xpose.msra.mxu0 0.0
    %5046 = vmatprep.subr.mxu0 0.0
    %5047 = vmatpush1.xpose.msra.mxu0 0.0
    %5048 = vmatprep.subr.mxu0 0.0
    %5049 = vmatpush1.xpose.msra.mxu0 0.0
    %5050 = vmatprep.subr.mxu0 0.0
    %5051 = vmatpush1.xpose.msra.mxu0 %v5020
    %5052 = vmatprep.subr.mxu0 0.0
    %5053 = vmatpush1.xpose.msra.mxu0 %v5017
    %5054 = vmatprep.subr.mxu0 0.0
    %5055 = vmatpush2.xpose.msra.mxu0 0.0
    %5056 = vmatprep.subr.mxu0 0.0
    %5057 = vmatpush2.xpose.msra.mxu0 0.0
    %5058 = vmatprep.subr.mxu0 0.0
    %5059 = vmatpush2.xpose.msra.mxu0 0.0
    %5060 = vmatprep.subr.mxu0 0.0
    %5061 = vmatpush2.xpose.msra.mxu0 0.0
    %5062 = vmatprep.subr.mxu0 0.0
    %5063 = vmatpush2.xpose.msra.mxu0 0.0
    %5064 = vmatprep.subr.mxu0 0.0
    %5065 = vmatpush2.xpose.msra.mxu0 0.0
    %5066 = vmatprep.subr.mxu0 0.0
    %5067 = vmatpush2.xpose.msra.mxu0 0.0
    %5068 = vmatprep.subr.mxu0 0.0
    %5069 = vmatpush2.xpose.msra.mxu0 0.0
    %5070 = vmatprep.subr.mxu0 0.0
    %5071 = vmatpush2.xpose.msra.mxu0 0.0
    %5072 = vmatprep.subr.mxu0 0.0
    %5073 = vmatpush2.xpose.msra.mxu0 0.0
    %5074 = vmatprep.subr.mxu0 0.0
    %5075 = vmatpush2.xpose.msra.mxu0 0.0
    %5076 = vmatprep.subr.mxu0 0.0
    %5077 = vmatpush2.xpose.msra.mxu0 0.0
    %5078 = vmatprep.subr.mxu0 0.0
    %5079 = vmatpush2.xpose.msra.mxu0 0.0
    %5080 = vmatprep.subr.mxu0 0.0
    %5081 = vmatpush2.xpose.msra.mxu0 0.0
    %5082 = vmatprep.subr.mxu0 0.0
    %5083 = vmatpush2.xpose.msra.mxu0 0.0
    %5084 = vmatprep.subr.mxu0 0.0
    %5085 = vmatpush2.xpose.msra.mxu0 0.0
    %5086 = vmatprep.mubr.f32.mxu0 0.0
    %5087 = vmatmul.mubr.f32.gmra.mxu0 %v5011
    %v5088 = vpop.f32.mrf.mxu0
    %v5089 = vadd.f32 0.0, %v5088
    %v5090 = vpop.f32.mrf.mxu0
    %5091 = vmatprep.mubr.f32.mxu0 0.0
    %5092 = vmatmul.mubr.f32.gmra.mxu0 %v5014
    %v5093 = vpop.f32.mrf.mxu0
    %v5094 = vadd.f32 0.0, %v5093
    %v5095 = vpop.f32.mrf.mxu0
    %5096 = vdwg.mxu0
    %v5098 = vsel %vm3791, %v1302, 0
    %v5101 = vsel %vm3791, %v1438, 0
    %v5104 = vsel %vm3791, %v2478, 0
    %v5107 = vsel %vm3791, %v2614, 0
    %5109 = vmatprep.subr.mxu0 0.0
    %5110 = vmatpush1.xpose.msra.mxu0 0.0
    %5111 = vmatprep.subr.mxu0 0.0
    %5112 = vmatpush1.xpose.msra.mxu0 0.0
    %5113 = vmatprep.subr.mxu0 0.0
    %5114 = vmatpush1.xpose.msra.mxu0 0.0
    %5115 = vmatprep.subr.mxu0 0.0
    %5116 = vmatpush1.xpose.msra.mxu0 0.0
    %5117 = vmatprep.subr.mxu0 0.0
    %5118 = vmatpush1.xpose.msra.mxu0 0.0
    %5119 = vmatprep.subr.mxu0 0.0
    %5120 = vmatpush1.xpose.msra.mxu0 0.0
    %5121 = vmatprep.subr.mxu0 0.0
    %5122 = vmatpush1.xpose.msra.mxu0 0.0
    %5123 = vmatprep.subr.mxu0 0.0
    %5124 = vmatpush1.xpose.msra.mxu0 0.0
    %5125 = vmatprep.subr.mxu0 0.0
    %5126 = vmatpush1.xpose.msra.mxu0 0.0
    %5127 = vmatprep.subr.mxu0 0.0
    %5128 = vmatpush1.xpose.msra.mxu0 0.0
    %5129 = vmatprep.subr.mxu0 0.0
    %5130 = vmatpush1.xpose.msra.mxu0 0.0
    %5131 = vmatprep.subr.mxu0 0.0
    %5132 = vmatpush1.xpose.msra.mxu0 0.0
    %5133 = vmatprep.subr.mxu0 0.0
    %5134 = vmatpush1.xpose.msra.mxu0 0.0
    %5135 = vmatprep.subr.mxu0 0.0
    %5136 = vmatpush1.xpose.msra.mxu0 0.0
    %5137 = vmatprep.subr.mxu0 0.0
    %5138 = vmatpush1.xpose.msra.mxu0 %v5107
    %5139 = vmatprep.subr.mxu0 0.0
    %5140 = vmatpush1.xpose.msra.mxu0 %v5104
    %5141 = vmatprep.subr.mxu0 0.0
    %5142 = vmatpush2.xpose.msra.mxu0 0.0
    %5143 = vmatprep.subr.mxu0 0.0
    %5144 = vmatpush2.xpose.msra.mxu0 0.0
    %5145 = vmatprep.subr.mxu0 0.0
    %5146 = vmatpush2.xpose.msra.mxu0 0.0
    %5147 = vmatprep.subr.mxu0 0.0
    %5148 = vmatpush2.xpose.msra.mxu0 0.0
    %5149 = vmatprep.subr.mxu0 0.0
    %5150 = vmatpush2.xpose.msra.mxu0 0.0
    %5151 = vmatprep.subr.mxu0 0.0
    %5152 = vmatpush2.xpose.msra.mxu0 0.0
    %5153 = vmatprep.subr.mxu0 0.0
    %5154 = vmatpush2.xpose.msra.mxu0 0.0
    %5155 = vmatprep.subr.mxu0 0.0
    %5156 = vmatpush2.xpose.msra.mxu0 0.0
    %5157 = vmatprep.subr.mxu0 0.0
    %5158 = vmatpush2.xpose.msra.mxu0 0.0
    %5159 = vmatprep.subr.mxu0 0.0
    %5160 = vmatpush2.xpose.msra.mxu0 0.0
    %5161 = vmatprep.subr.mxu0 0.0
    %5162 = vmatpush2.xpose.msra.mxu0 0.0
    %5163 = vmatprep.subr.mxu0 0.0
    %5164 = vmatpush2.xpose.msra.mxu0 0.0
    %5165 = vmatprep.subr.mxu0 0.0
    %5166 = vmatpush2.xpose.msra.mxu0 0.0
    %5167 = vmatprep.subr.mxu0 0.0
    %5168 = vmatpush2.xpose.msra.mxu0 0.0
    %5169 = vmatprep.subr.mxu0 0.0
    %5170 = vmatpush2.xpose.msra.mxu0 0.0
    %5171 = vmatprep.subr.mxu0 0.0
    %5172 = vmatpush2.xpose.msra.mxu0 0.0
    %5173 = vmatprep.mubr.f32.mxu0 0.0
    %5174 = vmatmul.mubr.f32.gmra.mxu0 %v5098
    %v5175 = vpop.f32.mrf.mxu0
    %v5176 = vadd.f32 0.0, %v5175
    %v5177 = vpop.f32.mrf.mxu0
    %5178 = vmatprep.mubr.f32.mxu0 0.0
    %5179 = vmatmul.mubr.f32.gmra.mxu0 %v5101
    %v5180 = vpop.f32.mrf.mxu0
    %v5181 = vadd.f32 0.0, %v5180
    %v5182 = vpop.f32.mrf.mxu0
    %5183 = vdwg.mxu0
    %v5184 = vsel %vm3791, %v3871, -inf
    %5185 = vmax.xlane.f32.xlu0 %v5184
    %v5186 = vpop.xlane.xlu0 %5185
    %v5187 = vsel %vm3791, %v3876, -inf
    %5188 = vmax.xlane.f32.xlu0 %v5187
    %v5189 = vpop.xlane.xlu0 %5188
    %v5190 = vsel %vm3791, %v3958, -inf
    %5191 = vmax.xlane.f32.xlu0 %v5190
    %v5192 = vpop.xlane.xlu0 %5191
    %v5193 = vsel %vm3791, %v3963, -inf
    %5194 = vmax.xlane.f32.xlu0 %v5193
    %v5195 = vpop.xlane.xlu0 %5194
    %v5196 = vsel %vm3791, %v4045, -inf
    %5197 = vmax.xlane.f32.xlu0 %v5196
    %v5198 = vpop.xlane.xlu0 %5197
    %v5199 = vsel %vm3791, %v4050, -inf
    %5200 = vmax.xlane.f32.xlu0 %v5199
    %v5201 = vpop.xlane.xlu0 %5200
    %v5202 = vsel %vm3791, %v4132, -inf
    %5203 = vmax.xlane.f32.xlu0 %v5202
    %v5204 = vpop.xlane.xlu0 %5203
    %v5205 = vsel %vm3791, %v4137, -inf
    %5206 = vmax.xlane.f32.xlu0 %v5205
    %v5207 = vpop.xlane.xlu0 %5206
    %v5208 = vsel %vm3791, %v4219, -inf
    %5209 = vmax.xlane.f32.xlu0 %v5208
    %v5210 = vpop.xlane.xlu0 %5209
    %v5211 = vsel %vm3791, %v4224, -inf
    %5212 = vmax.xlane.f32.xlu0 %v5211
    %v5213 = vpop.xlane.xlu0 %5212
    %v5214 = vsel %vm3791, %v4306, -inf
    %5215 = vmax.xlane.f32.xlu0 %v5214
    %v5216 = vpop.xlane.xlu0 %5215
    %v5217 = vsel %vm3791, %v4311, -inf
    %5218 = vmax.xlane.f32.xlu0 %v5217
    %v5219 = vpop.xlane.xlu0 %5218
    %v5220 = vsel %vm3791, %v4393, -inf
    %5221 = vmax.xlane.f32.xlu0 %v5220
    %v5222 = vpop.xlane.xlu0 %5221
    %v5223 = vsel %vm3791, %v4398, -inf
    %5224 = vmax.xlane.f32.xlu0 %v5223
    %v5225 = vpop.xlane.xlu0 %5224
    %v5226 = vsel %vm3791, %v4480, -inf
    %5227 = vmax.xlane.f32.xlu0 %v5226
    %v5228 = vpop.xlane.xlu0 %5227
    %v5229 = vsel %vm3791, %v4485, -inf
    %5230 = vmax.xlane.f32.xlu0 %v5229
    %v5231 = vpop.xlane.xlu0 %5230
    %v5232 = vsel %vm3791, %v4567, -inf
    %5233 = vmax.xlane.f32.xlu0 %v5232
    %v5234 = vpop.xlane.xlu0 %5233
    %v5235 = vsel %vm3791, %v4572, -inf
    %5236 = vmax.xlane.f32.xlu0 %v5235
    %v5237 = vpop.xlane.xlu0 %5236
    %v5238 = vsel %vm3791, %v4654, -inf
    %5239 = vmax.xlane.f32.xlu0 %v5238
    %v5240 = vpop.xlane.xlu0 %5239
    %v5241 = vsel %vm3791, %v4659, -inf
    %5242 = vmax.xlane.f32.xlu0 %v5241
    %v5243 = vpop.xlane.xlu0 %5242
    %v5244 = vsel %vm3791, %v4741, -inf
    %5245 = vmax.xlane.f32.xlu0 %v5244
    %v5246 = vpop.xlane.xlu0 %5245
    %v5247 = vsel %vm3791, %v4746, -inf
    %5248 = vmax.xlane.f32.xlu0 %v5247
    %v5249 = vpop.xlane.xlu0 %5248
    %v5250 = vsel %vm3791, %v4828, -inf
    %5251 = vmax.xlane.f32.xlu0 %v5250
    %v5252 = vpop.xlane.xlu0 %5251
    %v5253 = vsel %vm3791, %v4833, -inf
    %5254 = vmax.xlane.f32.xlu0 %v5253
    %v5255 = vpop.xlane.xlu0 %5254
    %v5256 = vsel %vm3791, %v4915, -inf
    %5257 = vmax.xlane.f32.xlu0 %v5256
    %v5258 = vpop.xlane.xlu0 %5257
    %v5259 = vsel %vm3791, %v4920, -inf
    %5260 = vmax.xlane.f32.xlu0 %v5259
    %v5261 = vpop.xlane.xlu0 %5260
    %v5262 = vsel %vm3791, %v5002, -inf
    %5263 = vmax.xlane.f32.xlu0 %v5262
    %v5264 = vpop.xlane.xlu0 %5263
    %v5265 = vsel %vm3791, %v5007, -inf
    %5266 = vmax.xlane.f32.xlu0 %v5265
    %v5267 = vpop.xlane.xlu0 %5266
    %v5268 = vsel %vm3791, %v5089, -inf
    %5269 = vmax.xlane.f32.xlu0 %v5268
    %v5270 = vpop.xlane.xlu0 %5269
    %v5271 = vsel %vm3791, %v5094, -inf
    %5272 = vmax.xlane.f32.xlu0 %v5271
    %v5273 = vpop.xlane.xlu0 %5272
    %v5274 = vsel %vm3791, %v5176, -inf
    %5275 = vmax.xlane.f32.xlu0 %v5274
    %v5276 = vpop.xlane.xlu0 %5275
    %v5277 = vsel %vm3791, %v5181, -inf
    %5278 = vmax.xlane.f32.xlu0 %v5277
    %v5279 = vpop.xlane.xlu0 %5278
    %v5280 = vsub.f32 %v3871, %v5186
    %v5281 = vsub.f32 %v3876, %v5189
    %v5282 = vsub.f32 %v3958, %v5192
    %v5283 = vsub.f32 %v3963, %v5195
    %v5284 = vsub.f32 %v4045, %v5198
    %v5285 = vsub.f32 %v4050, %v5201
    %v5286 = vsub.f32 %v4132, %v5204
    %v5287 = vsub.f32 %v4137, %v5207
    %v5288 = vsub.f32 %v4219, %v5210
    %v5289 = vsub.f32 %v4224, %v5213
    %v5290 = vsub.f32 %v4306, %v5216
    %v5291 = vsub.f32 %v4311, %v5219
    %v5292 = vsub.f32 %v4393, %v5222
    %v5293 = vsub.f32 %v4398, %v5225
    %v5294 = vsub.f32 %v4480, %v5228
    %v5295 = vsub.f32 %v4485, %v5231
    %v5296 = vsub.f32 %v4567, %v5234
    %v5297 = vsub.f32 %v4572, %v5237
    %v5298 = vsub.f32 %v4654, %v5240
    %v5299 = vsub.f32 %v4659, %v5243
    %v5300 = vsub.f32 %v4741, %v5246
    %v5301 = vsub.f32 %v4746, %v5249
    %v5302 = vsub.f32 %v4828, %v5252
    %v5303 = vsub.f32 %v4833, %v5255
    %v5304 = vsub.f32 %v4915, %v5258
    %v5305 = vsub.f32 %v4920, %v5261
    %v5306 = vsub.f32 %v5002, %v5264
    %v5307 = vsub.f32 %v5007, %v5267
    %v5308 = vsub.f32 %v5089, %v5270
    %v5309 = vsub.f32 %v5094, %v5273
    %v5310 = vsub.f32 %v5176, %v5276
    %v5311 = vsub.f32 %v5181, %v5279
    %v5312 = vmul.f32 %v5280, 1.442695
    %v5313 = vpow.pop %v5312
    %v5314 = vmul.f32 %v5281, 1.442695
    %v5315 = vpow.pop %v5314
    %v5316 = vmul.f32 %v5282, 1.442695
    %v5317 = vpow.pop %v5316
    %v5318 = vmul.f32 %v5283, 1.442695
    %v5319 = vpow.pop %v5318
    %v5320 = vmul.f32 %v5284, 1.442695
    %v5321 = vpow.pop %v5320
    %v5322 = vmul.f32 %v5285, 1.442695
    %v5323 = vpow.pop %v5322
    %v5324 = vmul.f32 %v5286, 1.442695
    %v5325 = vpow.pop %v5324
    %v5326 = vmul.f32 %v5287, 1.442695
    %v5327 = vpow.pop %v5326
    %v5328 = vmul.f32 %v5288, 1.442695
    %v5329 = vpow.pop %v5328
    %v5330 = vmul.f32 %v5289, 1.442695
    %v5331 = vpow.pop %v5330
    %v5332 = vmul.f32 %v5290, 1.442695
    %v5333 = vpow.pop %v5332
    %v5334 = vmul.f32 %v5291, 1.442695
    %v5335 = vpow.pop %v5334
    %v5336 = vmul.f32 %v5292, 1.442695
    %v5337 = vpow.pop %v5336
    %v5338 = vmul.f32 %v5293, 1.442695
    %v5339 = vpow.pop %v5338
    %v5340 = vmul.f32 %v5294, 1.442695
    %v5341 = vpow.pop %v5340
    %v5342 = vmul.f32 %v5295, 1.442695
    %v5343 = vpow.pop %v5342
    %v5344 = vmul.f32 %v5296, 1.442695
    %v5345 = vpow.pop %v5344
    %v5346 = vmul.f32 %v5297, 1.442695
    %v5347 = vpow.pop %v5346
    %v5348 = vmul.f32 %v5298, 1.442695
    %v5349 = vpow.pop %v5348
    %v5350 = vmul.f32 %v5299, 1.442695
    %v5351 = vpow.pop %v5350
    %v5352 = vmul.f32 %v5300, 1.442695
    %v5353 = vpow.pop %v5352
    %v5354 = vmul.f32 %v5301, 1.442695
    %v5355 = vpow.pop %v5354
    %v5356 = vmul.f32 %v5302, 1.442695
    %v5357 = vpow.pop %v5356
    %v5358 = vmul.f32 %v5303, 1.442695
    %v5359 = vpow.pop %v5358
    %v5360 = vmul.f32 %v5304, 1.442695
    %v5361 = vpow.pop %v5360
    %v5362 = vmul.f32 %v5305, 1.442695
    %v5363 = vpow.pop %v5362
    %v5364 = vmul.f32 %v5306, 1.442695
    %v5365 = vpow.pop %v5364
    %v5366 = vmul.f32 %v5307, 1.442695
    %v5367 = vpow.pop %v5366
    %v5368 = vmul.f32 %v5308, 1.442695
    %v5369 = vpow.pop %v5368
    %v5370 = vmul.f32 %v5309, 1.442695
    %v5371 = vpow.pop %v5370
    %v5372 = vmul.f32 %v5310, 1.442695
    %v5373 = vpow.pop %v5372
    %v5374 = vmul.f32 %v5311, 1.442695
    %v5375 = vpow.pop %v5374
    %v5376 = vsel %vm3791, %v5313, 0.0
    %5377 = vadd.xlane.f32.xlu0 %v5376
    %v5378 = vpop.xlane.xlu0 %5377
    %v5379 = vsel %vm3791, %v5315, 0.0
    %5380 = vadd.xlane.f32.xlu0 %v5379
    %v5381 = vpop.xlane.xlu0 %5380
    %v5382 = vsel %vm3791, %v5317, 0.0
    %5383 = vadd.xlane.f32.xlu0 %v5382
    %v5384 = vpop.xlane.xlu0 %5383
    %v5385 = vsel %vm3791, %v5319, 0.0
    %5386 = vadd.xlane.f32.xlu0 %v5385
    %v5387 = vpop.xlane.xlu0 %5386
    %v5388 = vsel %vm3791, %v5321, 0.0
    %5389 = vadd.xlane.f32.xlu0 %v5388
    %v5390 = vpop.xlane.xlu0 %5389
    %v5391 = vsel %vm3791, %v5323, 0.0
    %5392 = vadd.xlane.f32.xlu0 %v5391
    %v5393 = vpop.xlane.xlu0 %5392
    %v5394 = vsel %vm3791, %v5325, 0.0
    %5395 = vadd.xlane.f32.xlu0 %v5394
    %v5396 = vpop.xlane.xlu0 %5395
    %v5397 = vsel %vm3791, %v5327, 0.0
    %5398 = vadd.xlane.f32.xlu0 %v5397
    %v5399 = vpop.xlane.xlu0 %5398
    %v5400 = vsel %vm3791, %v5329, 0.0
    %5401 = vadd.xlane.f32.xlu0 %v5400
    %v5402 = vpop.xlane.xlu0 %5401
    %v5403 = vsel %vm3791, %v5331, 0.0
    %5404 = vadd.xlane.f32.xlu0 %v5403
    %v5405 = vpop.xlane.xlu0 %5404
    %v5406 = vsel %vm3791, %v5333, 0.0
    %5407 = vadd.xlane.f32.xlu0 %v5406
    %v5408 = vpop.xlane.xlu0 %5407
    %v5409 = vsel %vm3791, %v5335, 0.0
    %5410 = vadd.xlane.f32.xlu0 %v5409
    %v5411 = vpop.xlane.xlu0 %5410
    %v5412 = vsel %vm3791, %v5337, 0.0
    %5413 = vadd.xlane.f32.xlu0 %v5412
    %v5414 = vpop.xlane.xlu0 %5413
    %v5415 = vsel %vm3791, %v5339, 0.0
    %5416 = vadd.xlane.f32.xlu0 %v5415
    %v5417 = vpop.xlane.xlu0 %5416
    %v5418 = vsel %vm3791, %v5341, 0.0
    %5419 = vadd.xlane.f32.xlu0 %v5418
    %v5420 = vpop.xlane.xlu0 %5419
    %v5421 = vsel %vm3791, %v5343, 0.0
    %5422 = vadd.xlane.f32.xlu0 %v5421
    %v5423 = vpop.xlane.xlu0 %5422
    %v5424 = vsel %vm3791, %v5345, 0.0
    %5425 = vadd.xlane.f32.xlu0 %v5424
    %v5426 = vpop.xlane.xlu0 %5425
    %v5427 = vsel %vm3791, %v5347, 0.0
    %5428 = vadd.xlane.f32.xlu0 %v5427
    %v5429 = vpop.xlane.xlu0 %5428
    %v5430 = vsel %vm3791, %v5349, 0.0
    %5431 = vadd.xlane.f32.xlu0 %v5430
    %v5432 = vpop.xlane.xlu0 %5431
    %v5433 = vsel %vm3791, %v5351, 0.0
    %5434 = vadd.xlane.f32.xlu0 %v5433
    %v5435 = vpop.xlane.xlu0 %5434
    %v5436 = vsel %vm3791, %v5353, 0.0
    %5437 = vadd.xlane.f32.xlu0 %v5436
    %v5438 = vpop.xlane.xlu0 %5437
    %v5439 = vsel %vm3791, %v5355, 0.0
    %5440 = vadd.xlane.f32.xlu0 %v5439
    %v5441 = vpop.xlane.xlu0 %5440
    %v5442 = vsel %vm3791, %v5357, 0.0
    %5443 = vadd.xlane.f32.xlu0 %v5442
    %v5444 = vpop.xlane.xlu0 %5443
    %v5445 = vsel %vm3791, %v5359, 0.0
    %5446 = vadd.xlane.f32.xlu0 %v5445
    %v5447 = vpop.xlane.xlu0 %5446
    %v5448 = vsel %vm3791, %v5361, 0.0
    %5449 = vadd.xlane.f32.xlu0 %v5448
    %v5450 = vpop.xlane.xlu0 %5449
    %v5451 = vsel %vm3791, %v5363, 0.0
    %5452 = vadd.xlane.f32.xlu0 %v5451
    %v5453 = vpop.xlane.xlu0 %5452
    %v5454 = vsel %vm3791, %v5365, 0.0
    %5455 = vadd.xlane.f32.xlu0 %v5454
    %v5456 = vpop.xlane.xlu0 %5455
    %v5457 = vsel %vm3791, %v5367, 0.0
    %5458 = vadd.xlane.f32.xlu0 %v5457
    %v5459 = vpop.xlane.xlu0 %5458
    %v5460 = vsel %vm3791, %v5369, 0.0
    %5461 = vadd.xlane.f32.xlu0 %v5460
    %v5462 = vpop.xlane.xlu0 %5461
    %v5463 = vsel %vm3791, %v5371, 0.0
    %5464 = vadd.xlane.f32.xlu0 %v5463
    %v5465 = vpop.xlane.xlu0 %5464
    %v5466 = vsel %vm3791, %v5373, 0.0
    %5467 = vadd.xlane.f32.xlu0 %v5466
    %v5468 = vpop.xlane.xlu0 %5467
    %v5469 = vsel %vm3791, %v5375, 0.0
    %5470 = vadd.xlane.f32.xlu0 %v5469
    %v5471 = vpop.xlane.xlu0 %5470
    %v5472 = vrcp.pop %v5378
    %v5473 = vmul.f32 %v5313, %v5472
    %v5474 = vrcp.pop %v5381
    %v5475 = vmul.f32 %v5315, %v5474
    %v5476 = vrcp.pop %v5384
    %v5477 = vmul.f32 %v5317, %v5476
    %v5478 = vrcp.pop %v5387
    %v5479 = vmul.f32 %v5319, %v5478
    %v5480 = vrcp.pop %v5390
    %v5481 = vmul.f32 %v5321, %v5480
    %v5482 = vrcp.pop %v5393
    %v5483 = vmul.f32 %v5323, %v5482
    %v5484 = vrcp.pop %v5396
    %v5485 = vmul.f32 %v5325, %v5484
    %v5486 = vrcp.pop %v5399
    %v5487 = vmul.f32 %v5327, %v5486
    %v5488 = vrcp.pop %v5402
    %v5489 = vmul.f32 %v5329, %v5488
    %v5490 = vrcp.pop %v5405
    %v5491 = vmul.f32 %v5331, %v5490
    %v5492 = vrcp.pop %v5408
    %v5493 = vmul.f32 %v5333, %v5492
    %v5494 = vrcp.pop %v5411
    %v5495 = vmul.f32 %v5335, %v5494
    %v5496 = vrcp.pop %v5414
    %v5497 = vmul.f32 %v5337, %v5496
    %v5498 = vrcp.pop %v5417
    %v5499 = vmul.f32 %v5339, %v5498
    %v5500 = vrcp.pop %v5420
    %v5501 = vmul.f32 %v5341, %v5500
    %v5502 = vrcp.pop %v5423
    %v5503 = vmul.f32 %v5343, %v5502
    %v5504 = vrcp.pop %v5426
    %v5505 = vmul.f32 %v5345, %v5504
    %v5506 = vrcp.pop %v5429
    %v5507 = vmul.f32 %v5347, %v5506
    %v5508 = vrcp.pop %v5432
    %v5509 = vmul.f32 %v5349, %v5508
    %v5510 = vrcp.pop %v5435
    %v5511 = vmul.f32 %v5351, %v5510
    %v5512 = vrcp.pop %v5438
    %v5513 = vmul.f32 %v5353, %v5512
    %v5514 = vrcp.pop %v5441
    %v5515 = vmul.f32 %v5355, %v5514
    %v5516 = vrcp.pop %v5444
    %v5517 = vmul.f32 %v5357, %v5516
    %v5518 = vrcp.pop %v5447
    %v5519 = vmul.f32 %v5359, %v5518
    %v5520 = vrcp.pop %v5450
    %v5521 = vmul.f32 %v5361, %v5520
    %v5522 = vrcp.pop %v5453
    %v5523 = vmul.f32 %v5363, %v5522
    %v5524 = vrcp.pop %v5456
    %v5525 = vmul.f32 %v5365, %v5524
    %v5526 = vrcp.pop %v5459
    %v5527 = vmul.f32 %v5367, %v5526
    %v5528 = vrcp.pop %v5462
    %v5529 = vmul.f32 %v5369, %v5528
    %v5530 = vrcp.pop %v5465
    %v5531 = vmul.f32 %v5371, %v5530
    %v5532 = vrcp.pop %v5468
    %v5533 = vmul.f32 %v5373, %v5532
    %v5534 = vrcp.pop %v5471
    %v5535 = vmul.f32 %v5375, %v5534
    %v5537 = vsel %vm3791, %v5473, 0
    %v5540 = vsel %vm3791, %v5475, 0
    %5542 = vmatprep.subr.mxu0 0.0
    %5543 = vmatpush1.msra.mxu0 0.0
    %5544 = vmatprep.subr.mxu0 0.0
    %5545 = vmatpush1.msra.mxu0 0.0
    %5546 = vmatprep.subr.mxu0 0.0
    %5547 = vmatpush1.msra.mxu0 0.0
    %5548 = vmatprep.subr.mxu0 0.0
    %5549 = vmatpush1.msra.mxu0 0.0
    %5550 = vmatprep.subr.mxu0 0.0
    %5551 = vmatpush1.msra.mxu0 0.0
    %5552 = vmatprep.subr.mxu0 0.0
    %5553 = vmatpush1.msra.mxu0 0.0
    %5554 = vmatprep.subr.mxu0 0.0
    %5555 = vmatpush1.msra.mxu0 0.0
    %5556 = vmatprep.subr.mxu0 0.0
    %5557 = vmatpush1.msra.mxu0 0.0
    %5558 = vmatprep.subr.mxu0 0.0
    %5559 = vmatpush1.msra.mxu0 0.0
    %5560 = vmatprep.subr.mxu0 0.0
    %5561 = vmatpush1.msra.mxu0 0.0
    %5562 = vmatprep.subr.mxu0 0.0
    %5563 = vmatpush1.msra.mxu0 0.0
    %5564 = vmatprep.subr.mxu0 0.0
    %5565 = vmatpush1.msra.mxu0 0.0
    %5566 = vmatprep.subr.mxu0 0.0
    %5567 = vmatpush1.msra.mxu0 0.0
    %5568 = vmatprep.subr.mxu0 0.0
    %5569 = vmatpush1.msra.mxu0 0.0
    %5570 = vmatprep.subr.mxu0 0.0
    %5571 = vmatpush1.msra.mxu0 %v3511
    %5572 = vmatprep.subr.mxu0 0.0
    %5573 = vmatpush1.msra.mxu0 %v3375
    %5574 = vmatprep.subr.mxu0 0.0
    %5575 = vmatpush2.msra.mxu0 0.0
    %5576 = vmatprep.subr.mxu0 0.0
    %5577 = vmatpush2.msra.mxu0 0.0
    %5578 = vmatprep.subr.mxu0 0.0
    %5579 = vmatpush2.msra.mxu0 0.0
    %5580 = vmatprep.subr.mxu0 0.0
    %5581 = vmatpush2.msra.mxu0 0.0
    %5582 = vmatprep.subr.mxu0 0.0
    %5583 = vmatpush2.msra.mxu0 0.0
    %5584 = vmatprep.subr.mxu0 0.0
    %5585 = vmatpush2.msra.mxu0 0.0
    %5586 = vmatprep.subr.mxu0 0.0
    %5587 = vmatpush2.msra.mxu0 0.0
    %5588 = vmatprep.subr.mxu0 0.0
    %5589 = vmatpush2.msra.mxu0 0.0
    %5590 = vmatprep.subr.mxu0 0.0
    %5591 = vmatpush2.msra.mxu0 0.0
    %5592 = vmatprep.subr.mxu0 0.0
    %5593 = vmatpush2.msra.mxu0 0.0
    %5594 = vmatprep.subr.mxu0 0.0
    %5595 = vmatpush2.msra.mxu0 0.0
    %5596 = vmatprep.subr.mxu0 0.0
    %5597 = vmatpush2.msra.mxu0 0.0
    %5598 = vmatprep.subr.mxu0 0.0
    %5599 = vmatpush2.msra.mxu0 0.0
    %5600 = vmatprep.subr.mxu0 0.0
    %5601 = vmatpush2.msra.mxu0 0.0
    %5602 = vmatprep.subr.mxu0 0.0
    %5603 = vmatpush2.msra.mxu0 0.0
    %5604 = vmatprep.subr.mxu0 0.0
    %5605 = vmatpush2.msra.mxu0 0.0
    %5606 = vmatprep.mubr.f32.mxu0 0.0
    %5607 = vmatmul.mubr.f32.gmra.mxu0 %v5537
    %v5608 = vpop.f32.mrf.mxu0
    %v5609 = vadd.f32 0.0, %v5608
    %v5610 = vpop.f32.mrf.mxu0
    %5611 = vmatprep.mubr.f32.mxu0 0.0
    %5612 = vmatmul.mubr.f32.gmra.mxu0 %v5540
    %v5613 = vpop.f32.mrf.mxu0
    %v5614 = vadd.f32 0.0, %v5613
    %v5615 = vpop.f32.mrf.mxu0
    %5616 = vdwg.mxu0
    %v5618 = vsel %vm3791, %v5477, 0
    %v5621 = vsel %vm3791, %v5479, 0
    %5623 = vmatprep.subr.mxu0 0.0
    %5624 = vmatpush1.msra.mxu0 0.0
    %5625 = vmatprep.subr.mxu0 0.0
    %5626 = vmatpush1.msra.mxu0 0.0
    %5627 = vmatprep.subr.mxu0 0.0
    %5628 = vmatpush1.msra.mxu0 0.0
    %5629 = vmatprep.subr.mxu0 0.0
    %5630 = vmatpush1.msra.mxu0 0.0
    %5631 = vmatprep.subr.mxu0 0.0
    %5632 = vmatpush1.msra.mxu0 0.0
    %5633 = vmatprep.subr.mxu0 0.0
    %5634 = vmatpush1.msra.mxu0 0.0
    %5635 = vmatprep.subr.mxu0 0.0
    %5636 = vmatpush1.msra.mxu0 0.0
    %5637 = vmatprep.subr.mxu0 0.0
    %5638 = vmatpush1.msra.mxu0 0.0
    %5639 = vmatprep.subr.mxu0 0.0
    %5640 = vmatpush1.msra.mxu0 0.0
    %5641 = vmatprep.subr.mxu0 0.0
    %5642 = vmatpush1.msra.mxu0 0.0
    %5643 = vmatprep.subr.mxu0 0.0
    %5644 = vmatpush1.msra.mxu0 0.0
    %5645 = vmatprep.subr.mxu0 0.0
    %5646 = vmatpush1.msra.mxu0 0.0
    %5647 = vmatprep.subr.mxu0 0.0
    %5648 = vmatpush1.msra.mxu0 0.0
    %5649 = vmatprep.subr.mxu0 0.0
    %5650 = vmatpush1.msra.mxu0 0.0
    %5651 = vmatprep.subr.mxu0 0.0
    %5652 = vmatpush1.msra.mxu0 %v3512
    %5653 = vmatprep.subr.mxu0 0.0
    %5654 = vmatpush1.msra.mxu0 %v3376
    %5655 = vmatprep.subr.mxu0 0.0
    %5656 = vmatpush2.msra.mxu0 0.0
    %5657 = vmatprep.subr.mxu0 0.0
    %5658 = vmatpush2.msra.mxu0 0.0
    %5659 = vmatprep.subr.mxu0 0.0
    %5660 = vmatpush2.msra.mxu0 0.0
    %5661 = vmatprep.subr.mxu0 0.0
    %5662 = vmatpush2.msra.mxu0 0.0
    %5663 = vmatprep.subr.mxu0 0.0
    %5664 = vmatpush2.msra.mxu0 0.0
    %5665 = vmatprep.subr.mxu0 0.0
    %5666 = vmatpush2.msra.mxu0 0.0
    %5667 = vmatprep.subr.mxu0 0.0
    %5668 = vmatpush2.msra.mxu0 0.0
    %5669 = vmatprep.subr.mxu0 0.0
    %5670 = vmatpush2.msra.mxu0 0.0
    %5671 = vmatprep.subr.mxu0 0.0
    %5672 = vmatpush2.msra.mxu0 0.0
    %5673 = vmatprep.subr.mxu0 0.0
    %5674 = vmatpush2.msra.mxu0 0.0
    %5675 = vmatprep.subr.mxu0 0.0
    %5676 = vmatpush2.msra.mxu0 0.0
    %5677 = vmatprep.subr.mxu0 0.0
    %5678 = vmatpush2.msra.mxu0 0.0
    %5679 = vmatprep.subr.mxu0 0.0
    %5680 = vmatpush2.msra.mxu0 0.0
    %5681 = vmatprep.subr.mxu0 0.0
    %5682 = vmatpush2.msra.mxu0 0.0
    %5683 = vmatprep.subr.mxu0 0.0
    %5684 = vmatpush2.msra.mxu0 0.0
    %5685 = vmatprep.subr.mxu0 0.0
    %5686 = vmatpush2.msra.mxu0 0.0
    %5687 = vmatprep.mubr.f32.mxu0 0.0
    %5688 = vmatmul.mubr.f32.gmra.mxu0 %v5618
    %v5689 = vpop.f32.mrf.mxu0
    %v5690 = vadd.f32 0.0, %v5689
    %v5691 = vpop.f32.mrf.mxu0
    %5692 = vmatprep.mubr.f32.mxu0 0.0
    %5693 = vmatmul.mubr.f32.gmra.mxu0 %v5621
    %v5694 = vpop.f32.mrf.mxu0
    %v5695 = vadd.f32 0.0, %v5694
    %v5696 = vpop.f32.mrf.mxu0
    %5697 = vdwg.mxu0
    %v5699 = vsel %vm3791, %v5481, 0
    %v5702 = vsel %vm3791, %v5483, 0
    %5704 = vmatprep.subr.mxu0 0.0
    %5705 = vmatpush1.msra.mxu0 0.0
    %5706 = vmatprep.subr.mxu0 0.0
    %5707 = vmatpush1.msra.mxu0 0.0
    %5708 = vmatprep.subr.mxu0 0.0
    %5709 = vmatpush1.msra.mxu0 0.0
    %5710 = vmatprep.subr.mxu0 0.0
    %5711 = vmatpush1.msra.mxu0 0.0
    %5712 = vmatprep.subr.mxu0 0.0
    %5713 = vmatpush1.msra.mxu0 0.0
    %5714 = vmatprep.subr.mxu0 0.0
    %5715 = vmatpush1.msra.mxu0 0.0
    %5716 = vmatprep.subr.mxu0 0.0
    %5717 = vmatpush1.msra.mxu0 0.0
    %5718 = vmatprep.subr.mxu0 0.0
    %5719 = vmatpush1.msra.mxu0 0.0
    %5720 = vmatprep.subr.mxu0 0.0
    %5721 = vmatpush1.msra.mxu0 0.0
    %5722 = vmatprep.subr.mxu0 0.0
    %5723 = vmatpush1.msra.mxu0 0.0
    %5724 = vmatprep.subr.mxu0 0.0
    %5725 = vmatpush1.msra.mxu0 0.0
    %5726 = vmatprep.subr.mxu0 0.0
    %5727 = vmatpush1.msra.mxu0 0.0
    %5728 = vmatprep.subr.mxu0 0.0
    %5729 = vmatpush1.msra.mxu0 0.0
    %5730 = vmatprep.subr.mxu0 0.0
    %5731 = vmatpush1.msra.mxu0 0.0
    %5732 = vmatprep.subr.mxu0 0.0
    %5733 = vmatpush1.msra.mxu0 %v3513
    %5734 = vmatprep.subr.mxu0 0.0
    %5735 = vmatpush1.msra.mxu0 %v3377
    %5736 = vmatprep.subr.mxu0 0.0
    %5737 = vmatpush2.msra.mxu0 0.0
    %5738 = vmatprep.subr.mxu0 0.0
    %5739 = vmatpush2.msra.mxu0 0.0
    %5740 = vmatprep.subr.mxu0 0.0
    %5741 = vmatpush2.msra.mxu0 0.0
    %5742 = vmatprep.subr.mxu0 0.0
    %5743 = vmatpush2.msra.mxu0 0.0
    %5744 = vmatprep.subr.mxu0 0.0
    %5745 = vmatpush2.msra.mxu0 0.0
    %5746 = vmatprep.subr.mxu0 0.0
    %5747 = vmatpush2.msra.mxu0 0.0
    %5748 = vmatprep.subr.mxu0 0.0
    %5749 = vmatpush2.msra.mxu0 0.0
    %5750 = vmatprep.subr.mxu0 0.0
    %5751 = vmatpush2.msra.mxu0 0.0
    %5752 = vmatprep.subr.mxu0 0.0
    %5753 = vmatpush2.msra.mxu0 0.0
    %5754 = vmatprep.subr.mxu0 0.0
    %5755 = vmatpush2.msra.mxu0 0.0
    %5756 = vmatprep.subr.mxu0 0.0
    %5757 = vmatpush2.msra.mxu0 0.0
    %5758 = vmatprep.subr.mxu0 0.0
    %5759 = vmatpush2.msra.mxu0 0.0
    %5760 = vmatprep.subr.mxu0 0.0
    %5761 = vmatpush2.msra.mxu0 0.0
    %5762 = vmatprep.subr.mxu0 0.0
    %5763 = vmatpush2.msra.mxu0 0.0
    %5764 = vmatprep.subr.mxu0 0.0
    %5765 = vmatpush2.msra.mxu0 0.0
    %5766 = vmatprep.subr.mxu0 0.0
    %5767 = vmatpush2.msra.mxu0 0.0
    %5768 = vmatprep.mubr.f32.mxu0 0.0
    %5769 = vmatmul.mubr.f32.gmra.mxu0 %v5699
    %v5770 = vpop.f32.mrf.mxu0
    %v5771 = vadd.f32 0.0, %v5770
    %v5772 = vpop.f32.mrf.mxu0
    %5773 = vmatprep.mubr.f32.mxu0 0.0
    %5774 = vmatmul.mubr.f32.gmra.mxu0 %v5702
    %v5775 = vpop.f32.mrf.mxu0
    %v5776 = vadd.f32 0.0, %v5775
    %v5777 = vpop.f32.mrf.mxu0
    %5778 = vdwg.mxu0
    %v5780 = vsel %vm3791, %v5485, 0
    %v5783 = vsel %vm3791, %v5487, 0
    %5785 = vmatprep.subr.mxu0 0.0
    %5786 = vmatpush1.msra.mxu0 0.0
    %5787 = vmatprep.subr.mxu0 0.0
    %5788 = vmatpush1.msra.mxu0 0.0
    %5789 = vmatprep.subr.mxu0 0.0
    %5790 = vmatpush1.msra.mxu0 0.0
    %5791 = vmatprep.subr.mxu0 0.0
    %5792 = vmatpush1.msra.mxu0 0.0
    %5793 = vmatprep.subr.mxu0 0.0
    %5794 = vmatpush1.msra.mxu0 0.0
    %5795 = vmatprep.subr.mxu0 0.0
    %5796 = vmatpush1.msra.mxu0 0.0
    %5797 = vmatprep.subr.mxu0 0.0
    %5798 = vmatpush1.msra.mxu0 0.0
    %5799 = vmatprep.subr.mxu0 0.0
    %5800 = vmatpush1.msra.mxu0 0.0
    %5801 = vmatprep.subr.mxu0 0.0
    %5802 = vmatpush1.msra.mxu0 0.0
    %5803 = vmatprep.subr.mxu0 0.0
    %5804 = vmatpush1.msra.mxu0 0.0
    %5805 = vmatprep.subr.mxu0 0.0
    %5806 = vmatpush1.msra.mxu0 0.0
    %5807 = vmatprep.subr.mxu0 0.0
    %5808 = vmatpush1.msra.mxu0 0.0
    %5809 = vmatprep.subr.mxu0 0.0
    %5810 = vmatpush1.msra.mxu0 0.0
    %5811 = vmatprep.subr.mxu0 0.0
    %5812 = vmatpush1.msra.mxu0 0.0
    %5813 = vmatprep.subr.mxu0 0.0
    %5814 = vmatpush1.msra.mxu0 %v3514
    %5815 = vmatprep.subr.mxu0 0.0
    %5816 = vmatpush1.msra.mxu0 %v3378
    %5817 = vmatprep.subr.mxu0 0.0
    %5818 = vmatpush2.msra.mxu0 0.0
    %5819 = vmatprep.subr.mxu0 0.0
    %5820 = vmatpush2.msra.mxu0 0.0
    %5821 = vmatprep.subr.mxu0 0.0
    %5822 = vmatpush2.msra.mxu0 0.0
    %5823 = vmatprep.subr.mxu0 0.0
    %5824 = vmatpush2.msra.mxu0 0.0
    %5825 = vmatprep.subr.mxu0 0.0
    %5826 = vmatpush2.msra.mxu0 0.0
    %5827 = vmatprep.subr.mxu0 0.0
    %5828 = vmatpush2.msra.mxu0 0.0
    %5829 = vmatprep.subr.mxu0 0.0
    %5830 = vmatpush2.msra.mxu0 0.0
    %5831 = vmatprep.subr.mxu0 0.0
    %5832 = vmatpush2.msra.mxu0 0.0
    %5833 = vmatprep.subr.mxu0 0.0
    %5834 = vmatpush2.msra.mxu0 0.0
    %5835 = vmatprep.subr.mxu0 0.0
    %5836 = vmatpush2.msra.mxu0 0.0
    %5837 = vmatprep.subr.mxu0 0.0
    %5838 = vmatpush2.msra.mxu0 0.0
    %5839 = vmatprep.subr.mxu0 0.0
    %5840 = vmatpush2.msra.mxu0 0.0
    %5841 = vmatprep.subr.mxu0 0.0
    %5842 = vmatpush2.msra.mxu0 0.0
    %5843 = vmatprep.subr.mxu0 0.0
    %5844 = vmatpush2.msra.mxu0 0.0
    %5845 = vmatprep.subr.mxu0 0.0
    %5846 = vmatpush2.msra.mxu0 0.0
    %5847 = vmatprep.subr.mxu0 0.0
    %5848 = vmatpush2.msra.mxu0 0.0
    %5849 = vmatprep.mubr.f32.mxu0 0.0
    %5850 = vmatmul.mubr.f32.gmra.mxu0 %v5780
    %v5851 = vpop.f32.mrf.mxu0
    %v5852 = vadd.f32 0.0, %v5851
    %v5853 = vpop.f32.mrf.mxu0
    %5854 = vmatprep.mubr.f32.mxu0 0.0
    %5855 = vmatmul.mubr.f32.gmra.mxu0 %v5783
    %v5856 = vpop.f32.mrf.mxu0
    %v5857 = vadd.f32 0.0, %v5856
    %v5858 = vpop.f32.mrf.mxu0
    %5859 = vdwg.mxu0
    %v5861 = vsel %vm3791, %v5489, 0
    %v5864 = vsel %vm3791, %v5491, 0
    %5866 = vmatprep.subr.mxu0 0.0
    %5867 = vmatpush1.msra.mxu0 0.0
    %5868 = vmatprep.subr.mxu0 0.0
    %5869 = vmatpush1.msra.mxu0 0.0
    %5870 = vmatprep.subr.mxu0 0.0
    %5871 = vmatpush1.msra.mxu0 0.0
    %5872 = vmatprep.subr.mxu0 0.0
    %5873 = vmatpush1.msra.mxu0 0.0
    %5874 = vmatprep.subr.mxu0 0.0
    %5875 = vmatpush1.msra.mxu0 0.0
    %5876 = vmatprep.subr.mxu0 0.0
    %5877 = vmatpush1.msra.mxu0 0.0
    %5878 = vmatprep.subr.mxu0 0.0
    %5879 = vmatpush1.msra.mxu0 0.0
    %5880 = vmatprep.subr.mxu0 0.0
    %5881 = vmatpush1.msra.mxu0 0.0
    %5882 = vmatprep.subr.mxu0 0.0
    %5883 = vmatpush1.msra.mxu0 0.0
    %5884 = vmatprep.subr.mxu0 0.0
    %5885 = vmatpush1.msra.mxu0 0.0
    %5886 = vmatprep.subr.mxu0 0.0
    %5887 = vmatpush1.msra.mxu0 0.0
    %5888 = vmatprep.subr.mxu0 0.0
    %5889 = vmatpush1.msra.mxu0 0.0
    %5890 = vmatprep.subr.mxu0 0.0
    %5891 = vmatpush1.msra.mxu0 0.0
    %5892 = vmatprep.subr.mxu0 0.0
    %5893 = vmatpush1.msra.mxu0 0.0
    %5894 = vmatprep.subr.mxu0 0.0
    %5895 = vmatpush1.msra.mxu0 %v3515
    %5896 = vmatprep.subr.mxu0 0.0
    %5897 = vmatpush1.msra.mxu0 %v3379
    %5898 = vmatprep.subr.mxu0 0.0
    %5899 = vmatpush2.msra.mxu0 0.0
    %5900 = vmatprep.subr.mxu0 0.0
    %5901 = vmatpush2.msra.mxu0 0.0
    %5902 = vmatprep.subr.mxu0 0.0
    %5903 = vmatpush2.msra.mxu0 0.0
    %5904 = vmatprep.subr.mxu0 0.0
    %5905 = vmatpush2.msra.mxu0 0.0
    %5906 = vmatprep.subr.mxu0 0.0
    %5907 = vmatpush2.msra.mxu0 0.0
    %5908 = vmatprep.subr.mxu0 0.0
    %5909 = vmatpush2.msra.mxu0 0.0
    %5910 = vmatprep.subr.mxu0 0.0
    %5911 = vmatpush2.msra.mxu0 0.0
    %5912 = vmatprep.subr.mxu0 0.0
    %5913 = vmatpush2.msra.mxu0 0.0
    %5914 = vmatprep.subr.mxu0 0.0
    %5915 = vmatpush2.msra.mxu0 0.0
    %5916 = vmatprep.subr.mxu0 0.0
    %5917 = vmatpush2.msra.mxu0 0.0
    %5918 = vmatprep.subr.mxu0 0.0
    %5919 = vmatpush2.msra.mxu0 0.0
    %5920 = vmatprep.subr.mxu0 0.0
    %5921 = vmatpush2.msra.mxu0 0.0
    %5922 = vmatprep.subr.mxu0 0.0
    %5923 = vmatpush2.msra.mxu0 0.0
    %5924 = vmatprep.subr.mxu0 0.0
    %5925 = vmatpush2.msra.mxu0 0.0
    %5926 = vmatprep.subr.mxu0 0.0
    %5927 = vmatpush2.msra.mxu0 0.0
    %5928 = vmatprep.subr.mxu0 0.0
    %5929 = vmatpush2.msra.mxu0 0.0
    %5930 = vmatprep.mubr.f32.mxu0 0.0
    %5931 = vmatmul.mubr.f32.gmra.mxu0 %v5861
    %v5932 = vpop.f32.mrf.mxu0
    %v5933 = vadd.f32 0.0, %v5932
    %v5934 = vpop.f32.mrf.mxu0
    %5935 = vmatprep.mubr.f32.mxu0 0.0
    %5936 = vmatmul.mubr.f32.gmra.mxu0 %v5864
    %v5937 = vpop.f32.mrf.mxu0
    %v5938 = vadd.f32 0.0, %v5937
    %v5939 = vpop.f32.mrf.mxu0
    %5940 = vdwg.mxu0
    %v5942 = vsel %vm3791, %v5493, 0
    %v5945 = vsel %vm3791, %v5495, 0
    %5947 = vmatprep.subr.mxu0 0.0
    %5948 = vmatpush1.msra.mxu0 0.0
    %5949 = vmatprep.subr.mxu0 0.0
    %5950 = vmatpush1.msra.mxu0 0.0
    %5951 = vmatprep.subr.mxu0 0.0
    %5952 = vmatpush1.msra.mxu0 0.0
    %5953 = vmatprep.subr.mxu0 0.0
    %5954 = vmatpush1.msra.mxu0 0.0
    %5955 = vmatprep.subr.mxu0 0.0
    %5956 = vmatpush1.msra.mxu0 0.0
    %5957 = vmatprep.subr.mxu0 0.0
    %5958 = vmatpush1.msra.mxu0 0.0
    %5959 = vmatprep.subr.mxu0 0.0
    %5960 = vmatpush1.msra.mxu0 0.0
    %5961 = vmatprep.subr.mxu0 0.0
    %5962 = vmatpush1.msra.mxu0 0.0
    %5963 = vmatprep.subr.mxu0 0.0
    %5964 = vmatpush1.msra.mxu0 0.0
    %5965 = vmatprep.subr.mxu0 0.0
    %5966 = vmatpush1.msra.mxu0 0.0
    %5967 = vmatprep.subr.mxu0 0.0
    %5968 = vmatpush1.msra.mxu0 0.0
    %5969 = vmatprep.subr.mxu0 0.0
    %5970 = vmatpush1.msra.mxu0 0.0
    %5971 = vmatprep.subr.mxu0 0.0
    %5972 = vmatpush1.msra.mxu0 0.0
    %5973 = vmatprep.subr.mxu0 0.0
    %5974 = vmatpush1.msra.mxu0 0.0
    %5975 = vmatprep.subr.mxu0 0.0
    %5976 = vmatpush1.msra.mxu0 %v3516
    %5977 = vmatprep.subr.mxu0 0.0
    %5978 = vmatpush1.msra.mxu0 %v3380
    %5979 = vmatprep.subr.mxu0 0.0
    %5980 = vmatpush2.msra.mxu0 0.0
    %5981 = vmatprep.subr.mxu0 0.0
    %5982 = vmatpush2.msra.mxu0 0.0
    %5983 = vmatprep.subr.mxu0 0.0
    %5984 = vmatpush2.msra.mxu0 0.0
    %5985 = vmatprep.subr.mxu0 0.0
    %5986 = vmatpush2.msra.mxu0 0.0
    %5987 = vmatprep.subr.mxu0 0.0
    %5988 = vmatpush2.msra.mxu0 0.0
    %5989 = vmatprep.subr.mxu0 0.0
    %5990 = vmatpush2.msra.mxu0 0.0
    %5991 = vmatprep.subr.mxu0 0.0
    %5992 = vmatpush2.msra.mxu0 0.0
    %5993 = vmatprep.subr.mxu0 0.0
    %5994 = vmatpush2.msra.mxu0 0.0
    %5995 = vmatprep.subr.mxu0 0.0
    %5996 = vmatpush2.msra.mxu0 0.0
    %5997 = vmatprep.subr.mxu0 0.0
    %5998 = vmatpush2.msra.mxu0 0.0
    %5999 = vmatprep.subr.mxu0 0.0
    %6000 = vmatpush2.msra.mxu0 0.0
    %6001 = vmatprep.subr.mxu0 0.0
    %6002 = vmatpush2.msra.mxu0 0.0
    %6003 = vmatprep.subr.mxu0 0.0
    %6004 = vmatpush2.msra.mxu0 0.0
    %6005 = vmatprep.subr.mxu0 0.0
    %6006 = vmatpush2.msra.mxu0 0.0
    %6007 = vmatprep.subr.mxu0 0.0
    %6008 = vmatpush2.msra.mxu0 0.0
    %6009 = vmatprep.subr.mxu0 0.0
    %6010 = vmatpush2.msra.mxu0 0.0
    %6011 = vmatprep.mubr.f32.mxu0 0.0
    %6012 = vmatmul.mubr.f32.gmra.mxu0 %v5942
    %v6013 = vpop.f32.mrf.mxu0
    %v6014 = vadd.f32 0.0, %v6013
    %v6015 = vpop.f32.mrf.mxu0
    %6016 = vmatprep.mubr.f32.mxu0 0.0
    %6017 = vmatmul.mubr.f32.gmra.mxu0 %v5945
    %v6018 = vpop.f32.mrf.mxu0
    %v6019 = vadd.f32 0.0, %v6018
    %v6020 = vpop.f32.mrf.mxu0
    %6021 = vdwg.mxu0
    %v6023 = vsel %vm3791, %v5497, 0
    %v6026 = vsel %vm3791, %v5499, 0
    %6028 = vmatprep.subr.mxu0 0.0
    %6029 = vmatpush1.msra.mxu0 0.0
    %6030 = vmatprep.subr.mxu0 0.0
    %6031 = vmatpush1.msra.mxu0 0.0
    %6032 = vmatprep.subr.mxu0 0.0
    %6033 = vmatpush1.msra.mxu0 0.0
    %6034 = vmatprep.subr.mxu0 0.0
    %6035 = vmatpush1.msra.mxu0 0.0
    %6036 = vmatprep.subr.mxu0 0.0
    %6037 = vmatpush1.msra.mxu0 0.0
    %6038 = vmatprep.subr.mxu0 0.0
    %6039 = vmatpush1.msra.mxu0 0.0
    %6040 = vmatprep.subr.mxu0 0.0
    %6041 = vmatpush1.msra.mxu0 0.0
    %6042 = vmatprep.subr.mxu0 0.0
    %6043 = vmatpush1.msra.mxu0 0.0
    %6044 = vmatprep.subr.mxu0 0.0
    %6045 = vmatpush1.msra.mxu0 0.0
    %6046 = vmatprep.subr.mxu0 0.0
    %6047 = vmatpush1.msra.mxu0 0.0
    %6048 = vmatprep.subr.mxu0 0.0
    %6049 = vmatpush1.msra.mxu0 0.0
    %6050 = vmatprep.subr.mxu0 0.0
    %6051 = vmatpush1.msra.mxu0 0.0
    %6052 = vmatprep.subr.mxu0 0.0
    %6053 = vmatpush1.msra.mxu0 0.0
    %6054 = vmatprep.subr.mxu0 0.0
    %6055 = vmatpush1.msra.mxu0 0.0
    %6056 = vmatprep.subr.mxu0 0.0
    %6057 = vmatpush1.msra.mxu0 %v3517
    %6058 = vmatprep.subr.mxu0 0.0
    %6059 = vmatpush1.msra.mxu0 %v3381
    %6060 = vmatprep.subr.mxu0 0.0
    %6061 = vmatpush2.msra.mxu0 0.0
    %6062 = vmatprep.subr.mxu0 0.0
    %6063 = vmatpush2.msra.mxu0 0.0
    %6064 = vmatprep.subr.mxu0 0.0
    %6065 = vmatpush2.msra.mxu0 0.0
    %6066 = vmatprep.subr.mxu0 0.0
    %6067 = vmatpush2.msra.mxu0 0.0
    %6068 = vmatprep.subr.mxu0 0.0
    %6069 = vmatpush2.msra.mxu0 0.0
    %6070 = vmatprep.subr.mxu0 0.0
    %6071 = vmatpush2.msra.mxu0 0.0
    %6072 = vmatprep.subr.mxu0 0.0
    %6073 = vmatpush2.msra.mxu0 0.0
    %6074 = vmatprep.subr.mxu0 0.0
    %6075 = vmatpush2.msra.mxu0 0.0
    %6076 = vmatprep.subr.mxu0 0.0
    %6077 = vmatpush2.msra.mxu0 0.0
    %6078 = vmatprep.subr.mxu0 0.0
    %6079 = vmatpush2.msra.mxu0 0.0
    %6080 = vmatprep.subr.mxu0 0.0
    %6081 = vmatpush2.msra.mxu0 0.0
    %6082 = vmatprep.subr.mxu0 0.0
    %6083 = vmatpush2.msra.mxu0 0.0
    %6084 = vmatprep.subr.mxu0 0.0
    %6085 = vmatpush2.msra.mxu0 0.0
    %6086 = vmatprep.subr.mxu0 0.0
    %6087 = vmatpush2.msra.mxu0 0.0
    %6088 = vmatprep.subr.mxu0 0.0
    %6089 = vmatpush2.msra.mxu0 0.0
    %6090 = vmatprep.subr.mxu0 0.0
    %6091 = vmatpush2.msra.mxu0 0.0
    %6092 = vmatprep.mubr.f32.mxu0 0.0
    %6093 = vmatmul.mubr.f32.gmra.mxu0 %v6023
    %v6094 = vpop.f32.mrf.mxu0
    %v6095 = vadd.f32 0.0, %v6094
    %v6096 = vpop.f32.mrf.mxu0
    %6097 = vmatprep.mubr.f32.mxu0 0.0
    %6098 = vmatmul.mubr.f32.gmra.mxu0 %v6026
    %v6099 = vpop.f32.mrf.mxu0
    %v6100 = vadd.f32 0.0, %v6099
    %v6101 = vpop.f32.mrf.mxu0
    %6102 = vdwg.mxu0
    %v6104 = vsel %vm3791, %v5501, 0
    %v6107 = vsel %vm3791, %v5503, 0
    %6109 = vmatprep.subr.mxu0 0.0
    %6110 = vmatpush1.msra.mxu0 0.0
    %6111 = vmatprep.subr.mxu0 0.0
    %6112 = vmatpush1.msra.mxu0 0.0
    %6113 = vmatprep.subr.mxu0 0.0
    %6114 = vmatpush1.msra.mxu0 0.0
    %6115 = vmatprep.subr.mxu0 0.0
    %6116 = vmatpush1.msra.mxu0 0.0
    %6117 = vmatprep.subr.mxu0 0.0
    %6118 = vmatpush1.msra.mxu0 0.0
    %6119 = vmatprep.subr.mxu0 0.0
    %6120 = vmatpush1.msra.mxu0 0.0
    %6121 = vmatprep.subr.mxu0 0.0
    %6122 = vmatpush1.msra.mxu0 0.0
    %6123 = vmatprep.subr.mxu0 0.0
    %6124 = vmatpush1.msra.mxu0 0.0
    %6125 = vmatprep.subr.mxu0 0.0
    %6126 = vmatpush1.msra.mxu0 0.0
    %6127 = vmatprep.subr.mxu0 0.0
    %6128 = vmatpush1.msra.mxu0 0.0
    %6129 = vmatprep.subr.mxu0 0.0
    %6130 = vmatpush1.msra.mxu0 0.0
    %6131 = vmatprep.subr.mxu0 0.0
    %6132 = vmatpush1.msra.mxu0 0.0
    %6133 = vmatprep.subr.mxu0 0.0
    %6134 = vmatpush1.msra.mxu0 0.0
    %6135 = vmatprep.subr.mxu0 0.0
    %6136 = vmatpush1.msra.mxu0 0.0
    %6137 = vmatprep.subr.mxu0 0.0
    %6138 = vmatpush1.msra.mxu0 %v3518
    %6139 = vmatprep.subr.mxu0 0.0
    %6140 = vmatpush1.msra.mxu0 %v3382
    %6141 = vmatprep.subr.mxu0 0.0
    %6142 = vmatpush2.msra.mxu0 0.0
    %6143 = vmatprep.subr.mxu0 0.0
    %6144 = vmatpush2.msra.mxu0 0.0
    %6145 = vmatprep.subr.mxu0 0.0
    %6146 = vmatpush2.msra.mxu0 0.0
    %6147 = vmatprep.subr.mxu0 0.0
    %6148 = vmatpush2.msra.mxu0 0.0
    %6149 = vmatprep.subr.mxu0 0.0
    %6150 = vmatpush2.msra.mxu0 0.0
    %6151 = vmatprep.subr.mxu0 0.0
    %6152 = vmatpush2.msra.mxu0 0.0
    %6153 = vmatprep.subr.mxu0 0.0
    %6154 = vmatpush2.msra.mxu0 0.0
    %6155 = vmatprep.subr.mxu0 0.0
    %6156 = vmatpush2.msra.mxu0 0.0
    %6157 = vmatprep.subr.mxu0 0.0
    %6158 = vmatpush2.msra.mxu0 0.0
    %6159 = vmatprep.subr.mxu0 0.0
    %6160 = vmatpush2.msra.mxu0 0.0
    %6161 = vmatprep.subr.mxu0 0.0
    %6162 = vmatpush2.msra.mxu0 0.0
    %6163 = vmatprep.subr.mxu0 0.0
    %6164 = vmatpush2.msra.mxu0 0.0
    %6165 = vmatprep.subr.mxu0 0.0
    %6166 = vmatpush2.msra.mxu0 0.0
    %6167 = vmatprep.subr.mxu0 0.0
    %6168 = vmatpush2.msra.mxu0 0.0
    %6169 = vmatprep.subr.mxu0 0.0
    %6170 = vmatpush2.msra.mxu0 0.0
    %6171 = vmatprep.subr.mxu0 0.0
    %6172 = vmatpush2.msra.mxu0 0.0
    %6173 = vmatprep.mubr.f32.mxu0 0.0
    %6174 = vmatmul.mubr.f32.gmra.mxu0 %v6104
    %v6175 = vpop.f32.mrf.mxu0
    %v6176 = vadd.f32 0.0, %v6175
    %v6177 = vpop.f32.mrf.mxu0
    %6178 = vmatprep.mubr.f32.mxu0 0.0
    %6179 = vmatmul.mubr.f32.gmra.mxu0 %v6107
    %v6180 = vpop.f32.mrf.mxu0
    %v6181 = vadd.f32 0.0, %v6180
    %v6182 = vpop.f32.mrf.mxu0
    %6183 = vdwg.mxu0
    %v6185 = vsel %vm3791, %v5505, 0
    %v6188 = vsel %vm3791, %v5507, 0
    %6190 = vmatprep.subr.mxu0 0.0
    %6191 = vmatpush1.msra.mxu0 0.0
    %6192 = vmatprep.subr.mxu0 0.0
    %6193 = vmatpush1.msra.mxu0 0.0
    %6194 = vmatprep.subr.mxu0 0.0
    %6195 = vmatpush1.msra.mxu0 0.0
    %6196 = vmatprep.subr.mxu0 0.0
    %6197 = vmatpush1.msra.mxu0 0.0
    %6198 = vmatprep.subr.mxu0 0.0
    %6199 = vmatpush1.msra.mxu0 0.0
    %6200 = vmatprep.subr.mxu0 0.0
    %6201 = vmatpush1.msra.mxu0 0.0
    %6202 = vmatprep.subr.mxu0 0.0
    %6203 = vmatpush1.msra.mxu0 0.0
    %6204 = vmatprep.subr.mxu0 0.0
    %6205 = vmatpush1.msra.mxu0 0.0
    %6206 = vmatprep.subr.mxu0 0.0
    %6207 = vmatpush1.msra.mxu0 0.0
    %6208 = vmatprep.subr.mxu0 0.0
    %6209 = vmatpush1.msra.mxu0 0.0
    %6210 = vmatprep.subr.mxu0 0.0
    %6211 = vmatpush1.msra.mxu0 0.0
    %6212 = vmatprep.subr.mxu0 0.0
    %6213 = vmatpush1.msra.mxu0 0.0
    %6214 = vmatprep.subr.mxu0 0.0
    %6215 = vmatpush1.msra.mxu0 0.0
    %6216 = vmatprep.subr.mxu0 0.0
    %6217 = vmatpush1.msra.mxu0 0.0
    %6218 = vmatprep.subr.mxu0 0.0
    %6219 = vmatpush1.msra.mxu0 %v3783
    %6220 = vmatprep.subr.mxu0 0.0
    %6221 = vmatpush1.msra.mxu0 %v3647
    %6222 = vmatprep.subr.mxu0 0.0
    %6223 = vmatpush2.msra.mxu0 0.0
    %6224 = vmatprep.subr.mxu0 0.0
    %6225 = vmatpush2.msra.mxu0 0.0
    %6226 = vmatprep.subr.mxu0 0.0
    %6227 = vmatpush2.msra.mxu0 0.0
    %6228 = vmatprep.subr.mxu0 0.0
    %6229 = vmatpush2.msra.mxu0 0.0
    %6230 = vmatprep.subr.mxu0 0.0
    %6231 = vmatpush2.msra.mxu0 0.0
    %6232 = vmatprep.subr.mxu0 0.0
    %6233 = vmatpush2.msra.mxu0 0.0
    %6234 = vmatprep.subr.mxu0 0.0
    %6235 = vmatpush2.msra.mxu0 0.0
    %6236 = vmatprep.subr.mxu0 0.0
    %6237 = vmatpush2.msra.mxu0 0.0
    %6238 = vmatprep.subr.mxu0 0.0
    %6239 = vmatpush2.msra.mxu0 0.0
    %6240 = vmatprep.subr.mxu0 0.0
    %6241 = vmatpush2.msra.mxu0 0.0
    %6242 = vmatprep.subr.mxu0 0.0
    %6243 = vmatpush2.msra.mxu0 0.0
    %6244 = vmatprep.subr.mxu0 0.0
    %6245 = vmatpush2.msra.mxu0 0.0
    %6246 = vmatprep.subr.mxu0 0.0
    %6247 = vmatpush2.msra.mxu0 0.0
    %6248 = vmatprep.subr.mxu0 0.0
    %6249 = vmatpush2.msra.mxu0 0.0
    %6250 = vmatprep.subr.mxu0 0.0
    %6251 = vmatpush2.msra.mxu0 0.0
    %6252 = vmatprep.subr.mxu0 0.0
    %6253 = vmatpush2.msra.mxu0 0.0
    %6254 = vmatprep.mubr.f32.mxu0 0.0
    %6255 = vmatmul.mubr.f32.gmra.mxu0 %v6185
    %v6256 = vpop.f32.mrf.mxu0
    %v6257 = vadd.f32 0.0, %v6256
    %v6258 = vpop.f32.mrf.mxu0
    %6259 = vmatprep.mubr.f32.mxu0 0.0
    %6260 = vmatmul.mubr.f32.gmra.mxu0 %v6188
    %v6261 = vpop.f32.mrf.mxu0
    %v6262 = vadd.f32 0.0, %v6261
    %v6263 = vpop.f32.mrf.mxu0
    %6264 = vdwg.mxu0
    %v6266 = vsel %vm3791, %v5509, 0
    %v6269 = vsel %vm3791, %v5511, 0
    %6271 = vmatprep.subr.mxu0 0.0
    %6272 = vmatpush1.msra.mxu0 0.0
    %6273 = vmatprep.subr.mxu0 0.0
    %6274 = vmatpush1.msra.mxu0 0.0
    %6275 = vmatprep.subr.mxu0 0.0
    %6276 = vmatpush1.msra.mxu0 0.0
    %6277 = vmatprep.subr.mxu0 0.0
    %6278 = vmatpush1.msra.mxu0 0.0
    %6279 = vmatprep.subr.mxu0 0.0
    %6280 = vmatpush1.msra.mxu0 0.0
    %6281 = vmatprep.subr.mxu0 0.0
    %6282 = vmatpush1.msra.mxu0 0.0
    %6283 = vmatprep.subr.mxu0 0.0
    %6284 = vmatpush1.msra.mxu0 0.0
    %6285 = vmatprep.subr.mxu0 0.0
    %6286 = vmatpush1.msra.mxu0 0.0
    %6287 = vmatprep.subr.mxu0 0.0
    %6288 = vmatpush1.msra.mxu0 0.0
    %6289 = vmatprep.subr.mxu0 0.0
    %6290 = vmatpush1.msra.mxu0 0.0
    %6291 = vmatprep.subr.mxu0 0.0
    %6292 = vmatpush1.msra.mxu0 0.0
    %6293 = vmatprep.subr.mxu0 0.0
    %6294 = vmatpush1.msra.mxu0 0.0
    %6295 = vmatprep.subr.mxu0 0.0
    %6296 = vmatpush1.msra.mxu0 0.0
    %6297 = vmatprep.subr.mxu0 0.0
    %6298 = vmatpush1.msra.mxu0 0.0
    %6299 = vmatprep.subr.mxu0 0.0
    %6300 = vmatpush1.msra.mxu0 %v3784
    %6301 = vmatprep.subr.mxu0 0.0
    %6302 = vmatpush1.msra.mxu0 %v3648
    %6303 = vmatprep.subr.mxu0 0.0
    %6304 = vmatpush2.msra.mxu0 0.0
    %6305 = vmatprep.subr.mxu0 0.0
    %6306 = vmatpush2.msra.mxu0 0.0
    %6307 = vmatprep.subr.mxu0 0.0
    %6308 = vmatpush2.msra.mxu0 0.0
    %6309 = vmatprep.subr.mxu0 0.0
    %6310 = vmatpush2.msra.mxu0 0.0
    %6311 = vmatprep.subr.mxu0 0.0
    %6312 = vmatpush2.msra.mxu0 0.0
    %6313 = vmatprep.subr.mxu0 0.0
    %6314 = vmatpush2.msra.mxu0 0.0
    %6315 = vmatprep.subr.mxu0 0.0
    %6316 = vmatpush2.msra.mxu0 0.0
    %6317 = vmatprep.subr.mxu0 0.0
    %6318 = vmatpush2.msra.mxu0 0.0
    %6319 = vmatprep.subr.mxu0 0.0
    %6320 = vmatpush2.msra.mxu0 0.0
    %6321 = vmatprep.subr.mxu0 0.0
    %6322 = vmatpush2.msra.mxu0 0.0
    %6323 = vmatprep.subr.mxu0 0.0
    %6324 = vmatpush2.msra.mxu0 0.0
    %6325 = vmatprep.subr.mxu0 0.0
    %6326 = vmatpush2.msra.mxu0 0.0
    %6327 = vmatprep.subr.mxu0 0.0
    %6328 = vmatpush2.msra.mxu0 0.0
    %6329 = vmatprep.subr.mxu0 0.0
    %6330 = vmatpush2.msra.mxu0 0.0
    %6331 = vmatprep.subr.mxu0 0.0
    %6332 = vmatpush2.msra.mxu0 0.0
    %6333 = vmatprep.subr.mxu0 0.0
    %6334 = vmatpush2.msra.mxu0 0.0
    %6335 = vmatprep.mubr.f32.mxu0 0.0
    %6336 = vmatmul.mubr.f32.gmra.mxu0 %v6266
    %v6337 = vpop.f32.mrf.mxu0
    %v6338 = vadd.f32 0.0, %v6337
    %v6339 = vpop.f32.mrf.mxu0
    %6340 = vmatprep.mubr.f32.mxu0 0.0
    %6341 = vmatmul.mubr.f32.gmra.mxu0 %v6269
    %v6342 = vpop.f32.mrf.mxu0
    %v6343 = vadd.f32 0.0, %v6342
    %v6344 = vpop.f32.mrf.mxu0
    %6345 = vdwg.mxu0
    %v6347 = vsel %vm3791, %v5513, 0
    %v6350 = vsel %vm3791, %v5515, 0
    %6352 = vmatprep.subr.mxu0 0.0
    %6353 = vmatpush1.msra.mxu0 0.0
    %6354 = vmatprep.subr.mxu0 0.0
    %6355 = vmatpush1.msra.mxu0 0.0
    %6356 = vmatprep.subr.mxu0 0.0
    %6357 = vmatpush1.msra.mxu0 0.0
    %6358 = vmatprep.subr.mxu0 0.0
    %6359 = vmatpush1.msra.mxu0 0.0
    %6360 = vmatprep.subr.mxu0 0.0
    %6361 = vmatpush1.msra.mxu0 0.0
    %6362 = vmatprep.subr.mxu0 0.0
    %6363 = vmatpush1.msra.mxu0 0.0
    %6364 = vmatprep.subr.mxu0 0.0
    %6365 = vmatpush1.msra.mxu0 0.0
    %6366 = vmatprep.subr.mxu0 0.0
    %6367 = vmatpush1.msra.mxu0 0.0
    %6368 = vmatprep.subr.mxu0 0.0
    %6369 = vmatpush1.msra.mxu0 0.0
    %6370 = vmatprep.subr.mxu0 0.0
    %6371 = vmatpush1.msra.mxu0 0.0
    %6372 = vmatprep.subr.mxu0 0.0
    %6373 = vmatpush1.msra.mxu0 0.0
    %6374 = vmatprep.subr.mxu0 0.0
    %6375 = vmatpush1.msra.mxu0 0.0
    %6376 = vmatprep.subr.mxu0 0.0
    %6377 = vmatpush1.msra.mxu0 0.0
    %6378 = vmatprep.subr.mxu0 0.0
    %6379 = vmatpush1.msra.mxu0 0.0
    %6380 = vmatprep.subr.mxu0 0.0
    %6381 = vmatpush1.msra.mxu0 %v3785
    %6382 = vmatprep.subr.mxu0 0.0
    %6383 = vmatpush1.msra.mxu0 %v3649
    %6384 = vmatprep.subr.mxu0 0.0
    %6385 = vmatpush2.msra.mxu0 0.0
    %6386 = vmatprep.subr.mxu0 0.0
    %6387 = vmatpush2.msra.mxu0 0.0
    %6388 = vmatprep.subr.mxu0 0.0
    %6389 = vmatpush2.msra.mxu0 0.0
    %6390 = vmatprep.subr.mxu0 0.0
    %6391 = vmatpush2.msra.mxu0 0.0
    %6392 = vmatprep.subr.mxu0 0.0
    %6393 = vmatpush2.msra.mxu0 0.0
    %6394 = vmatprep.subr.mxu0 0.0
    %6395 = vmatpush2.msra.mxu0 0.0
    %6396 = vmatprep.subr.mxu0 0.0
    %6397 = vmatpush2.msra.mxu0 0.0
    %6398 = vmatprep.subr.mxu0 0.0
    %6399 = vmatpush2.msra.mxu0 0.0
    %6400 = vmatprep.subr.mxu0 0.0
    %6401 = vmatpush2.msra.mxu0 0.0
    %6402 = vmatprep.subr.mxu0 0.0
    %6403 = vmatpush2.msra.mxu0 0.0
    %6404 = vmatprep.subr.mxu0 0.0
    %6405 = vmatpush2.msra.mxu0 0.0
    %6406 = vmatprep.subr.mxu0 0.0
    %6407 = vmatpush2.msra.mxu0 0.0
    %6408 = vmatprep.subr.mxu0 0.0
    %6409 = vmatpush2.msra.mxu0 0.0
    %6410 = vmatprep.subr.mxu0 0.0
    %6411 = vmatpush2.msra.mxu0 0.0
    %6412 = vmatprep.subr.mxu0 0.0
    %6413 = vmatpush2.msra.mxu0 0.0
    %6414 = vmatprep.subr.mxu0 0.0
    %6415 = vmatpush2.msra.mxu0 0.0
    %6416 = vmatprep.mubr.f32.mxu0 0.0
    %6417 = vmatmul.mubr.f32.gmra.mxu0 %v6347
    %v6418 = vpop.f32.mrf.mxu0
    %v6419 = vadd.f32 0.0, %v6418
    %v6420 = vpop.f32.mrf.mxu0
    %6421 = vmatprep.mubr.f32.mxu0 0.0
    %6422 = vmatmul.mubr.f32.gmra.mxu0 %v6350
    %v6423 = vpop.f32.mrf.mxu0
    %v6424 = vadd.f32 0.0, %v6423
    %v6425 = vpop.f32.mrf.mxu0
    %6426 = vdwg.mxu0
    %v6428 = vsel %vm3791, %v5517, 0
    %v6431 = vsel %vm3791, %v5519, 0
    %6433 = vmatprep.subr.mxu0 0.0
    %6434 = vmatpush1.msra.mxu0 0.0
    %6435 = vmatprep.subr.mxu0 0.0
    %6436 = vmatpush1.msra.mxu0 0.0
    %6437 = vmatprep.subr.mxu0 0.0
    %6438 = vmatpush1.msra.mxu0 0.0
    %6439 = vmatprep.subr.mxu0 0.0
    %6440 = vmatpush1.msra.mxu0 0.0
    %6441 = vmatprep.subr.mxu0 0.0
    %6442 = vmatpush1.msra.mxu0 0.0
    %6443 = vmatprep.subr.mxu0 0.0
    %6444 = vmatpush1.msra.mxu0 0.0
    %6445 = vmatprep.subr.mxu0 0.0
    %6446 = vmatpush1.msra.mxu0 0.0
    %6447 = vmatprep.subr.mxu0 0.0
    %6448 = vmatpush1.msra.mxu0 0.0
    %6449 = vmatprep.subr.mxu0 0.0
    %6450 = vmatpush1.msra.mxu0 0.0
    %6451 = vmatprep.subr.mxu0 0.0
    %6452 = vmatpush1.msra.mxu0 0.0
    %6453 = vmatprep.subr.mxu0 0.0
    %6454 = vmatpush1.msra.mxu0 0.0
    %6455 = vmatprep.subr.mxu0 0.0
    %6456 = vmatpush1.msra.mxu0 0.0
    %6457 = vmatprep.subr.mxu0 0.0
    %6458 = vmatpush1.msra.mxu0 0.0
    %6459 = vmatprep.subr.mxu0 0.0
    %6460 = vmatpush1.msra.mxu0 0.0
    %6461 = vmatprep.subr.mxu0 0.0
    %6462 = vmatpush1.msra.mxu0 %v3786
    %6463 = vmatprep.subr.mxu0 0.0
    %6464 = vmatpush1.msra.mxu0 %v3650
    %6465 = vmatprep.subr.mxu0 0.0
    %6466 = vmatpush2.msra.mxu0 0.0
    %6467 = vmatprep.subr.mxu0 0.0
    %6468 = vmatpush2.msra.mxu0 0.0
    %6469 = vmatprep.subr.mxu0 0.0
    %6470 = vmatpush2.msra.mxu0 0.0
    %6471 = vmatprep.subr.mxu0 0.0
    %6472 = vmatpush2.msra.mxu0 0.0
    %6473 = vmatprep.subr.mxu0 0.0
    %6474 = vmatpush2.msra.mxu0 0.0
    %6475 = vmatprep.subr.mxu0 0.0
    %6476 = vmatpush2.msra.mxu0 0.0
    %6477 = vmatprep.subr.mxu0 0.0
    %6478 = vmatpush2.msra.mxu0 0.0
    %6479 = vmatprep.subr.mxu0 0.0
    %6480 = vmatpush2.msra.mxu0 0.0
    %6481 = vmatprep.subr.mxu0 0.0
    %6482 = vmatpush2.msra.mxu0 0.0
    %6483 = vmatprep.subr.mxu0 0.0
    %6484 = vmatpush2.msra.mxu0 0.0
    %6485 = vmatprep.subr.mxu0 0.0
    %6486 = vmatpush2.msra.mxu0 0.0
    %6487 = vmatprep.subr.mxu0 0.0
    %6488 = vmatpush2.msra.mxu0 0.0
    %6489 = vmatprep.subr.mxu0 0.0
    %6490 = vmatpush2.msra.mxu0 0.0
    %6491 = vmatprep.subr.mxu0 0.0
    %6492 = vmatpush2.msra.mxu0 0.0
    %6493 = vmatprep.subr.mxu0 0.0
    %6494 = vmatpush2.msra.mxu0 0.0
    %6495 = vmatprep.subr.mxu0 0.0
    %6496 = vmatpush2.msra.mxu0 0.0
    %6497 = vmatprep.mubr.f32.mxu0 0.0
    %6498 = vmatmul.mubr.f32.gmra.mxu0 %v6428
    %v6499 = vpop.f32.mrf.mxu0
    %v6500 = vadd.f32 0.0, %v6499
    %v6501 = vpop.f32.mrf.mxu0
    %6502 = vmatprep.mubr.f32.mxu0 0.0
    %6503 = vmatmul.mubr.f32.gmra.mxu0 %v6431
    %v6504 = vpop.f32.mrf.mxu0
    %v6505 = vadd.f32 0.0, %v6504
    %v6506 = vpop.f32.mrf.mxu0
    %6507 = vdwg.mxu0
    %v6509 = vsel %vm3791, %v5521, 0
    %v6512 = vsel %vm3791, %v5523, 0
    %6514 = vmatprep.subr.mxu0 0.0
    %6515 = vmatpush1.msra.mxu0 0.0
    %6516 = vmatprep.subr.mxu0 0.0
    %6517 = vmatpush1.msra.mxu0 0.0
    %6518 = vmatprep.subr.mxu0 0.0
    %6519 = vmatpush1.msra.mxu0 0.0
    %6520 = vmatprep.subr.mxu0 0.0
    %6521 = vmatpush1.msra.mxu0 0.0
    %6522 = vmatprep.subr.mxu0 0.0
    %6523 = vmatpush1.msra.mxu0 0.0
    %6524 = vmatprep.subr.mxu0 0.0
    %6525 = vmatpush1.msra.mxu0 0.0
    %6526 = vmatprep.subr.mxu0 0.0
    %6527 = vmatpush1.msra.mxu0 0.0
    %6528 = vmatprep.subr.mxu0 0.0
    %6529 = vmatpush1.msra.mxu0 0.0
    %6530 = vmatprep.subr.mxu0 0.0
    %6531 = vmatpush1.msra.mxu0 0.0
    %6532 = vmatprep.subr.mxu0 0.0
    %6533 = vmatpush1.msra.mxu0 0.0
    %6534 = vmatprep.subr.mxu0 0.0
    %6535 = vmatpush1.msra.mxu0 0.0
    %6536 = vmatprep.subr.mxu0 0.0
    %6537 = vmatpush1.msra.mxu0 0.0
    %6538 = vmatprep.subr.mxu0 0.0
    %6539 = vmatpush1.msra.mxu0 0.0
    %6540 = vmatprep.subr.mxu0 0.0
    %6541 = vmatpush1.msra.mxu0 0.0
    %6542 = vmatprep.subr.mxu0 0.0
    %6543 = vmatpush1.msra.mxu0 %v3787
    %6544 = vmatprep.subr.mxu0 0.0
    %6545 = vmatpush1.msra.mxu0 %v3651
    %6546 = vmatprep.subr.mxu0 0.0
    %6547 = vmatpush2.msra.mxu0 0.0
    %6548 = vmatprep.subr.mxu0 0.0
    %6549 = vmatpush2.msra.mxu0 0.0
    %6550 = vmatprep.subr.mxu0 0.0
    %6551 = vmatpush2.msra.mxu0 0.0
    %6552 = vmatprep.subr.mxu0 0.0
    %6553 = vmatpush2.msra.mxu0 0.0
    %6554 = vmatprep.subr.mxu0 0.0
    %6555 = vmatpush2.msra.mxu0 0.0
    %6556 = vmatprep.subr.mxu0 0.0
    %6557 = vmatpush2.msra.mxu0 0.0
    %6558 = vmatprep.subr.mxu0 0.0
    %6559 = vmatpush2.msra.mxu0 0.0
    %6560 = vmatprep.subr.mxu0 0.0
    %6561 = vmatpush2.msra.mxu0 0.0
    %6562 = vmatprep.subr.mxu0 0.0
    %6563 = vmatpush2.msra.mxu0 0.0
    %6564 = vmatprep.subr.mxu0 0.0
    %6565 = vmatpush2.msra.mxu0 0.0
    %6566 = vmatprep.subr.mxu0 0.0
    %6567 = vmatpush2.msra.mxu0 0.0
    %6568 = vmatprep.subr.mxu0 0.0
    %6569 = vmatpush2.msra.mxu0 0.0
    %6570 = vmatprep.subr.mxu0 0.0
    %6571 = vmatpush2.msra.mxu0 0.0
    %6572 = vmatprep.subr.mxu0 0.0
    %6573 = vmatpush2.msra.mxu0 0.0
    %6574 = vmatprep.subr.mxu0 0.0
    %6575 = vmatpush2.msra.mxu0 0.0
    %6576 = vmatprep.subr.mxu0 0.0
    %6577 = vmatpush2.msra.mxu0 0.0
    %6578 = vmatprep.mubr.f32.mxu0 0.0
    %6579 = vmatmul.mubr.f32.gmra.mxu0 %v6509
    %v6580 = vpop.f32.mrf.mxu0
    %v6581 = vadd.f32 0.0, %v6580
    %v6582 = vpop.f32.mrf.mxu0
    %6583 = vmatprep.mubr.f32.mxu0 0.0
    %6584 = vmatmul.mubr.f32.gmra.mxu0 %v6512
    %v6585 = vpop.f32.mrf.mxu0
    %v6586 = vadd.f32 0.0, %v6585
    %v6587 = vpop.f32.mrf.mxu0
    %6588 = vdwg.mxu0
    %v6590 = vsel %vm3791, %v5525, 0
    %v6593 = vsel %vm3791, %v5527, 0
    %6595 = vmatprep.subr.mxu0 0.0
    %6596 = vmatpush1.msra.mxu0 0.0
    %6597 = vmatprep.subr.mxu0 0.0
    %6598 = vmatpush1.msra.mxu0 0.0
    %6599 = vmatprep.subr.mxu0 0.0
    %6600 = vmatpush1.msra.mxu0 0.0
    %6601 = vmatprep.subr.mxu0 0.0
    %6602 = vmatpush1.msra.mxu0 0.0
    %6603 = vmatprep.subr.mxu0 0.0
    %6604 = vmatpush1.msra.mxu0 0.0
    %6605 = vmatprep.subr.mxu0 0.0
    %6606 = vmatpush1.msra.mxu0 0.0
    %6607 = vmatprep.subr.mxu0 0.0
    %6608 = vmatpush1.msra.mxu0 0.0
    %6609 = vmatprep.subr.mxu0 0.0
    %6610 = vmatpush1.msra.mxu0 0.0
    %6611 = vmatprep.subr.mxu0 0.0
    %6612 = vmatpush1.msra.mxu0 0.0
    %6613 = vmatprep.subr.mxu0 0.0
    %6614 = vmatpush1.msra.mxu0 0.0
    %6615 = vmatprep.subr.mxu0 0.0
    %6616 = vmatpush1.msra.mxu0 0.0
    %6617 = vmatprep.subr.mxu0 0.0
    %6618 = vmatpush1.msra.mxu0 0.0
    %6619 = vmatprep.subr.mxu0 0.0
    %6620 = vmatpush1.msra.mxu0 0.0
    %6621 = vmatprep.subr.mxu0 0.0
    %6622 = vmatpush1.msra.mxu0 0.0
    %6623 = vmatprep.subr.mxu0 0.0
    %6624 = vmatpush1.msra.mxu0 %v3788
    %6625 = vmatprep.subr.mxu0 0.0
    %6626 = vmatpush1.msra.mxu0 %v3652
    %6627 = vmatprep.subr.mxu0 0.0
    %6628 = vmatpush2.msra.mxu0 0.0
    %6629 = vmatprep.subr.mxu0 0.0
    %6630 = vmatpush2.msra.mxu0 0.0
    %6631 = vmatprep.subr.mxu0 0.0
    %6632 = vmatpush2.msra.mxu0 0.0
    %6633 = vmatprep.subr.mxu0 0.0
    %6634 = vmatpush2.msra.mxu0 0.0
    %6635 = vmatprep.subr.mxu0 0.0
    %6636 = vmatpush2.msra.mxu0 0.0
    %6637 = vmatprep.subr.mxu0 0.0
    %6638 = vmatpush2.msra.mxu0 0.0
    %6639 = vmatprep.subr.mxu0 0.0
    %6640 = vmatpush2.msra.mxu0 0.0
    %6641 = vmatprep.subr.mxu0 0.0
    %6642 = vmatpush2.msra.mxu0 0.0
    %6643 = vmatprep.subr.mxu0 0.0
    %6644 = vmatpush2.msra.mxu0 0.0
    %6645 = vmatprep.subr.mxu0 0.0
    %6646 = vmatpush2.msra.mxu0 0.0
    %6647 = vmatprep.subr.mxu0 0.0
    %6648 = vmatpush2.msra.mxu0 0.0
    %6649 = vmatprep.subr.mxu0 0.0
    %6650 = vmatpush2.msra.mxu0 0.0
    %6651 = vmatprep.subr.mxu0 0.0
    %6652 = vmatpush2.msra.mxu0 0.0
    %6653 = vmatprep.subr.mxu0 0.0
    %6654 = vmatpush2.msra.mxu0 0.0
    %6655 = vmatprep.subr.mxu0 0.0
    %6656 = vmatpush2.msra.mxu0 0.0
    %6657 = vmatprep.subr.mxu0 0.0
    %6658 = vmatpush2.msra.mxu0 0.0
    %6659 = vmatprep.mubr.f32.mxu0 0.0
    %6660 = vmatmul.mubr.f32.gmra.mxu0 %v6590
    %v6661 = vpop.f32.mrf.mxu0
    %v6662 = vadd.f32 0.0, %v6661
    %v6663 = vpop.f32.mrf.mxu0
    %6664 = vmatprep.mubr.f32.mxu0 0.0
    %6665 = vmatmul.mubr.f32.gmra.mxu0 %v6593
    %v6666 = vpop.f32.mrf.mxu0
    %v6667 = vadd.f32 0.0, %v6666
    %v6668 = vpop.f32.mrf.mxu0
    %6669 = vdwg.mxu0
    %v6671 = vsel %vm3791, %v5529, 0
    %v6674 = vsel %vm3791, %v5531, 0
    %6676 = vmatprep.subr.mxu0 0.0
    %6677 = vmatpush1.msra.mxu0 0.0
    %6678 = vmatprep.subr.mxu0 0.0
    %6679 = vmatpush1.msra.mxu0 0.0
    %6680 = vmatprep.subr.mxu0 0.0
    %6681 = vmatpush1.msra.mxu0 0.0
    %6682 = vmatprep.subr.mxu0 0.0
    %6683 = vmatpush1.msra.mxu0 0.0
    %6684 = vmatprep.subr.mxu0 0.0
    %6685 = vmatpush1.msra.mxu0 0.0
    %6686 = vmatprep.subr.mxu0 0.0
    %6687 = vmatpush1.msra.mxu0 0.0
    %6688 = vmatprep.subr.mxu0 0.0
    %6689 = vmatpush1.msra.mxu0 0.0
    %6690 = vmatprep.subr.mxu0 0.0
    %6691 = vmatpush1.msra.mxu0 0.0
    %6692 = vmatprep.subr.mxu0 0.0
    %6693 = vmatpush1.msra.mxu0 0.0
    %6694 = vmatprep.subr.mxu0 0.0
    %6695 = vmatpush1.msra.mxu0 0.0
    %6696 = vmatprep.subr.mxu0 0.0
    %6697 = vmatpush1.msra.mxu0 0.0
    %6698 = vmatprep.subr.mxu0 0.0
    %6699 = vmatpush1.msra.mxu0 0.0
    %6700 = vmatprep.subr.mxu0 0.0
    %6701 = vmatpush1.msra.mxu0 0.0
    %6702 = vmatprep.subr.mxu0 0.0
    %6703 = vmatpush1.msra.mxu0 0.0
    %6704 = vmatprep.subr.mxu0 0.0
    %6705 = vmatpush1.msra.mxu0 %v3789
    %6706 = vmatprep.subr.mxu0 0.0
    %6707 = vmatpush1.msra.mxu0 %v3653
    %6708 = vmatprep.subr.mxu0 0.0
    %6709 = vmatpush2.msra.mxu0 0.0
    %6710 = vmatprep.subr.mxu0 0.0
    %6711 = vmatpush2.msra.mxu0 0.0
    %6712 = vmatprep.subr.mxu0 0.0
    %6713 = vmatpush2.msra.mxu0 0.0
    %6714 = vmatprep.subr.mxu0 0.0
    %6715 = vmatpush2.msra.mxu0 0.0
    %6716 = vmatprep.subr.mxu0 0.0
    %6717 = vmatpush2.msra.mxu0 0.0
    %6718 = vmatprep.subr.mxu0 0.0
    %6719 = vmatpush2.msra.mxu0 0.0
    %6720 = vmatprep.subr.mxu0 0.0
    %6721 = vmatpush2.msra.mxu0 0.0
    %6722 = vmatprep.subr.mxu0 0.0
    %6723 = vmatpush2.msra.mxu0 0.0
    %6724 = vmatprep.subr.mxu0 0.0
    %6725 = vmatpush2.msra.mxu0 0.0
    %6726 = vmatprep.subr.mxu0 0.0
    %6727 = vmatpush2.msra.mxu0 0.0
    %6728 = vmatprep.subr.mxu0 0.0
    %6729 = vmatpush2.msra.mxu0 0.0
    %6730 = vmatprep.subr.mxu0 0.0
    %6731 = vmatpush2.msra.mxu0 0.0
    %6732 = vmatprep.subr.mxu0 0.0
    %6733 = vmatpush2.msra.mxu0 0.0
    %6734 = vmatprep.subr.mxu0 0.0
    %6735 = vmatpush2.msra.mxu0 0.0
    %6736 = vmatprep.subr.mxu0 0.0
    %6737 = vmatpush2.msra.mxu0 0.0
    %6738 = vmatprep.subr.mxu0 0.0
    %6739 = vmatpush2.msra.mxu0 0.0
    %6740 = vmatprep.mubr.f32.mxu0 0.0
    %6741 = vmatmul.mubr.f32.gmra.mxu0 %v6671
    %v6742 = vpop.f32.mrf.mxu0
    %v6743 = vadd.f32 0.0, %v6742
    %v6744 = vpop.f32.mrf.mxu0
    %6745 = vmatprep.mubr.f32.mxu0 0.0
    %6746 = vmatmul.mubr.f32.gmra.mxu0 %v6674
    %v6747 = vpop.f32.mrf.mxu0
    %v6748 = vadd.f32 0.0, %v6747
    %v6749 = vpop.f32.mrf.mxu0
    %6750 = vdwg.mxu0
    %v6752 = vsel %vm3791, %v5533, 0
    %v6755 = vsel %vm3791, %v5535, 0
    %6757 = vmatprep.subr.mxu0 0.0
    %6758 = vmatpush1.msra.mxu0 0.0
    %6759 = vmatprep.subr.mxu0 0.0
    %6760 = vmatpush1.msra.mxu0 0.0
    %6761 = vmatprep.subr.mxu0 0.0
    %6762 = vmatpush1.msra.mxu0 0.0
    %6763 = vmatprep.subr.mxu0 0.0
    %6764 = vmatpush1.msra.mxu0 0.0
    %6765 = vmatprep.subr.mxu0 0.0
    %6766 = vmatpush1.msra.mxu0 0.0
    %6767 = vmatprep.subr.mxu0 0.0
    %6768 = vmatpush1.msra.mxu0 0.0
    %6769 = vmatprep.subr.mxu0 0.0
    %6770 = vmatpush1.msra.mxu0 0.0
    %6771 = vmatprep.subr.mxu0 0.0
    %6772 = vmatpush1.msra.mxu0 0.0
    %6773 = vmatprep.subr.mxu0 0.0
    %6774 = vmatpush1.msra.mxu0 0.0
    %6775 = vmatprep.subr.mxu0 0.0
    %6776 = vmatpush1.msra.mxu0 0.0
    %6777 = vmatprep.subr.mxu0 0.0
    %6778 = vmatpush1.msra.mxu0 0.0
    %6779 = vmatprep.subr.mxu0 0.0
    %6780 = vmatpush1.msra.mxu0 0.0
    %6781 = vmatprep.subr.mxu0 0.0
    %6782 = vmatpush1.msra.mxu0 0.0
    %6783 = vmatprep.subr.mxu0 0.0
    %6784 = vmatpush1.msra.mxu0 0.0
    %6785 = vmatprep.subr.mxu0 0.0
    %6786 = vmatpush1.msra.mxu0 %v3790
    %6787 = vmatprep.subr.mxu0 0.0
    %6788 = vmatpush1.msra.mxu0 %v3654
    %6789 = vmatprep.subr.mxu0 0.0
    %6790 = vmatpush2.msra.mxu0 0.0
    %6791 = vmatprep.subr.mxu0 0.0
    %6792 = vmatpush2.msra.mxu0 0.0
    %6793 = vmatprep.subr.mxu0 0.0
    %6794 = vmatpush2.msra.mxu0 0.0
    %6795 = vmatprep.subr.mxu0 0.0
    %6796 = vmatpush2.msra.mxu0 0.0
    %6797 = vmatprep.subr.mxu0 0.0
    %6798 = vmatpush2.msra.mxu0 0.0
    %6799 = vmatprep.subr.mxu0 0.0
    %6800 = vmatpush2.msra.mxu0 0.0
    %6801 = vmatprep.subr.mxu0 0.0
    %6802 = vmatpush2.msra.mxu0 0.0
    %6803 = vmatprep.subr.mxu0 0.0
    %6804 = vmatpush2.msra.mxu0 0.0
    %6805 = vmatprep.subr.mxu0 0.0
    %6806 = vmatpush2.msra.mxu0 0.0
    %6807 = vmatprep.subr.mxu0 0.0
    %6808 = vmatpush2.msra.mxu0 0.0
    %6809 = vmatprep.subr.mxu0 0.0
    %6810 = vmatpush2.msra.mxu0 0.0
    %6811 = vmatprep.subr.mxu0 0.0
    %6812 = vmatpush2.msra.mxu0 0.0
    %6813 = vmatprep.subr.mxu0 0.0
    %6814 = vmatpush2.msra.mxu0 0.0
    %6815 = vmatprep.subr.mxu0 0.0
    %6816 = vmatpush2.msra.mxu0 0.0
    %6817 = vmatprep.subr.mxu0 0.0
    %6818 = vmatpush2.msra.mxu0 0.0
    %6819 = vmatprep.subr.mxu0 0.0
    %6820 = vmatpush2.msra.mxu0 0.0
    %6821 = vmatprep.mubr.f32.mxu0 0.0
    %6822 = vmatmul.mubr.f32.gmra.mxu0 %v6752
    %v6823 = vpop.f32.mrf.mxu0
    %v6824 = vadd.f32 0.0, %v6823
    %v6825 = vpop.f32.mrf.mxu0
    %6826 = vmatprep.mubr.f32.mxu0 0.0
    %6827 = vmatmul.mubr.f32.gmra.mxu0 %v6755
    %v6828 = vpop.f32.mrf.mxu0
    %v6829 = vadd.f32 0.0, %v6828
    %v6830 = vpop.f32.mrf.mxu0
    %6831 = vdwg.mxu0
    %v6832 = vcombine.low %v5609, %v5771
    %v6833 = vcombine.high %v5609, %v5771
    %v6835 = vunpack.c.l.s4 1983009808
    %v6836 = vunpack.c.0.s8 %v6835
    %v6837 = vlaneseq
    %v6838 = vshrl.u32 %v6837, 7
    %v6839 = vsub.s32 %v6836, %v6838
    %v6840 = vrot.slane %v6832, %v6839
    %v6842 = vunpack.c.l.s4 1983009808
    %v6843 = vunpack.c.0.s8 %v6842
    %v6844 = vlaneseq
    %v6845 = vshrl.u32 %v6844, 7
    %v6846 = vsub.s32 %v6843, %v6845
    %v6847 = vrot.slane %v6833, %v6846
    %v6848 = vcombine.low %v5690, %v5852
    %v6849 = vcombine.high %v5690, %v5852
    %v6851 = vunpack.c.l.s4 1983009808
    %v6852 = vunpack.c.0.s8 %v6851
    %v6853 = vlaneseq
    %v6854 = vshrl.u32 %v6853, 7
    %v6855 = vsub.s32 %v6852, %v6854
    %v6856 = vrot.slane %v6848, %v6855
    %v6858 = vunpack.c.l.s4 1983009808
    %v6859 = vunpack.c.0.s8 %v6858
    %v6860 = vlaneseq
    %v6861 = vshrl.u32 %v6860, 7
    %v6862 = vsub.s32 %v6859, %v6861
    %v6863 = vrot.slane %v6849, %v6862
    %v6864 = vcombine.low %v5933, %v6095
    %v6865 = vcombine.high %v5933, %v6095
    %v6867 = vunpack.c.l.s4 1983009808
    %v6868 = vunpack.c.0.s8 %v6867
    %v6869 = vlaneseq
    %v6870 = vshrl.u32 %v6869, 7
    %v6871 = vsub.s32 %v6868, %v6870
    %v6872 = vrot.slane %v6864, %v6871
    %v6874 = vunpack.c.l.s4 1983009808
    %v6875 = vunpack.c.0.s8 %v6874
    %v6876 = vlaneseq
    %v6877 = vshrl.u32 %v6876, 7
    %v6878 = vsub.s32 %v6875, %v6877
    %v6879 = vrot.slane %v6865, %v6878
    %v6880 = vcombine.low %v6014, %v6176
    %v6881 = vcombine.high %v6014, %v6176
    %v6883 = vunpack.c.l.s4 1983009808
    %v6884 = vunpack.c.0.s8 %v6883
    %v6885 = vlaneseq
    %v6886 = vshrl.u32 %v6885, 7
    %v6887 = vsub.s32 %v6884, %v6886
    %v6888 = vrot.slane %v6880, %v6887
    %v6890 = vunpack.c.l.s4 1983009808
    %v6891 = vunpack.c.0.s8 %v6890
    %v6892 = vlaneseq
    %v6893 = vshrl.u32 %v6892, 7
    %v6894 = vsub.s32 %v6891, %v6893
    %v6895 = vrot.slane %v6881, %v6894
    %v6896 = vcombine.low %v6840, %v6856
    %v6897 = vcombine.high %v6840, %v6856
    %v6899 = vunpack.c.l.s4 1934713408
    %v6900 = vunpack.c.0.s8 %v6899
    %v6901 = vlaneseq
    %v6902 = vshrl.u32 %v6901, 7
    %v6903 = vsub.s32 %v6900, %v6902
    %v6904 = vrot.slane %v6896, %v6903
    %v6906 = vunpack.c.l.s4 1934713408
    %v6907 = vunpack.c.0.s8 %v6906
    %v6908 = vlaneseq
    %v6909 = vshrl.u32 %v6908, 7
    %v6910 = vsub.s32 %v6907, %v6909
    %v6911 = vrot.slane %v6897, %v6910
    %v6912 = vcombine.low %v6847, %v6863
    %v6913 = vcombine.high %v6847, %v6863
    %v6915 = vunpack.c.l.s4 1934713408
    %v6916 = vunpack.c.0.s8 %v6915
    %v6917 = vlaneseq
    %v6918 = vshrl.u32 %v6917, 7
    %v6919 = vsub.s32 %v6916, %v6918
    %v6920 = vrot.slane %v6912, %v6919
    %v6922 = vunpack.c.l.s4 1934713408
    %v6923 = vunpack.c.0.s8 %v6922
    %v6924 = vlaneseq
    %v6925 = vshrl.u32 %v6924, 7
    %v6926 = vsub.s32 %v6923, %v6925
    %v6927 = vrot.slane %v6913, %v6926
    %v6928 = vcombine.low %v6872, %v6888
    %v6929 = vcombine.high %v6872, %v6888
    %v6931 = vunpack.c.l.s4 1934713408
    %v6932 = vunpack.c.0.s8 %v6931
    %v6933 = vlaneseq
    %v6934 = vshrl.u32 %v6933, 7
    %v6935 = vsub.s32 %v6932, %v6934
    %v6936 = vrot.slane %v6928, %v6935
    %v6938 = vunpack.c.l.s4 1934713408
    %v6939 = vunpack.c.0.s8 %v6938
    %v6940 = vlaneseq
    %v6941 = vshrl.u32 %v6940, 7
    %v6942 = vsub.s32 %v6939, %v6941
    %v6943 = vrot.slane %v6929, %v6942
    %v6944 = vcombine.low %v6879, %v6895
    %v6945 = vcombine.high %v6879, %v6895
    %v6947 = vunpack.c.l.s4 1934713408
    %v6948 = vunpack.c.0.s8 %v6947
    %v6949 = vlaneseq
    %v6950 = vshrl.u32 %v6949, 7
    %v6951 = vsub.s32 %v6948, %v6950
    %v6952 = vrot.slane %v6944, %v6951
    %v6954 = vunpack.c.l.s4 1934713408
    %v6955 = vunpack.c.0.s8 %v6954
    %v6956 = vlaneseq
    %v6957 = vshrl.u32 %v6956, 7
    %v6958 = vsub.s32 %v6955, %v6957
    %v6959 = vrot.slane %v6945, %v6958
    %v6960 = vcombine.low %v6904, %v6936
    %v6961 = vcombine.high %v6904, %v6936
    %v6962 = vcombine.low %v6911, %v6943
    %v6963 = vcombine.high %v6911, %v6943
    %v6964 = vcombine.low %v6920, %v6952
    %v6965 = vcombine.high %v6920, %v6952
    %v6966 = vcombine.low %v6927, %v6959
    %v6967 = vcombine.high %v6927, %v6959
    %v6968 = vcombine.low %v5614, %v5776
    %v6969 = vcombine.high %v5614, %v5776
    %v6971 = vunpack.c.l.s4 1983009808
    %v6972 = vunpack.c.0.s8 %v6971
    %v6973 = vlaneseq
    %v6974 = vshrl.u32 %v6973, 7
    %v6975 = vsub.s32 %v6972, %v6974
    %v6976 = vrot.slane %v6968, %v6975
    %v6978 = vunpack.c.l.s4 1983009808
    %v6979 = vunpack.c.0.s8 %v6978
    %v6980 = vlaneseq
    %v6981 = vshrl.u32 %v6980, 7
    %v6982 = vsub.s32 %v6979, %v6981
    %v6983 = vrot.slane %v6969, %v6982
    %v6984 = vcombine.low %v5695, %v5857
    %v6985 = vcombine.high %v5695, %v5857
    %v6987 = vunpack.c.l.s4 1983009808
    %v6988 = vunpack.c.0.s8 %v6987
    %v6989 = vlaneseq
    %v6990 = vshrl.u32 %v6989, 7
    %v6991 = vsub.s32 %v6988, %v6990
    %v6992 = vrot.slane %v6984, %v6991
    %v6994 = vunpack.c.l.s4 1983009808
    %v6995 = vunpack.c.0.s8 %v6994
    %v6996 = vlaneseq
    %v6997 = vshrl.u32 %v6996, 7
    %v6998 = vsub.s32 %v6995, %v6997
    %v6999 = vrot.slane %v6985, %v6998
    %v7000 = vcombine.low %v5938, %v6100
    %v7001 = vcombine.high %v5938, %v6100
    %v7003 = vunpack.c.l.s4 1983009808
    %v7004 = vunpack.c.0.s8 %v7003
    %v7005 = vlaneseq
    %v7006 = vshrl.u32 %v7005, 7
    %v7007 = vsub.s32 %v7004, %v7006
    %v7008 = vrot.slane %v7000, %v7007
    %v7010 = vunpack.c.l.s4 1983009808
    %v7011 = vunpack.c.0.s8 %v7010
    %v7012 = vlaneseq
    %v7013 = vshrl.u32 %v7012, 7
    %v7014 = vsub.s32 %v7011, %v7013
    %v7015 = vrot.slane %v7001, %v7014
    %v7016 = vcombine.low %v6019, %v6181
    %v7017 = vcombine.high %v6019, %v6181
    %v7019 = vunpack.c.l.s4 1983009808
    %v7020 = vunpack.c.0.s8 %v7019
    %v7021 = vlaneseq
    %v7022 = vshrl.u32 %v7021, 7
    %v7023 = vsub.s32 %v7020, %v7022
    %v7024 = vrot.slane %v7016, %v7023
    %v7026 = vunpack.c.l.s4 1983009808
    %v7027 = vunpack.c.0.s8 %v7026
    %v7028 = vlaneseq
    %v7029 = vshrl.u32 %v7028, 7
    %v7030 = vsub.s32 %v7027, %v7029
    %v7031 = vrot.slane %v7017, %v7030
    %v7032 = vcombine.low %v6976, %v6992
    %v7033 = vcombine.high %v6976, %v6992
    %v7035 = vunpack.c.l.s4 1934713408
    %v7036 = vunpack.c.0.s8 %v7035
    %v7037 = vlaneseq
    %v7038 = vshrl.u32 %v7037, 7
    %v7039 = vsub.s32 %v7036, %v7038
    %v7040 = vrot.slane %v7032, %v7039
    %v7042 = vunpack.c.l.s4 1934713408
    %v7043 = vunpack.c.0.s8 %v7042
    %v7044 = vlaneseq
    %v7045 = vshrl.u32 %v7044, 7
    %v7046 = vsub.s32 %v7043, %v7045
    %v7047 = vrot.slane %v7033, %v7046
    %v7048 = vcombine.low %v6983, %v6999
    %v7049 = vcombine.high %v6983, %v6999
    %v7051 = vunpack.c.l.s4 1934713408
    %v7052 = vunpack.c.0.s8 %v7051
    %v7053 = vlaneseq
    %v7054 = vshrl.u32 %v7053, 7
    %v7055 = vsub.s32 %v7052, %v7054
    %v7056 = vrot.slane %v7048, %v7055
    %v7058 = vunpack.c.l.s4 1934713408
    %v7059 = vunpack.c.0.s8 %v7058
    %v7060 = vlaneseq
    %v7061 = vshrl.u32 %v7060, 7
    %v7062 = vsub.s32 %v7059, %v7061
    %v7063 = vrot.slane %v7049, %v7062
    %v7064 = vcombine.low %v7008, %v7024
    %v7065 = vcombine.high %v7008, %v7024
    %v7067 = vunpack.c.l.s4 1934713408
    %v7068 = vunpack.c.0.s8 %v7067
    %v7069 = vlaneseq
    %v7070 = vshrl.u32 %v7069, 7
    %v7071 = vsub.s32 %v7068, %v7070
    %v7072 = vrot.slane %v7064, %v7071
    %v7074 = vunpack.c.l.s4 1934713408
    %v7075 = vunpack.c.0.s8 %v7074
    %v7076 = vlaneseq
    %v7077 = vshrl.u32 %v7076, 7
    %v7078 = vsub.s32 %v7075, %v7077
    %v7079 = vrot.slane %v7065, %v7078
    %v7080 = vcombine.low %v7015, %v7031
    %v7081 = vcombine.high %v7015, %v7031
    %v7083 = vunpack.c.l.s4 1934713408
    %v7084 = vunpack.c.0.s8 %v7083
    %v7085 = vlaneseq
    %v7086 = vshrl.u32 %v7085, 7
    %v7087 = vsub.s32 %v7084, %v7086
    %v7088 = vrot.slane %v7080, %v7087
    %v7090 = vunpack.c.l.s4 1934713408
    %v7091 = vunpack.c.0.s8 %v7090
    %v7092 = vlaneseq
    %v7093 = vshrl.u32 %v7092, 7
    %v7094 = vsub.s32 %v7091, %v7093
    %v7095 = vrot.slane %v7081, %v7094
    %v7096 = vcombine.low %v7040, %v7072
    %v7097 = vcombine.high %v7040, %v7072
    %v7098 = vcombine.low %v7047, %v7079
    %v7099 = vcombine.high %v7047, %v7079
    %v7100 = vcombine.low %v7056, %v7088
    %v7101 = vcombine.high %v7056, %v7088
    %v7102 = vcombine.low %v7063, %v7095
    %v7103 = vcombine.high %v7063, %v7095
    %v7104 = vcombine.low %v6257, %v6419
    %v7105 = vcombine.high %v6257, %v6419
    %v7107 = vunpack.c.l.s4 1983009808
    %v7108 = vunpack.c.0.s8 %v7107
    %v7109 = vlaneseq
    %v7110 = vshrl.u32 %v7109, 7
    %v7111 = vsub.s32 %v7108, %v7110
    %v7112 = vrot.slane %v7104, %v7111
    %v7114 = vunpack.c.l.s4 1983009808
    %v7115 = vunpack.c.0.s8 %v7114
    %v7116 = vlaneseq
    %v7117 = vshrl.u32 %v7116, 7
    %v7118 = vsub.s32 %v7115, %v7117
    %v7119 = vrot.slane %v7105, %v7118
    %v7120 = vcombine.low %v6338, %v6500
    %v7121 = vcombine.high %v6338, %v6500
    %v7123 = vunpack.c.l.s4 1983009808
    %v7124 = vunpack.c.0.s8 %v7123
    %v7125 = vlaneseq
    %v7126 = vshrl.u32 %v7125, 7
    %v7127 = vsub.s32 %v7124, %v7126
    %v7128 = vrot.slane %v7120, %v7127
    %v7130 = vunpack.c.l.s4 1983009808
    %v7131 = vunpack.c.0.s8 %v7130
    %v7132 = vlaneseq
    %v7133 = vshrl.u32 %v7132, 7
    %v7134 = vsub.s32 %v7131, %v7133
    %v7135 = vrot.slane %v7121, %v7134
    %v7136 = vcombine.low %v6581, %v6743
    %v7137 = vcombine.high %v6581, %v6743
    %v7139 = vunpack.c.l.s4 1983009808
    %v7140 = vunpack.c.0.s8 %v7139
    %v7141 = vlaneseq
    %v7142 = vshrl.u32 %v7141, 7
    %v7143 = vsub.s32 %v7140, %v7142
    %v7144 = vrot.slane %v7136, %v7143
    %v7146 = vunpack.c.l.s4 1983009808
    %v7147 = vunpack.c.0.s8 %v7146
    %v7148 = vlaneseq
    %v7149 = vshrl.u32 %v7148, 7
    %v7150 = vsub.s32 %v7147, %v7149
    %v7151 = vrot.slane %v7137, %v7150
    %v7152 = vcombine.low %v6662, %v6824
    %v7153 = vcombine.high %v6662, %v6824
    %v7155 = vunpack.c.l.s4 1983009808
    %v7156 = vunpack.c.0.s8 %v7155
    %v7157 = vlaneseq
    %v7158 = vshrl.u32 %v7157, 7
    %v7159 = vsub.s32 %v7156, %v7158
    %v7160 = vrot.slane %v7152, %v7159
    %v7162 = vunpack.c.l.s4 1983009808
    %v7163 = vunpack.c.0.s8 %v7162
    %v7164 = vlaneseq
    %v7165 = vshrl.u32 %v7164, 7
    %v7166 = vsub.s32 %v7163, %v7165
    %v7167 = vrot.slane %v7153, %v7166
    %v7168 = vcombine.low %v7112, %v7128
    %v7169 = vcombine.high %v7112, %v7128
    %v7171 = vunpack.c.l.s4 1934713408
    %v7172 = vunpack.c.0.s8 %v7171
    %v7173 = vlaneseq
    %v7174 = vshrl.u32 %v7173, 7
    %v7175 = vsub.s32 %v7172, %v7174
    %v7176 = vrot.slane %v7168, %v7175
    %v7178 = vunpack.c.l.s4 1934713408
    %v7179 = vunpack.c.0.s8 %v7178
    %v7180 = vlaneseq
    %v7181 = vshrl.u32 %v7180, 7
    %v7182 = vsub.s32 %v7179, %v7181
    %v7183 = vrot.slane %v7169, %v7182
    %v7184 = vcombine.low %v7119, %v7135
    %v7185 = vcombine.high %v7119, %v7135
    %v7187 = vunpack.c.l.s4 1934713408
    %v7188 = vunpack.c.0.s8 %v7187
    %v7189 = vlaneseq
    %v7190 = vshrl.u32 %v7189, 7
    %v7191 = vsub.s32 %v7188, %v7190
    %v7192 = vrot.slane %v7184, %v7191
    %v7194 = vunpack.c.l.s4 1934713408
    %v7195 = vunpack.c.0.s8 %v7194
    %v7196 = vlaneseq
    %v7197 = vshrl.u32 %v7196, 7
    %v7198 = vsub.s32 %v7195, %v7197
    %v7199 = vrot.slane %v7185, %v7198
    %v7200 = vcombine.low %v7144, %v7160
    %v7201 = vcombine.high %v7144, %v7160
    %v7203 = vunpack.c.l.s4 1934713408
    %v7204 = vunpack.c.0.s8 %v7203
    %v7205 = vlaneseq
    %v7206 = vshrl.u32 %v7205, 7
    %v7207 = vsub.s32 %v7204, %v7206
    %v7208 = vrot.slane %v7200, %v7207
    %v7210 = vunpack.c.l.s4 1934713408
    %v7211 = vunpack.c.0.s8 %v7210
    %v7212 = vlaneseq
    %v7213 = vshrl.u32 %v7212, 7
    %v7214 = vsub.s32 %v7211, %v7213
    %v7215 = vrot.slane %v7201, %v7214
    %v7216 = vcombine.low %v7151, %v7167
    %v7217 = vcombine.high %v7151, %v7167
    %v7219 = vunpack.c.l.s4 1934713408
    %v7220 = vunpack.c.0.s8 %v7219
    %v7221 = vlaneseq
    %v7222 = vshrl.u32 %v7221, 7
    %v7223 = vsub.s32 %v7220, %v7222
    %v7224 = vrot.slane %v7216, %v7223
    %v7226 = vunpack.c.l.s4 1934713408
    %v7227 = vunpack.c.0.s8 %v7226
    %v7228 = vlaneseq
    %v7229 = vshrl.u32 %v7228, 7
    %v7230 = vsub.s32 %v7227, %v7229
    %v7231 = vrot.slane %v7217, %v7230
    %v7232 = vcombine.low %v7176, %v7208
    %v7233 = vcombine.high %v7176, %v7208
    %v7234 = vcombine.low %v7183, %v7215
    %v7235 = vcombine.high %v7183, %v7215
    %v7236 = vcombine.low %v7192, %v7224
    %v7237 = vcombine.high %v7192, %v7224
    %v7238 = vcombine.low %v7199, %v7231
    %v7239 = vcombine.high %v7199, %v7231
    %v7240 = vcombine.low %v6262, %v6424
    %v7241 = vcombine.high %v6262, %v6424
    %v7243 = vunpack.c.l.s4 1983009808
    %v7244 = vunpack.c.0.s8 %v7243
    %v7245 = vlaneseq
    %v7246 = vshrl.u32 %v7245, 7
    %v7247 = vsub.s32 %v7244, %v7246
    %v7248 = vrot.slane %v7240, %v7247
    %v7250 = vunpack.c.l.s4 1983009808
    %v7251 = vunpack.c.0.s8 %v7250
    %v7252 = vlaneseq
    %v7253 = vshrl.u32 %v7252, 7
    %v7254 = vsub.s32 %v7251, %v7253
    %v7255 = vrot.slane %v7241, %v7254
    %v7256 = vcombine.low %v6343, %v6505
    %v7257 = vcombine.high %v6343, %v6505
    %v7259 = vunpack.c.l.s4 1983009808
    %v7260 = vunpack.c.0.s8 %v7259
    %v7261 = vlaneseq
    %v7262 = vshrl.u32 %v7261, 7
    %v7263 = vsub.s32 %v7260, %v7262
    %v7264 = vrot.slane %v7256, %v7263
    %v7266 = vunpack.c.l.s4 1983009808
    %v7267 = vunpack.c.0.s8 %v7266
    %v7268 = vlaneseq
    %v7269 = vshrl.u32 %v7268, 7
    %v7270 = vsub.s32 %v7267, %v7269
    %v7271 = vrot.slane %v7257, %v7270
    %v7272 = vcombine.low %v6586, %v6748
    %v7273 = vcombine.high %v6586, %v6748
    %v7275 = vunpack.c.l.s4 1983009808
    %v7276 = vunpack.c.0.s8 %v7275
    %v7277 = vlaneseq
    %v7278 = vshrl.u32 %v7277, 7
    %v7279 = vsub.s32 %v7276, %v7278
    %v7280 = vrot.slane %v7272, %v7279
    %v7282 = vunpack.c.l.s4 1983009808
    %v7283 = vunpack.c.0.s8 %v7282
    %v7284 = vlaneseq
    %v7285 = vshrl.u32 %v7284, 7
    %v7286 = vsub.s32 %v7283, %v7285
    %v7287 = vrot.slane %v7273, %v7286
    %v7288 = vcombine.low %v6667, %v6829
    %v7289 = vcombine.high %v6667, %v6829
    %v7291 = vunpack.c.l.s4 1983009808
    %v7292 = vunpack.c.0.s8 %v7291
    %v7293 = vlaneseq
    %v7294 = vshrl.u32 %v7293, 7
    %v7295 = vsub.s32 %v7292, %v7294
    %v7296 = vrot.slane %v7288, %v7295
    %v7298 = vunpack.c.l.s4 1983009808
    %v7299 = vunpack.c.0.s8 %v7298
    %v7300 = vlaneseq
    %v7301 = vshrl.u32 %v7300, 7
    %v7302 = vsub.s32 %v7299, %v7301
    %v7303 = vrot.slane %v7289, %v7302
    %v7304 = vcombine.low %v7248, %v7264
    %v7305 = vcombine.high %v7248, %v7264
    %v7307 = vunpack.c.l.s4 1934713408
    %v7308 = vunpack.c.0.s8 %v7307
    %v7309 = vlaneseq
    %v7310 = vshrl.u32 %v7309, 7
    %v7311 = vsub.s32 %v7308, %v7310
    %v7312 = vrot.slane %v7304, %v7311
    %v7314 = vunpack.c.l.s4 1934713408
    %v7315 = vunpack.c.0.s8 %v7314
    %v7316 = vlaneseq
    %v7317 = vshrl.u32 %v7316, 7
    %v7318 = vsub.s32 %v7315, %v7317
    %v7319 = vrot.slane %v7305, %v7318
    %v7320 = vcombine.low %v7255, %v7271
    %v7321 = vcombine.high %v7255, %v7271
    %v7323 = vunpack.c.l.s4 1934713408
    %v7324 = vunpack.c.0.s8 %v7323
    %v7325 = vlaneseq
    %v7326 = vshrl.u32 %v7325, 7
    %v7327 = vsub.s32 %v7324, %v7326
    %v7328 = vrot.slane %v7320, %v7327
    %v7330 = vunpack.c.l.s4 1934713408
    %v7331 = vunpack.c.0.s8 %v7330
    %v7332 = vlaneseq
    %v7333 = vshrl.u32 %v7332, 7
    %v7334 = vsub.s32 %v7331, %v7333
    %v7335 = vrot.slane %v7321, %v7334
    %v7336 = vcombine.low %v7280, %v7296
    %v7337 = vcombine.high %v7280, %v7296
    %v7339 = vunpack.c.l.s4 1934713408
    %v7340 = vunpack.c.0.s8 %v7339
    %v7341 = vlaneseq
    %v7342 = vshrl.u32 %v7341, 7
    %v7343 = vsub.s32 %v7340, %v7342
    %v7344 = vrot.slane %v7336, %v7343
    %v7346 = vunpack.c.l.s4 1934713408
    %v7347 = vunpack.c.0.s8 %v7346
    %v7348 = vlaneseq
    %v7349 = vshrl.u32 %v7348, 7
    %v7350 = vsub.s32 %v7347, %v7349
    %v7351 = vrot.slane %v7337, %v7350
    %v7352 = vcombine.low %v7287, %v7303
    %v7353 = vcombine.high %v7287, %v7303
    %v7355 = vunpack.c.l.s4 1934713408
    %v7356 = vunpack.c.0.s8 %v7355
    %v7357 = vlaneseq
    %v7358 = vshrl.u32 %v7357, 7
    %v7359 = vsub.s32 %v7356, %v7358
    %v7360 = vrot.slane %v7352, %v7359
    %v7362 = vunpack.c.l.s4 1934713408
    %v7363 = vunpack.c.0.s8 %v7362
    %v7364 = vlaneseq
    %v7365 = vshrl.u32 %v7364, 7
    %v7366 = vsub.s32 %v7363, %v7365
    %v7367 = vrot.slane %v7353, %v7366
    %v7368 = vcombine.low %v7312, %v7344
    %v7369 = vcombine.high %v7312, %v7344
    %v7370 = vcombine.low %v7319, %v7351
    %v7371 = vcombine.high %v7319, %v7351
    %v7372 = vcombine.low %v7328, %v7360
    %v7373 = vcombine.high %v7328, %v7360
    %v7374 = vcombine.low %v7335, %v7367
    %v7375 = vcombine.high %v7335, %v7367
    %v7376 = vcombine.low %v6960, %v6962
    %v7377 = vcombine.high %v6960, %v6962
    %v7379 = vunpack.c.l.s4 1983009808
    %v7380 = vunpack.c.0.s8 %v7379
    %v7381 = vlaneseq
    %v7382 = vshrl.u32 %v7381, 7
    %v7383 = vsub.s32 %v7380, %v7382
    %v7384 = vrot.slane %v7376, %v7383
    %v7386 = vunpack.c.l.s4 1983009808
    %v7387 = vunpack.c.0.s8 %v7386
    %v7388 = vlaneseq
    %v7389 = vshrl.u32 %v7388, 7
    %v7390 = vsub.s32 %v7387, %v7389
    %v7391 = vrot.slane %v7377, %v7390
    %v7392 = vcombine.low %v6961, %v6963
    %v7393 = vcombine.high %v6961, %v6963
    %v7395 = vunpack.c.l.s4 1983009808
    %v7396 = vunpack.c.0.s8 %v7395
    %v7397 = vlaneseq
    %v7398 = vshrl.u32 %v7397, 7
    %v7399 = vsub.s32 %v7396, %v7398
    %v7400 = vrot.slane %v7392, %v7399
    %v7402 = vunpack.c.l.s4 1983009808
    %v7403 = vunpack.c.0.s8 %v7402
    %v7404 = vlaneseq
    %v7405 = vshrl.u32 %v7404, 7
    %v7406 = vsub.s32 %v7403, %v7405
    %v7407 = vrot.slane %v7393, %v7406
    %v7408 = vcombine.low %v6964, %v6966
    %v7409 = vcombine.high %v6964, %v6966
    %v7411 = vunpack.c.l.s4 1983009808
    %v7412 = vunpack.c.0.s8 %v7411
    %v7413 = vlaneseq
    %v7414 = vshrl.u32 %v7413, 7
    %v7415 = vsub.s32 %v7412, %v7414
    %v7416 = vrot.slane %v7408, %v7415
    %v7418 = vunpack.c.l.s4 1983009808
    %v7419 = vunpack.c.0.s8 %v7418
    %v7420 = vlaneseq
    %v7421 = vshrl.u32 %v7420, 7
    %v7422 = vsub.s32 %v7419, %v7421
    %v7423 = vrot.slane %v7409, %v7422
    %v7424 = vcombine.low %v6965, %v6967
    %v7425 = vcombine.high %v6965, %v6967
    %v7427 = vunpack.c.l.s4 1983009808
    %v7428 = vunpack.c.0.s8 %v7427
    %v7429 = vlaneseq
    %v7430 = vshrl.u32 %v7429, 7
    %v7431 = vsub.s32 %v7428, %v7430
    %v7432 = vrot.slane %v7424, %v7431
    %v7434 = vunpack.c.l.s4 1983009808
    %v7435 = vunpack.c.0.s8 %v7434
    %v7436 = vlaneseq
    %v7437 = vshrl.u32 %v7436, 7
    %v7438 = vsub.s32 %v7435, %v7437
    %v7439 = vrot.slane %v7425, %v7438
    %v7440 = vcombine.low %v7384, %v7400
    %v7441 = vcombine.high %v7384, %v7400
    %v7443 = vunpack.c.l.s4 1934713408
    %v7444 = vunpack.c.0.s8 %v7443
    %v7445 = vlaneseq
    %v7446 = vshrl.u32 %v7445, 7
    %v7447 = vsub.s32 %v7444, %v7446
    %v7448 = vrot.slane %v7440, %v7447
    %v7450 = vunpack.c.l.s4 1934713408
    %v7451 = vunpack.c.0.s8 %v7450
    %v7452 = vlaneseq
    %v7453 = vshrl.u32 %v7452, 7
    %v7454 = vsub.s32 %v7451, %v7453
    %v7455 = vrot.slane %v7441, %v7454
    %v7456 = vcombine.low %v7391, %v7407
    %v7457 = vcombine.high %v7391, %v7407
    %v7459 = vunpack.c.l.s4 1934713408
    %v7460 = vunpack.c.0.s8 %v7459
    %v7461 = vlaneseq
    %v7462 = vshrl.u32 %v7461, 7
    %v7463 = vsub.s32 %v7460, %v7462
    %v7464 = vrot.slane %v7456, %v7463
    %v7466 = vunpack.c.l.s4 1934713408
    %v7467 = vunpack.c.0.s8 %v7466
    %v7468 = vlaneseq
    %v7469 = vshrl.u32 %v7468, 7
    %v7470 = vsub.s32 %v7467, %v7469
    %v7471 = vrot.slane %v7457, %v7470
    %v7472 = vcombine.low %v7416, %v7432
    %v7473 = vcombine.high %v7416, %v7432
    %v7475 = vunpack.c.l.s4 1934713408
    %v7476 = vunpack.c.0.s8 %v7475
    %v7477 = vlaneseq
    %v7478 = vshrl.u32 %v7477, 7
    %v7479 = vsub.s32 %v7476, %v7478
    %v7480 = vrot.slane %v7472, %v7479
    %v7482 = vunpack.c.l.s4 1934713408
    %v7483 = vunpack.c.0.s8 %v7482
    %v7484 = vlaneseq
    %v7485 = vshrl.u32 %v7484, 7
    %v7486 = vsub.s32 %v7483, %v7485
    %v7487 = vrot.slane %v7473, %v7486
    %v7488 = vcombine.low %v7423, %v7439
    %v7489 = vcombine.high %v7423, %v7439
    %v7491 = vunpack.c.l.s4 1934713408
    %v7492 = vunpack.c.0.s8 %v7491
    %v7493 = vlaneseq
    %v7494 = vshrl.u32 %v7493, 7
    %v7495 = vsub.s32 %v7492, %v7494
    %v7496 = vrot.slane %v7488, %v7495
    %v7498 = vunpack.c.l.s4 1934713408
    %v7499 = vunpack.c.0.s8 %v7498
    %v7500 = vlaneseq
    %v7501 = vshrl.u32 %v7500, 7
    %v7502 = vsub.s32 %v7499, %v7501
    %v7503 = vrot.slane %v7489, %v7502
    %v7504 = vcombine.low %v7448, %v7480
    %v7505 = vcombine.high %v7448, %v7480
    %v7506 = vcombine.low %v7455, %v7487
    %v7507 = vcombine.high %v7455, %v7487
    %v7508 = vcombine.low %v7464, %v7496
    %v7509 = vcombine.high %v7464, %v7496
    %v7510 = vcombine.low %v7471, %v7503
    %v7511 = vcombine.high %v7471, %v7503
    %v7512 = vcombine.low %v7096, %v7098
    %v7513 = vcombine.high %v7096, %v7098
    %v7515 = vunpack.c.l.s4 1983009808
    %v7516 = vunpack.c.0.s8 %v7515
    %v7517 = vlaneseq
    %v7518 = vshrl.u32 %v7517, 7
    %v7519 = vsub.s32 %v7516, %v7518
    %v7520 = vrot.slane %v7512, %v7519
    %v7522 = vunpack.c.l.s4 1983009808
    %v7523 = vunpack.c.0.s8 %v7522
    %v7524 = vlaneseq
    %v7525 = vshrl.u32 %v7524, 7
    %v7526 = vsub.s32 %v7523, %v7525
    %v7527 = vrot.slane %v7513, %v7526
    %v7528 = vcombine.low %v7097, %v7099
    %v7529 = vcombine.high %v7097, %v7099
    %v7531 = vunpack.c.l.s4 1983009808
    %v7532 = vunpack.c.0.s8 %v7531
    %v7533 = vlaneseq
    %v7534 = vshrl.u32 %v7533, 7
    %v7535 = vsub.s32 %v7532, %v7534
    %v7536 = vrot.slane %v7528, %v7535
    %v7538 = vunpack.c.l.s4 1983009808
    %v7539 = vunpack.c.0.s8 %v7538
    %v7540 = vlaneseq
    %v7541 = vshrl.u32 %v7540, 7
    %v7542 = vsub.s32 %v7539, %v7541
    %v7543 = vrot.slane %v7529, %v7542
    %v7544 = vcombine.low %v7100, %v7102
    %v7545 = vcombine.high %v7100, %v7102
    %v7547 = vunpack.c.l.s4 1983009808
    %v7548 = vunpack.c.0.s8 %v7547
    %v7549 = vlaneseq
    %v7550 = vshrl.u32 %v7549, 7
    %v7551 = vsub.s32 %v7548, %v7550
    %v7552 = vrot.slane %v7544, %v7551
    %v7554 = vunpack.c.l.s4 1983009808
    %v7555 = vunpack.c.0.s8 %v7554
    %v7556 = vlaneseq
    %v7557 = vshrl.u32 %v7556, 7
    %v7558 = vsub.s32 %v7555, %v7557
    %v7559 = vrot.slane %v7545, %v7558
    %v7560 = vcombine.low %v7101, %v7103
    %v7561 = vcombine.high %v7101, %v7103
    %v7563 = vunpack.c.l.s4 1983009808
    %v7564 = vunpack.c.0.s8 %v7563
    %v7565 = vlaneseq
    %v7566 = vshrl.u32 %v7565, 7
    %v7567 = vsub.s32 %v7564, %v7566
    %v7568 = vrot.slane %v7560, %v7567
    %v7570 = vunpack.c.l.s4 1983009808
    %v7571 = vunpack.c.0.s8 %v7570
    %v7572 = vlaneseq
    %v7573 = vshrl.u32 %v7572, 7
    %v7574 = vsub.s32 %v7571, %v7573
    %v7575 = vrot.slane %v7561, %v7574
    %v7576 = vcombine.low %v7520, %v7536
    %v7577 = vcombine.high %v7520, %v7536
    %v7579 = vunpack.c.l.s4 1934713408
    %v7580 = vunpack.c.0.s8 %v7579
    %v7581 = vlaneseq
    %v7582 = vshrl.u32 %v7581, 7
    %v7583 = vsub.s32 %v7580, %v7582
    %v7584 = vrot.slane %v7576, %v7583
    %v7586 = vunpack.c.l.s4 1934713408
    %v7587 = vunpack.c.0.s8 %v7586
    %v7588 = vlaneseq
    %v7589 = vshrl.u32 %v7588, 7
    %v7590 = vsub.s32 %v7587, %v7589
    %v7591 = vrot.slane %v7577, %v7590
    %v7592 = vcombine.low %v7527, %v7543
    %v7593 = vcombine.high %v7527, %v7543
    %v7595 = vunpack.c.l.s4 1934713408
    %v7596 = vunpack.c.0.s8 %v7595
    %v7597 = vlaneseq
    %v7598 = vshrl.u32 %v7597, 7
    %v7599 = vsub.s32 %v7596, %v7598
    %v7600 = vrot.slane %v7592, %v7599
    %v7602 = vunpack.c.l.s4 1934713408
    %v7603 = vunpack.c.0.s8 %v7602
    %v7604 = vlaneseq
    %v7605 = vshrl.u32 %v7604, 7
    %v7606 = vsub.s32 %v7603, %v7605
    %v7607 = vrot.slane %v7593, %v7606
    %v7608 = vcombine.low %v7552, %v7568
    %v7609 = vcombine.high %v7552, %v7568
    %v7611 = vunpack.c.l.s4 1934713408
    %v7612 = vunpack.c.0.s8 %v7611
    %v7613 = vlaneseq
    %v7614 = vshrl.u32 %v7613, 7
    %v7615 = vsub.s32 %v7612, %v7614
    %v7616 = vrot.slane %v7608, %v7615
    %v7618 = vunpack.c.l.s4 1934713408
    %v7619 = vunpack.c.0.s8 %v7618
    %v7620 = vlaneseq
    %v7621 = vshrl.u32 %v7620, 7
    %v7622 = vsub.s32 %v7619, %v7621
    %v7623 = vrot.slane %v7609, %v7622
    %v7624 = vcombine.low %v7559, %v7575
    %v7625 = vcombine.high %v7559, %v7575
    %v7627 = vunpack.c.l.s4 1934713408
    %v7628 = vunpack.c.0.s8 %v7627
    %v7629 = vlaneseq
    %v7630 = vshrl.u32 %v7629, 7
    %v7631 = vsub.s32 %v7628, %v7630
    %v7632 = vrot.slane %v7624, %v7631
    %v7634 = vunpack.c.l.s4 1934713408
    %v7635 = vunpack.c.0.s8 %v7634
    %v7636 = vlaneseq
    %v7637 = vshrl.u32 %v7636, 7
    %v7638 = vsub.s32 %v7635, %v7637
    %v7639 = vrot.slane %v7625, %v7638
    %v7640 = vcombine.low %v7584, %v7616
    %v7641 = vcombine.high %v7584, %v7616
    %v7642 = vcombine.low %v7591, %v7623
    %v7643 = vcombine.high %v7591, %v7623
    %v7644 = vcombine.low %v7600, %v7632
    %v7645 = vcombine.high %v7600, %v7632
    %v7646 = vcombine.low %v7607, %v7639
    %v7647 = vcombine.high %v7607, %v7639
    %v7648 = vcombine.low %v7232, %v7234
    %v7649 = vcombine.high %v7232, %v7234
    %v7651 = vunpack.c.l.s4 1983009808
    %v7652 = vunpack.c.0.s8 %v7651
    %v7653 = vlaneseq
    %v7654 = vshrl.u32 %v7653, 7
    %v7655 = vsub.s32 %v7652, %v7654
    %v7656 = vrot.slane %v7648, %v7655
    %v7658 = vunpack.c.l.s4 1983009808
    %v7659 = vunpack.c.0.s8 %v7658
    %v7660 = vlaneseq
    %v7661 = vshrl.u32 %v7660, 7
    %v7662 = vsub.s32 %v7659, %v7661
    %v7663 = vrot.slane %v7649, %v7662
    %v7664 = vcombine.low %v7233, %v7235
    %v7665 = vcombine.high %v7233, %v7235
    %v7667 = vunpack.c.l.s4 1983009808
    %v7668 = vunpack.c.0.s8 %v7667
    %v7669 = vlaneseq
    %v7670 = vshrl.u32 %v7669, 7
    %v7671 = vsub.s32 %v7668, %v7670
    %v7672 = vrot.slane %v7664, %v7671
    %v7674 = vunpack.c.l.s4 1983009808
    %v7675 = vunpack.c.0.s8 %v7674
    %v7676 = vlaneseq
    %v7677 = vshrl.u32 %v7676, 7
    %v7678 = vsub.s32 %v7675, %v7677
    %v7679 = vrot.slane %v7665, %v7678
    %v7680 = vcombine.low %v7236, %v7238
    %v7681 = vcombine.high %v7236, %v7238
    %v7683 = vunpack.c.l.s4 1983009808
    %v7684 = vunpack.c.0.s8 %v7683
    %v7685 = vlaneseq
    %v7686 = vshrl.u32 %v7685, 7
    %v7687 = vsub.s32 %v7684, %v7686
    %v7688 = vrot.slane %v7680, %v7687
    %v7690 = vunpack.c.l.s4 1983009808
    %v7691 = vunpack.c.0.s8 %v7690
    %v7692 = vlaneseq
    %v7693 = vshrl.u32 %v7692, 7
    %v7694 = vsub.s32 %v7691, %v7693
    %v7695 = vrot.slane %v7681, %v7694
    %v7696 = vcombine.low %v7237, %v7239
    %v7697 = vcombine.high %v7237, %v7239
    %v7699 = vunpack.c.l.s4 1983009808
    %v7700 = vunpack.c.0.s8 %v7699
    %v7701 = vlaneseq
    %v7702 = vshrl.u32 %v7701, 7
    %v7703 = vsub.s32 %v7700, %v7702
    %v7704 = vrot.slane %v7696, %v7703
    %v7706 = vunpack.c.l.s4 1983009808
    %v7707 = vunpack.c.0.s8 %v7706
    %v7708 = vlaneseq
    %v7709 = vshrl.u32 %v7708, 7
    %v7710 = vsub.s32 %v7707, %v7709
    %v7711 = vrot.slane %v7697, %v7710
    %v7712 = vcombine.low %v7656, %v7672
    %v7713 = vcombine.high %v7656, %v7672
    %v7715 = vunpack.c.l.s4 1934713408
    %v7716 = vunpack.c.0.s8 %v7715
    %v7717 = vlaneseq
    %v7718 = vshrl.u32 %v7717, 7
    %v7719 = vsub.s32 %v7716, %v7718
    %v7720 = vrot.slane %v7712, %v7719
    %v7722 = vunpack.c.l.s4 1934713408
    %v7723 = vunpack.c.0.s8 %v7722
    %v7724 = vlaneseq
    %v7725 = vshrl.u32 %v7724, 7
    %v7726 = vsub.s32 %v7723, %v7725
    %v7727 = vrot.slane %v7713, %v7726
    %v7728 = vcombine.low %v7663, %v7679
    %v7729 = vcombine.high %v7663, %v7679
    %v7731 = vunpack.c.l.s4 1934713408
    %v7732 = vunpack.c.0.s8 %v7731
    %v7733 = vlaneseq
    %v7734 = vshrl.u32 %v7733, 7
    %v7735 = vsub.s32 %v7732, %v7734
    %v7736 = vrot.slane %v7728, %v7735
    %v7738 = vunpack.c.l.s4 1934713408
    %v7739 = vunpack.c.0.s8 %v7738
    %v7740 = vlaneseq
    %v7741 = vshrl.u32 %v7740, 7
    %v7742 = vsub.s32 %v7739, %v7741
    %v7743 = vrot.slane %v7729, %v7742
    %v7744 = vcombine.low %v7688, %v7704
    %v7745 = vcombine.high %v7688, %v7704
    %v7747 = vunpack.c.l.s4 1934713408
    %v7748 = vunpack.c.0.s8 %v7747
    %v7749 = vlaneseq
    %v7750 = vshrl.u32 %v7749, 7
    %v7751 = vsub.s32 %v7748, %v7750
    %v7752 = vrot.slane %v7744, %v7751
    %v7754 = vunpack.c.l.s4 1934713408
    %v7755 = vunpack.c.0.s8 %v7754
    %v7756 = vlaneseq
    %v7757 = vshrl.u32 %v7756, 7
    %v7758 = vsub.s32 %v7755, %v7757
    %v7759 = vrot.slane %v7745, %v7758
    %v7760 = vcombine.low %v7695, %v7711
    %v7761 = vcombine.high %v7695, %v7711
    %v7763 = vunpack.c.l.s4 1934713408
    %v7764 = vunpack.c.0.s8 %v7763
    %v7765 = vlaneseq
    %v7766 = vshrl.u32 %v7765, 7
    %v7767 = vsub.s32 %v7764, %v7766
    %v7768 = vrot.slane %v7760, %v7767
    %v7770 = vunpack.c.l.s4 1934713408
    %v7771 = vunpack.c.0.s8 %v7770
    %v7772 = vlaneseq
    %v7773 = vshrl.u32 %v7772, 7
    %v7774 = vsub.s32 %v7771, %v7773
    %v7775 = vrot.slane %v7761, %v7774
    %v7776 = vcombine.low %v7720, %v7752
    %v7777 = vcombine.high %v7720, %v7752
    %v7778 = vcombine.low %v7727, %v7759
    %v7779 = vcombine.high %v7727, %v7759
    %v7780 = vcombine.low %v7736, %v7768
    %v7781 = vcombine.high %v7736, %v7768
    %v7782 = vcombine.low %v7743, %v7775
    %v7783 = vcombine.high %v7743, %v7775
    %v7784 = vcombine.low %v7368, %v7370
    %v7785 = vcombine.high %v7368, %v7370
    %v7787 = vunpack.c.l.s4 1983009808
    %v7788 = vunpack.c.0.s8 %v7787
    %v7789 = vlaneseq
    %v7790 = vshrl.u32 %v7789, 7
    %v7791 = vsub.s32 %v7788, %v7790
    %v7792 = vrot.slane %v7784, %v7791
    %v7794 = vunpack.c.l.s4 1983009808
    %v7795 = vunpack.c.0.s8 %v7794
    %v7796 = vlaneseq
    %v7797 = vshrl.u32 %v7796, 7
    %v7798 = vsub.s32 %v7795, %v7797
    %v7799 = vrot.slane %v7785, %v7798
    %v7800 = vcombine.low %v7369, %v7371
    %v7801 = vcombine.high %v7369, %v7371
    %v7803 = vunpack.c.l.s4 1983009808
    %v7804 = vunpack.c.0.s8 %v7803
    %v7805 = vlaneseq
    %v7806 = vshrl.u32 %v7805, 7
    %v7807 = vsub.s32 %v7804, %v7806
    %v7808 = vrot.slane %v7800, %v7807
    %v7810 = vunpack.c.l.s4 1983009808
    %v7811 = vunpack.c.0.s8 %v7810
    %v7812 = vlaneseq
    %v7813 = vshrl.u32 %v7812, 7
    %v7814 = vsub.s32 %v7811, %v7813
    %v7815 = vrot.slane %v7801, %v7814
    %v7816 = vcombine.low %v7372, %v7374
    %v7817 = vcombine.high %v7372, %v7374
    %v7819 = vunpack.c.l.s4 1983009808
    %v7820 = vunpack.c.0.s8 %v7819
    %v7821 = vlaneseq
    %v7822 = vshrl.u32 %v7821, 7
    %v7823 = vsub.s32 %v7820, %v7822
    %v7824 = vrot.slane %v7816, %v7823
    %v7826 = vunpack.c.l.s4 1983009808
    %v7827 = vunpack.c.0.s8 %v7826
    %v7828 = vlaneseq
    %v7829 = vshrl.u32 %v7828, 7
    %v7830 = vsub.s32 %v7827, %v7829
    %v7831 = vrot.slane %v7817, %v7830
    %v7832 = vcombine.low %v7373, %v7375
    %v7833 = vcombine.high %v7373, %v7375
    %v7835 = vunpack.c.l.s4 1983009808
    %v7836 = vunpack.c.0.s8 %v7835
    %v7837 = vlaneseq
    %v7838 = vshrl.u32 %v7837, 7
    %v7839 = vsub.s32 %v7836, %v7838
    %v7840 = vrot.slane %v7832, %v7839
    %v7842 = vunpack.c.l.s4 1983009808
    %v7843 = vunpack.c.0.s8 %v7842
    %v7844 = vlaneseq
    %v7845 = vshrl.u32 %v7844, 7
    %v7846 = vsub.s32 %v7843, %v7845
    %v7847 = vrot.slane %v7833, %v7846
    %v7848 = vcombine.low %v7792, %v7808
    %v7849 = vcombine.high %v7792, %v7808
    %v7851 = vunpack.c.l.s4 1934713408
    %v7852 = vunpack.c.0.s8 %v7851
    %v7853 = vlaneseq
    %v7854 = vshrl.u32 %v7853, 7
    %v7855 = vsub.s32 %v7852, %v7854
    %v7856 = vrot.slane %v7848, %v7855
    %v7858 = vunpack.c.l.s4 1934713408
    %v7859 = vunpack.c.0.s8 %v7858
    %v7860 = vlaneseq
    %v7861 = vshrl.u32 %v7860, 7
    %v7862 = vsub.s32 %v7859, %v7861
    %v7863 = vrot.slane %v7849, %v7862
    %v7864 = vcombine.low %v7799, %v7815
    %v7865 = vcombine.high %v7799, %v7815
    %v7867 = vunpack.c.l.s4 1934713408
    %v7868 = vunpack.c.0.s8 %v7867
    %v7869 = vlaneseq
    %v7870 = vshrl.u32 %v7869, 7
    %v7871 = vsub.s32 %v7868, %v7870
    %v7872 = vrot.slane %v7864, %v7871
    %v7874 = vunpack.c.l.s4 1934713408
    %v7875 = vunpack.c.0.s8 %v7874
    %v7876 = vlaneseq
    %v7877 = vshrl.u32 %v7876, 7
    %v7878 = vsub.s32 %v7875, %v7877
    %v7879 = vrot.slane %v7865, %v7878
    %v7880 = vcombine.low %v7824, %v7840
    %v7881 = vcombine.high %v7824, %v7840
    %v7883 = vunpack.c.l.s4 1934713408
    %v7884 = vunpack.c.0.s8 %v7883
    %v7885 = vlaneseq
    %v7886 = vshrl.u32 %v7885, 7
    %v7887 = vsub.s32 %v7884, %v7886
    %v7888 = vrot.slane %v7880, %v7887
    %v7890 = vunpack.c.l.s4 1934713408
    %v7891 = vunpack.c.0.s8 %v7890
    %v7892 = vlaneseq
    %v7893 = vshrl.u32 %v7892, 7
    %v7894 = vsub.s32 %v7891, %v7893
    %v7895 = vrot.slane %v7881, %v7894
    %v7896 = vcombine.low %v7831, %v7847
    %v7897 = vcombine.high %v7831, %v7847
    %v7899 = vunpack.c.l.s4 1934713408
    %v7900 = vunpack.c.0.s8 %v7899
    %v7901 = vlaneseq
    %v7902 = vshrl.u32 %v7901, 7
    %v7903 = vsub.s32 %v7900, %v7902
    %v7904 = vrot.slane %v7896, %v7903
    %v7906 = vunpack.c.l.s4 1934713408
    %v7907 = vunpack.c.0.s8 %v7906
    %v7908 = vlaneseq
    %v7909 = vshrl.u32 %v7908, 7
    %v7910 = vsub.s32 %v7907, %v7909
    %v7911 = vrot.slane %v7897, %v7910
    %v7912 = vcombine.low %v7856, %v7888
    %v7913 = vcombine.high %v7856, %v7888
    %v7914 = vcombine.low %v7863, %v7895
    %v7915 = vcombine.high %v7863, %v7895
    %v7916 = vcombine.low %v7872, %v7904
    %v7917 = vcombine.high %v7872, %v7904
    %v7918 = vcombine.low %v7879, %v7911
    %v7919 = vcombine.high %v7879, %v7911
    %7924 = vrot.lane.b32.xlu0 %v7505, 4
    %v7925 = vpop.permute.xlu0 %7924
    %7926 = vrot.lane.b32.xlu0 %v7641, 4
    %v7927 = vpop.permute.xlu0 %7926
    %7928 = vrot.lane.b32.xlu0 %v7777, 4
    %v7929 = vpop.permute.xlu0 %7928
    %7930 = vrot.lane.b32.xlu0 %v7913, 4
    %v7931 = vpop.permute.xlu0 %7930
    %7940 = vrot.lane.b32.xlu0 %v7506, 8
    %v7941 = vpop.permute.xlu0 %7940
    %7942 = vrot.lane.b32.xlu0 %v7642, 8
    %v7943 = vpop.permute.xlu0 %7942
    %7944 = vrot.lane.b32.xlu0 %v7778, 8
    %v7945 = vpop.permute.xlu0 %7944
    %7946 = vrot.lane.b32.xlu0 %v7914, 8
    %v7947 = vpop.permute.xlu0 %7946
    %7956 = vrot.lane.b32.xlu0 %v7507, 12
    %v7957 = vpop.permute.xlu0 %7956
    %7958 = vrot.lane.b32.xlu0 %v7643, 12
    %v7959 = vpop.permute.xlu0 %7958
    %7960 = vrot.lane.b32.xlu0 %v7779, 12
    %v7961 = vpop.permute.xlu0 %7960
    %7962 = vrot.lane.b32.xlu0 %v7915, 12
    %v7963 = vpop.permute.xlu0 %7962
    %7972 = vrot.lane.b32.xlu0 %v7508, 16
    %v7973 = vpop.permute.xlu0 %7972
    %7974 = vrot.lane.b32.xlu0 %v7644, 16
    %v7975 = vpop.permute.xlu0 %7974
    %7976 = vrot.lane.b32.xlu0 %v7780, 16
    %v7977 = vpop.permute.xlu0 %7976
    %7978 = vrot.lane.b32.xlu0 %v7916, 16
    %v7979 = vpop.permute.xlu0 %7978
    %7988 = vrot.lane.b32.xlu0 %v7509, 20
    %v7989 = vpop.permute.xlu0 %7988
    %7990 = vrot.lane.b32.xlu0 %v7645, 20
    %v7991 = vpop.permute.xlu0 %7990
    %7992 = vrot.lane.b32.xlu0 %v7781, 20
    %v7993 = vpop.permute.xlu0 %7992
    %7994 = vrot.lane.b32.xlu0 %v7917, 20
    %v7995 = vpop.permute.xlu0 %7994
    %8004 = vrot.lane.b32.xlu0 %v7510, 24
    %v8005 = vpop.permute.xlu0 %8004
    %8006 = vrot.lane.b32.xlu0 %v7646, 24
    %v8007 = vpop.permute.xlu0 %8006
    %8008 = vrot.lane.b32.xlu0 %v7782, 24
    %v8009 = vpop.permute.xlu0 %8008
    %8010 = vrot.lane.b32.xlu0 %v7918, 24
    %v8011 = vpop.permute.xlu0 %8010
    %8020 = vrot.lane.b32.xlu0 %v7511, 28
    %v8021 = vpop.permute.xlu0 %8020
    %8022 = vrot.lane.b32.xlu0 %v7647, 28
    %v8023 = vpop.permute.xlu0 %8022
    %8024 = vrot.lane.b32.xlu0 %v7783, 28
    %v8025 = vpop.permute.xlu0 %8024
    %8026 = vrot.lane.b32.xlu0 %v7919, 28
    %v8027 = vpop.permute.xlu0 %8026
    %vm8032 = vcmask 31744
    %v8033 = vsel %vm8032, %v7504, %v7925
    %v8034 = vsel %vm8032, %v7640, %v7927
    %v8035 = vsel %vm8032, %v7776, %v7929
    %v8036 = vsel %vm8032, %v7912, %v7931
    %vm8037 = vcmask 64512
    %v8038 = vsel %vm8037, %v8033, %v7941
    %v8039 = vsel %vm8037, %v8034, %v7943
    %v8040 = vsel %vm8037, %v8035, %v7945
    %v8041 = vsel %vm8037, %v8036, %v7947
    %vm8042 = vcmask 97280
    %v8043 = vsel %vm8042, %v8038, %v7957
    %v8044 = vsel %vm8042, %v8039, %v7959
    %v8045 = vsel %vm8042, %v8040, %v7961
    %v8046 = vsel %vm8042, %v8041, %v7963
    %v8047 = vsel %vm3791, %v8043, %v7973
    %v8048 = vsel %vm3791, %v8044, %v7975
    %v8049 = vsel %vm3791, %v8045, %v7977
    %v8050 = vsel %vm3791, %v8046, %v7979
    %vm8051 = vcmask 162816
    %v8052 = vsel %vm8051, %v8047, %v7989
    %v8053 = vsel %vm8051, %v8048, %v7991
    %v8054 = vsel %vm8051, %v8049, %v7993
    %v8055 = vsel %vm8051, %v8050, %v7995
    %vm8056 = vcmask 195584
    %v8057 = vsel %vm8056, %v8052, %v8005
    %v8058 = vsel %vm8056, %v8053, %v8007
    %v8059 = vsel %vm8056, %v8054, %v8009
    %v8060 = vsel %vm8056, %v8055, %v8011
    %vm8061 = vcmask 228352
    %v8062 = vsel %vm8061, %v8057, %v8021
    %v8063 = vsel %vm8061, %v8058, %v8023
    %v8064 = vsel %vm8061, %v8059, %v8025
    %v8065 = vsel %vm8061, %v8060, %v8027
    %8066 = vst.msk [vmem:[#allocation7] sm:$0xff] %vm76, %v8062
    %8067 = vst.msk [vmem:[#allocation7 + $0x8] sm:$0xff] %vm76, %v8063
    %8068 = vst.msk [vmem:[#allocation7 + $0x10] sm:$0xff] %vm76, %v8064
    %8069 = vst.msk [vmem:[#allocation7 + $0x18] sm:$0xff] %vm76, %v8065
    // Predicated region
    $region22: #{tpu_custom_call.1} parent=1 // pred_check
      _
    $region23: #{tpu_custom_call.1} parent=1 // pred_check_branch
      %8071 = sbr.rel (0) target = $region25
    $region24: #{tpu_custom_call.1} parent=1 // pred_region
      %s8073 = ssub.s32 512, 512
      %8074 = vsyncadd [#allocation4], %s8073
      %s8075 = sshll.u32 [#allocation7], 4
      %s8076 = int_to_ptr.vmem [resolvable:$true] %s8075
      %8081 = dma.vmem_to_hbm [thread:$0]  %s8076, 512, %s3, [#allocation4], 128, 128, 8
    $region25: #{tpu_custom_call.1} parent=1 // pred_fallthru
      _
    // Predicated region
    $region26: #{tpu_custom_call.1} parent=1 // pred_check
      _
    $region27: #{tpu_custom_call.1} parent=1 // pred_check_branch
      %8083 = sbr.rel (0) target = $region29
    $region28: #{tpu_custom_call.1} parent=1 // pred_region
      %8084 = dma.done [#allocation4], 512
    $region29: #{tpu_custom_call.1} parent=1 // pred_fallthru
      _
    %8085 = vsyncpa [#allocation3], 1
    %8086 = vsyncpa [#allocation6], 1
    %8087 = vsyncpa [#allocation4], 1

</llo_original>
